<compile_context>
chip_gen: v7x
topology: tpu7x:2x2x1
jax: 0.10.0
libtpu: 0.0.40
codegen_flags: <defaults>
</compile_context>

<pallas_src>
import math

import jax
import jax.numpy as jnp
from jax.experimental import pallas as pl
from jax.experimental.pallas import tpu as pltpu

D_MODEL = 128
N_HEADS = 16
HEAD_DIM = D_MODEL // N_HEADS          # 8
DIM_FF = 256
NUM_LAYERS = 4
LN_EPS = 1e-5                          # torch.nn.LayerNorm default
NEG_INF = -1e20                        # masked_fill value in the reference


# ------------------------------ fused Pallas kernel ------------------------------

def _encoder_kernel(s1_ref, s2_ref, mz0_ref, mz1_ref,
                    cat_wqkv_ref, cat_bqkv_ref, cat_wo_ref, cat_bo_ref,
                    wqkv_ref, bqkv_ref, wo_ref, bo_ref,
                    w1_ref, b1_ref, w2_ref, b2_ref,
                    lng_ref, lnb_ref,
                    o_ref):
    L = s1_ref.shape[1]
    D, H, hd = D_MODEL, N_HEADS, HEAD_DIM
    scale = 1.0 / math.sqrt(hd)
    one = jnp.float32(1.0)
    zero = jnp.float32(0.0)

    # Head bookkeeping matrices, built once and shared by every attention in the kernel.
    #   reduce_mat[c, h] = 1 iff lane c belongs to head h   (D, H)
    #   expand_mat[h, c] = 1 iff lane c belongs to head h   (H, D)
    c_r = jax.lax.broadcasted_iota(jnp.int32, (D, H), 0)
    h_r = jax.lax.broadcasted_iota(jnp.int32, (D, H), 1)
    reduce_mat = jnp.where(
        jnp.logical_and(c_r >= h_r * hd, c_r < (h_r + 1) * hd), one, zero)
    h_e = jax.lax.broadcasted_iota(jnp.int32, (H, D), 0)
    c_e = jax.lax.broadcasted_iota(jnp.int32, (H, D), 1)
    expand_mat = jnp.where(
        jnp.logical_and(c_e >= h_e * hd, c_e < (h_e + 1) * hd), one, zero)

    s1 = s1_ref[0]                       # (L, D)
    s2 = s2_ref[0]                       # (L, D)
    mz0 = mz0_ref[0]                     # (L*L, 1)  1.0 where mask == 0
    mz1 = mz1_ref[0]

    def attention(q_in, kv_in, mz, wqkv, bqkv, wo, bo):
        # Fused QKV projection: one (L,128)x(128,384) MXU pass per distinct input.
        proj_q = jnp.dot(q_in, wqkv, preferred_element_type=jnp.float32) + bqkv
        proj_kv = proj_q if q_in is kv_in else (
            jnp.dot(kv_in, wqkv, preferred_element_type=jnp.float32) + bqkv)
        q = proj_q[:, 0:D] * scale       # heads live on contiguous 8-lane blocks
        k = proj_kv[:, D:2 * D]
        v = proj_kv[:, 2 * D:3 * D]

        # energy[q,k,h] = sum_d Q[q,h,d] K[k,h,d] / sqrt(hd):
        # elementwise outer product + ONE block-diagonal matmul (no per-head K=8 matmuls).
        prod = (q[:, None, :] * k[None, :, :]).reshape(L * L, D)                 # (L*L, D)
        energy = jnp.dot(prod, reduce_mat, preferred_element_type=jnp.float32)   # (L*L, H)
        energy = jnp.where(mz > 0.0, jnp.float32(NEG_INF), energy)               # masked_fill

        # softmax over the HEAD axis (torch dim=1), faithful to the reference.
        emax = jnp.max(energy, axis=-1, keepdims=True)
        p = jnp.exp(energy - emax)
        attn = p * pl.reciprocal(jnp.sum(p, axis=-1, keepdims=True), approx=True)

        # out[q, c] = sum_k attn[q, k, head(c)] * V[k, c]   (heads merged -> lane dense)
        attn_lanes = jnp.dot(attn, expand_mat, preferred_element_type=jnp.float32)  # (L*L, D)
        ctx = jnp.sum(attn_lanes.reshape(L, L, D) * v[None, :, :], axis=1)          # (L, D)
        return jnp.dot(ctx, wo, preferred_element_type=jnp.float32) + bo

    def layer_norm(x, gamma, beta):
        mu = jnp.mean(x, axis=-1, keepdims=True)
        var = jnp.mean((x - mu) ** 2, axis=-1, keepdims=True)
        return (x - mu) * jax.lax.rsqrt(var + LN_EPS) * gamma + beta

    # attnCat = catAttn(sent1, sent2, sent2, mask[0]); stays resident for every layer.
    attn_cat = attention(s1, s2, mz0,
                         cat_wqkv_ref[...], cat_bqkv_ref[...],
                         cat_wo_ref[...], cat_bo_ref[...])

    x = s1
    for l in range(NUM_LAYERS):          # static unroll; weights are VMEM-resident
        lng = lng_ref[l]                 # (3, D)
        lnb = lnb_ref[l]
        sa = attention(x, x, mz1, wqkv_ref[l], bqkv_ref[l], wo_ref[l], bo_ref[l])
        x = layer_norm(x + sa, lng[0:1, :], lnb[0:1, :])
        x = layer_norm(x + attn_cat, lng[1:2, :], lnb[1:2, :])
        h = jnp.dot(x, w1_ref[l], preferred_element_type=jnp.float32) + b1_ref[l]
        h = jnp.maximum(h, 0.0)          # F.relu_
        f = jnp.dot(h, w2_ref[l], preferred_element_type=jnp.float32) + b2_ref[l]
        x = layer_norm(x + f, lng[2:3, :], lnb[2:3, :])

    o_ref[0] = x


# ------------------------------ wrapper ------------------------------

def _batch_spec(shape):
    nd = len(shape)

    def imap(b):
        return (b,) + (0,) * (nd - 1)

    return pl.BlockSpec((1,) + tuple(shape[1:]), imap)


def _resident_spec(shape):
    nd = len(shape)

    def imap(b):
        return (0,) * nd

    return pl.BlockSpec(tuple(shape), imap)


def transformer_encoder(sent1, sent2, masks, params):
    B, L, D = sent1.shape
    mask0, mask1 = masks
    # `mask == 0` evaluated once and reused by the cat attention and all layers;
    # pre-flattened to the (L*L, 1) shape the kernel consumes directly.
    mz0 = (mask0 == 0).astype(jnp.float32).reshape(B, L * L, 1)
    mz1 = (mask1 == 0).astype(jnp.float32).reshape(B, L * L, 1)

    cat = params['cat_attn']
    lay = params['layers']
    args = (sent1, sent2, mz0, mz1,
            cat['wqkv'], cat['bqkv'], cat['wo'], cat['bo'],
            lay['wqkv'], lay['bqkv'], lay['wo'], lay['bo'],
            lay['w1'], lay['b1'], lay['w2'], lay['b2'],
            lay['ln_g'], lay['ln_b'])

    in_specs = [_batch_spec(a.shape) for a in args[:4]]
    in_specs += [_resident_spec(a.shape) for a in args[4:]]

    return pl.pallas_call(
        _encoder_kernel,
        grid=(B,),
        in_specs=in_specs,
        out_specs=_batch_spec((B, L, D)),
        out_shape=jax.ShapeDtypeStruct((B, L, D), jnp.float32),
        compiler_params=pltpu.CompilerParams(
            dimension_semantics=("parallel",)),
    )(*args)


# ------------------------------ parameter init ------------------------------

def _init_linear(key, d_in, d_out):
    kw, kb = jax.random.split(key)
    bound = 1.0 / math.sqrt(d_in)
    w = jax.random.uniform(kw, (d_in, d_out), jnp.float32, -bound, bound)
    b = jax.random.uniform(kb, (d_out,), jnp.float32, -bound, bound)
    return w, b


def _init_attn(key):
    kq, kk, kv, ko = jax.random.split(key, 4)
    wq, bq = _init_linear(kq, D_MODEL, D_MODEL)
    wk, bk = _init_linear(kk, D_MODEL, D_MODEL)
    wv, bv = _init_linear(kv, D_MODEL, D_MODEL)
    wo, bo = _init_linear(ko, D_MODEL, D_MODEL)
    return {
        'wqkv': jnp.concatenate([wq, wk, wv], axis=1),               # (D, 3D)
        'bqkv': jnp.concatenate([bq, bk, bv]).reshape(1, 3 * D_MODEL),
        'wo': wo, 'bo': bo.reshape(1, D_MODEL),
    }


def _init_layer(key):
    k_attn, k_f1, k_f2 = jax.random.split(key, 3)
    attn = _init_attn(k_attn)
    w1, b1 = _init_linear(k_f1, D_MODEL, DIM_FF)
    w2, b2 = _init_linear(k_f2, DIM_FF, D_MODEL)
    return {
        'wqkv': attn['wqkv'], 'bqkv': attn['bqkv'],
        'wo': attn['wo'], 'bo': attn['bo'],
        'w1': w1, 'b1': b1.reshape(1, DIM_FF),
        'w2': w2, 'b2': b2.reshape(1, D_MODEL),
        'ln_g': jnp.ones((3, D_MODEL), jnp.float32),
        'ln_b': jnp.zeros((3, D_MODEL), jnp.float32),
    }


def init_params(key):
    k_cat, *k_layers = jax.random.split(key, 1 + NUM_LAYERS)
    layers = [_init_layer(k) for k in k_layers]
    stacked = {name: jnp.stack([lp[name] for lp in layers]) for name in layers[0]}
    return {'cat_attn': _init_attn(k_cat), 'layers': stacked}


# ------------------------------ main ------------------------------

if __name__ == "__main__":
    key = jax.random.PRNGKey(0)
    k_params, k_s1, k_s2 = jax.random.split(key, 3)

    B, L = 2, 8
    params = init_params(k_params)
    sent1 = jax.random.normal(k_s1, (B, L, D_MODEL), jnp.float32)
    sent2 = jax.random.normal(k_s2, (B, L, D_MODEL), jnp.float32)
    mask0 = jnp.ones((B, L, L), jnp.float32)   # mask for catAttn (sent1 x sent2)
    mask1 = jnp.ones((B, L, L), jnp.float32)   # mask for encoder layers

    out = jax.jit(transformer_encoder)(sent1, sent2, (mask0, mask1), params)
    out = jax.block_until_ready(out)
    assert out.shape == (B, L, D_MODEL) and bool(jnp.all(jnp.isfinite(out)))
    print("KERNEL_OK")
</pallas_src>

<mosaic_0001>
module attributes {stable_mosaic.version = 11 : i64} {
  func.func @_encoder_kernel(%arg0: i32, %arg1: memref<1x8x128xf32, #tpu.memory_space<vmem>>, %arg2: memref<1x8x128xf32, #tpu.memory_space<vmem>>, %arg3: memref<1x64x1xf32, #tpu.memory_space<vmem>>, %arg4: memref<1x64x1xf32, #tpu.memory_space<vmem>>, %arg5: memref<128x384xf32, #tpu.memory_space<vmem>>, %arg6: memref<1x384xf32, #tpu.memory_space<vmem>>, %arg7: memref<128x128xf32, #tpu.memory_space<vmem>>, %arg8: memref<1x128xf32, #tpu.memory_space<vmem>>, %arg9: memref<4x128x384xf32, #tpu.memory_space<vmem>>, %arg10: memref<4x1x384xf32, #tpu.memory_space<vmem>>, %arg11: memref<4x128x128xf32, #tpu.memory_space<vmem>>, %arg12: memref<4x1x128xf32, #tpu.memory_space<vmem>>, %arg13: memref<4x128x256xf32, #tpu.memory_space<vmem>>, %arg14: memref<4x1x256xf32, #tpu.memory_space<vmem>>, %arg15: memref<4x256x128xf32, #tpu.memory_space<vmem>>, %arg16: memref<4x1x128xf32, #tpu.memory_space<vmem>>, %arg17: memref<4x3x128xf32, #tpu.memory_space<vmem>>, %arg18: memref<4x3x128xf32, #tpu.memory_space<vmem>>, %arg19: memref<1x8x128xf32, #tpu.memory_space<vmem>>) attributes {dimension_semantics = [#tpu.dimension_semantics<parallel>], iteration_bounds = array<i64: 2>, scalar_prefetch = 0 : i64, scratch_operands = 0 : i64, tpu.core_type = #tpu.core_type<tc>, window_params = [{transform_indices = @transform_0, window_bounds = array<i64: 1, 8, 128>}, {transform_indices = @transform_1, window_bounds = array<i64: 1, 8, 128>}, {transform_indices = @transform_2, window_bounds = array<i64: 1, 64, 1>}, {transform_indices = @transform_3, window_bounds = array<i64: 1, 64, 1>}, {pipeline_mode = #tpu.pipeline_mode<synchronous>, transform_indices = @transform_4, window_bounds = array<i64: 128, 384>}, {pipeline_mode = #tpu.pipeline_mode<synchronous>, transform_indices = @transform_5, window_bounds = array<i64: 1, 384>}, {pipeline_mode = #tpu.pipeline_mode<synchronous>, transform_indices = @transform_6, window_bounds = array<i64: 128, 128>}, {pipeline_mode = #tpu.pipeline_mode<synchronous>, transform_indices = @transform_7, window_bounds = array<i64: 1, 128>}, {pipeline_mode = #tpu.pipeline_mode<synchronous>, transform_indices = @transform_8, window_bounds = array<i64: 4, 128, 384>}, {pipeline_mode = #tpu.pipeline_mode<synchronous>, transform_indices = @transform_9, window_bounds = array<i64: 4, 1, 384>}, {pipeline_mode = #tpu.pipeline_mode<synchronous>, transform_indices = @transform_10, window_bounds = array<i64: 4, 128, 128>}, {pipeline_mode = #tpu.pipeline_mode<synchronous>, transform_indices = @transform_11, window_bounds = array<i64: 4, 1, 128>}, {pipeline_mode = #tpu.pipeline_mode<synchronous>, transform_indices = @transform_12, window_bounds = array<i64: 4, 128, 256>}, {pipeline_mode = #tpu.pipeline_mode<synchronous>, transform_indices = @transform_13, window_bounds = array<i64: 4, 1, 256>}, {pipeline_mode = #tpu.pipeline_mode<synchronous>, transform_indices = @transform_14, window_bounds = array<i64: 4, 256, 128>}, {pipeline_mode = #tpu.pipeline_mode<synchronous>, transform_indices = @transform_15, window_bounds = array<i64: 4, 1, 128>}, {pipeline_mode = #tpu.pipeline_mode<synchronous>, transform_indices = @transform_16, window_bounds = array<i64: 4, 3, 128>}, {pipeline_mode = #tpu.pipeline_mode<synchronous>, transform_indices = @transform_17, window_bounds = array<i64: 4, 3, 128>}, {transform_indices = @transform_18, window_bounds = array<i64: 1, 8, 128>}]} {
    %0 = tpu.iota {dimensions = array<i32: 0>} : vector<128x16xi32>
    %1 = tpu.iota {dimensions = array<i32: 1>} : vector<128x16xi32>
    %c8_i32 = arith.constant 8 : i32
    %2 = vector.broadcast %c8_i32 : i32 to vector<128x16xi32>
    %3 = arith.muli %1, %2 : vector<128x16xi32>
    %4 = arith.cmpi sge, %0, %3 : vector<128x16xi32>
    %c1_i32 = arith.constant 1 : i32
    %5 = vector.broadcast %c1_i32 : i32 to vector<128x16xi32>
    %6 = arith.addi %1, %5 : vector<128x16xi32>
    %c8_i32_0 = arith.constant 8 : i32
    %7 = vector.broadcast %c8_i32_0 : i32 to vector<128x16xi32>
    %8 = arith.muli %6, %7 : vector<128x16xi32>
    %9 = arith.cmpi slt, %0, %8 : vector<128x16xi32>
    %10 = arith.andi %4, %9 : vector<128x16xi1>
    %cst = arith.constant 1.000000e+00 : f32
    %cst_1 = arith.constant 0.000000e+00 : f32
    %11 = vector.broadcast %cst : f32 to vector<128x16xf32>
    %12 = vector.broadcast %cst_1 : f32 to vector<128x16xf32>
    %13 = arith.select %10, %11, %12 : vector<128x16xi1>, vector<128x16xf32>
    %14 = tpu.iota {dimensions = array<i32: 0>} : vector<16x128xi32>
    %15 = tpu.iota {dimensions = array<i32: 1>} : vector<16x128xi32>
    %c8_i32_2 = arith.constant 8 : i32
    %16 = vector.broadcast %c8_i32_2 : i32 to vector<16x128xi32>
    %17 = arith.muli %14, %16 : vector<16x128xi32>
    %18 = arith.cmpi sge, %15, %17 : vector<16x128xi32>
    %c1_i32_3 = arith.constant 1 : i32
    %19 = vector.broadcast %c1_i32_3 : i32 to vector<16x128xi32>
    %20 = arith.addi %14, %19 : vector<16x128xi32>
    %c8_i32_4 = arith.constant 8 : i32
    %21 = vector.broadcast %c8_i32_4 : i32 to vector<16x128xi32>
    %22 = arith.muli %20, %21 : vector<16x128xi32>
    %23 = arith.cmpi slt, %15, %22 : vector<16x128xi32>
    %24 = arith.andi %18, %23 : vector<16x128xi1>
    %cst_5 = arith.constant 1.000000e+00 : f32
    %cst_6 = arith.constant 0.000000e+00 : f32
    %25 = vector.broadcast %cst_5 : f32 to vector<16x128xf32>
    %26 = vector.broadcast %cst_6 : f32 to vector<16x128xf32>
    %27 = arith.select %24, %25, %26 : vector<16x128xi1>, vector<16x128xf32>
    %c0 = arith.constant 0 : index
    %c0_7 = arith.constant 0 : index
    %c0_8 = arith.constant 0 : index
    %28 = vector.load %arg1[%c0, %c0_7, %c0_8] : memref<1x8x128xf32, #tpu.memory_space<vmem>>, vector<1x8x128xf32>
    %29 = vector.shape_cast %28 : vector<1x8x128xf32> to vector<8x128xf32>
    %c0_9 = arith.constant 0 : index
    %c0_10 = arith.constant 0 : index
    %c0_11 = arith.constant 0 : index
    %30 = vector.load %arg2[%c0_9, %c0_10, %c0_11] : memref<1x8x128xf32, #tpu.memory_space<vmem>>, vector<1x8x128xf32>
    %31 = vector.shape_cast %30 : vector<1x8x128xf32> to vector<8x128xf32>
    %c0_12 = arith.constant 0 : index
    %c0_13 = arith.constant 0 : index
    %c0_14 = arith.constant 0 : index
    %32 = vector.load %arg3[%c0_12, %c0_13, %c0_14] : memref<1x64x1xf32, #tpu.memory_space<vmem>>, vector<1x64x1xf32>
    %33 = vector.shape_cast %32 : vector<1x64x1xf32> to vector<64x1xf32>
    %c0_15 = arith.constant 0 : index
    %c0_16 = arith.constant 0 : index
    %c0_17 = arith.constant 0 : index
    %34 = vector.load %arg4[%c0_15, %c0_16, %c0_17] : memref<1x64x1xf32, #tpu.memory_space<vmem>>, vector<1x64x1xf32>
    %35 = vector.shape_cast %34 : vector<1x64x1xf32> to vector<64x1xf32>
    %c0_18 = arith.constant 0 : index
    %c0_19 = arith.constant 0 : index
    %36 = vector.load %arg5[%c0_18, %c0_19] : memref<128x384xf32, #tpu.memory_space<vmem>>, vector<128x384xf32>
    %c0_20 = arith.constant 0 : index
    %c0_21 = arith.constant 0 : index
    %37 = vector.load %arg6[%c0_20, %c0_21] : memref<1x384xf32, #tpu.memory_space<vmem>>, vector<1x384xf32>
    %c0_22 = arith.constant 0 : index
    %c0_23 = arith.constant 0 : index
    %38 = vector.load %arg7[%c0_22, %c0_23] : memref<128x128xf32, #tpu.memory_space<vmem>>, vector<128x128xf32>
    %c0_24 = arith.constant 0 : index
    %c0_25 = arith.constant 0 : index
    %39 = vector.load %arg8[%c0_24, %c0_25] : memref<1x128xf32, #tpu.memory_space<vmem>>, vector<1x128xf32>
    %cst_26 = arith.constant dense<0.000000e+00> : vector<8x384xf32>
    %40 = tpu.matmul %29, %36, %cst_26 {dimension_numbers = #tpu.dot_dimension_numbers<[1], [0], [0], [1], [0, 0, 1, 1], [], []>} : vector<8x128xf32>, vector<128x384xf32>, vector<8x384xf32> -> vector<8x384xf32>
    %41 = vector.broadcast %37 : vector<1x384xf32> to vector<8x384xf32>
    %42 = arith.addf %40, %41 : vector<8x384xf32>
    %cst_27 = arith.constant dense<0.000000e+00> : vector<8x384xf32>
    %43 = tpu.matmul %31, %36, %cst_27 {dimension_numbers = #tpu.dot_dimension_numbers<[1], [0], [0], [1], [0, 0, 1, 1], [], []>} : vector<8x128xf32>, vector<128x384xf32>, vector<8x384xf32> -> vector<8x384xf32>
    %44 = vector.broadcast %37 : vector<1x384xf32> to vector<8x384xf32>
    %45 = arith.addf %43, %44 : vector<8x384xf32>
    %46 = vector.extract_strided_slice %42 {offsets = [0, 0], sizes = [8, 128], strides = [1, 1]} : vector<8x384xf32> to vector<8x128xf32>
    %cst_28 = arith.constant 0.353553385 : f32
    %47 = vector.broadcast %cst_28 : f32 to vector<8x128xf32>
    %48 = arith.mulf %46, %47 : vector<8x128xf32>
    %49 = vector.extract_strided_slice %45 {offsets = [0, 128], sizes = [8, 128], strides = [1, 1]} : vector<8x384xf32> to vector<8x128xf32>
    %50 = vector.extract_strided_slice %45 {offsets = [0, 256], sizes = [8, 128], strides = [1, 1]} : vector<8x384xf32> to vector<8x128xf32>
    %51 = vector.shape_cast %48 : vector<8x128xf32> to vector<8x1x128xf32>
    %52 = vector.shape_cast %49 : vector<8x128xf32> to vector<1x8x128xf32>
    %53 = vector.broadcast %51 : vector<8x1x128xf32> to vector<8x8x128xf32>
    %54 = vector.broadcast %52 : vector<1x8x128xf32> to vector<8x8x128xf32>
    %55 = arith.mulf %53, %54 : vector<8x8x128xf32>
    %56 = vector.shape_cast %55 : vector<8x8x128xf32> to vector<64x128xf32>
    %cst_29 = arith.constant dense<0.000000e+00> : vector<64x16xf32>
    %57 = tpu.matmul %56, %13, %cst_29 {dimension_numbers = #tpu.dot_dimension_numbers<[1], [0], [0], [1], [0, 0, 1, 1], [], []>} : vector<64x128xf32>, vector<128x16xf32>, vector<64x16xf32> -> vector<64x16xf32>
    %cst_30 = arith.constant 0.000000e+00 : f32
    %58 = vector.broadcast %cst_30 : f32 to vector<64x1xf32>
    %59 = arith.cmpf ogt, %33, %58 : vector<64x1xf32>
    %cst_31 = arith.constant -1.000000e+20 : f32
    %60 = vector.shape_cast %59 : vector<64x1xi1> to vector<64x1xi1>
    %61 = vector.broadcast %60 : vector<64x1xi1> to vector<64x16xi1>
    %62 = vector.broadcast %cst_31 : f32 to vector<64x16xf32>
    %63 = arith.select %61, %62, %57 : vector<64x16xi1>, vector<64x16xf32>
    %cst_32 = arith.constant dense<0xFF800000> : vector<64xf32>
    %64 = vector.multi_reduction <maximumf>, %63, %cst_32 [1] : vector<64x16xf32> to vector<64xf32>
    %65 = vector.shape_cast %64 : vector<64xf32> to vector<64x1xf32>
    %66 = vector.broadcast %65 : vector<64x1xf32> to vector<64x16xf32>
    %67 = arith.subf %63, %66 : vector<64x16xf32>
    %68 = math.exp %67 : vector<64x16xf32>
    %cst_33 = arith.constant dense<0.000000e+00> : vector<64xf32>
    %69 = vector.multi_reduction <add>, %68, %cst_33 [1] : vector<64x16xf32> to vector<64xf32>
    %70 = vector.shape_cast %69 : vector<64xf32> to vector<64x1xf32>
    %71 = tpu.reciprocal %70 {approx = true} : vector<64x1xf32> -> vector<64x1xf32>
    %72 = vector.broadcast %71 : vector<64x1xf32> to vector<64x16xf32>
    %73 = arith.mulf %68, %72 : vector<64x16xf32>
    %cst_34 = arith.constant dense<0.000000e+00> : vector<64x128xf32>
    %74 = tpu.matmul %73, %27, %cst_34 {dimension_numbers = #tpu.dot_dimension_numbers<[1], [0], [0], [1], [0, 0, 1, 1], [], []>} : vector<64x16xf32>, vector<16x128xf32>, vector<64x128xf32> -> vector<64x128xf32>
    %75 = vector.shape_cast %74 : vector<64x128xf32> to vector<8x8x128xf32>
    %76 = vector.shape_cast %50 : vector<8x128xf32> to vector<1x8x128xf32>
    %77 = vector.broadcast %76 : vector<1x8x128xf32> to vector<8x8x128xf32>
    %78 = arith.mulf %75, %77 : vector<8x8x128xf32>
    %cst_35 = arith.constant dense<0.000000e+00> : vector<8x128xf32>
    %79 = vector.multi_reduction <add>, %78, %cst_35 [1] : vector<8x8x128xf32> to vector<8x128xf32>
    %cst_36 = arith.constant dense<0.000000e+00> : vector<8x128xf32>
    %80 = tpu.matmul %79, %38, %cst_36 {dimension_numbers = #tpu.dot_dimension_numbers<[1], [0], [0], [1], [0, 0, 1, 1], [], []>} : vector<8x128xf32>, vector<128x128xf32>, vector<8x128xf32> -> vector<8x128xf32>
    %81 = vector.broadcast %39 : vector<1x128xf32> to vector<8x128xf32>
    %82 = arith.addf %80, %81 : vector<8x128xf32>
    %c0_37 = arith.constant 0 : index
    %c0_38 = arith.constant 0 : index
    %c0_39 = arith.constant 0 : index
    %83 = vector.load %arg17[%c0_37, %c0_38, %c0_39] : memref<4x3x128xf32, #tpu.memory_space<vmem>>, vector<1x3x128xf32>
    %84 = vector.shape_cast %83 : vector<1x3x128xf32> to vector<3x128xf32>
    %c0_40 = arith.constant 0 : index
    %c0_41 = arith.constant 0 : index
    %c0_42 = arith.constant 0 : index
    %85 = vector.load %arg18[%c0_40, %c0_41, %c0_42] : memref<4x3x128xf32, #tpu.memory_space<vmem>>, vector<1x3x128xf32>
    %86 = vector.shape_cast %85 : vector<1x3x128xf32> to vector<3x128xf32>
    %c0_43 = arith.constant 0 : index
    %c0_44 = arith.constant 0 : index
    %c0_45 = arith.constant 0 : index
    %87 = vector.load %arg9[%c0_43, %c0_44, %c0_45] : memref<4x128x384xf32, #tpu.memory_space<vmem>>, vector<1x128x384xf32>
    %88 = vector.shape_cast %87 : vector<1x128x384xf32> to vector<128x384xf32>
    %c0_46 = arith.constant 0 : index
    %c0_47 = arith.constant 0 : index
    %c0_48 = arith.constant 0 : index
    %89 = vector.load %arg10[%c0_46, %c0_47, %c0_48] : memref<4x1x384xf32, #tpu.memory_space<vmem>>, vector<1x1x384xf32>
    %90 = vector.shape_cast %89 : vector<1x1x384xf32> to vector<1x384xf32>
    %c0_49 = arith.constant 0 : index
    %c0_50 = arith.constant 0 : index
    %c0_51 = arith.constant 0 : index
    %91 = vector.load %arg11[%c0_49, %c0_50, %c0_51] : memref<4x128x128xf32, #tpu.memory_space<vmem>>, vector<1x128x128xf32>
    %92 = vector.shape_cast %91 : vector<1x128x128xf32> to vector<128x128xf32>
    %c0_52 = arith.constant 0 : index
    %c0_53 = arith.constant 0 : index
    %c0_54 = arith.constant 0 : index
    %93 = vector.load %arg12[%c0_52, %c0_53, %c0_54] : memref<4x1x128xf32, #tpu.memory_space<vmem>>, vector<1x1x128xf32>
    %94 = vector.shape_cast %93 : vector<1x1x128xf32> to vector<1x128xf32>
    %cst_55 = arith.constant dense<0.000000e+00> : vector<8x384xf32>
    %95 = tpu.matmul %29, %88, %cst_55 {dimension_numbers = #tpu.dot_dimension_numbers<[1], [0], [0], [1], [0, 0, 1, 1], [], []>} : vector<8x128xf32>, vector<128x384xf32>, vector<8x384xf32> -> vector<8x384xf32>
    %96 = vector.broadcast %90 : vector<1x384xf32> to vector<8x384xf32>
    %97 = arith.addf %95, %96 : vector<8x384xf32>
    %98 = vector.extract_strided_slice %97 {offsets = [0, 0], sizes = [8, 128], strides = [1, 1]} : vector<8x384xf32> to vector<8x128xf32>
    %cst_56 = arith.constant 0.353553385 : f32
    %99 = vector.broadcast %cst_56 : f32 to vector<8x128xf32>
    %100 = arith.mulf %98, %99 : vector<8x128xf32>
    %101 = vector.extract_strided_slice %97 {offsets = [0, 128], sizes = [8, 128], strides = [1, 1]} : vector<8x384xf32> to vector<8x128xf32>
    %102 = vector.extract_strided_slice %97 {offsets = [0, 256], sizes = [8, 128], strides = [1, 1]} : vector<8x384xf32> to vector<8x128xf32>
    %103 = vector.shape_cast %100 : vector<8x128xf32> to vector<8x1x128xf32>
    %104 = vector.shape_cast %101 : vector<8x128xf32> to vector<1x8x128xf32>
    %105 = vector.broadcast %103 : vector<8x1x128xf32> to vector<8x8x128xf32>
    %106 = vector.broadcast %104 : vector<1x8x128xf32> to vector<8x8x128xf32>
    %107 = arith.mulf %105, %106 : vector<8x8x128xf32>
    %108 = vector.shape_cast %107 : vector<8x8x128xf32> to vector<64x128xf32>
    %cst_57 = arith.constant dense<0.000000e+00> : vector<64x16xf32>
    %109 = tpu.matmul %108, %13, %cst_57 {dimension_numbers = #tpu.dot_dimension_numbers<[1], [0], [0], [1], [0, 0, 1, 1], [], []>} : vector<64x128xf32>, vector<128x16xf32>, vector<64x16xf32> -> vector<64x16xf32>
    %cst_58 = arith.constant 0.000000e+00 : f32
    %110 = vector.broadcast %cst_58 : f32 to vector<64x1xf32>
    %111 = arith.cmpf ogt, %35, %110 : vector<64x1xf32>
    %cst_59 = arith.constant -1.000000e+20 : f32
    %112 = vector.shape_cast %111 : vector<64x1xi1> to vector<64x1xi1>
    %113 = vector.broadcast %112 : vector<64x1xi1> to vector<64x16xi1>
    %114 = vector.broadcast %cst_59 : f32 to vector<64x16xf32>
    %115 = arith.select %113, %114, %109 : vector<64x16xi1>, vector<64x16xf32>
    %cst_60 = arith.constant dense<0xFF800000> : vector<64xf32>
    %116 = vector.multi_reduction <maximumf>, %115, %cst_60 [1] : vector<64x16xf32> to vector<64xf32>
    %117 = vector.shape_cast %116 : vector<64xf32> to vector<64x1xf32>
    %118 = vector.broadcast %117 : vector<64x1xf32> to vector<64x16xf32>
    %119 = arith.subf %115, %118 : vector<64x16xf32>
    %120 = math.exp %119 : vector<64x16xf32>
    %cst_61 = arith.constant dense<0.000000e+00> : vector<64xf32>
    %121 = vector.multi_reduction <add>, %120, %cst_61 [1] : vector<64x16xf32> to vector<64xf32>
    %122 = vector.shape_cast %121 : vector<64xf32> to vector<64x1xf32>
    %123 = tpu.reciprocal %122 {approx = true} : vector<64x1xf32> -> vector<64x1xf32>
    %124 = vector.broadcast %123 : vector<64x1xf32> to vector<64x16xf32>
    %125 = arith.mulf %120, %124 : vector<64x16xf32>
    %cst_62 = arith.constant dense<0.000000e+00> : vector<64x128xf32>
    %126 = tpu.matmul %125, %27, %cst_62 {dimension_numbers = #tpu.dot_dimension_numbers<[1], [0], [0], [1], [0, 0, 1, 1], [], []>} : vector<64x16xf32>, vector<16x128xf32>, vector<64x128xf32> -> vector<64x128xf32>
    %127 = vector.shape_cast %126 : vector<64x128xf32> to vector<8x8x128xf32>
    %128 = vector.shape_cast %102 : vector<8x128xf32> to vector<1x8x128xf32>
    %129 = vector.broadcast %128 : vector<1x8x128xf32> to vector<8x8x128xf32>
    %130 = arith.mulf %127, %129 : vector<8x8x128xf32>
    %cst_63 = arith.constant dense<0.000000e+00> : vector<8x128xf32>
    %131 = vector.multi_reduction <add>, %130, %cst_63 [1] : vector<8x8x128xf32> to vector<8x128xf32>
    %cst_64 = arith.constant dense<0.000000e+00> : vector<8x128xf32>
    %132 = tpu.matmul %131, %92, %cst_64 {dimension_numbers = #tpu.dot_dimension_numbers<[1], [0], [0], [1], [0, 0, 1, 1], [], []>} : vector<8x128xf32>, vector<128x128xf32>, vector<8x128xf32> -> vector<8x128xf32>
    %133 = vector.broadcast %94 : vector<1x128xf32> to vector<8x128xf32>
    %134 = arith.addf %132, %133 : vector<8x128xf32>
    %135 = arith.addf %29, %134 : vector<8x128xf32>
    %136 = vector.extract_strided_slice %84 {offsets = [0, 0], sizes = [1, 128], strides = [1, 1]} : vector<3x128xf32> to vector<1x128xf32>
    %137 = vector.extract_strided_slice %86 {offsets = [0, 0], sizes = [1, 128], strides = [1, 1]} : vector<3x128xf32> to vector<1x128xf32>
    %cst_65 = arith.constant dense<0.000000e+00> : vector<8xf32>
    %138 = vector.multi_reduction <add>, %135, %cst_65 [1] : vector<8x128xf32> to vector<8xf32>
    %139 = vector.shape_cast %138 : vector<8xf32> to vector<8x1xf32>
    %cst_66 = arith.constant 1.280000e+02 : f32
    %140 = vector.broadcast %cst_66 : f32 to vector<8x1xf32>
    %141 = arith.divf %139, %140 : vector<8x1xf32>
    %142 = vector.broadcast %141 : vector<8x1xf32> to vector<8x128xf32>
    %143 = arith.subf %135, %142 : vector<8x128xf32>
    %144 = arith.mulf %143, %143 : vector<8x128xf32>
    %cst_67 = arith.constant dense<0.000000e+00> : vector<8xf32>
    %145 = vector.multi_reduction <add>, %144, %cst_67 [1] : vector<8x128xf32> to vector<8xf32>
    %146 = vector.shape_cast %145 : vector<8xf32> to vector<8x1xf32>
    %cst_68 = arith.constant 1.280000e+02 : f32
    %147 = vector.broadcast %cst_68 : f32 to vector<8x1xf32>
    %148 = arith.divf %146, %147 : vector<8x1xf32>
    %149 = vector.broadcast %141 : vector<8x1xf32> to vector<8x128xf32>
    %150 = arith.subf %135, %149 : vector<8x128xf32>
    %cst_69 = arith.constant 9.99999974E-6 : f32
    %151 = vector.broadcast %cst_69 : f32 to vector<8x1xf32>
    %152 = arith.addf %148, %151 : vector<8x1xf32>
    %153 = math.rsqrt %152 : vector<8x1xf32>
    %154 = vector.broadcast %153 : vector<8x1xf32> to vector<8x128xf32>
    %155 = arith.mulf %150, %154 : vector<8x128xf32>
    %156 = vector.broadcast %136 : vector<1x128xf32> to vector<8x128xf32>
    %157 = arith.mulf %155, %156 : vector<8x128xf32>
    %158 = vector.broadcast %137 : vector<1x128xf32> to vector<8x128xf32>
    %159 = arith.addf %157, %158 : vector<8x128xf32>
    %160 = arith.addf %159, %82 : vector<8x128xf32>
    %161 = vector.extract_strided_slice %84 {offsets = [1, 0], sizes = [1, 128], strides = [1, 1]} : vector<3x128xf32> to vector<1x128xf32>
    %162 = vector.extract_strided_slice %86 {offsets = [1, 0], sizes = [1, 128], strides = [1, 1]} : vector<3x128xf32> to vector<1x128xf32>
    %cst_70 = arith.constant dense<0.000000e+00> : vector<8xf32>
    %163 = vector.multi_reduction <add>, %160, %cst_70 [1] : vector<8x128xf32> to vector<8xf32>
    %164 = vector.shape_cast %163 : vector<8xf32> to vector<8x1xf32>
    %cst_71 = arith.constant 1.280000e+02 : f32
    %165 = vector.broadcast %cst_71 : f32 to vector<8x1xf32>
    %166 = arith.divf %164, %165 : vector<8x1xf32>
    %167 = vector.broadcast %166 : vector<8x1xf32> to vector<8x128xf32>
    %168 = arith.subf %160, %167 : vector<8x128xf32>
    %169 = arith.mulf %168, %168 : vector<8x128xf32>
    %cst_72 = arith.constant dense<0.000000e+00> : vector<8xf32>
    %170 = vector.multi_reduction <add>, %169, %cst_72 [1] : vector<8x128xf32> to vector<8xf32>
    %171 = vector.shape_cast %170 : vector<8xf32> to vector<8x1xf32>
    %cst_73 = arith.constant 1.280000e+02 : f32
    %172 = vector.broadcast %cst_73 : f32 to vector<8x1xf32>
    %173 = arith.divf %171, %172 : vector<8x1xf32>
    %174 = vector.broadcast %166 : vector<8x1xf32> to vector<8x128xf32>
    %175 = arith.subf %160, %174 : vector<8x128xf32>
    %cst_74 = arith.constant 9.99999974E-6 : f32
    %176 = vector.broadcast %cst_74 : f32 to vector<8x1xf32>
    %177 = arith.addf %173, %176 : vector<8x1xf32>
    %178 = math.rsqrt %177 : vector<8x1xf32>
    %179 = vector.broadcast %178 : vector<8x1xf32> to vector<8x128xf32>
    %180 = arith.mulf %175, %179 : vector<8x128xf32>
    %181 = vector.broadcast %161 : vector<1x128xf32> to vector<8x128xf32>
    %182 = arith.mulf %180, %181 : vector<8x128xf32>
    %183 = vector.broadcast %162 : vector<1x128xf32> to vector<8x128xf32>
    %184 = arith.addf %182, %183 : vector<8x128xf32>
    %c0_75 = arith.constant 0 : index
    %c0_76 = arith.constant 0 : index
    %c0_77 = arith.constant 0 : index
    %185 = vector.load %arg13[%c0_75, %c0_76, %c0_77] : memref<4x128x256xf32, #tpu.memory_space<vmem>>, vector<1x128x256xf32>
    %186 = vector.shape_cast %185 : vector<1x128x256xf32> to vector<128x256xf32>
    %cst_78 = arith.constant dense<0.000000e+00> : vector<8x256xf32>
    %187 = tpu.matmul %184, %186, %cst_78 {dimension_numbers = #tpu.dot_dimension_numbers<[1], [0], [0], [1], [0, 0, 1, 1], [], []>} : vector<8x128xf32>, vector<128x256xf32>, vector<8x256xf32> -> vector<8x256xf32>
    %c0_79 = arith.constant 0 : index
    %c0_80 = arith.constant 0 : index
    %c0_81 = arith.constant 0 : index
    %188 = vector.load %arg14[%c0_79, %c0_80, %c0_81] : memref<4x1x256xf32, #tpu.memory_space<vmem>>, vector<1x1x256xf32>
    %189 = vector.shape_cast %188 : vector<1x1x256xf32> to vector<1x256xf32>
    %190 = vector.broadcast %189 : vector<1x256xf32> to vector<8x256xf32>
    %191 = arith.addf %187, %190 : vector<8x256xf32>
    %cst_82 = arith.constant 0.000000e+00 : f32
    %192 = vector.broadcast %cst_82 : f32 to vector<8x256xf32>
    %193 = arith.maximumf %191, %192 : vector<8x256xf32>
    %c0_83 = arith.constant 0 : index
    %c0_84 = arith.constant 0 : index
    %c0_85 = arith.constant 0 : index
    %194 = vector.load %arg15[%c0_83, %c0_84, %c0_85] : memref<4x256x128xf32, #tpu.memory_space<vmem>>, vector<1x256x128xf32>
    %195 = vector.shape_cast %194 : vector<1x256x128xf32> to vector<256x128xf32>
    %cst_86 = arith.constant dense<0.000000e+00> : vector<8x128xf32>
    %196 = tpu.matmul %193, %195, %cst_86 {dimension_numbers = #tpu.dot_dimension_numbers<[1], [0], [0], [1], [0, 0, 1, 1], [], []>} : vector<8x256xf32>, vector<256x128xf32>, vector<8x128xf32> -> vector<8x128xf32>
    %c0_87 = arith.constant 0 : index
    %c0_88 = arith.constant 0 : index
    %c0_89 = arith.constant 0 : index
    %197 = vector.load %arg16[%c0_87, %c0_88, %c0_89] : memref<4x1x128xf32, #tpu.memory_space<vmem>>, vector<1x1x128xf32>
    %198 = vector.shape_cast %197 : vector<1x1x128xf32> to vector<1x128xf32>
    %199 = vector.broadcast %198 : vector<1x128xf32> to vector<8x128xf32>
    %200 = arith.addf %196, %199 : vector<8x128xf32>
    %201 = arith.addf %184, %200 : vector<8x128xf32>
    %202 = vector.extract_strided_slice %84 {offsets = [2, 0], sizes = [1, 128], strides = [1, 1]} : vector<3x128xf32> to vector<1x128xf32>
    %203 = vector.extract_strided_slice %86 {offsets = [2, 0], sizes = [1, 128], strides = [1, 1]} : vector<3x128xf32> to vector<1x128xf32>
    %cst_90 = arith.constant dense<0.000000e+00> : vector<8xf32>
    %204 = vector.multi_reduction <add>, %201, %cst_90 [1] : vector<8x128xf32> to vector<8xf32>
    %205 = vector.shape_cast %204 : vector<8xf32> to vector<8x1xf32>
    %cst_91 = arith.constant 1.280000e+02 : f32
    %206 = vector.broadcast %cst_91 : f32 to vector<8x1xf32>
    %207 = arith.divf %205, %206 : vector<8x1xf32>
    %208 = vector.broadcast %207 : vector<8x1xf32> to vector<8x128xf32>
    %209 = arith.subf %201, %208 : vector<8x128xf32>
    %210 = arith.mulf %209, %209 : vector<8x128xf32>
    %cst_92 = arith.constant dense<0.000000e+00> : vector<8xf32>
    %211 = vector.multi_reduction <add>, %210, %cst_92 [1] : vector<8x128xf32> to vector<8xf32>
    %212 = vector.shape_cast %211 : vector<8xf32> to vector<8x1xf32>
    %cst_93 = arith.constant 1.280000e+02 : f32
    %213 = vector.broadcast %cst_93 : f32 to vector<8x1xf32>
    %214 = arith.divf %212, %213 : vector<8x1xf32>
    %215 = vector.broadcast %207 : vector<8x1xf32> to vector<8x128xf32>
    %216 = arith.subf %201, %215 : vector<8x128xf32>
    %cst_94 = arith.constant 9.99999974E-6 : f32
    %217 = vector.broadcast %cst_94 : f32 to vector<8x1xf32>
    %218 = arith.addf %214, %217 : vector<8x1xf32>
    %219 = math.rsqrt %218 : vector<8x1xf32>
    %220 = vector.broadcast %219 : vector<8x1xf32> to vector<8x128xf32>
    %221 = arith.mulf %216, %220 : vector<8x128xf32>
    %222 = vector.broadcast %202 : vector<1x128xf32> to vector<8x128xf32>
    %223 = arith.mulf %221, %222 : vector<8x128xf32>
    %224 = vector.broadcast %203 : vector<1x128xf32> to vector<8x128xf32>
    %225 = arith.addf %223, %224 : vector<8x128xf32>
    %c1 = arith.constant 1 : index
    %c0_95 = arith.constant 0 : index
    %c0_96 = arith.constant 0 : index
    %226 = vector.load %arg17[%c1, %c0_95, %c0_96] : memref<4x3x128xf32, #tpu.memory_space<vmem>>, vector<1x3x128xf32>
    %227 = vector.shape_cast %226 : vector<1x3x128xf32> to vector<3x128xf32>
    %c1_97 = arith.constant 1 : index
    %c0_98 = arith.constant 0 : index
    %c0_99 = arith.constant 0 : index
    %228 = vector.load %arg18[%c1_97, %c0_98, %c0_99] : memref<4x3x128xf32, #tpu.memory_space<vmem>>, vector<1x3x128xf32>
    %229 = vector.shape_cast %228 : vector<1x3x128xf32> to vector<3x128xf32>
    %c1_100 = arith.constant 1 : index
    %c0_101 = arith.constant 0 : index
    %c0_102 = arith.constant 0 : index
    %230 = vector.load %arg9[%c1_100, %c0_101, %c0_102] : memref<4x128x384xf32, #tpu.memory_space<vmem>>, vector<1x128x384xf32>
    %231 = vector.shape_cast %230 : vector<1x128x384xf32> to vector<128x384xf32>
    %c1_103 = arith.constant 1 : index
    %c0_104 = arith.constant 0 : index
    %c0_105 = arith.constant 0 : index
    %232 = vector.load %arg10[%c1_103, %c0_104, %c0_105] : memref<4x1x384xf32, #tpu.memory_space<vmem>>, vector<1x1x384xf32>
    %233 = vector.shape_cast %232 : vector<1x1x384xf32> to vector<1x384xf32>
    %c1_106 = arith.constant 1 : index
    %c0_107 = arith.constant 0 : index
    %c0_108 = arith.constant 0 : index
    %234 = vector.load %arg11[%c1_106, %c0_107, %c0_108] : memref<4x128x128xf32, #tpu.memory_space<vmem>>, vector<1x128x128xf32>
    %235 = vector.shape_cast %234 : vector<1x128x128xf32> to vector<128x128xf32>
    %c1_109 = arith.constant 1 : index
    %c0_110 = arith.constant 0 : index
    %c0_111 = arith.constant 0 : index
    %236 = vector.load %arg12[%c1_109, %c0_110, %c0_111] : memref<4x1x128xf32, #tpu.memory_space<vmem>>, vector<1x1x128xf32>
    %237 = vector.shape_cast %236 : vector<1x1x128xf32> to vector<1x128xf32>
    %cst_112 = arith.constant dense<0.000000e+00> : vector<8x384xf32>
    %238 = tpu.matmul %225, %231, %cst_112 {dimension_numbers = #tpu.dot_dimension_numbers<[1], [0], [0], [1], [0, 0, 1, 1], [], []>} : vector<8x128xf32>, vector<128x384xf32>, vector<8x384xf32> -> vector<8x384xf32>
    %239 = vector.broadcast %233 : vector<1x384xf32> to vector<8x384xf32>
    %240 = arith.addf %238, %239 : vector<8x384xf32>
    %241 = vector.extract_strided_slice %240 {offsets = [0, 0], sizes = [8, 128], strides = [1, 1]} : vector<8x384xf32> to vector<8x128xf32>
    %cst_113 = arith.constant 0.353553385 : f32
    %242 = vector.broadcast %cst_113 : f32 to vector<8x128xf32>
    %243 = arith.mulf %241, %242 : vector<8x128xf32>
    %244 = vector.extract_strided_slice %240 {offsets = [0, 128], sizes = [8, 128], strides = [1, 1]} : vector<8x384xf32> to vector<8x128xf32>
    %245 = vector.extract_strided_slice %240 {offsets = [0, 256], sizes = [8, 128], strides = [1, 1]} : vector<8x384xf32> to vector<8x128xf32>
    %246 = vector.shape_cast %243 : vector<8x128xf32> to vector<8x1x128xf32>
    %247 = vector.shape_cast %244 : vector<8x128xf32> to vector<1x8x128xf32>
    %248 = vector.broadcast %246 : vector<8x1x128xf32> to vector<8x8x128xf32>
    %249 = vector.broadcast %247 : vector<1x8x128xf32> to vector<8x8x128xf32>
    %250 = arith.mulf %248, %249 : vector<8x8x128xf32>
    %251 = vector.shape_cast %250 : vector<8x8x128xf32> to vector<64x128xf32>
    %cst_114 = arith.constant dense<0.000000e+00> : vector<64x16xf32>
    %252 = tpu.matmul %251, %13, %cst_114 {dimension_numbers = #tpu.dot_dimension_numbers<[1], [0], [0], [1], [0, 0, 1, 1], [], []>} : vector<64x128xf32>, vector<128x16xf32>, vector<64x16xf32> -> vector<64x16xf32>
    %cst_115 = arith.constant 0.000000e+00 : f32
    %253 = vector.broadcast %cst_115 : f32 to vector<64x1xf32>
    %254 = arith.cmpf ogt, %35, %253 : vector<64x1xf32>
    %cst_116 = arith.constant -1.000000e+20 : f32
    %255 = vector.shape_cast %254 : vector<64x1xi1> to vector<64x1xi1>
    %256 = vector.broadcast %255 : vector<64x1xi1> to vector<64x16xi1>
    %257 = vector.broadcast %cst_116 : f32 to vector<64x16xf32>
    %258 = arith.select %256, %257, %252 : vector<64x16xi1>, vector<64x16xf32>
    %cst_117 = arith.constant dense<0xFF800000> : vector<64xf32>
    %259 = vector.multi_reduction <maximumf>, %258, %cst_117 [1] : vector<64x16xf32> to vector<64xf32>
    %260 = vector.shape_cast %259 : vector<64xf32> to vector<64x1xf32>
    %261 = vector.broadcast %260 : vector<64x1xf32> to vector<64x16xf32>
    %262 = arith.subf %258, %261 : vector<64x16xf32>
    %263 = math.exp %262 : vector<64x16xf32>
    %cst_118 = arith.constant dense<0.000000e+00> : vector<64xf32>
    %264 = vector.multi_reduction <add>, %263, %cst_118 [1] : vector<64x16xf32> to vector<64xf32>
    %265 = vector.shape_cast %264 : vector<64xf32> to vector<64x1xf32>
    %266 = tpu.reciprocal %265 {approx = true} : vector<64x1xf32> -> vector<64x1xf32>
    %267 = vector.broadcast %266 : vector<64x1xf32> to vector<64x16xf32>
    %268 = arith.mulf %263, %267 : vector<64x16xf32>
    %cst_119 = arith.constant dense<0.000000e+00> : vector<64x128xf32>
    %269 = tpu.matmul %268, %27, %cst_119 {dimension_numbers = #tpu.dot_dimension_numbers<[1], [0], [0], [1], [0, 0, 1, 1], [], []>} : vector<64x16xf32>, vector<16x128xf32>, vector<64x128xf32> -> vector<64x128xf32>
    %270 = vector.shape_cast %269 : vector<64x128xf32> to vector<8x8x128xf32>
    %271 = vector.shape_cast %245 : vector<8x128xf32> to vector<1x8x128xf32>
    %272 = vector.broadcast %271 : vector<1x8x128xf32> to vector<8x8x128xf32>
    %273 = arith.mulf %270, %272 : vector<8x8x128xf32>
    %cst_120 = arith.constant dense<0.000000e+00> : vector<8x128xf32>
    %274 = vector.multi_reduction <add>, %273, %cst_120 [1] : vector<8x8x128xf32> to vector<8x128xf32>
    %cst_121 = arith.constant dense<0.000000e+00> : vector<8x128xf32>
    %275 = tpu.matmul %274, %235, %cst_121 {dimension_numbers = #tpu.dot_dimension_numbers<[1], [0], [0], [1], [0, 0, 1, 1], [], []>} : vector<8x128xf32>, vector<128x128xf32>, vector<8x128xf32> -> vector<8x128xf32>
    %276 = vector.broadcast %237 : vector<1x128xf32> to vector<8x128xf32>
    %277 = arith.addf %275, %276 : vector<8x128xf32>
    %278 = arith.addf %225, %277 : vector<8x128xf32>
    %279 = vector.extract_strided_slice %227 {offsets = [0, 0], sizes = [1, 128], strides = [1, 1]} : vector<3x128xf32> to vector<1x128xf32>
    %280 = vector.extract_strided_slice %229 {offsets = [0, 0], sizes = [1, 128], strides = [1, 1]} : vector<3x128xf32> to vector<1x128xf32>
    %cst_122 = arith.constant dense<0.000000e+00> : vector<8xf32>
    %281 = vector.multi_reduction <add>, %278, %cst_122 [1] : vector<8x128xf32> to vector<8xf32>
    %282 = vector.shape_cast %281 : vector<8xf32> to vector<8x1xf32>
    %cst_123 = arith.constant 1.280000e+02 : f32
    %283 = vector.broadcast %cst_123 : f32 to vector<8x1xf32>
    %284 = arith.divf %282, %283 : vector<8x1xf32>
    %285 = vector.broadcast %284 : vector<8x1xf32> to vector<8x128xf32>
    %286 = arith.subf %278, %285 : vector<8x128xf32>
    %287 = arith.mulf %286, %286 : vector<8x128xf32>
    %cst_124 = arith.constant dense<0.000000e+00> : vector<8xf32>
    %288 = vector.multi_reduction <add>, %287, %cst_124 [1] : vector<8x128xf32> to vector<8xf32>
    %289 = vector.shape_cast %288 : vector<8xf32> to vector<8x1xf32>
    %cst_125 = arith.constant 1.280000e+02 : f32
    %290 = vector.broadcast %cst_125 : f32 to vector<8x1xf32>
    %291 = arith.divf %289, %290 : vector<8x1xf32>
    %292 = vector.broadcast %284 : vector<8x1xf32> to vector<8x128xf32>
    %293 = arith.subf %278, %292 : vector<8x128xf32>
    %cst_126 = arith.constant 9.99999974E-6 : f32
    %294 = vector.broadcast %cst_126 : f32 to vector<8x1xf32>
    %295 = arith.addf %291, %294 : vector<8x1xf32>
    %296 = math.rsqrt %295 : vector<8x1xf32>
    %297 = vector.broadcast %296 : vector<8x1xf32> to vector<8x128xf32>
    %298 = arith.mulf %293, %297 : vector<8x128xf32>
    %299 = vector.broadcast %279 : vector<1x128xf32> to vector<8x128xf32>
    %300 = arith.mulf %298, %299 : vector<8x128xf32>
    %301 = vector.broadcast %280 : vector<1x128xf32> to vector<8x128xf32>
    %302 = arith.addf %300, %301 : vector<8x128xf32>
    %303 = arith.addf %302, %82 : vector<8x128xf32>
    %304 = vector.extract_strided_slice %227 {offsets = [1, 0], sizes = [1, 128], strides = [1, 1]} : vector<3x128xf32> to vector<1x128xf32>
    %305 = vector.extract_strided_slice %229 {offsets = [1, 0], sizes = [1, 128], strides = [1, 1]} : vector<3x128xf32> to vector<1x128xf32>
    %cst_127 = arith.constant dense<0.000000e+00> : vector<8xf32>
    %306 = vector.multi_reduction <add>, %303, %cst_127 [1] : vector<8x128xf32> to vector<8xf32>
    %307 = vector.shape_cast %306 : vector<8xf32> to vector<8x1xf32>
    %cst_128 = arith.constant 1.280000e+02 : f32
    %308 = vector.broadcast %cst_128 : f32 to vector<8x1xf32>
    %309 = arith.divf %307, %308 : vector<8x1xf32>
    %310 = vector.broadcast %309 : vector<8x1xf32> to vector<8x128xf32>
    %311 = arith.subf %303, %310 : vector<8x128xf32>
    %312 = arith.mulf %311, %311 : vector<8x128xf32>
    %cst_129 = arith.constant dense<0.000000e+00> : vector<8xf32>
    %313 = vector.multi_reduction <add>, %312, %cst_129 [1] : vector<8x128xf32> to vector<8xf32>
    %314 = vector.shape_cast %313 : vector<8xf32> to vector<8x1xf32>
    %cst_130 = arith.constant 1.280000e+02 : f32
    %315 = vector.broadcast %cst_130 : f32 to vector<8x1xf32>
    %316 = arith.divf %314, %315 : vector<8x1xf32>
    %317 = vector.broadcast %309 : vector<8x1xf32> to vector<8x128xf32>
    %318 = arith.subf %303, %317 : vector<8x128xf32>
    %cst_131 = arith.constant 9.99999974E-6 : f32
    %319 = vector.broadcast %cst_131 : f32 to vector<8x1xf32>
    %320 = arith.addf %316, %319 : vector<8x1xf32>
    %321 = math.rsqrt %320 : vector<8x1xf32>
    %322 = vector.broadcast %321 : vector<8x1xf32> to vector<8x128xf32>
    %323 = arith.mulf %318, %322 : vector<8x128xf32>
    %324 = vector.broadcast %304 : vector<1x128xf32> to vector<8x128xf32>
    %325 = arith.mulf %323, %324 : vector<8x128xf32>
    %326 = vector.broadcast %305 : vector<1x128xf32> to vector<8x128xf32>
    %327 = arith.addf %325, %326 : vector<8x128xf32>
    %c1_132 = arith.constant 1 : index
    %c0_133 = arith.constant 0 : index
    %c0_134 = arith.constant 0 : index
    %328 = vector.load %arg13[%c1_132, %c0_133, %c0_134] : memref<4x128x256xf32, #tpu.memory_space<vmem>>, vector<1x128x256xf32>
    %329 = vector.shape_cast %328 : vector<1x128x256xf32> to vector<128x256xf32>
    %cst_135 = arith.constant dense<0.000000e+00> : vector<8x256xf32>
    %330 = tpu.matmul %327, %329, %cst_135 {dimension_numbers = #tpu.dot_dimension_numbers<[1], [0], [0], [1], [0, 0, 1, 1], [], []>} : vector<8x128xf32>, vector<128x256xf32>, vector<8x256xf32> -> vector<8x256xf32>
    %c1_136 = arith.constant 1 : index
    %c0_137 = arith.constant 0 : index
    %c0_138 = arith.constant 0 : index
    %331 = vector.load %arg14[%c1_136, %c0_137, %c0_138] : memref<4x1x256xf32, #tpu.memory_space<vmem>>, vector<1x1x256xf32>
    %332 = vector.shape_cast %331 : vector<1x1x256xf32> to vector<1x256xf32>
    %333 = vector.broadcast %332 : vector<1x256xf32> to vector<8x256xf32>
    %334 = arith.addf %330, %333 : vector<8x256xf32>
    %cst_139 = arith.constant 0.000000e+00 : f32
    %335 = vector.broadcast %cst_139 : f32 to vector<8x256xf32>
    %336 = arith.maximumf %334, %335 : vector<8x256xf32>
    %c1_140 = arith.constant 1 : index
    %c0_141 = arith.constant 0 : index
    %c0_142 = arith.constant 0 : index
    %337 = vector.load %arg15[%c1_140, %c0_141, %c0_142] : memref<4x256x128xf32, #tpu.memory_space<vmem>>, vector<1x256x128xf32>
    %338 = vector.shape_cast %337 : vector<1x256x128xf32> to vector<256x128xf32>
    %cst_143 = arith.constant dense<0.000000e+00> : vector<8x128xf32>
    %339 = tpu.matmul %336, %338, %cst_143 {dimension_numbers = #tpu.dot_dimension_numbers<[1], [0], [0], [1], [0, 0, 1, 1], [], []>} : vector<8x256xf32>, vector<256x128xf32>, vector<8x128xf32> -> vector<8x128xf32>
    %c1_144 = arith.constant 1 : index
    %c0_145 = arith.constant 0 : index
    %c0_146 = arith.constant 0 : index
    %340 = vector.load %arg16[%c1_144, %c0_145, %c0_146] : memref<4x1x128xf32, #tpu.memory_space<vmem>>, vector<1x1x128xf32>
    %341 = vector.shape_cast %340 : vector<1x1x128xf32> to vector<1x128xf32>
    %342 = vector.broadcast %341 : vector<1x128xf32> to vector<8x128xf32>
    %343 = arith.addf %339, %342 : vector<8x128xf32>
    %344 = arith.addf %327, %343 : vector<8x128xf32>
    %345 = vector.extract_strided_slice %227 {offsets = [2, 0], sizes = [1, 128], strides = [1, 1]} : vector<3x128xf32> to vector<1x128xf32>
    %346 = vector.extract_strided_slice %229 {offsets = [2, 0], sizes = [1, 128], strides = [1, 1]} : vector<3x128xf32> to vector<1x128xf32>
    %cst_147 = arith.constant dense<0.000000e+00> : vector<8xf32>
    %347 = vector.multi_reduction <add>, %344, %cst_147 [1] : vector<8x128xf32> to vector<8xf32>
    %348 = vector.shape_cast %347 : vector<8xf32> to vector<8x1xf32>
    %cst_148 = arith.constant 1.280000e+02 : f32
    %349 = vector.broadcast %cst_148 : f32 to vector<8x1xf32>
    %350 = arith.divf %348, %349 : vector<8x1xf32>
    %351 = vector.broadcast %350 : vector<8x1xf32> to vector<8x128xf32>
    %352 = arith.subf %344, %351 : vector<8x128xf32>
    %353 = arith.mulf %352, %352 : vector<8x128xf32>
    %cst_149 = arith.constant dense<0.000000e+00> : vector<8xf32>
    %354 = vector.multi_reduction <add>, %353, %cst_149 [1] : vector<8x128xf32> to vector<8xf32>
    %355 = vector.shape_cast %354 : vector<8xf32> to vector<8x1xf32>
    %cst_150 = arith.constant 1.280000e+02 : f32
    %356 = vector.broadcast %cst_150 : f32 to vector<8x1xf32>
    %357 = arith.divf %355, %356 : vector<8x1xf32>
    %358 = vector.broadcast %350 : vector<8x1xf32> to vector<8x128xf32>
    %359 = arith.subf %344, %358 : vector<8x128xf32>
    %cst_151 = arith.constant 9.99999974E-6 : f32
    %360 = vector.broadcast %cst_151 : f32 to vector<8x1xf32>
    %361 = arith.addf %357, %360 : vector<8x1xf32>
    %362 = math.rsqrt %361 : vector<8x1xf32>
    %363 = vector.broadcast %362 : vector<8x1xf32> to vector<8x128xf32>
    %364 = arith.mulf %359, %363 : vector<8x128xf32>
    %365 = vector.broadcast %345 : vector<1x128xf32> to vector<8x128xf32>
    %366 = arith.mulf %364, %365 : vector<8x128xf32>
    %367 = vector.broadcast %346 : vector<1x128xf32> to vector<8x128xf32>
    %368 = arith.addf %366, %367 : vector<8x128xf32>
    %c2 = arith.constant 2 : index
    %c0_152 = arith.constant 0 : index
    %c0_153 = arith.constant 0 : index
    %369 = vector.load %arg17[%c2, %c0_152, %c0_153] : memref<4x3x128xf32, #tpu.memory_space<vmem>>, vector<1x3x128xf32>
    %370 = vector.shape_cast %369 : vector<1x3x128xf32> to vector<3x128xf32>
    %c2_154 = arith.constant 2 : index
    %c0_155 = arith.constant 0 : index
    %c0_156 = arith.constant 0 : index
    %371 = vector.load %arg18[%c2_154, %c0_155, %c0_156] : memref<4x3x128xf32, #tpu.memory_space<vmem>>, vector<1x3x128xf32>
    %372 = vector.shape_cast %371 : vector<1x3x128xf32> to vector<3x128xf32>
    %c2_157 = arith.constant 2 : index
    %c0_158 = arith.constant 0 : index
    %c0_159 = arith.constant 0 : index
    %373 = vector.load %arg9[%c2_157, %c0_158, %c0_159] : memref<4x128x384xf32, #tpu.memory_space<vmem>>, vector<1x128x384xf32>
    %374 = vector.shape_cast %373 : vector<1x128x384xf32> to vector<128x384xf32>
    %c2_160 = arith.constant 2 : index
    %c0_161 = arith.constant 0 : index
    %c0_162 = arith.constant 0 : index
    %375 = vector.load %arg10[%c2_160, %c0_161, %c0_162] : memref<4x1x384xf32, #tpu.memory_space<vmem>>, vector<1x1x384xf32>
    %376 = vector.shape_cast %375 : vector<1x1x384xf32> to vector<1x384xf32>
    %c2_163 = arith.constant 2 : index
    %c0_164 = arith.constant 0 : index
    %c0_165 = arith.constant 0 : index
    %377 = vector.load %arg11[%c2_163, %c0_164, %c0_165] : memref<4x128x128xf32, #tpu.memory_space<vmem>>, vector<1x128x128xf32>
    %378 = vector.shape_cast %377 : vector<1x128x128xf32> to vector<128x128xf32>
    %c2_166 = arith.constant 2 : index
    %c0_167 = arith.constant 0 : index
    %c0_168 = arith.constant 0 : index
    %379 = vector.load %arg12[%c2_166, %c0_167, %c0_168] : memref<4x1x128xf32, #tpu.memory_space<vmem>>, vector<1x1x128xf32>
    %380 = vector.shape_cast %379 : vector<1x1x128xf32> to vector<1x128xf32>
    %cst_169 = arith.constant dense<0.000000e+00> : vector<8x384xf32>
    %381 = tpu.matmul %368, %374, %cst_169 {dimension_numbers = #tpu.dot_dimension_numbers<[1], [0], [0], [1], [0, 0, 1, 1], [], []>} : vector<8x128xf32>, vector<128x384xf32>, vector<8x384xf32> -> vector<8x384xf32>
    %382 = vector.broadcast %376 : vector<1x384xf32> to vector<8x384xf32>
    %383 = arith.addf %381, %382 : vector<8x384xf32>
    %384 = vector.extract_strided_slice %383 {offsets = [0, 0], sizes = [8, 128], strides = [1, 1]} : vector<8x384xf32> to vector<8x128xf32>
    %cst_170 = arith.constant 0.353553385 : f32
    %385 = vector.broadcast %cst_170 : f32 to vector<8x128xf32>
    %386 = arith.mulf %384, %385 : vector<8x128xf32>
    %387 = vector.extract_strided_slice %383 {offsets = [0, 128], sizes = [8, 128], strides = [1, 1]} : vector<8x384xf32> to vector<8x128xf32>
    %388 = vector.extract_strided_slice %383 {offsets = [0, 256], sizes = [8, 128], strides = [1, 1]} : vector<8x384xf32> to vector<8x128xf32>
    %389 = vector.shape_cast %386 : vector<8x128xf32> to vector<8x1x128xf32>
    %390 = vector.shape_cast %387 : vector<8x128xf32> to vector<1x8x128xf32>
    %391 = vector.broadcast %389 : vector<8x1x128xf32> to vector<8x8x128xf32>
    %392 = vector.broadcast %390 : vector<1x8x128xf32> to vector<8x8x128xf32>
    %393 = arith.mulf %391, %392 : vector<8x8x128xf32>
    %394 = vector.shape_cast %393 : vector<8x8x128xf32> to vector<64x128xf32>
    %cst_171 = arith.constant dense<0.000000e+00> : vector<64x16xf32>
    %395 = tpu.matmul %394, %13, %cst_171 {dimension_numbers = #tpu.dot_dimension_numbers<[1], [0], [0], [1], [0, 0, 1, 1], [], []>} : vector<64x128xf32>, vector<128x16xf32>, vector<64x16xf32> -> vector<64x16xf32>
    %cst_172 = arith.constant 0.000000e+00 : f32
    %396 = vector.broadcast %cst_172 : f32 to vector<64x1xf32>
    %397 = arith.cmpf ogt, %35, %396 : vector<64x1xf32>
    %cst_173 = arith.constant -1.000000e+20 : f32
    %398 = vector.shape_cast %397 : vector<64x1xi1> to vector<64x1xi1>
    %399 = vector.broadcast %398 : vector<64x1xi1> to vector<64x16xi1>
    %400 = vector.broadcast %cst_173 : f32 to vector<64x16xf32>
    %401 = arith.select %399, %400, %395 : vector<64x16xi1>, vector<64x16xf32>
    %cst_174 = arith.constant dense<0xFF800000> : vector<64xf32>
    %402 = vector.multi_reduction <maximumf>, %401, %cst_174 [1] : vector<64x16xf32> to vector<64xf32>
    %403 = vector.shape_cast %402 : vector<64xf32> to vector<64x1xf32>
    %404 = vector.broadcast %403 : vector<64x1xf32> to vector<64x16xf32>
    %405 = arith.subf %401, %404 : vector<64x16xf32>
    %406 = math.exp %405 : vector<64x16xf32>
    %cst_175 = arith.constant dense<0.000000e+00> : vector<64xf32>
    %407 = vector.multi_reduction <add>, %406, %cst_175 [1] : vector<64x16xf32> to vector<64xf32>
    %408 = vector.shape_cast %407 : vector<64xf32> to vector<64x1xf32>
    %409 = tpu.reciprocal %408 {approx = true} : vector<64x1xf32> -> vector<64x1xf32>
    %410 = vector.broadcast %409 : vector<64x1xf32> to vector<64x16xf32>
    %411 = arith.mulf %406, %410 : vector<64x16xf32>
    %cst_176 = arith.constant dense<0.000000e+00> : vector<64x128xf32>
    %412 = tpu.matmul %411, %27, %cst_176 {dimension_numbers = #tpu.dot_dimension_numbers<[1], [0], [0], [1], [0, 0, 1, 1], [], []>} : vector<64x16xf32>, vector<16x128xf32>, vector<64x128xf32> -> vector<64x128xf32>
    %413 = vector.shape_cast %412 : vector<64x128xf32> to vector<8x8x128xf32>
    %414 = vector.shape_cast %388 : vector<8x128xf32> to vector<1x8x128xf32>
    %415 = vector.broadcast %414 : vector<1x8x128xf32> to vector<8x8x128xf32>
    %416 = arith.mulf %413, %415 : vector<8x8x128xf32>
    %cst_177 = arith.constant dense<0.000000e+00> : vector<8x128xf32>
    %417 = vector.multi_reduction <add>, %416, %cst_177 [1] : vector<8x8x128xf32> to vector<8x128xf32>
    %cst_178 = arith.constant dense<0.000000e+00> : vector<8x128xf32>
    %418 = tpu.matmul %417, %378, %cst_178 {dimension_numbers = #tpu.dot_dimension_numbers<[1], [0], [0], [1], [0, 0, 1, 1], [], []>} : vector<8x128xf32>, vector<128x128xf32>, vector<8x128xf32> -> vector<8x128xf32>
    %419 = vector.broadcast %380 : vector<1x128xf32> to vector<8x128xf32>
    %420 = arith.addf %418, %419 : vector<8x128xf32>
    %421 = arith.addf %368, %420 : vector<8x128xf32>
    %422 = vector.extract_strided_slice %370 {offsets = [0, 0], sizes = [1, 128], strides = [1, 1]} : vector<3x128xf32> to vector<1x128xf32>
    %423 = vector.extract_strided_slice %372 {offsets = [0, 0], sizes = [1, 128], strides = [1, 1]} : vector<3x128xf32> to vector<1x128xf32>
    %cst_179 = arith.constant dense<0.000000e+00> : vector<8xf32>
    %424 = vector.multi_reduction <add>, %421, %cst_179 [1] : vector<8x128xf32> to vector<8xf32>
    %425 = vector.shape_cast %424 : vector<8xf32> to vector<8x1xf32>
    %cst_180 = arith.constant 1.280000e+02 : f32
    %426 = vector.broadcast %cst_180 : f32 to vector<8x1xf32>
    %427 = arith.divf %425, %426 : vector<8x1xf32>
    %428 = vector.broadcast %427 : vector<8x1xf32> to vector<8x128xf32>
    %429 = arith.subf %421, %428 : vector<8x128xf32>
    %430 = arith.mulf %429, %429 : vector<8x128xf32>
    %cst_181 = arith.constant dense<0.000000e+00> : vector<8xf32>
    %431 = vector.multi_reduction <add>, %430, %cst_181 [1] : vector<8x128xf32> to vector<8xf32>
    %432 = vector.shape_cast %431 : vector<8xf32> to vector<8x1xf32>
    %cst_182 = arith.constant 1.280000e+02 : f32
    %433 = vector.broadcast %cst_182 : f32 to vector<8x1xf32>
    %434 = arith.divf %432, %433 : vector<8x1xf32>
    %435 = vector.broadcast %427 : vector<8x1xf32> to vector<8x128xf32>
    %436 = arith.subf %421, %435 : vector<8x128xf32>
    %cst_183 = arith.constant 9.99999974E-6 : f32
    %437 = vector.broadcast %cst_183 : f32 to vector<8x1xf32>
    %438 = arith.addf %434, %437 : vector<8x1xf32>
    %439 = math.rsqrt %438 : vector<8x1xf32>
    %440 = vector.broadcast %439 : vector<8x1xf32> to vector<8x128xf32>
    %441 = arith.mulf %436, %440 : vector<8x128xf32>
    %442 = vector.broadcast %422 : vector<1x128xf32> to vector<8x128xf32>
    %443 = arith.mulf %441, %442 : vector<8x128xf32>
    %444 = vector.broadcast %423 : vector<1x128xf32> to vector<8x128xf32>
    %445 = arith.addf %443, %444 : vector<8x128xf32>
    %446 = arith.addf %445, %82 : vector<8x128xf32>
    %447 = vector.extract_strided_slice %370 {offsets = [1, 0], sizes = [1, 128], strides = [1, 1]} : vector<3x128xf32> to vector<1x128xf32>
    %448 = vector.extract_strided_slice %372 {offsets = [1, 0], sizes = [1, 128], strides = [1, 1]} : vector<3x128xf32> to vector<1x128xf32>
    %cst_184 = arith.constant dense<0.000000e+00> : vector<8xf32>
    %449 = vector.multi_reduction <add>, %446, %cst_184 [1] : vector<8x128xf32> to vector<8xf32>
    %450 = vector.shape_cast %449 : vector<8xf32> to vector<8x1xf32>
    %cst_185 = arith.constant 1.280000e+02 : f32
    %451 = vector.broadcast %cst_185 : f32 to vector<8x1xf32>
    %452 = arith.divf %450, %451 : vector<8x1xf32>
    %453 = vector.broadcast %452 : vector<8x1xf32> to vector<8x128xf32>
    %454 = arith.subf %446, %453 : vector<8x128xf32>
    %455 = arith.mulf %454, %454 : vector<8x128xf32>
    %cst_186 = arith.constant dense<0.000000e+00> : vector<8xf32>
    %456 = vector.multi_reduction <add>, %455, %cst_186 [1] : vector<8x128xf32> to vector<8xf32>
    %457 = vector.shape_cast %456 : vector<8xf32> to vector<8x1xf32>
    %cst_187 = arith.constant 1.280000e+02 : f32
    %458 = vector.broadcast %cst_187 : f32 to vector<8x1xf32>
    %459 = arith.divf %457, %458 : vector<8x1xf32>
    %460 = vector.broadcast %452 : vector<8x1xf32> to vector<8x128xf32>
    %461 = arith.subf %446, %460 : vector<8x128xf32>
    %cst_188 = arith.constant 9.99999974E-6 : f32
    %462 = vector.broadcast %cst_188 : f32 to vector<8x1xf32>
    %463 = arith.addf %459, %462 : vector<8x1xf32>
    %464 = math.rsqrt %463 : vector<8x1xf32>
    %465 = vector.broadcast %464 : vector<8x1xf32> to vector<8x128xf32>
    %466 = arith.mulf %461, %465 : vector<8x128xf32>
    %467 = vector.broadcast %447 : vector<1x128xf32> to vector<8x128xf32>
    %468 = arith.mulf %466, %467 : vector<8x128xf32>
    %469 = vector.broadcast %448 : vector<1x128xf32> to vector<8x128xf32>
    %470 = arith.addf %468, %469 : vector<8x128xf32>
    %c2_189 = arith.constant 2 : index
    %c0_190 = arith.constant 0 : index
    %c0_191 = arith.constant 0 : index
    %471 = vector.load %arg13[%c2_189, %c0_190, %c0_191] : memref<4x128x256xf32, #tpu.memory_space<vmem>>, vector<1x128x256xf32>
    %472 = vector.shape_cast %471 : vector<1x128x256xf32> to vector<128x256xf32>
    %cst_192 = arith.constant dense<0.000000e+00> : vector<8x256xf32>
    %473 = tpu.matmul %470, %472, %cst_192 {dimension_numbers = #tpu.dot_dimension_numbers<[1], [0], [0], [1], [0, 0, 1, 1], [], []>} : vector<8x128xf32>, vector<128x256xf32>, vector<8x256xf32> -> vector<8x256xf32>
    %c2_193 = arith.constant 2 : index
    %c0_194 = arith.constant 0 : index
    %c0_195 = arith.constant 0 : index
    %474 = vector.load %arg14[%c2_193, %c0_194, %c0_195] : memref<4x1x256xf32, #tpu.memory_space<vmem>>, vector<1x1x256xf32>
    %475 = vector.shape_cast %474 : vector<1x1x256xf32> to vector<1x256xf32>
    %476 = vector.broadcast %475 : vector<1x256xf32> to vector<8x256xf32>
    %477 = arith.addf %473, %476 : vector<8x256xf32>
    %cst_196 = arith.constant 0.000000e+00 : f32
    %478 = vector.broadcast %cst_196 : f32 to vector<8x256xf32>
    %479 = arith.maximumf %477, %478 : vector<8x256xf32>
    %c2_197 = arith.constant 2 : index
    %c0_198 = arith.constant 0 : index
    %c0_199 = arith.constant 0 : index
    %480 = vector.load %arg15[%c2_197, %c0_198, %c0_199] : memref<4x256x128xf32, #tpu.memory_space<vmem>>, vector<1x256x128xf32>
    %481 = vector.shape_cast %480 : vector<1x256x128xf32> to vector<256x128xf32>
    %cst_200 = arith.constant dense<0.000000e+00> : vector<8x128xf32>
    %482 = tpu.matmul %479, %481, %cst_200 {dimension_numbers = #tpu.dot_dimension_numbers<[1], [0], [0], [1], [0, 0, 1, 1], [], []>} : vector<8x256xf32>, vector<256x128xf32>, vector<8x128xf32> -> vector<8x128xf32>
    %c2_201 = arith.constant 2 : index
    %c0_202 = arith.constant 0 : index
    %c0_203 = arith.constant 0 : index
    %483 = vector.load %arg16[%c2_201, %c0_202, %c0_203] : memref<4x1x128xf32, #tpu.memory_space<vmem>>, vector<1x1x128xf32>
    %484 = vector.shape_cast %483 : vector<1x1x128xf32> to vector<1x128xf32>
    %485 = vector.broadcast %484 : vector<1x128xf32> to vector<8x128xf32>
    %486 = arith.addf %482, %485 : vector<8x128xf32>
    %487 = arith.addf %470, %486 : vector<8x128xf32>
    %488 = vector.extract_strided_slice %370 {offsets = [2, 0], sizes = [1, 128], strides = [1, 1]} : vector<3x128xf32> to vector<1x128xf32>
    %489 = vector.extract_strided_slice %372 {offsets = [2, 0], sizes = [1, 128], strides = [1, 1]} : vector<3x128xf32> to vector<1x128xf32>
    %cst_204 = arith.constant dense<0.000000e+00> : vector<8xf32>
    %490 = vector.multi_reduction <add>, %487, %cst_204 [1] : vector<8x128xf32> to vector<8xf32>
    %491 = vector.shape_cast %490 : vector<8xf32> to vector<8x1xf32>
    %cst_205 = arith.constant 1.280000e+02 : f32
    %492 = vector.broadcast %cst_205 : f32 to vector<8x1xf32>
    %493 = arith.divf %491, %492 : vector<8x1xf32>
    %494 = vector.broadcast %493 : vector<8x1xf32> to vector<8x128xf32>
    %495 = arith.subf %487, %494 : vector<8x128xf32>
    %496 = arith.mulf %495, %495 : vector<8x128xf32>
    %cst_206 = arith.constant dense<0.000000e+00> : vector<8xf32>
    %497 = vector.multi_reduction <add>, %496, %cst_206 [1] : vector<8x128xf32> to vector<8xf32>
    %498 = vector.shape_cast %497 : vector<8xf32> to vector<8x1xf32>
    %cst_207 = arith.constant 1.280000e+02 : f32
    %499 = vector.broadcast %cst_207 : f32 to vector<8x1xf32>
    %500 = arith.divf %498, %499 : vector<8x1xf32>
    %501 = vector.broadcast %493 : vector<8x1xf32> to vector<8x128xf32>
    %502 = arith.subf %487, %501 : vector<8x128xf32>
    %cst_208 = arith.constant 9.99999974E-6 : f32
    %503 = vector.broadcast %cst_208 : f32 to vector<8x1xf32>
    %504 = arith.addf %500, %503 : vector<8x1xf32>
    %505 = math.rsqrt %504 : vector<8x1xf32>
    %506 = vector.broadcast %505 : vector<8x1xf32> to vector<8x128xf32>
    %507 = arith.mulf %502, %506 : vector<8x128xf32>
    %508 = vector.broadcast %488 : vector<1x128xf32> to vector<8x128xf32>
    %509 = arith.mulf %507, %508 : vector<8x128xf32>
    %510 = vector.broadcast %489 : vector<1x128xf32> to vector<8x128xf32>
    %511 = arith.addf %509, %510 : vector<8x128xf32>
    %c3 = arith.constant 3 : index
    %c0_209 = arith.constant 0 : index
    %c0_210 = arith.constant 0 : index
    %512 = vector.load %arg17[%c3, %c0_209, %c0_210] : memref<4x3x128xf32, #tpu.memory_space<vmem>>, vector<1x3x128xf32>
    %513 = vector.shape_cast %512 : vector<1x3x128xf32> to vector<3x128xf32>
    %c3_211 = arith.constant 3 : index
    %c0_212 = arith.constant 0 : index
    %c0_213 = arith.constant 0 : index
    %514 = vector.load %arg18[%c3_211, %c0_212, %c0_213] : memref<4x3x128xf32, #tpu.memory_space<vmem>>, vector<1x3x128xf32>
    %515 = vector.shape_cast %514 : vector<1x3x128xf32> to vector<3x128xf32>
    %c3_214 = arith.constant 3 : index
    %c0_215 = arith.constant 0 : index
    %c0_216 = arith.constant 0 : index
    %516 = vector.load %arg9[%c3_214, %c0_215, %c0_216] : memref<4x128x384xf32, #tpu.memory_space<vmem>>, vector<1x128x384xf32>
    %517 = vector.shape_cast %516 : vector<1x128x384xf32> to vector<128x384xf32>
    %c3_217 = arith.constant 3 : index
    %c0_218 = arith.constant 0 : index
    %c0_219 = arith.constant 0 : index
    %518 = vector.load %arg10[%c3_217, %c0_218, %c0_219] : memref<4x1x384xf32, #tpu.memory_space<vmem>>, vector<1x1x384xf32>
    %519 = vector.shape_cast %518 : vector<1x1x384xf32> to vector<1x384xf32>
    %c3_220 = arith.constant 3 : index
    %c0_221 = arith.constant 0 : index
    %c0_222 = arith.constant 0 : index
    %520 = vector.load %arg11[%c3_220, %c0_221, %c0_222] : memref<4x128x128xf32, #tpu.memory_space<vmem>>, vector<1x128x128xf32>
    %521 = vector.shape_cast %520 : vector<1x128x128xf32> to vector<128x128xf32>
    %c3_223 = arith.constant 3 : index
    %c0_224 = arith.constant 0 : index
    %c0_225 = arith.constant 0 : index
    %522 = vector.load %arg12[%c3_223, %c0_224, %c0_225] : memref<4x1x128xf32, #tpu.memory_space<vmem>>, vector<1x1x128xf32>
    %523 = vector.shape_cast %522 : vector<1x1x128xf32> to vector<1x128xf32>
    %cst_226 = arith.constant dense<0.000000e+00> : vector<8x384xf32>
    %524 = tpu.matmul %511, %517, %cst_226 {dimension_numbers = #tpu.dot_dimension_numbers<[1], [0], [0], [1], [0, 0, 1, 1], [], []>} : vector<8x128xf32>, vector<128x384xf32>, vector<8x384xf32> -> vector<8x384xf32>
    %525 = vector.broadcast %519 : vector<1x384xf32> to vector<8x384xf32>
    %526 = arith.addf %524, %525 : vector<8x384xf32>
    %527 = vector.extract_strided_slice %526 {offsets = [0, 0], sizes = [8, 128], strides = [1, 1]} : vector<8x384xf32> to vector<8x128xf32>
    %cst_227 = arith.constant 0.353553385 : f32
    %528 = vector.broadcast %cst_227 : f32 to vector<8x128xf32>
    %529 = arith.mulf %527, %528 : vector<8x128xf32>
    %530 = vector.extract_strided_slice %526 {offsets = [0, 128], sizes = [8, 128], strides = [1, 1]} : vector<8x384xf32> to vector<8x128xf32>
    %531 = vector.extract_strided_slice %526 {offsets = [0, 256], sizes = [8, 128], strides = [1, 1]} : vector<8x384xf32> to vector<8x128xf32>
    %532 = vector.shape_cast %529 : vector<8x128xf32> to vector<8x1x128xf32>
    %533 = vector.shape_cast %530 : vector<8x128xf32> to vector<1x8x128xf32>
    %534 = vector.broadcast %532 : vector<8x1x128xf32> to vector<8x8x128xf32>
    %535 = vector.broadcast %533 : vector<1x8x128xf32> to vector<8x8x128xf32>
    %536 = arith.mulf %534, %535 : vector<8x8x128xf32>
    %537 = vector.shape_cast %536 : vector<8x8x128xf32> to vector<64x128xf32>
    %cst_228 = arith.constant dense<0.000000e+00> : vector<64x16xf32>
    %538 = tpu.matmul %537, %13, %cst_228 {dimension_numbers = #tpu.dot_dimension_numbers<[1], [0], [0], [1], [0, 0, 1, 1], [], []>} : vector<64x128xf32>, vector<128x16xf32>, vector<64x16xf32> -> vector<64x16xf32>
    %cst_229 = arith.constant 0.000000e+00 : f32
    %539 = vector.broadcast %cst_229 : f32 to vector<64x1xf32>
    %540 = arith.cmpf ogt, %35, %539 : vector<64x1xf32>
    %cst_230 = arith.constant -1.000000e+20 : f32
    %541 = vector.shape_cast %540 : vector<64x1xi1> to vector<64x1xi1>
    %542 = vector.broadcast %541 : vector<64x1xi1> to vector<64x16xi1>
    %543 = vector.broadcast %cst_230 : f32 to vector<64x16xf32>
    %544 = arith.select %542, %543, %538 : vector<64x16xi1>, vector<64x16xf32>
    %cst_231 = arith.constant dense<0xFF800000> : vector<64xf32>
    %545 = vector.multi_reduction <maximumf>, %544, %cst_231 [1] : vector<64x16xf32> to vector<64xf32>
    %546 = vector.shape_cast %545 : vector<64xf32> to vector<64x1xf32>
    %547 = vector.broadcast %546 : vector<64x1xf32> to vector<64x16xf32>
    %548 = arith.subf %544, %547 : vector<64x16xf32>
    %549 = math.exp %548 : vector<64x16xf32>
    %cst_232 = arith.constant dense<0.000000e+00> : vector<64xf32>
    %550 = vector.multi_reduction <add>, %549, %cst_232 [1] : vector<64x16xf32> to vector<64xf32>
    %551 = vector.shape_cast %550 : vector<64xf32> to vector<64x1xf32>
    %552 = tpu.reciprocal %551 {approx = true} : vector<64x1xf32> -> vector<64x1xf32>
    %553 = vector.broadcast %552 : vector<64x1xf32> to vector<64x16xf32>
    %554 = arith.mulf %549, %553 : vector<64x16xf32>
    %cst_233 = arith.constant dense<0.000000e+00> : vector<64x128xf32>
    %555 = tpu.matmul %554, %27, %cst_233 {dimension_numbers = #tpu.dot_dimension_numbers<[1], [0], [0], [1], [0, 0, 1, 1], [], []>} : vector<64x16xf32>, vector<16x128xf32>, vector<64x128xf32> -> vector<64x128xf32>
    %556 = vector.shape_cast %555 : vector<64x128xf32> to vector<8x8x128xf32>
    %557 = vector.shape_cast %531 : vector<8x128xf32> to vector<1x8x128xf32>
    %558 = vector.broadcast %557 : vector<1x8x128xf32> to vector<8x8x128xf32>
    %559 = arith.mulf %556, %558 : vector<8x8x128xf32>
    %cst_234 = arith.constant dense<0.000000e+00> : vector<8x128xf32>
    %560 = vector.multi_reduction <add>, %559, %cst_234 [1] : vector<8x8x128xf32> to vector<8x128xf32>
    %cst_235 = arith.constant dense<0.000000e+00> : vector<8x128xf32>
    %561 = tpu.matmul %560, %521, %cst_235 {dimension_numbers = #tpu.dot_dimension_numbers<[1], [0], [0], [1], [0, 0, 1, 1], [], []>} : vector<8x128xf32>, vector<128x128xf32>, vector<8x128xf32> -> vector<8x128xf32>
    %562 = vector.broadcast %523 : vector<1x128xf32> to vector<8x128xf32>
    %563 = arith.addf %561, %562 : vector<8x128xf32>
    %564 = arith.addf %511, %563 : vector<8x128xf32>
    %565 = vector.extract_strided_slice %513 {offsets = [0, 0], sizes = [1, 128], strides = [1, 1]} : vector<3x128xf32> to vector<1x128xf32>
    %566 = vector.extract_strided_slice %515 {offsets = [0, 0], sizes = [1, 128], strides = [1, 1]} : vector<3x128xf32> to vector<1x128xf32>
    %cst_236 = arith.constant dense<0.000000e+00> : vector<8xf32>
    %567 = vector.multi_reduction <add>, %564, %cst_236 [1] : vector<8x128xf32> to vector<8xf32>
    %568 = vector.shape_cast %567 : vector<8xf32> to vector<8x1xf32>
    %cst_237 = arith.constant 1.280000e+02 : f32
    %569 = vector.broadcast %cst_237 : f32 to vector<8x1xf32>
    %570 = arith.divf %568, %569 : vector<8x1xf32>
    %571 = vector.broadcast %570 : vector<8x1xf32> to vector<8x128xf32>
    %572 = arith.subf %564, %571 : vector<8x128xf32>
    %573 = arith.mulf %572, %572 : vector<8x128xf32>
    %cst_238 = arith.constant dense<0.000000e+00> : vector<8xf32>
    %574 = vector.multi_reduction <add>, %573, %cst_238 [1] : vector<8x128xf32> to vector<8xf32>
    %575 = vector.shape_cast %574 : vector<8xf32> to vector<8x1xf32>
    %cst_239 = arith.constant 1.280000e+02 : f32
    %576 = vector.broadcast %cst_239 : f32 to vector<8x1xf32>
    %577 = arith.divf %575, %576 : vector<8x1xf32>
    %578 = vector.broadcast %570 : vector<8x1xf32> to vector<8x128xf32>
    %579 = arith.subf %564, %578 : vector<8x128xf32>
    %cst_240 = arith.constant 9.99999974E-6 : f32
    %580 = vector.broadcast %cst_240 : f32 to vector<8x1xf32>
    %581 = arith.addf %577, %580 : vector<8x1xf32>
    %582 = math.rsqrt %581 : vector<8x1xf32>
    %583 = vector.broadcast %582 : vector<8x1xf32> to vector<8x128xf32>
    %584 = arith.mulf %579, %583 : vector<8x128xf32>
    %585 = vector.broadcast %565 : vector<1x128xf32> to vector<8x128xf32>
    %586 = arith.mulf %584, %585 : vector<8x128xf32>
    %587 = vector.broadcast %566 : vector<1x128xf32> to vector<8x128xf32>
    %588 = arith.addf %586, %587 : vector<8x128xf32>
    %589 = arith.addf %588, %82 : vector<8x128xf32>
    %590 = vector.extract_strided_slice %513 {offsets = [1, 0], sizes = [1, 128], strides = [1, 1]} : vector<3x128xf32> to vector<1x128xf32>
    %591 = vector.extract_strided_slice %515 {offsets = [1, 0], sizes = [1, 128], strides = [1, 1]} : vector<3x128xf32> to vector<1x128xf32>
    %cst_241 = arith.constant dense<0.000000e+00> : vector<8xf32>
    %592 = vector.multi_reduction <add>, %589, %cst_241 [1] : vector<8x128xf32> to vector<8xf32>
    %593 = vector.shape_cast %592 : vector<8xf32> to vector<8x1xf32>
    %cst_242 = arith.constant 1.280000e+02 : f32
    %594 = vector.broadcast %cst_242 : f32 to vector<8x1xf32>
    %595 = arith.divf %593, %594 : vector<8x1xf32>
    %596 = vector.broadcast %595 : vector<8x1xf32> to vector<8x128xf32>
    %597 = arith.subf %589, %596 : vector<8x128xf32>
    %598 = arith.mulf %597, %597 : vector<8x128xf32>
    %cst_243 = arith.constant dense<0.000000e+00> : vector<8xf32>
    %599 = vector.multi_reduction <add>, %598, %cst_243 [1] : vector<8x128xf32> to vector<8xf32>
    %600 = vector.shape_cast %599 : vector<8xf32> to vector<8x1xf32>
    %cst_244 = arith.constant 1.280000e+02 : f32
    %601 = vector.broadcast %cst_244 : f32 to vector<8x1xf32>
    %602 = arith.divf %600, %601 : vector<8x1xf32>
    %603 = vector.broadcast %595 : vector<8x1xf32> to vector<8x128xf32>
    %604 = arith.subf %589, %603 : vector<8x128xf32>
    %cst_245 = arith.constant 9.99999974E-6 : f32
    %605 = vector.broadcast %cst_245 : f32 to vector<8x1xf32>
    %606 = arith.addf %602, %605 : vector<8x1xf32>
    %607 = math.rsqrt %606 : vector<8x1xf32>
    %608 = vector.broadcast %607 : vector<8x1xf32> to vector<8x128xf32>
    %609 = arith.mulf %604, %608 : vector<8x128xf32>
    %610 = vector.broadcast %590 : vector<1x128xf32> to vector<8x128xf32>
    %611 = arith.mulf %609, %610 : vector<8x128xf32>
    %612 = vector.broadcast %591 : vector<1x128xf32> to vector<8x128xf32>
    %613 = arith.addf %611, %612 : vector<8x128xf32>
    %c3_246 = arith.constant 3 : index
    %c0_247 = arith.constant 0 : index
    %c0_248 = arith.constant 0 : index
    %614 = vector.load %arg13[%c3_246, %c0_247, %c0_248] : memref<4x128x256xf32, #tpu.memory_space<vmem>>, vector<1x128x256xf32>
    %615 = vector.shape_cast %614 : vector<1x128x256xf32> to vector<128x256xf32>
    %cst_249 = arith.constant dense<0.000000e+00> : vector<8x256xf32>
    %616 = tpu.matmul %613, %615, %cst_249 {dimension_numbers = #tpu.dot_dimension_numbers<[1], [0], [0], [1], [0, 0, 1, 1], [], []>} : vector<8x128xf32>, vector<128x256xf32>, vector<8x256xf32> -> vector<8x256xf32>
    %c3_250 = arith.constant 3 : index
    %c0_251 = arith.constant 0 : index
    %c0_252 = arith.constant 0 : index
    %617 = vector.load %arg14[%c3_250, %c0_251, %c0_252] : memref<4x1x256xf32, #tpu.memory_space<vmem>>, vector<1x1x256xf32>
    %618 = vector.shape_cast %617 : vector<1x1x256xf32> to vector<1x256xf32>
    %619 = vector.broadcast %618 : vector<1x256xf32> to vector<8x256xf32>
    %620 = arith.addf %616, %619 : vector<8x256xf32>
    %cst_253 = arith.constant 0.000000e+00 : f32
    %621 = vector.broadcast %cst_253 : f32 to vector<8x256xf32>
    %622 = arith.maximumf %620, %621 : vector<8x256xf32>
    %c3_254 = arith.constant 3 : index
    %c0_255 = arith.constant 0 : index
    %c0_256 = arith.constant 0 : index
    %623 = vector.load %arg15[%c3_254, %c0_255, %c0_256] : memref<4x256x128xf32, #tpu.memory_space<vmem>>, vector<1x256x128xf32>
    %624 = vector.shape_cast %623 : vector<1x256x128xf32> to vector<256x128xf32>
    %cst_257 = arith.constant dense<0.000000e+00> : vector<8x128xf32>
    %625 = tpu.matmul %622, %624, %cst_257 {dimension_numbers = #tpu.dot_dimension_numbers<[1], [0], [0], [1], [0, 0, 1, 1], [], []>} : vector<8x256xf32>, vector<256x128xf32>, vector<8x128xf32> -> vector<8x128xf32>
    %c3_258 = arith.constant 3 : index
    %c0_259 = arith.constant 0 : index
    %c0_260 = arith.constant 0 : index
    %626 = vector.load %arg16[%c3_258, %c0_259, %c0_260] : memref<4x1x128xf32, #tpu.memory_space<vmem>>, vector<1x1x128xf32>
    %627 = vector.shape_cast %626 : vector<1x1x128xf32> to vector<1x128xf32>
    %628 = vector.broadcast %627 : vector<1x128xf32> to vector<8x128xf32>
    %629 = arith.addf %625, %628 : vector<8x128xf32>
    %630 = arith.addf %613, %629 : vector<8x128xf32>
    %631 = vector.extract_strided_slice %513 {offsets = [2, 0], sizes = [1, 128], strides = [1, 1]} : vector<3x128xf32> to vector<1x128xf32>
    %632 = vector.extract_strided_slice %515 {offsets = [2, 0], sizes = [1, 128], strides = [1, 1]} : vector<3x128xf32> to vector<1x128xf32>
    %cst_261 = arith.constant dense<0.000000e+00> : vector<8xf32>
    %633 = vector.multi_reduction <add>, %630, %cst_261 [1] : vector<8x128xf32> to vector<8xf32>
    %634 = vector.shape_cast %633 : vector<8xf32> to vector<8x1xf32>
    %cst_262 = arith.constant 1.280000e+02 : f32
    %635 = vector.broadcast %cst_262 : f32 to vector<8x1xf32>
    %636 = arith.divf %634, %635 : vector<8x1xf32>
    %637 = vector.broadcast %636 : vector<8x1xf32> to vector<8x128xf32>
    %638 = arith.subf %630, %637 : vector<8x128xf32>
    %639 = arith.mulf %638, %638 : vector<8x128xf32>
    %cst_263 = arith.constant dense<0.000000e+00> : vector<8xf32>
    %640 = vector.multi_reduction <add>, %639, %cst_263 [1] : vector<8x128xf32> to vector<8xf32>
    %641 = vector.shape_cast %640 : vector<8xf32> to vector<8x1xf32>
    %cst_264 = arith.constant 1.280000e+02 : f32
    %642 = vector.broadcast %cst_264 : f32 to vector<8x1xf32>
    %643 = arith.divf %641, %642 : vector<8x1xf32>
    %644 = vector.broadcast %636 : vector<8x1xf32> to vector<8x128xf32>
    %645 = arith.subf %630, %644 : vector<8x128xf32>
    %cst_265 = arith.constant 9.99999974E-6 : f32
    %646 = vector.broadcast %cst_265 : f32 to vector<8x1xf32>
    %647 = arith.addf %643, %646 : vector<8x1xf32>
    %648 = math.rsqrt %647 : vector<8x1xf32>
    %649 = vector.broadcast %648 : vector<8x1xf32> to vector<8x128xf32>
    %650 = arith.mulf %645, %649 : vector<8x128xf32>
    %651 = vector.broadcast %631 : vector<1x128xf32> to vector<8x128xf32>
    %652 = arith.mulf %650, %651 : vector<8x128xf32>
    %653 = vector.broadcast %632 : vector<1x128xf32> to vector<8x128xf32>
    %654 = arith.addf %652, %653 : vector<8x128xf32>
    %c0_266 = arith.constant 0 : index
    %c0_267 = arith.constant 0 : index
    %c0_268 = arith.constant 0 : index
    %655 = vector.load %arg19[%c0_266, %c0_267, %c0_268] : memref<1x8x128xf32, #tpu.memory_space<vmem>>, vector<1x8x128xf32>
    %656 = vector.shape_cast %655 : vector<1x8x128xf32> to vector<8x128xf32>
    %657 = vector.shape_cast %654 : vector<8x128xf32> to vector<1x8x128xf32>
    tpu.vector_store %arg19[%c0_266, %c0_267, %c0_268], %657 {strides = array<i32>} : memref<1x8x128xf32, #tpu.memory_space<vmem>>, vector<1x8x128xf32>,
    return
  }
  func.func @transform_0(%arg0: i32) -> (i32, i32, i32) {
    %c0_i32 = arith.constant 0 : i32
    %c0_i32_0 = arith.constant 0 : i32
    %c0_i32_1 = arith.constant 0 : i32
    return %arg0, %c0_i32, %c0_i32_0 : i32, i32, i32
  }
  func.func @transform_1(%arg0: i32) -> (i32, i32, i32) {
    %c0_i32 = arith.constant 0 : i32
    %c0_i32_0 = arith.constant 0 : i32
    %c0_i32_1 = arith.constant 0 : i32
    return %arg0, %c0_i32, %c0_i32_0 : i32, i32, i32
  }
  func.func @transform_2(%arg0: i32) -> (i32, i32, i32) {
    %c0_i32 = arith.constant 0 : i32
    %c0_i32_0 = arith.constant 0 : i32
    %c0_i32_1 = arith.constant 0 : i32
    return %arg0, %c0_i32, %c0_i32_0 : i32, i32, i32
  }
  func.func @transform_3(%arg0: i32) -> (i32, i32, i32) {
    %c0_i32 = arith.constant 0 : i32
    %c0_i32_0 = arith.constant 0 : i32
    %c0_i32_1 = arith.constant 0 : i32
    return %arg0, %c0_i32, %c0_i32_0 : i32, i32, i32
  }
  func.func @transform_4(%arg0: i32) -> (i32, i32) {
    %c0_i32 = arith.constant 0 : i32
    %c0_i32_0 = arith.constant 0 : i32
    %c0_i32_1 = arith.constant 0 : i32
    return %c0_i32, %c0_i32_0 : i32, i32
  }
  func.func @transform_5(%arg0: i32) -> (i32, i32) {
    %c0_i32 = arith.constant 0 : i32
    %c0_i32_0 = arith.constant 0 : i32
    %c0_i32_1 = arith.constant 0 : i32
    return %c0_i32, %c0_i32_0 : i32, i32
  }
  func.func @transform_6(%arg0: i32) -> (i32, i32) {
    %c0_i32 = arith.constant 0 : i32
    %c0_i32_0 = arith.constant 0 : i32
    %c0_i32_1 = arith.constant 0 : i32
    return %c0_i32, %c0_i32_0 : i32, i32
  }
  func.func @transform_7(%arg0: i32) -> (i32, i32) {
    %c0_i32 = arith.constant 0 : i32
    %c0_i32_0 = arith.constant 0 : i32
    %c0_i32_1 = arith.constant 0 : i32
    return %c0_i32, %c0_i32_0 : i32, i32
  }
  func.func @transform_8(%arg0: i32) -> (i32, i32, i32) {
    %c0_i32 = arith.constant 0 : i32
    %c0_i32_0 = arith.constant 0 : i32
    %c0_i32_1 = arith.constant 0 : i32
    %c0_i32_2 = arith.constant 0 : i32
    return %c0_i32, %c0_i32_0, %c0_i32_1 : i32, i32, i32
  }
  func.func @transform_9(%arg0: i32) -> (i32, i32, i32) {
    %c0_i32 = arith.constant 0 : i32
    %c0_i32_0 = arith.constant 0 : i32
    %c0_i32_1 = arith.constant 0 : i32
    %c0_i32_2 = arith.constant 0 : i32
    return %c0_i32, %c0_i32_0, %c0_i32_1 : i32, i32, i32
  }
  func.func @transform_10(%arg0: i32) -> (i32, i32, i32) {
    %c0_i32 = arith.constant 0 : i32
    %c0_i32_0 = arith.constant 0 : i32
    %c0_i32_1 = arith.constant 0 : i32
    %c0_i32_2 = arith.constant 0 : i32
    return %c0_i32, %c0_i32_0, %c0_i32_1 : i32, i32, i32
  }
  func.func @transform_11(%arg0: i32) -> (i32, i32, i32) {
    %c0_i32 = arith.constant 0 : i32
    %c0_i32_0 = arith.constant 0 : i32
    %c0_i32_1 = arith.constant 0 : i32
    %c0_i32_2 = arith.constant 0 : i32
    return %c0_i32, %c0_i32_0, %c0_i32_1 : i32, i32, i32
  }
  func.func @transform_12(%arg0: i32) -> (i32, i32, i32) {
    %c0_i32 = arith.constant 0 : i32
    %c0_i32_0 = arith.constant 0 : i32
    %c0_i32_1 = arith.constant 0 : i32
    %c0_i32_2 = arith.constant 0 : i32
    return %c0_i32, %c0_i32_0, %c0_i32_1 : i32, i32, i32
  }
  func.func @transform_13(%arg0: i32) -> (i32, i32, i32) {
    %c0_i32 = arith.constant 0 : i32
    %c0_i32_0 = arith.constant 0 : i32
    %c0_i32_1 = arith.constant 0 : i32
    %c0_i32_2 = arith.constant 0 : i32
    return %c0_i32, %c0_i32_0, %c0_i32_1 : i32, i32, i32
  }
  func.func @transform_14(%arg0: i32) -> (i32, i32, i32) {
    %c0_i32 = arith.constant 0 : i32
    %c0_i32_0 = arith.constant 0 : i32
    %c0_i32_1 = arith.constant 0 : i32
    %c0_i32_2 = arith.constant 0 : i32
    return %c0_i32, %c0_i32_0, %c0_i32_1 : i32, i32, i32
  }
  func.func @transform_15(%arg0: i32) -> (i32, i32, i32) {
    %c0_i32 = arith.constant 0 : i32
    %c0_i32_0 = arith.constant 0 : i32
    %c0_i32_1 = arith.constant 0 : i32
    %c0_i32_2 = arith.constant 0 : i32
    return %c0_i32, %c0_i32_0, %c0_i32_1 : i32, i32, i32
  }
  func.func @transform_16(%arg0: i32) -> (i32, i32, i32) {
    %c0_i32 = arith.constant 0 : i32
    %c0_i32_0 = arith.constant 0 : i32
    %c0_i32_1 = arith.constant 0 : i32
    %c0_i32_2 = arith.constant 0 : i32
    return %c0_i32, %c0_i32_0, %c0_i32_1 : i32, i32, i32
  }
  func.func @transform_17(%arg0: i32) -> (i32, i32, i32) {
    %c0_i32 = arith.constant 0 : i32
    %c0_i32_0 = arith.constant 0 : i32
    %c0_i32_1 = arith.constant 0 : i32
    %c0_i32_2 = arith.constant 0 : i32
    return %c0_i32, %c0_i32_0, %c0_i32_1 : i32, i32, i32
  }
  func.func @transform_18(%arg0: i32) -> (i32, i32, i32) {
    %c0_i32 = arith.constant 0 : i32
    %c0_i32_0 = arith.constant 0 : i32
    %c0_i32_1 = arith.constant 0 : i32
    return %arg0, %c0_i32, %c0_i32_0 : i32, i32, i32
  }
}

</mosaic_0001>

<llo_original>
// kernel: transformer_encoder.1
$region0: #{transformer_encoder.1}
  #allocation0 [shape = 'u32[]', space=smem, size = 0x4, offset = 0x4, fixed_abs, tag = 'smem constant byte address 0x4 - core index']
  #allocation1 [shape = 'u32[144,128]{1,0:T(1,128)}', space=vmem, size = 0x12000, scoped, tag = 'internal scratch']
  %s0 = inlined_call_operand.vmem [shape: f32[2,8,128], index: 0, kind: input, shape index: {}]
  %s1 = inlined_call_operand.vmem [shape: f32[2,8,128], index: 1, kind: input, shape index: {}]
  %s2 = inlined_call_operand.vmem [shape: f32[2,64,1], index: 2, kind: input, shape index: {}]
  %s3 = inlined_call_operand.vmem [shape: f32[2,64,1], index: 3, kind: input, shape index: {}]
  %s4 = inlined_call_operand.vmem [shape: f32[128,384], index: 4, kind: input, shape index: {}]
  %s5 = inlined_call_operand.hbm [shape: f32[1,384], index: 5, kind: input, shape index: {}]
  %s6 = inlined_call_operand.hbm [shape: f32[128,128], index: 6, kind: input, shape index: {}]
  %s7 = inlined_call_operand.vmem [shape: f32[1,128], index: 7, kind: input, shape index: {}]
  %s8 = inlined_call_operand.hbm [shape: f32[4,128,384], index: 8, kind: input, shape index: {}]
  %s9 = inlined_call_operand.vmem [shape: f32[4,1,384], index: 9, kind: input, shape index: {}]
  %s10 = inlined_call_operand.hbm [shape: f32[4,128,128], index: 10, kind: input, shape index: {}]
  %s11 = inlined_call_operand.hbm [shape: f32[4,1,128], index: 11, kind: input, shape index: {}]
  %s12 = inlined_call_operand.hbm [shape: f32[4,128,256], index: 12, kind: input, shape index: {}]
  %s13 = inlined_call_operand.hbm [shape: f32[4,1,256], index: 13, kind: input, shape index: {}]
  %s14 = inlined_call_operand.hbm [shape: f32[4,256,128], index: 14, kind: input, shape index: {}]
  %s15 = inlined_call_operand.hbm [shape: f32[4,1,128], index: 15, kind: input, shape index: {}]
  %s16 = inlined_call_operand.vmem [shape: f32[4,3,128], index: 16, kind: input, shape index: {}]
  %s17 = inlined_call_operand.vmem [shape: f32[4,3,128], index: 17, kind: input, shape index: {}]
  %s18 = inlined_call_operand.hbm [shape: f32[2,8,128], index: 18, kind: output, shape index: {}]
  %s19 = sld [smem:[#allocation0]]
  $region141: #{transformer_encoder.1} parent=0
    _
  %s21 = ssub.s32 1, %s19
  %s22 = scalar_select 0, %s21, %s19
  $region1: #{transformer_encoder.1} parent=0
    #allocation2 [shape = 'u8[1536]{0}', space=vmem, size = 0x800, scoped, tag = 'input window, operand 5, single buffered']
    #allocation3 [shape = 's32[2]{0}', space=sflag, size = 0x8, scoped, tag = 'scoped memory for transformer_encoder.1']
    #allocation4 [shape = 's32[2]{0}', space=sflag, size = 0x8, scoped, tag = 'scoped memory for transformer_encoder.1']
    #allocation5 [shape = 'u8[65536]{0}', space=vmem, size = 0x10000, scoped, tag = 'input window, operand 6, single buffered']
    #allocation6 [shape = 's32[1]{0}', space=sflag, size = 0x4, scoped, tag = 'scoped memory for transformer_encoder.1']
    #allocation7 [shape = 'u8[786432]{0}', space=vmem, size = 0xc0000, scoped, tag = 'input window, operand 8, single buffered']
    #allocation8 [shape = 'u8[262144]{0}', space=vmem, size = 0x40000, scoped, tag = 'input window, operand 10, single buffered']
    #allocation9 [shape = 's32[1]{0}', space=sflag, size = 0x4, scoped, tag = 'scoped memory for transformer_encoder.1']
    #allocation10 [shape = 'u8[2048]{0}', space=vmem, size = 0x800, scoped, tag = 'input window, operand 11, single buffered']
    #allocation11 [shape = 'u8[524288]{0}', space=vmem, size = 0x80000, scoped, tag = 'input window, operand 12, single buffered']
    #allocation12 [shape = 's32[1]{0}', space=sflag, size = 0x4, scoped, tag = 'scoped memory for transformer_encoder.1']
    #allocation13 [shape = 'u8[4096]{0}', space=vmem, size = 0x1000, scoped, tag = 'input window, operand 13, single buffered']
    #allocation14 [shape = 'u8[524288]{0}', space=vmem, size = 0x80000, scoped, tag = 'input window, operand 14, single buffered']
    #allocation15 [shape = 's32[1]{0}', space=sflag, size = 0x4, scoped, tag = 'scoped memory for transformer_encoder.1']
    #allocation16 [shape = 'u8[2048]{0}', space=vmem, size = 0x800, scoped, tag = 'input window, operand 15, single buffered']
    #allocation17 [shape = 'u8[8192]{0}', space=vmem, size = 0x2000, scoped, tag = 'output window, operand 0']
    %23 = vsyncpa [#allocation3], 0
    %24 = vsyncpa [#allocation6], 0
    %25 = vsyncpa [#allocation9], 0
    %26 = vsyncpa [#allocation12], 0
    %27 = vsyncpa [#allocation15], 0
    %28 = vsyncpa [#allocation4], 0
    %s29 = scalar_lea.sflag [#allocation4], 1
    %30 = vsyncpa %s29, 0
    loop: start=0, step=1, limit=4
    $region2: #{transformer_encoder.1} parent=1 // loop_pre_header
      _
    $region3: #{transformer_encoder.1} parent=1 // loop_header
      %s32 = sphi 0, %s36
      %p33 = scmp.ge.s32.totalorder %s32, 4
      %s42 = sphi 0, %s44
      %s45 = sphi 0, %s42
      %s46 = sphi 0, %s45
      %s62 = sphi 0, %s46
      %s68 = sphi 0, %s70
      %s71 = sphi 0, %s68
      %s72 = sphi 0, %s71
      %s88 = sphi 0, %s72
      %s94 = sphi 0, %s96
      %s97 = sphi 0, %s94
      %s98 = sphi 0, %s97
      %s114 = sphi 0, %s98
      %s120 = sphi 0, %s122
      %s123 = sphi 0, %s120
      %s124 = sphi 0, %s123
      %s140 = sphi 0, %s124
      %s144 = sphi 0, %s144
      %s146 = sphi 0, %s144
      %s147 = sphi 0, %s146
      %s161 = sphi 0, %s147
      %s165 = sphi 0, %s165
      %s167 = sphi 0, %s165
      %s168 = sphi 0, %s167
      %s182 = sphi 0, %s168
      %s186 = sphi 0, %s186
      %s188 = sphi 0, %s186
      %s189 = sphi 0, %s188
      %s203 = sphi 0, %s189
      %s207 = sphi 0, %s207
      %s209 = sphi 0, %s207
      %s210 = sphi 0, %s209
      %s224 = sphi 0, %s210
      %s228 = sphi 0, %s228
      %s230 = sphi 0, %s228
      %s231 = sphi 0, %s230
      %s245 = sphi 0, %s231
      %s249 = sphi 0, %s249
      %s251 = sphi 0, %s249
      %s252 = sphi 0, %s251
      %s266 = sphi 0, %s252
      %s270 = sphi 0, %s270
      %s272 = sphi 0, %s270
      %s273 = sphi 0, %s272
      %s287 = sphi 0, %s273
      %s291 = sphi 0, %s291
      %s293 = sphi 0, %s291
      %s294 = sphi 0, %s293
      %s308 = sphi 0, %s294
      %s312 = sphi 0, %s312
      %s314 = sphi 0, %s312
      %s315 = sphi 0, %s314
      %s329 = sphi 0, %s315
      %s333 = sphi 0, %s333
      %s335 = sphi 0, %s333
      %s336 = sphi 0, %s335
      %s350 = sphi 0, %s336
      %s354 = sphi 0, %s354
      %s356 = sphi 0, %s354
      %s357 = sphi 0, %s356
      %s371 = sphi 0, %s357
      %s375 = sphi 0, %s375
      %s377 = sphi 0, %s375
      %s378 = sphi 0, %s377
      %s392 = sphi 0, %s378
      %s396 = sphi 0, %s396
      %s398 = sphi 0, %s396
      %s399 = sphi 0, %s398
      %s413 = sphi 0, %s399
      %s417 = sphi 0, %s417
      %s419 = sphi 0, %s417
      %s420 = sphi 0, %s419
      %s434 = sphi 0, %s420
      %s440 = sphi 0, %s442
      %s443 = sphi 0, %s440
      %s444 = sphi 0, %s443
      %s460 = sphi 0, %s444
    $region4: #{transformer_encoder.1} parent=1 // loop_header_branch
      %35 = sbr.rel (%p33) target = $region8
    $region5: #{transformer_encoder.1} parent=1 // loop_body
      %s37 = ssub.s32 %s32, 1
      %s38 = ssub.s32 %s32, 2
      %s39 = sadd.s32 %s32, 1
      %s40 = ssub.s32 %s32, %s39
      %p41 = scmp.eq.s32.totalorder %s40, 0
      %s43 = sadd.s32 %s42, 1
      %s44 = scalar_select %p41, %s42, %s43
      %p47 = pneg %p41
      %p48 = scmp.eq.s32.totalorder %s32, 1
      %p49 = por %p47, %p48
      %p50 = scmp.ne.s32.totalorder %s42, %s45
      %p51 = scmp.eq.s32.totalorder %s32, 0
      %p52 = por %p50, %p51
      %p53 = scmp.ne.s32.totalorder %s42, %s45
      %p54 = scmp.eq.s32.totalorder %s37, 1
      %p55 = por %p53, %p54
      %p56 = scmp.ne.s32.totalorder %s45, %s46
      %p57 = scmp.eq.s32.totalorder %s37, 0
      %p58 = por %p56, %p57
      %p59 = scmp.ne.s32.totalorder %s45, %s46
      %p60 = scmp.eq.s32.totalorder %s38, 1
      %p61 = por %p59, %p60
      %p63 = scmp.ne.s32.totalorder %s46, %s62
      %p64 = scmp.eq.s32.totalorder %s38, 0
      %p65 = por %p63, %p64
      %s66 = ssub.s32 %s32, %s39
      %p67 = scmp.eq.s32.totalorder %s66, 0
      %s69 = sadd.s32 %s68, 1
      %s70 = scalar_select %p67, %s68, %s69
      %p73 = pneg %p67
      %p74 = scmp.eq.s32.totalorder %s32, 1
      %p75 = por %p73, %p74
      %p76 = scmp.ne.s32.totalorder %s68, %s71
      %p77 = scmp.eq.s32.totalorder %s32, 0
      %p78 = por %p76, %p77
      %p79 = scmp.ne.s32.totalorder %s68, %s71
      %p80 = scmp.eq.s32.totalorder %s37, 1
      %p81 = por %p79, %p80
      %p82 = scmp.ne.s32.totalorder %s71, %s72
      %p83 = scmp.eq.s32.totalorder %s37, 0
      %p84 = por %p82, %p83
      %p85 = scmp.ne.s32.totalorder %s71, %s72
      %p86 = scmp.eq.s32.totalorder %s38, 1
      %p87 = por %p85, %p86
      %p89 = scmp.ne.s32.totalorder %s72, %s88
      %p90 = scmp.eq.s32.totalorder %s38, 0
      %p91 = por %p89, %p90
      %s92 = ssub.s32 %s32, %s39
      %p93 = scmp.eq.s32.totalorder %s92, 0
      %s95 = sadd.s32 %s94, 1
      %s96 = scalar_select %p93, %s94, %s95
      %p99 = pneg %p93
      %p100 = scmp.eq.s32.totalorder %s32, 1
      %p101 = por %p99, %p100
      %p102 = scmp.ne.s32.totalorder %s94, %s97
      %p103 = scmp.eq.s32.totalorder %s32, 0
      %p104 = por %p102, %p103
      %p105 = scmp.ne.s32.totalorder %s94, %s97
      %p106 = scmp.eq.s32.totalorder %s37, 1
      %p107 = por %p105, %p106
      %p108 = scmp.ne.s32.totalorder %s97, %s98
      %p109 = scmp.eq.s32.totalorder %s37, 0
      %p110 = por %p108, %p109
      %p111 = scmp.ne.s32.totalorder %s97, %s98
      %p112 = scmp.eq.s32.totalorder %s38, 1
      %p113 = por %p111, %p112
      %p115 = scmp.ne.s32.totalorder %s98, %s114
      %p116 = scmp.eq.s32.totalorder %s38, 0
      %p117 = por %p115, %p116
      %s118 = ssub.s32 %s32, %s39
      %p119 = scmp.eq.s32.totalorder %s118, 0
      %s121 = sadd.s32 %s120, 1
      %s122 = scalar_select %p119, %s120, %s121
      %p125 = pneg %p119
      %p126 = scmp.eq.s32.totalorder %s32, 1
      %p127 = por %p125, %p126
      %p128 = scmp.ne.s32.totalorder %s120, %s123
      %p129 = scmp.eq.s32.totalorder %s32, 0
      %p130 = por %p128, %p129
      %p131 = scmp.ne.s32.totalorder %s120, %s123
      %p132 = scmp.eq.s32.totalorder %s37, 1
      %p133 = por %p131, %p132
      %p134 = scmp.ne.s32.totalorder %s123, %s124
      %p135 = scmp.eq.s32.totalorder %s37, 0
      %p136 = por %p134, %p135
      %p137 = scmp.ne.s32.totalorder %s123, %s124
      %p138 = scmp.eq.s32.totalorder %s38, 1
      %p139 = por %p137, %p138
      %p141 = scmp.ne.s32.totalorder %s124, %s140
      %p142 = scmp.eq.s32.totalorder %s38, 0
      %p143 = por %p141, %p142
      %s145 = sadd.s32 %s144, 1
      %p148 = scmp.eq.s32.totalorder %s32, 1
      %p149 = scmp.ne.s32.totalorder %s144, %s146
      %p150 = scmp.eq.s32.totalorder %s32, 0
      %p151 = por %p149, %p150
      %p152 = scmp.ne.s32.totalorder %s144, %s146
      %p153 = scmp.eq.s32.totalorder %s37, 1
      %p154 = por %p152, %p153
      %p155 = scmp.ne.s32.totalorder %s146, %s147
      %p156 = scmp.eq.s32.totalorder %s37, 0
      %p157 = por %p155, %p156
      %p158 = scmp.ne.s32.totalorder %s146, %s147
      %p159 = scmp.eq.s32.totalorder %s38, 1
      %p160 = por %p158, %p159
      %p162 = scmp.ne.s32.totalorder %s147, %s161
      %p163 = scmp.eq.s32.totalorder %s38, 0
      %p164 = por %p162, %p163
      %s166 = sadd.s32 %s165, 1
      %p169 = scmp.eq.s32.totalorder %s32, 1
      %p170 = scmp.ne.s32.totalorder %s165, %s167
      %p171 = scmp.eq.s32.totalorder %s32, 0
      %p172 = por %p170, %p171
      %p173 = scmp.ne.s32.totalorder %s165, %s167
      %p174 = scmp.eq.s32.totalorder %s37, 1
      %p175 = por %p173, %p174
      %p176 = scmp.ne.s32.totalorder %s167, %s168
      %p177 = scmp.eq.s32.totalorder %s37, 0
      %p178 = por %p176, %p177
      %p179 = scmp.ne.s32.totalorder %s167, %s168
      %p180 = scmp.eq.s32.totalorder %s38, 1
      %p181 = por %p179, %p180
      %p183 = scmp.ne.s32.totalorder %s168, %s182
      %p184 = scmp.eq.s32.totalorder %s38, 0
      %p185 = por %p183, %p184
      %s187 = sadd.s32 %s186, 1
      %p190 = scmp.eq.s32.totalorder %s32, 1
      %p191 = scmp.ne.s32.totalorder %s186, %s188
      %p192 = scmp.eq.s32.totalorder %s32, 0
      %p193 = por %p191, %p192
      %p194 = scmp.ne.s32.totalorder %s186, %s188
      %p195 = scmp.eq.s32.totalorder %s37, 1
      %p196 = por %p194, %p195
      %p197 = scmp.ne.s32.totalorder %s188, %s189
      %p198 = scmp.eq.s32.totalorder %s37, 0
      %p199 = por %p197, %p198
      %p200 = scmp.ne.s32.totalorder %s188, %s189
      %p201 = scmp.eq.s32.totalorder %s38, 1
      %p202 = por %p200, %p201
      %p204 = scmp.ne.s32.totalorder %s189, %s203
      %p205 = scmp.eq.s32.totalorder %s38, 0
      %p206 = por %p204, %p205
      %s208 = sadd.s32 %s207, 1
      %p211 = scmp.eq.s32.totalorder %s32, 1
      %p212 = scmp.ne.s32.totalorder %s207, %s209
      %p213 = scmp.eq.s32.totalorder %s32, 0
      %p214 = por %p212, %p213
      %p215 = scmp.ne.s32.totalorder %s207, %s209
      %p216 = scmp.eq.s32.totalorder %s37, 1
      %p217 = por %p215, %p216
      %p218 = scmp.ne.s32.totalorder %s209, %s210
      %p219 = scmp.eq.s32.totalorder %s37, 0
      %p220 = por %p218, %p219
      %p221 = scmp.ne.s32.totalorder %s209, %s210
      %p222 = scmp.eq.s32.totalorder %s38, 1
      %p223 = por %p221, %p222
      %p225 = scmp.ne.s32.totalorder %s210, %s224
      %p226 = scmp.eq.s32.totalorder %s38, 0
      %p227 = por %p225, %p226
      %s229 = sadd.s32 %s228, 1
      %p232 = scmp.eq.s32.totalorder %s32, 1
      %p233 = scmp.ne.s32.totalorder %s228, %s230
      %p234 = scmp.eq.s32.totalorder %s32, 0
      %p235 = por %p233, %p234
      %p236 = scmp.ne.s32.totalorder %s228, %s230
      %p237 = scmp.eq.s32.totalorder %s37, 1
      %p238 = por %p236, %p237
      %p239 = scmp.ne.s32.totalorder %s230, %s231
      %p240 = scmp.eq.s32.totalorder %s37, 0
      %p241 = por %p239, %p240
      %p242 = scmp.ne.s32.totalorder %s230, %s231
      %p243 = scmp.eq.s32.totalorder %s38, 1
      %p244 = por %p242, %p243
      %p246 = scmp.ne.s32.totalorder %s231, %s245
      %p247 = scmp.eq.s32.totalorder %s38, 0
      %p248 = por %p246, %p247
      %s250 = sadd.s32 %s249, 1
      %p253 = scmp.eq.s32.totalorder %s32, 1
      %p254 = scmp.ne.s32.totalorder %s249, %s251
      %p255 = scmp.eq.s32.totalorder %s32, 0
      %p256 = por %p254, %p255
      %p257 = scmp.ne.s32.totalorder %s249, %s251
      %p258 = scmp.eq.s32.totalorder %s37, 1
      %p259 = por %p257, %p258
      %p260 = scmp.ne.s32.totalorder %s251, %s252
      %p261 = scmp.eq.s32.totalorder %s37, 0
      %p262 = por %p260, %p261
      %p263 = scmp.ne.s32.totalorder %s251, %s252
      %p264 = scmp.eq.s32.totalorder %s38, 1
      %p265 = por %p263, %p264
      %p267 = scmp.ne.s32.totalorder %s252, %s266
      %p268 = scmp.eq.s32.totalorder %s38, 0
      %p269 = por %p267, %p268
      %s271 = sadd.s32 %s270, 1
      %p274 = scmp.eq.s32.totalorder %s32, 1
      %p275 = scmp.ne.s32.totalorder %s270, %s272
      %p276 = scmp.eq.s32.totalorder %s32, 0
      %p277 = por %p275, %p276
      %p278 = scmp.ne.s32.totalorder %s270, %s272
      %p279 = scmp.eq.s32.totalorder %s37, 1
      %p280 = por %p278, %p279
      %p281 = scmp.ne.s32.totalorder %s272, %s273
      %p282 = scmp.eq.s32.totalorder %s37, 0
      %p283 = por %p281, %p282
      %p284 = scmp.ne.s32.totalorder %s272, %s273
      %p285 = scmp.eq.s32.totalorder %s38, 1
      %p286 = por %p284, %p285
      %p288 = scmp.ne.s32.totalorder %s273, %s287
      %p289 = scmp.eq.s32.totalorder %s38, 0
      %p290 = por %p288, %p289
      %s292 = sadd.s32 %s291, 1
      %p295 = scmp.eq.s32.totalorder %s32, 1
      %p296 = scmp.ne.s32.totalorder %s291, %s293
      %p297 = scmp.eq.s32.totalorder %s32, 0
      %p298 = por %p296, %p297
      %p299 = scmp.ne.s32.totalorder %s291, %s293
      %p300 = scmp.eq.s32.totalorder %s37, 1
      %p301 = por %p299, %p300
      %p302 = scmp.ne.s32.totalorder %s293, %s294
      %p303 = scmp.eq.s32.totalorder %s37, 0
      %p304 = por %p302, %p303
      %p305 = scmp.ne.s32.totalorder %s293, %s294
      %p306 = scmp.eq.s32.totalorder %s38, 1
      %p307 = por %p305, %p306
      %p309 = scmp.ne.s32.totalorder %s294, %s308
      %p310 = scmp.eq.s32.totalorder %s38, 0
      %p311 = por %p309, %p310
      %s313 = sadd.s32 %s312, 1
      %p316 = scmp.eq.s32.totalorder %s32, 1
      %p317 = scmp.ne.s32.totalorder %s312, %s314
      %p318 = scmp.eq.s32.totalorder %s32, 0
      %p319 = por %p317, %p318
      %p320 = scmp.ne.s32.totalorder %s312, %s314
      %p321 = scmp.eq.s32.totalorder %s37, 1
      %p322 = por %p320, %p321
      %p323 = scmp.ne.s32.totalorder %s314, %s315
      %p324 = scmp.eq.s32.totalorder %s37, 0
      %p325 = por %p323, %p324
      %p326 = scmp.ne.s32.totalorder %s314, %s315
      %p327 = scmp.eq.s32.totalorder %s38, 1
      %p328 = por %p326, %p327
      %p330 = scmp.ne.s32.totalorder %s315, %s329
      %p331 = scmp.eq.s32.totalorder %s38, 0
      %p332 = por %p330, %p331
      %s334 = sadd.s32 %s333, 1
      %p337 = scmp.eq.s32.totalorder %s32, 1
      %p338 = scmp.ne.s32.totalorder %s333, %s335
      %p339 = scmp.eq.s32.totalorder %s32, 0
      %p340 = por %p338, %p339
      %p341 = scmp.ne.s32.totalorder %s333, %s335
      %p342 = scmp.eq.s32.totalorder %s37, 1
      %p343 = por %p341, %p342
      %p344 = scmp.ne.s32.totalorder %s335, %s336
      %p345 = scmp.eq.s32.totalorder %s37, 0
      %p346 = por %p344, %p345
      %p347 = scmp.ne.s32.totalorder %s335, %s336
      %p348 = scmp.eq.s32.totalorder %s38, 1
      %p349 = por %p347, %p348
      %p351 = scmp.ne.s32.totalorder %s336, %s350
      %p352 = scmp.eq.s32.totalorder %s38, 0
      %p353 = por %p351, %p352
      %s355 = sadd.s32 %s354, 1
      %p358 = scmp.eq.s32.totalorder %s32, 1
      %p359 = scmp.ne.s32.totalorder %s354, %s356
      %p360 = scmp.eq.s32.totalorder %s32, 0
      %p361 = por %p359, %p360
      %p362 = scmp.ne.s32.totalorder %s354, %s356
      %p363 = scmp.eq.s32.totalorder %s37, 1
      %p364 = por %p362, %p363
      %p365 = scmp.ne.s32.totalorder %s356, %s357
      %p366 = scmp.eq.s32.totalorder %s37, 0
      %p367 = por %p365, %p366
      %p368 = scmp.ne.s32.totalorder %s356, %s357
      %p369 = scmp.eq.s32.totalorder %s38, 1
      %p370 = por %p368, %p369
      %p372 = scmp.ne.s32.totalorder %s357, %s371
      %p373 = scmp.eq.s32.totalorder %s38, 0
      %p374 = por %p372, %p373
      %s376 = sadd.s32 %s375, 1
      %p379 = scmp.eq.s32.totalorder %s32, 1
      %p380 = scmp.ne.s32.totalorder %s375, %s377
      %p381 = scmp.eq.s32.totalorder %s32, 0
      %p382 = por %p380, %p381
      %p383 = scmp.ne.s32.totalorder %s375, %s377
      %p384 = scmp.eq.s32.totalorder %s37, 1
      %p385 = por %p383, %p384
      %p386 = scmp.ne.s32.totalorder %s377, %s378
      %p387 = scmp.eq.s32.totalorder %s37, 0
      %p388 = por %p386, %p387
      %p389 = scmp.ne.s32.totalorder %s377, %s378
      %p390 = scmp.eq.s32.totalorder %s38, 1
      %p391 = por %p389, %p390
      %p393 = scmp.ne.s32.totalorder %s378, %s392
      %p394 = scmp.eq.s32.totalorder %s38, 0
      %p395 = por %p393, %p394
      %s397 = sadd.s32 %s396, 1
      %p400 = scmp.eq.s32.totalorder %s32, 1
      %p401 = scmp.ne.s32.totalorder %s396, %s398
      %p402 = scmp.eq.s32.totalorder %s32, 0
      %p403 = por %p401, %p402
      %p404 = scmp.ne.s32.totalorder %s396, %s398
      %p405 = scmp.eq.s32.totalorder %s37, 1
      %p406 = por %p404, %p405
      %p407 = scmp.ne.s32.totalorder %s398, %s399
      %p408 = scmp.eq.s32.totalorder %s37, 0
      %p409 = por %p407, %p408
      %p410 = scmp.ne.s32.totalorder %s398, %s399
      %p411 = scmp.eq.s32.totalorder %s38, 1
      %p412 = por %p410, %p411
      %p414 = scmp.ne.s32.totalorder %s399, %s413
      %p415 = scmp.eq.s32.totalorder %s38, 0
      %p416 = por %p414, %p415
      %s418 = sadd.s32 %s417, 1
      %p421 = scmp.eq.s32.totalorder %s32, 1
      %p422 = scmp.ne.s32.totalorder %s417, %s419
      %p423 = scmp.eq.s32.totalorder %s32, 0
      %p424 = por %p422, %p423
      %p425 = scmp.ne.s32.totalorder %s417, %s419
      %p426 = scmp.eq.s32.totalorder %s37, 1
      %p427 = por %p425, %p426
      %p428 = scmp.ne.s32.totalorder %s419, %s420
      %p429 = scmp.eq.s32.totalorder %s37, 0
      %p430 = por %p428, %p429
      %p431 = scmp.ne.s32.totalorder %s419, %s420
      %p432 = scmp.eq.s32.totalorder %s38, 1
      %p433 = por %p431, %p432
      %p435 = scmp.ne.s32.totalorder %s420, %s434
      %p436 = scmp.eq.s32.totalorder %s38, 0
      %p437 = por %p435, %p436
      %s438 = ssub.s32 %s32, %s39
      %p439 = scmp.eq.s32.totalorder %s438, 0
      %s441 = sadd.s32 %s440, 1
      %s442 = scalar_select %p439, %s440, %s441
      %p445 = pneg %p439
      %p446 = scmp.eq.s32.totalorder %s32, 1
      %p447 = por %p445, %p446
      %p448 = scmp.ne.s32.totalorder %s440, %s443
      %p449 = scmp.eq.s32.totalorder %s32, 0
      %p450 = por %p448, %p449
      %p451 = scmp.ne.s32.totalorder %s440, %s443
      %p452 = scmp.eq.s32.totalorder %s37, 1
      %p453 = por %p451, %p452
      %p454 = scmp.ne.s32.totalorder %s443, %s444
      %p455 = scmp.eq.s32.totalorder %s37, 0
      %p456 = por %p454, %p455
      %p457 = scmp.ne.s32.totalorder %s443, %s444
      %p458 = scmp.eq.s32.totalorder %s38, 1
      %p459 = por %p457, %p458
      %p461 = scmp.ne.s32.totalorder %s444, %s460
      %p462 = scmp.eq.s32.totalorder %s38, 0
      %p463 = por %p461, %p462
      %p464 = scmp.le.s32.totalorder 1, %s32
      %p465 = scmp.lt.s32.totalorder %s32, 3
      %p466 = pnand %p464, %p465
      %p467 = pneg %p466
      // Predicated region
      $region9: #{transformer_encoder.1} parent=5 // pred_check
        _
      $region10: #{transformer_encoder.1} parent=5 // pred_check_branch
        %469 = sbr.rel (%p466) target = $region12
      $region11: #{transformer_encoder.1} parent=5 // pred_region
        %s470 = ssub.s32 %s32, 1
        // Predicated region
        $region13: #{transformer_encoder.1} parent=11 // pred_check
          %p471 = pneg %p157
        $region14: #{transformer_encoder.1} parent=11 // pred_check_branch
          %473 = sbr.rel (%p471) target = $region16
        $region15: #{transformer_encoder.1} parent=11 // pred_region
          _
        $region16: #{transformer_encoder.1} parent=11 // pred_fallthru
          _
        // Predicated region
        $region17: #{transformer_encoder.1} parent=11 // pred_check
          %p474 = pneg %p178
        $region18: #{transformer_encoder.1} parent=11 // pred_check_branch
          %476 = sbr.rel (%p474) target = $region20
        $region19: #{transformer_encoder.1} parent=11 // pred_region
          %s478 = ssub.s32 48, 48
          %479 = vsyncadd [#allocation3], %s478
          %s481 = sshll.u32 [#allocation2], 4
          %s482 = int_to_ptr.vmem [resolvable:$true] %s481
          %484 = dma.hbm_to_vmem [thread:$0]  %s5, 48, %s482, [#allocation3]
        $region20: #{transformer_encoder.1} parent=11 // pred_fallthru
          _
        // Predicated region
        $region21: #{transformer_encoder.1} parent=11 // pred_check
          %p485 = pneg %p199
        $region22: #{transformer_encoder.1} parent=11 // pred_check_branch
          %487 = sbr.rel (%p485) target = $region24
        $region23: #{transformer_encoder.1} parent=11 // pred_region
          %s489 = ssub.s32 2048, 2048
          %490 = vsyncadd [#allocation6], %s489
          %s491 = sshll.u32 [#allocation5], 4
          %s492 = int_to_ptr.vmem [resolvable:$true] %s491
          %497 = dma.hbm_to_vmem [thread:$0]  %s6, 2048, %s492, [#allocation6], 128, 128, 8
        $region24: #{transformer_encoder.1} parent=11 // pred_fallthru
          _
        // Predicated region
        $region25: #{transformer_encoder.1} parent=11 // pred_check
          %p498 = pneg %p220
        $region26: #{transformer_encoder.1} parent=11 // pred_check_branch
          %500 = sbr.rel (%p498) target = $region28
        $region27: #{transformer_encoder.1} parent=11 // pred_region
          _
        $region28: #{transformer_encoder.1} parent=11 // pred_fallthru
          _
        // Predicated region
        $region29: #{transformer_encoder.1} parent=11 // pred_check
          %p501 = pneg %p241
        $region30: #{transformer_encoder.1} parent=11 // pred_check_branch
          %503 = sbr.rel (%p501) target = $region32
        $region31: #{transformer_encoder.1} parent=11 // pred_region
          %s505 = ssub.s32 24576, 24576
          %506 = vsyncadd [#allocation6], %s505
          %s507 = sshll.u32 [#allocation7], 4
          %s508 = int_to_ptr.vmem [resolvable:$true] %s507
          %513 = dma.hbm_to_vmem [thread:$0]  %s8, 24576, %s508, [#allocation6], 384, 384, 24
        $region32: #{transformer_encoder.1} parent=11 // pred_fallthru
          _
        // Predicated region
        $region33: #{transformer_encoder.1} parent=11 // pred_check
          %p514 = pneg %p262
        $region34: #{transformer_encoder.1} parent=11 // pred_check_branch
          %516 = sbr.rel (%p514) target = $region36
        $region35: #{transformer_encoder.1} parent=11 // pred_region
          _
        $region36: #{transformer_encoder.1} parent=11 // pred_fallthru
          _
        // Predicated region
        $region37: #{transformer_encoder.1} parent=11 // pred_check
          %p517 = pneg %p283
        $region38: #{transformer_encoder.1} parent=11 // pred_check_branch
          %519 = sbr.rel (%p517) target = $region40
        $region39: #{transformer_encoder.1} parent=11 // pred_region
          %s521 = ssub.s32 8192, 8192
          %522 = vsyncadd [#allocation9], %s521
          %s523 = sshll.u32 [#allocation8], 4
          %s524 = int_to_ptr.vmem [resolvable:$true] %s523
          %529 = dma.hbm_to_vmem [thread:$0]  %s10, 8192, %s524, [#allocation9], 128, 128, 8
        $region40: #{transformer_encoder.1} parent=11 // pred_fallthru
          _
        // Predicated region
        $region41: #{transformer_encoder.1} parent=11 // pred_check
          %p530 = pneg %p304
        $region42: #{transformer_encoder.1} parent=11 // pred_check_branch
          %532 = sbr.rel (%p530) target = $region44
        $region43: #{transformer_encoder.1} parent=11 // pred_region
          %s534 = ssub.s32 64, 64
          %535 = vsyncadd [#allocation9], %s534
          %s536 = sshll.u32 [#allocation10], 4
          %s537 = int_to_ptr.vmem [resolvable:$true] %s536
          %542 = dma.hbm_to_vmem [thread:$0]  %s11, 64, %s537, [#allocation9], 16, 16, 1
        $region44: #{transformer_encoder.1} parent=11 // pred_fallthru
          _
        // Predicated region
        $region45: #{transformer_encoder.1} parent=11 // pred_check
          %p543 = pneg %p325
        $region46: #{transformer_encoder.1} parent=11 // pred_check_branch
          %545 = sbr.rel (%p543) target = $region48
        $region47: #{transformer_encoder.1} parent=11 // pred_region
          %s547 = ssub.s32 16384, 16384
          %548 = vsyncadd [#allocation12], %s547
          %s549 = sshll.u32 [#allocation11], 4
          %s550 = int_to_ptr.vmem [resolvable:$true] %s549
          %555 = dma.hbm_to_vmem [thread:$0]  %s12, 16384, %s550, [#allocation12], 256, 256, 16
        $region48: #{transformer_encoder.1} parent=11 // pred_fallthru
          _
        // Predicated region
        $region49: #{transformer_encoder.1} parent=11 // pred_check
          %p556 = pneg %p346
        $region50: #{transformer_encoder.1} parent=11 // pred_check_branch
          %558 = sbr.rel (%p556) target = $region52
        $region51: #{transformer_encoder.1} parent=11 // pred_region
          %s560 = ssub.s32 128, 128
          %561 = vsyncadd [#allocation12], %s560
          %s562 = sshll.u32 [#allocation13], 4
          %s563 = int_to_ptr.vmem [resolvable:$true] %s562
          %568 = dma.hbm_to_vmem [thread:$0]  %s13, 128, %s563, [#allocation12], 32, 32, 2
        $region52: #{transformer_encoder.1} parent=11 // pred_fallthru
          _
        // Predicated region
        $region53: #{transformer_encoder.1} parent=11 // pred_check
          %p569 = pneg %p367
        $region54: #{transformer_encoder.1} parent=11 // pred_check_branch
          %571 = sbr.rel (%p569) target = $region56
        $region55: #{transformer_encoder.1} parent=11 // pred_region
          %s573 = ssub.s32 16384, 16384
          %574 = vsyncadd [#allocation15], %s573
          %s575 = sshll.u32 [#allocation14], 4
          %s576 = int_to_ptr.vmem [resolvable:$true] %s575
          %581 = dma.hbm_to_vmem [thread:$0]  %s14, 16384, %s576, [#allocation15], 128, 128, 8
        $region56: #{transformer_encoder.1} parent=11 // pred_fallthru
          _
        // Predicated region
        $region57: #{transformer_encoder.1} parent=11 // pred_check
          %p582 = pneg %p388
        $region58: #{transformer_encoder.1} parent=11 // pred_check_branch
          %584 = sbr.rel (%p582) target = $region60
        $region59: #{transformer_encoder.1} parent=11 // pred_region
          %s586 = ssub.s32 64, 64
          %587 = vsyncadd [#allocation15], %s586
          %s588 = sshll.u32 [#allocation16], 4
          %s589 = int_to_ptr.vmem [resolvable:$true] %s588
          %594 = dma.hbm_to_vmem [thread:$0]  %s15, 64, %s589, [#allocation15], 16, 16, 1
        $region60: #{transformer_encoder.1} parent=11 // pred_fallthru
          _
        // Predicated region
        $region61: #{transformer_encoder.1} parent=11 // pred_check
          %p595 = pneg %p409
        $region62: #{transformer_encoder.1} parent=11 // pred_check_branch
          %597 = sbr.rel (%p595) target = $region64
        $region63: #{transformer_encoder.1} parent=11 // pred_region
          _
        $region64: #{transformer_encoder.1} parent=11 // pred_fallthru
          _
        // Predicated region
        $region65: #{transformer_encoder.1} parent=11 // pred_check
          %p598 = pneg %p430
        $region66: #{transformer_encoder.1} parent=11 // pred_check_branch
          %600 = sbr.rel (%p598) target = $region68
        $region67: #{transformer_encoder.1} parent=11 // pred_region
          _
        $region68: #{transformer_encoder.1} parent=11 // pred_fallthru
          _
      $region12: #{transformer_encoder.1} parent=5 // pred_fallthru
        _
      %p601 = scmp.lt.s32.totalorder %s32, 2
      // Predicated region
      $region69: #{transformer_encoder.1} parent=5 // pred_check
        %p602 = pneg %p601
      $region70: #{transformer_encoder.1} parent=5 // pred_check_branch
        %604 = sbr.rel (%p602) target = $region72
      $region71: #{transformer_encoder.1} parent=5 // pred_region
        // Predicated region
        $region73: #{transformer_encoder.1} parent=71 // pred_check
          %p605 = pneg %p52
        $region74: #{transformer_encoder.1} parent=71 // pred_check_branch
          %607 = sbr.rel (%p605) target = $region76
        $region75: #{transformer_encoder.1} parent=71 // pred_region
          %p608 = scmp.lt.s32.totalorder %s32, 1
          %s609 = scalar_select %p608, %s32, 1
          %s610 = smul.addr %s609, 8
          %s611 = scalar_lea.vmem %s0, %s610
        $region76: #{transformer_encoder.1} parent=71 // pred_fallthru
          _
        // Predicated region
        $region77: #{transformer_encoder.1} parent=71 // pred_check
          %p612 = pneg %p78
        $region78: #{transformer_encoder.1} parent=71 // pred_check_branch
          %614 = sbr.rel (%p612) target = $region80
        $region79: #{transformer_encoder.1} parent=71 // pred_region
          %p615 = scmp.lt.s32.totalorder %s32, 1
          %s616 = scalar_select %p615, %s32, 1
          %s617 = smul.addr %s616, 8
          %s618 = scalar_lea.vmem %s1, %s617
        $region80: #{transformer_encoder.1} parent=71 // pred_fallthru
          _
        // Predicated region
        $region81: #{transformer_encoder.1} parent=71 // pred_check
          %p619 = pneg %p104
        $region82: #{transformer_encoder.1} parent=71 // pred_check_branch
          %621 = sbr.rel (%p619) target = $region84
        $region83: #{transformer_encoder.1} parent=71 // pred_region
          %p622 = scmp.lt.s32.totalorder %s32, 1
          %s623 = scalar_select %p622, %s32, 1
          %s624 = smul.addr %s623, 8
          %s625 = smul.addr %s624, 8
          %s626 = scalar_lea.vmem %s2, %s625
        $region84: #{transformer_encoder.1} parent=71 // pred_fallthru
          _
        // Predicated region
        $region85: #{transformer_encoder.1} parent=71 // pred_check
          %p627 = pneg %p130
        $region86: #{transformer_encoder.1} parent=71 // pred_check_branch
          %629 = sbr.rel (%p627) target = $region88
        $region87: #{transformer_encoder.1} parent=71 // pred_region
          %p630 = scmp.lt.s32.totalorder %s32, 1
          %s631 = scalar_select %p630, %s32, 1
          %s632 = smul.addr %s631, 8
          %s633 = smul.addr %s632, 8
          %s634 = scalar_lea.vmem %s3, %s633
        $region88: #{transformer_encoder.1} parent=71 // pred_fallthru
          _
      $region72: #{transformer_encoder.1} parent=5 // pred_fallthru
        _
      %p635 = scmp.le.s32.totalorder 1, %s32
      %p636 = scmp.lt.s32.totalorder %s32, 3
      %p637 = pnand %p635, %p636
      %p638 = pneg %p637
      // Predicated region
      $region89: #{transformer_encoder.1} parent=5 // pred_check
        _
      $region90: #{transformer_encoder.1} parent=5 // pred_check_branch
        %640 = sbr.rel (%p637) target = $region92
      $region91: #{transformer_encoder.1} parent=5 // pred_region
        %s641 = ssub.s32 %s32, 1
        // Predicated region
        $region93: #{transformer_encoder.1} parent=91 // pred_check
          %p642 = pneg %p178
        $region94: #{transformer_encoder.1} parent=91 // pred_check_branch
          %644 = sbr.rel (%p642) target = $region96
        $region95: #{transformer_encoder.1} parent=91 // pred_region
          %645 = dma.done [#allocation3], 48
        $region96: #{transformer_encoder.1} parent=91 // pred_fallthru
          _
        // Predicated region
        $region97: #{transformer_encoder.1} parent=91 // pred_check
          %p646 = pneg %p199
        $region98: #{transformer_encoder.1} parent=91 // pred_check_branch
          %648 = sbr.rel (%p646) target = $region100
        $region99: #{transformer_encoder.1} parent=91 // pred_region
          %649 = dma.done [#allocation6], 2048
        $region100: #{transformer_encoder.1} parent=91 // pred_fallthru
          _
        // Predicated region
        $region101: #{transformer_encoder.1} parent=91 // pred_check
          %p650 = pneg %p241
        $region102: #{transformer_encoder.1} parent=91 // pred_check_branch
          %652 = sbr.rel (%p650) target = $region104
        $region103: #{transformer_encoder.1} parent=91 // pred_region
          %653 = dma.done [#allocation6], 24576
        $region104: #{transformer_encoder.1} parent=91 // pred_fallthru
          _
        // Predicated region
        $region105: #{transformer_encoder.1} parent=91 // pred_check
          %p654 = pneg %p283
        $region106: #{transformer_encoder.1} parent=91 // pred_check_branch
          %656 = sbr.rel (%p654) target = $region108
        $region107: #{transformer_encoder.1} parent=91 // pred_region
          %657 = dma.done [#allocation9], 8192
        $region108: #{transformer_encoder.1} parent=91 // pred_fallthru
          _
        // Predicated region
        $region109: #{transformer_encoder.1} parent=91 // pred_check
          %p658 = pneg %p304
        $region110: #{transformer_encoder.1} parent=91 // pred_check_branch
          %660 = sbr.rel (%p658) target = $region112
        $region111: #{transformer_encoder.1} parent=91 // pred_region
          %661 = dma.done [#allocation9], 64
        $region112: #{transformer_encoder.1} parent=91 // pred_fallthru
          _
        // Predicated region
        $region113: #{transformer_encoder.1} parent=91 // pred_check
          %p662 = pneg %p325
        $region114: #{transformer_encoder.1} parent=91 // pred_check_branch
          %664 = sbr.rel (%p662) target = $region116
        $region115: #{transformer_encoder.1} parent=91 // pred_region
          %665 = dma.done [#allocation12], 16384
        $region116: #{transformer_encoder.1} parent=91 // pred_fallthru
          _
        // Predicated region
        $region117: #{transformer_encoder.1} parent=91 // pred_check
          %p666 = pneg %p346
        $region118: #{transformer_encoder.1} parent=91 // pred_check_branch
          %668 = sbr.rel (%p666) target = $region120
        $region119: #{transformer_encoder.1} parent=91 // pred_region
          %669 = dma.done [#allocation12], 128
        $region120: #{transformer_encoder.1} parent=91 // pred_fallthru
          _
        // Predicated region
        $region121: #{transformer_encoder.1} parent=91 // pred_check
          %p670 = pneg %p367
        $region122: #{transformer_encoder.1} parent=91 // pred_check_branch
          %672 = sbr.rel (%p670) target = $region124
        $region123: #{transformer_encoder.1} parent=91 // pred_region
          %673 = dma.done [#allocation15], 16384
        $region124: #{transformer_encoder.1} parent=91 // pred_fallthru
          _
        // Predicated region
        $region125: #{transformer_encoder.1} parent=91 // pred_check
          %p674 = pneg %p388
        $region126: #{transformer_encoder.1} parent=91 // pred_check_branch
          %676 = sbr.rel (%p674) target = $region128
        $region127: #{transformer_encoder.1} parent=91 // pred_region
          %677 = dma.done [#allocation15], 64
        $region128: #{transformer_encoder.1} parent=91 // pred_fallthru
          _
        %p678 = scmp.lt.s32.totalorder %s37, 1
        %s679 = scalar_select %p678, %s37, 1
        %s680 = smul.addr %s679, 8
        %s681 = scalar_lea.vmem %s0, %s680
        %p682 = pneg %p58
        %p683 = pneg %p55
        %p684 = scmp.lt.s32.totalorder %s37, 1
        %s685 = scalar_select %p684, %s37, 1
        %s686 = smul.addr %s685, 8
        %s687 = scalar_lea.vmem %s1, %s686
        %p688 = pneg %p84
        %p689 = pneg %p81
        %p690 = scmp.lt.s32.totalorder %s37, 1
        %s691 = scalar_select %p690, %s37, 1
        %s692 = smul.addr %s691, 8
        %s693 = smul.addr %s692, 8
        %s694 = scalar_lea.vmem %s2, %s693
        %p695 = pneg %p110
        %p696 = pneg %p107
        %p697 = scmp.lt.s32.totalorder %s37, 1
        %s698 = scalar_select %p697, %s37, 1
        %s699 = smul.addr %s698, 8
        %s700 = smul.addr %s699, 8
        %s701 = scalar_lea.vmem %s3, %s700
        %p702 = pneg %p136
        %p703 = pneg %p133
        %p704 = pneg %p157
        %p705 = pneg %p154
        %p706 = pneg %p178
        %p707 = pneg %p175
        %p708 = pneg %p199
        %p709 = pneg %p196
        %p710 = pneg %p220
        %p711 = pneg %p217
        %p712 = pneg %p241
        %p713 = pneg %p238
        %p714 = pneg %p262
        %p715 = pneg %p259
        %p716 = pneg %p283
        %p717 = pneg %p280
        %p718 = pneg %p304
        %p719 = pneg %p301
        %p720 = pneg %p325
        %p721 = pneg %p322
        %p722 = pneg %p346
        %p723 = pneg %p343
        %p724 = pneg %p367
        %p725 = pneg %p364
        %p726 = pneg %p388
        %p727 = pneg %p385
        %p728 = pneg %p409
        %p729 = pneg %p406
        %p730 = pneg %p430
        %p731 = pneg %p427
        %p732 = pneg %p456
        %p733 = pneg %p453
        %s734 = sand.u32 %s443, 1
        %s735 = scalar_lea.sflag [#allocation4], %s734
        %s736 = sand.u32 %s443, 1
        %s737 = smul.addr %s736, 8
        %s738 = scalar_lea.vmem [#allocation17], %s737
        %p739 = scmp.lt.s32.totalorder %s37, 1
        %s740 = scalar_select %p739, %s37, 1
        %s741 = smul.addr %s740, 8
        %s742 = scalar_lea.vmem %s0, %s741
        %p743 = scmp.lt.s32.totalorder %s37, 1
        %s744 = scalar_select %p743, %s37, 1
        %s745 = smul.addr %s744, 8
        %s746 = scalar_lea.vmem %s1, %s745
        %p747 = scmp.lt.s32.totalorder %s37, 1
        %s748 = scalar_select %p747, %s37, 1
        %s749 = smul.addr %s748, 8
        %s750 = smul.addr %s749, 8
        %s751 = scalar_lea.vmem %s2, %s750
        %p752 = scmp.lt.s32.totalorder %s37, 1
        %s753 = scalar_select %p752, %s37, 1
        %s754 = smul.addr %s753, 8
        %s755 = smul.addr %s754, 8
        %s756 = scalar_lea.vmem %s3, %s755
        %v757 = vlaneseq
        %v758 = vshrl.u32 %v757, 7
        %v759 = vadd.s32 %v758, 8
        %v760 = vadd.s32 %v758, 16
        %v761 = vadd.s32 %v758, 24
        %v762 = vadd.s32 %v758, 32
        %v763 = vadd.s32 %v758, 40
        %v764 = vadd.s32 %v758, 48
        %v765 = vadd.s32 %v758, 56
        %v766 = vadd.s32 %v758, 64
        %v767 = vadd.s32 %v758, 72
        %v768 = vadd.s32 %v758, 80
        %v769 = vadd.s32 %v758, 88
        %v770 = vadd.s32 %v758, 96
        %v771 = vadd.s32 %v758, 104
        %v772 = vadd.s32 %v758, 112
        %v773 = vadd.s32 %v758, 120
        %v774 = vlaneseq
        %v775 = vand.u32 %v774, 127
        %v776 = vmul.u32 %v775, 8
        %vm777 = vcmp.ge.s32.totalorder %v758, %v776
        %vm778 = vcmp.ge.s32.totalorder %v759, %v776
        %vm779 = vcmp.ge.s32.totalorder %v760, %v776
        %vm780 = vcmp.ge.s32.totalorder %v761, %v776
        %vm781 = vcmp.ge.s32.totalorder %v762, %v776
        %vm782 = vcmp.ge.s32.totalorder %v763, %v776
        %vm783 = vcmp.ge.s32.totalorder %v764, %v776
        %vm784 = vcmp.ge.s32.totalorder %v765, %v776
        %vm785 = vcmp.ge.s32.totalorder %v766, %v776
        %vm786 = vcmp.ge.s32.totalorder %v767, %v776
        %vm787 = vcmp.ge.s32.totalorder %v768, %v776
        %vm788 = vcmp.ge.s32.totalorder %v769, %v776
        %vm789 = vcmp.ge.s32.totalorder %v770, %v776
        %vm790 = vcmp.ge.s32.totalorder %v771, %v776
        %vm791 = vcmp.ge.s32.totalorder %v772, %v776
        %vm792 = vcmp.ge.s32.totalorder %v773, %v776
        %v793 = vadd.s32 %v775, 1
        %v794 = vmul.u32 %v793, 8
        %vm795 = vcmp.lt.s32.totalorder %v758, %v794
        %vm796 = vcmp.lt.s32.totalorder %v759, %v794
        %vm797 = vcmp.lt.s32.totalorder %v760, %v794
        %vm798 = vcmp.lt.s32.totalorder %v761, %v794
        %vm799 = vcmp.lt.s32.totalorder %v762, %v794
        %vm800 = vcmp.lt.s32.totalorder %v763, %v794
        %vm801 = vcmp.lt.s32.totalorder %v764, %v794
        %vm802 = vcmp.lt.s32.totalorder %v765, %v794
        %vm803 = vcmp.lt.s32.totalorder %v766, %v794
        %vm804 = vcmp.lt.s32.totalorder %v767, %v794
        %vm805 = vcmp.lt.s32.totalorder %v768, %v794
        %vm806 = vcmp.lt.s32.totalorder %v769, %v794
        %vm807 = vcmp.lt.s32.totalorder %v770, %v794
        %vm808 = vcmp.lt.s32.totalorder %v771, %v794
        %vm809 = vcmp.lt.s32.totalorder %v772, %v794
        %vm810 = vcmp.lt.s32.totalorder %v773, %v794
        %vm811 = vmand %vm777, %vm795
        %vm812 = vmand %vm778, %vm796
        %vm813 = vmand %vm779, %vm797
        %vm814 = vmand %vm780, %vm798
        %vm815 = vmand %vm781, %vm799
        %vm816 = vmand %vm782, %vm800
        %vm817 = vmand %vm783, %vm801
        %vm818 = vmand %vm784, %vm802
        %vm819 = vmand %vm785, %vm803
        %vm820 = vmand %vm786, %vm804
        %vm821 = vmand %vm787, %vm805
        %vm822 = vmand %vm788, %vm806
        %vm823 = vmand %vm789, %vm807
        %vm824 = vmand %vm790, %vm808
        %vm825 = vmand %vm791, %vm809
        %vm826 = vmand %vm792, %vm810
        %v827 = vsel %vm811, 1.0, 0.0
        %v828 = vsel %vm812, 1.0, 0.0
        %v829 = vsel %vm813, 1.0, 0.0
        %v830 = vsel %vm814, 1.0, 0.0
        %v831 = vsel %vm815, 1.0, 0.0
        %v832 = vsel %vm816, 1.0, 0.0
        %v833 = vsel %vm817, 1.0, 0.0
        %v834 = vsel %vm818, 1.0, 0.0
        %v835 = vsel %vm819, 1.0, 0.0
        %v836 = vsel %vm820, 1.0, 0.0
        %v837 = vsel %vm821, 1.0, 0.0
        %v838 = vsel %vm822, 1.0, 0.0
        %v839 = vsel %vm823, 1.0, 0.0
        %v840 = vsel %vm824, 1.0, 0.0
        %v841 = vsel %vm825, 1.0, 0.0
        %v842 = vsel %vm826, 1.0, 0.0
        %v843 = vmul.u32 %v758, 8
        %v844 = vmul.u32 %v759, 8
        %vm845 = vcmp.ge.s32.totalorder %v775, %v843
        %vm846 = vcmp.ge.s32.totalorder %v775, %v844
        %v847 = vadd.s32 %v758, 1
        %v848 = vadd.s32 %v759, 1
        %v849 = vmul.u32 %v847, 8
        %v850 = vmul.u32 %v848, 8
        %vm851 = vcmp.lt.s32.totalorder %v775, %v849
        %vm852 = vcmp.lt.s32.totalorder %v775, %v850
        %vm853 = vmand %vm845, %vm851
        %vm854 = vmand %vm846, %vm852
        %v855 = vsel %vm853, 1.0, 0.0
        %v856 = vsel %vm854, 1.0, 0.0
        %v857 = vld [vmem:[%s742] sm:$0xff]
        %v858 = vld [vmem:[%s746] sm:$0xff]
        %v859 = vld [vmem:[%s751] sm:$0xff]
        %v860 = vld [vmem:[%s751 + $0x8] sm:$0xff]
        %v861 = vld [vmem:[%s751 + $0x10] sm:$0xff]
        %v862 = vld [vmem:[%s751 + $0x18] sm:$0xff]
        %v863 = vld [vmem:[%s751 + $0x20] sm:$0xff]
        %v864 = vld [vmem:[%s751 + $0x28] sm:$0xff]
        %v865 = vld [vmem:[%s751 + $0x30] sm:$0xff]
        %v866 = vld [vmem:[%s751 + $0x38] sm:$0xff]
        %v867 = vld [vmem:[%s756] sm:$0xff]
        %v868 = vld [vmem:[%s756 + $0x8] sm:$0xff]
        %v869 = vld [vmem:[%s756 + $0x10] sm:$0xff]
        %v870 = vld [vmem:[%s756 + $0x18] sm:$0xff]
        %v871 = vld [vmem:[%s756 + $0x20] sm:$0xff]
        %v872 = vld [vmem:[%s756 + $0x28] sm:$0xff]
        %v873 = vld [vmem:[%s756 + $0x30] sm:$0xff]
        %v874 = vld [vmem:[%s756 + $0x38] sm:$0xff]
        %v875 = vld [vmem:[%s4] sm:$0xff]
        %v876 = vld [vmem:[%s4 + $0x8] sm:$0xff]
        %v877 = vld [vmem:[%s4 + $0x10] sm:$0xff]
        %v878 = vld [vmem:[%s4 + $0x18] sm:$0xff]
        %v879 = vld [vmem:[%s4 + $0x20] sm:$0xff]
        %v880 = vld [vmem:[%s4 + $0x28] sm:$0xff]
        %v881 = vld [vmem:[%s4 + $0x30] sm:$0xff]
        %v882 = vld [vmem:[%s4 + $0x38] sm:$0xff]
        %v883 = vld [vmem:[%s4 + $0x40] sm:$0xff]
        %v884 = vld [vmem:[%s4 + $0x48] sm:$0xff]
        %v885 = vld [vmem:[%s4 + $0x50] sm:$0xff]
        %v886 = vld [vmem:[%s4 + $0x58] sm:$0xff]
        %v887 = vld [vmem:[%s4 + $0x60] sm:$0xff]
        %v888 = vld [vmem:[%s4 + $0x68] sm:$0xff]
        %v889 = vld [vmem:[%s4 + $0x70] sm:$0xff]
        %v890 = vld [vmem:[%s4 + $0x78] sm:$0xff]
        %v891 = vld [vmem:[%s4 + $0x80] sm:$0xff]
        %v892 = vld [vmem:[%s4 + $0x88] sm:$0xff]
        %v893 = vld [vmem:[%s4 + $0x90] sm:$0xff]
        %v894 = vld [vmem:[%s4 + $0x98] sm:$0xff]
        %v895 = vld [vmem:[%s4 + $0xa0] sm:$0xff]
        %v896 = vld [vmem:[%s4 + $0xa8] sm:$0xff]
        %v897 = vld [vmem:[%s4 + $0xb0] sm:$0xff]
        %v898 = vld [vmem:[%s4 + $0xb8] sm:$0xff]
        %v899 = vld [vmem:[%s4 + $0xc0] sm:$0xff]
        %v900 = vld [vmem:[%s4 + $0xc8] sm:$0xff]
        %v901 = vld [vmem:[%s4 + $0xd0] sm:$0xff]
        %v902 = vld [vmem:[%s4 + $0xd8] sm:$0xff]
        %v903 = vld [vmem:[%s4 + $0xe0] sm:$0xff]
        %v904 = vld [vmem:[%s4 + $0xe8] sm:$0xff]
        %v905 = vld [vmem:[%s4 + $0xf0] sm:$0xff]
        %v906 = vld [vmem:[%s4 + $0xf8] sm:$0xff]
        %v907 = vld [vmem:[%s4 + $0x100] sm:$0xff]
        %v908 = vld [vmem:[%s4 + $0x108] sm:$0xff]
        %v909 = vld [vmem:[%s4 + $0x110] sm:$0xff]
        %v910 = vld [vmem:[%s4 + $0x118] sm:$0xff]
        %v911 = vld [vmem:[%s4 + $0x120] sm:$0xff]
        %v912 = vld [vmem:[%s4 + $0x128] sm:$0xff]
        %v913 = vld [vmem:[%s4 + $0x130] sm:$0xff]
        %v914 = vld [vmem:[%s4 + $0x138] sm:$0xff]
        %v915 = vld [vmem:[%s4 + $0x140] sm:$0xff]
        %v916 = vld [vmem:[%s4 + $0x148] sm:$0xff]
        %v917 = vld [vmem:[%s4 + $0x150] sm:$0xff]
        %v918 = vld [vmem:[%s4 + $0x158] sm:$0xff]
        %v919 = vld [vmem:[%s4 + $0x160] sm:$0xff]
        %v920 = vld [vmem:[%s4 + $0x168] sm:$0xff]
        %v921 = vld [vmem:[%s4 + $0x170] sm:$0xff]
        %v922 = vld [vmem:[%s4 + $0x178] sm:$0xff]
        %v923 = vld [vmem:[#allocation2] sm:$0x7]
        %v924 = vld [vmem:[#allocation5] sm:$0xff]
        %v925 = vld [vmem:[#allocation5 + $0x8] sm:$0xff]
        %v926 = vld [vmem:[#allocation5 + $0x10] sm:$0xff]
        %v927 = vld [vmem:[#allocation5 + $0x18] sm:$0xff]
        %v928 = vld [vmem:[#allocation5 + $0x20] sm:$0xff]
        %v929 = vld [vmem:[#allocation5 + $0x28] sm:$0xff]
        %v930 = vld [vmem:[#allocation5 + $0x30] sm:$0xff]
        %v931 = vld [vmem:[#allocation5 + $0x38] sm:$0xff]
        %v932 = vld [vmem:[#allocation5 + $0x40] sm:$0xff]
        %v933 = vld [vmem:[#allocation5 + $0x48] sm:$0xff]
        %v934 = vld [vmem:[#allocation5 + $0x50] sm:$0xff]
        %v935 = vld [vmem:[#allocation5 + $0x58] sm:$0xff]
        %v936 = vld [vmem:[#allocation5 + $0x60] sm:$0xff]
        %v937 = vld [vmem:[#allocation5 + $0x68] sm:$0xff]
        %v938 = vld [vmem:[#allocation5 + $0x70] sm:$0xff]
        %v939 = vld [vmem:[#allocation5 + $0x78] sm:$0xff]
        %v940 = vld [vmem:[%s7] sm:$0x1]
        %v942 = vlaneseq
        %v943 = vshrl.u32 %v942, 7
        %v944 = vsub.s32 0, %v943
        %v945 = vrot.slane %v923, %v944
        %v946 = vlaneseq
        %v947 = vshrl.u32 %v946, 7
        %v948 = vsub.s32 1, %v947
        %v949 = vrot.slane %v923, %v948
        %v950 = vlaneseq
        %v951 = vshrl.u32 %v950, 7
        %v952 = vsub.s32 2, %v951
        %v953 = vrot.slane %v923, %v952
        %957 = vmatprep.subr.mxu0 %v876
        %958 = vmatpush1.msra.mxu0 %v875
        %959 = vmatprep.subr.mxu0 %v879
        %960 = vmatpush1.msra.mxu0 %v878
        %961 = vmatprep.subr.mxu0 %v882
        %962 = vmatpush1.msra.mxu0 %v881
        %963 = vmatprep.subr.mxu0 %v885
        %964 = vmatpush1.msra.mxu0 %v884
        %965 = vmatprep.subr.mxu0 %v888
        %966 = vmatpush1.msra.mxu0 %v887
        %967 = vmatprep.subr.mxu0 %v891
        %968 = vmatpush1.msra.mxu0 %v890
        %969 = vmatprep.subr.mxu0 %v894
        %970 = vmatpush1.msra.mxu0 %v893
        %971 = vmatprep.subr.mxu0 %v897
        %972 = vmatpush1.msra.mxu0 %v896
        %973 = vmatprep.subr.mxu0 %v900
        %974 = vmatpush1.msra.mxu0 %v899
        %975 = vmatprep.subr.mxu0 %v903
        %976 = vmatpush1.msra.mxu0 %v902
        %977 = vmatprep.subr.mxu0 %v906
        %978 = vmatpush1.msra.mxu0 %v905
        %979 = vmatprep.subr.mxu0 %v909
        %980 = vmatpush1.msra.mxu0 %v908
        %981 = vmatprep.subr.mxu0 %v912
        %982 = vmatpush1.msra.mxu0 %v911
        %983 = vmatprep.subr.mxu0 %v915
        %984 = vmatpush1.msra.mxu0 %v914
        %985 = vmatprep.subr.mxu0 %v918
        %986 = vmatpush1.msra.mxu0 %v917
        %987 = vmatprep.subr.mxu0 %v921
        %988 = vmatpush1.msra.mxu0 %v920
        %989 = vmatprep.subr.mxu0 0.0
        %990 = vmatpush1.msra.mxu0 0.0
        %991 = vmatprep.subr.mxu0 0.0
        %992 = vmatpush1.msra.mxu0 0.0
        %993 = vmatprep.subr.mxu0 0.0
        %994 = vmatpush1.msra.mxu0 0.0
        %995 = vmatprep.subr.mxu0 0.0
        %996 = vmatpush1.msra.mxu0 0.0
        %997 = vmatprep.subr.mxu0 0.0
        %998 = vmatpush1.msra.mxu0 0.0
        %999 = vmatprep.subr.mxu0 0.0
        %1000 = vmatpush1.msra.mxu0 0.0
        %1001 = vmatprep.subr.mxu0 0.0
        %1002 = vmatpush1.msra.mxu0 0.0
        %1003 = vmatprep.subr.mxu0 0.0
        %1004 = vmatpush1.msra.mxu0 0.0
        %1005 = vmatprep.subr.mxu0 0.0
        %1006 = vmatpush1.msra.mxu0 0.0
        %1007 = vmatprep.subr.mxu0 0.0
        %1008 = vmatpush1.msra.mxu0 0.0
        %1009 = vmatprep.subr.mxu0 0.0
        %1010 = vmatpush1.msra.mxu0 0.0
        %1011 = vmatprep.subr.mxu0 0.0
        %1012 = vmatpush1.msra.mxu0 0.0
        %1013 = vmatprep.subr.mxu0 0.0
        %1014 = vmatpush1.msra.mxu0 0.0
        %1015 = vmatprep.subr.mxu0 0.0
        %1016 = vmatpush1.msra.mxu0 0.0
        %1017 = vmatprep.subr.mxu0 0.0
        %1018 = vmatpush1.msra.mxu0 0.0
        %1019 = vmatprep.subr.mxu0 0.0
        %1020 = vmatpush1.msra.mxu0 0.0
        %1021 = vmatprep.mubr.f32.mxu0 0.0
        %1022 = vmatmul.mubr.f32.gmra.mrb[0].mxu0 %v857
        %v1023 = vpop.f32.mrb[0].mxu0
        %v1024 = vadd.f32 %v945, %v1023
        %v1025 = vpop.f32.mrb[0].mxu0
        %1026 = vdwg.mxu0
        %1027 = vmatprep.subr.mxu0 %v876
        %1028 = vmatpush1.msra.mxu0 %v875
        %1029 = vmatprep.subr.mxu0 %v879
        %1030 = vmatpush1.msra.mxu0 %v878
        %1031 = vmatprep.subr.mxu0 %v882
        %1032 = vmatpush1.msra.mxu0 %v881
        %1033 = vmatprep.subr.mxu0 %v885
        %1034 = vmatpush1.msra.mxu0 %v884
        %1035 = vmatprep.subr.mxu0 %v888
        %1036 = vmatpush1.msra.mxu0 %v887
        %1037 = vmatprep.subr.mxu0 %v891
        %1038 = vmatpush1.msra.mxu0 %v890
        %1039 = vmatprep.subr.mxu0 %v894
        %1040 = vmatpush1.msra.mxu0 %v893
        %1041 = vmatprep.subr.mxu0 %v897
        %1042 = vmatpush1.msra.mxu0 %v896
        %1043 = vmatprep.subr.mxu0 %v900
        %1044 = vmatpush1.msra.mxu0 %v899
        %1045 = vmatprep.subr.mxu0 %v903
        %1046 = vmatpush1.msra.mxu0 %v902
        %1047 = vmatprep.subr.mxu0 %v906
        %1048 = vmatpush1.msra.mxu0 %v905
        %1049 = vmatprep.subr.mxu0 %v909
        %1050 = vmatpush1.msra.mxu0 %v908
        %1051 = vmatprep.subr.mxu0 %v912
        %1052 = vmatpush1.msra.mxu0 %v911
        %1053 = vmatprep.subr.mxu0 %v915
        %1054 = vmatpush1.msra.mxu0 %v914
        %1055 = vmatprep.subr.mxu0 %v918
        %1056 = vmatpush1.msra.mxu0 %v917
        %1057 = vmatprep.subr.mxu0 %v921
        %1058 = vmatpush1.msra.mxu0 %v920
        %1059 = vmatprep.subr.mxu0 0.0
        %1060 = vmatpush1.msra.mxu0 0.0
        %1061 = vmatprep.subr.mxu0 0.0
        %1062 = vmatpush1.msra.mxu0 0.0
        %1063 = vmatprep.subr.mxu0 0.0
        %1064 = vmatpush1.msra.mxu0 0.0
        %1065 = vmatprep.subr.mxu0 0.0
        %1066 = vmatpush1.msra.mxu0 0.0
        %1067 = vmatprep.subr.mxu0 0.0
        %1068 = vmatpush1.msra.mxu0 0.0
        %1069 = vmatprep.subr.mxu0 0.0
        %1070 = vmatpush1.msra.mxu0 0.0
        %1071 = vmatprep.subr.mxu0 0.0
        %1072 = vmatpush1.msra.mxu0 0.0
        %1073 = vmatprep.subr.mxu0 0.0
        %1074 = vmatpush1.msra.mxu0 0.0
        %1075 = vmatprep.subr.mxu0 0.0
        %1076 = vmatpush1.msra.mxu0 0.0
        %1077 = vmatprep.subr.mxu0 0.0
        %1078 = vmatpush1.msra.mxu0 0.0
        %1079 = vmatprep.subr.mxu0 0.0
        %1080 = vmatpush1.msra.mxu0 0.0
        %1081 = vmatprep.subr.mxu0 0.0
        %1082 = vmatpush1.msra.mxu0 0.0
        %1083 = vmatprep.subr.mxu0 0.0
        %1084 = vmatpush1.msra.mxu0 0.0
        %1085 = vmatprep.subr.mxu0 0.0
        %1086 = vmatpush1.msra.mxu0 0.0
        %1087 = vmatprep.subr.mxu0 0.0
        %1088 = vmatpush1.msra.mxu0 0.0
        %1089 = vmatprep.subr.mxu0 0.0
        %1090 = vmatpush1.msra.mxu0 0.0
        %1091 = vmatprep.mubr.f32.mxu0 0.0
        %1092 = vmatmul.mubr.f32.gmra.mrb[0].mxu0 %v858
        %v1093 = vpop.f32.mrb[0].mxu0
        %v1094 = vpop.f32.mrb[0].mxu0
        %v1095 = vadd.f32 %v949, %v1094
        %1096 = vdwg.mxu0
        %1097 = vmatprep.subr.mxu0 0.0
        %1098 = vmatpush1.msra.mxu0 %v877
        %1099 = vmatprep.subr.mxu0 0.0
        %1100 = vmatpush1.msra.mxu0 %v880
        %1101 = vmatprep.subr.mxu0 0.0
        %1102 = vmatpush1.msra.mxu0 %v883
        %1103 = vmatprep.subr.mxu0 0.0
        %1104 = vmatpush1.msra.mxu0 %v886
        %1105 = vmatprep.subr.mxu0 0.0
        %1106 = vmatpush1.msra.mxu0 %v889
        %1107 = vmatprep.subr.mxu0 0.0
        %1108 = vmatpush1.msra.mxu0 %v892
        %1109 = vmatprep.subr.mxu0 0.0
        %1110 = vmatpush1.msra.mxu0 %v895
        %1111 = vmatprep.subr.mxu0 0.0
        %1112 = vmatpush1.msra.mxu0 %v898
        %1113 = vmatprep.subr.mxu0 0.0
        %1114 = vmatpush1.msra.mxu0 %v901
        %1115 = vmatprep.subr.mxu0 0.0
        %1116 = vmatpush1.msra.mxu0 %v904
        %1117 = vmatprep.subr.mxu0 0.0
        %1118 = vmatpush1.msra.mxu0 %v907
        %1119 = vmatprep.subr.mxu0 0.0
        %1120 = vmatpush1.msra.mxu0 %v910
        %1121 = vmatprep.subr.mxu0 0.0
        %1122 = vmatpush1.msra.mxu0 %v913
        %1123 = vmatprep.subr.mxu0 0.0
        %1124 = vmatpush1.msra.mxu0 %v916
        %1125 = vmatprep.subr.mxu0 0.0
        %1126 = vmatpush1.msra.mxu0 %v919
        %1127 = vmatprep.subr.mxu0 0.0
        %1128 = vmatpush1.msra.mxu0 %v922
        %1129 = vmatprep.subr.mxu0 0.0
        %1130 = vmatpush1.msra.mxu0 0.0
        %1131 = vmatprep.subr.mxu0 0.0
        %1132 = vmatpush1.msra.mxu0 0.0
        %1133 = vmatprep.subr.mxu0 0.0
        %1134 = vmatpush1.msra.mxu0 0.0
        %1135 = vmatprep.subr.mxu0 0.0
        %1136 = vmatpush1.msra.mxu0 0.0
        %1137 = vmatprep.subr.mxu0 0.0
        %1138 = vmatpush1.msra.mxu0 0.0
        %1139 = vmatprep.subr.mxu0 0.0
        %1140 = vmatpush1.msra.mxu0 0.0
        %1141 = vmatprep.subr.mxu0 0.0
        %1142 = vmatpush1.msra.mxu0 0.0
        %1143 = vmatprep.subr.mxu0 0.0
        %1144 = vmatpush1.msra.mxu0 0.0
        %1145 = vmatprep.subr.mxu0 0.0
        %1146 = vmatpush1.msra.mxu0 0.0
        %1147 = vmatprep.subr.mxu0 0.0
        %1148 = vmatpush1.msra.mxu0 0.0
        %1149 = vmatprep.subr.mxu0 0.0
        %1150 = vmatpush1.msra.mxu0 0.0
        %1151 = vmatprep.subr.mxu0 0.0
        %1152 = vmatpush1.msra.mxu0 0.0
        %1153 = vmatprep.subr.mxu0 0.0
        %1154 = vmatpush1.msra.mxu0 0.0
        %1155 = vmatprep.subr.mxu0 0.0
        %1156 = vmatpush1.msra.mxu0 0.0
        %1157 = vmatprep.subr.mxu0 0.0
        %1158 = vmatpush1.msra.mxu0 0.0
        %1159 = vmatprep.subr.mxu0 0.0
        %1160 = vmatpush1.msra.mxu0 0.0
        %1161 = vmatprep.mubr.f32.mxu0 0.0
        %1162 = vmatmul.mubr.f32.gmra.mrb[0].mxu0 %v858
        %v1163 = vpop.f32.mrb[0].mxu0
        %v1164 = vadd.f32 %v953, %v1163
        %v1165 = vpop.f32.mrb[0].mxu0
        %1166 = vdwg.mxu0
        %v1167 = vmul.f32 %v1024, 0.35355338
        %v1169 = vcombine.high %v1167, %v1167
        %v1171 = vunpack.c.l.s4 1966171168
        %v1172 = vunpack.c.0.s8 %v1171
        %v1173 = vlaneseq
        %v1174 = vshrl.u32 %v1173, 7
        %v1175 = vsub.s32 %v1172, %v1174
        %v1176 = vrot.slane %v1167, %v1175
        %v1178 = vunpack.c.l.s4 1966171168
        %v1179 = vunpack.c.0.s8 %v1178
        %v1180 = vlaneseq
        %v1181 = vshrl.u32 %v1180, 7
        %v1182 = vsub.s32 %v1179, %v1181
        %v1183 = vrot.slane %v1169, %v1182
        %v1184 = vcombine.high %v1176, %v1176
        %v1185 = vcombine.high %v1183, %v1183
        %v1187 = vunpack.c.l.s4 1966171168
        %v1188 = vunpack.c.0.s8 %v1187
        %v1189 = vlaneseq
        %v1190 = vshrl.u32 %v1189, 7
        %v1191 = vsub.s32 %v1188, %v1190
        %v1192 = vrot.slane %v1176, %v1191
        %v1194 = vunpack.c.l.s4 1966171168
        %v1195 = vunpack.c.0.s8 %v1194
        %v1196 = vlaneseq
        %v1197 = vshrl.u32 %v1196, 7
        %v1198 = vsub.s32 %v1195, %v1197
        %v1199 = vrot.slane %v1183, %v1198
        %v1201 = vunpack.c.l.s4 1966171168
        %v1202 = vunpack.c.0.s8 %v1201
        %v1203 = vlaneseq
        %v1204 = vshrl.u32 %v1203, 7
        %v1205 = vsub.s32 %v1202, %v1204
        %v1206 = vrot.slane %v1184, %v1205
        %v1208 = vunpack.c.l.s4 1966171168
        %v1209 = vunpack.c.0.s8 %v1208
        %v1210 = vlaneseq
        %v1211 = vshrl.u32 %v1210, 7
        %v1212 = vsub.s32 %v1209, %v1211
        %v1213 = vrot.slane %v1185, %v1212
        %v1214 = vcombine.high %v1192, %v1192
        %v1215 = vcombine.high %v1199, %v1199
        %v1216 = vcombine.high %v1206, %v1206
        %v1217 = vcombine.high %v1213, %v1213
        %v1218 = vlaneseq
        %v1219 = vshrl.u32 %v1218, 7
        %v1220 = vsub.s32 0, %v1219
        %v1221 = vrot.slane %v1192, %v1220
        %v1222 = vlaneseq
        %v1223 = vshrl.u32 %v1222, 7
        %v1224 = vsub.s32 0, %v1223
        %v1225 = vrot.slane %v1206, %v1224
        %v1226 = vlaneseq
        %v1227 = vshrl.u32 %v1226, 7
        %v1228 = vsub.s32 0, %v1227
        %v1229 = vrot.slane %v1214, %v1228
        %v1230 = vlaneseq
        %v1231 = vshrl.u32 %v1230, 7
        %v1232 = vsub.s32 0, %v1231
        %v1233 = vrot.slane %v1216, %v1232
        %v1234 = vlaneseq
        %v1235 = vshrl.u32 %v1234, 7
        %v1236 = vsub.s32 0, %v1235
        %v1237 = vrot.slane %v1199, %v1236
        %v1238 = vlaneseq
        %v1239 = vshrl.u32 %v1238, 7
        %v1240 = vsub.s32 0, %v1239
        %v1241 = vrot.slane %v1213, %v1240
        %v1242 = vlaneseq
        %v1243 = vshrl.u32 %v1242, 7
        %v1244 = vsub.s32 0, %v1243
        %v1245 = vrot.slane %v1215, %v1244
        %v1246 = vlaneseq
        %v1247 = vshrl.u32 %v1246, 7
        %v1248 = vsub.s32 0, %v1247
        %v1249 = vrot.slane %v1217, %v1248
        %v1258 = vmul.f32 %v1221, %v1095
        %v1259 = vmul.f32 %v1225, %v1095
        %v1260 = vmul.f32 %v1229, %v1095
        %v1261 = vmul.f32 %v1233, %v1095
        %v1262 = vmul.f32 %v1237, %v1095
        %v1263 = vmul.f32 %v1241, %v1095
        %v1264 = vmul.f32 %v1245, %v1095
        %v1265 = vmul.f32 %v1249, %v1095
        %1266 = vmatprep.subr.mxu0 0.0
        %1267 = vmatpush1.msra.mxu0 %v827
        %1268 = vmatprep.subr.mxu0 0.0
        %1269 = vmatpush1.msra.mxu0 %v828
        %1270 = vmatprep.subr.mxu0 0.0
        %1271 = vmatpush1.msra.mxu0 %v829
        %1272 = vmatprep.subr.mxu0 0.0
        %1273 = vmatpush1.msra.mxu0 %v830
        %1274 = vmatprep.subr.mxu0 0.0
        %1275 = vmatpush1.msra.mxu0 %v831
        %1276 = vmatprep.subr.mxu0 0.0
        %1277 = vmatpush1.msra.mxu0 %v832
        %1278 = vmatprep.subr.mxu0 0.0
        %1279 = vmatpush1.msra.mxu0 %v833
        %1280 = vmatprep.subr.mxu0 0.0
        %1281 = vmatpush1.msra.mxu0 %v834
        %1282 = vmatprep.subr.mxu0 0.0
        %1283 = vmatpush1.msra.mxu0 %v835
        %1284 = vmatprep.subr.mxu0 0.0
        %1285 = vmatpush1.msra.mxu0 %v836
        %1286 = vmatprep.subr.mxu0 0.0
        %1287 = vmatpush1.msra.mxu0 %v837
        %1288 = vmatprep.subr.mxu0 0.0
        %1289 = vmatpush1.msra.mxu0 %v838
        %1290 = vmatprep.subr.mxu0 0.0
        %1291 = vmatpush1.msra.mxu0 %v839
        %1292 = vmatprep.subr.mxu0 0.0
        %1293 = vmatpush1.msra.mxu0 %v840
        %1294 = vmatprep.subr.mxu0 0.0
        %1295 = vmatpush1.msra.mxu0 %v841
        %1296 = vmatprep.subr.mxu0 0.0
        %1297 = vmatpush1.msra.mxu0 %v842
        %1298 = vmatprep.subr.mxu0 0.0
        %1299 = vmatpush1.msra.mxu0 0.0
        %1300 = vmatprep.subr.mxu0 0.0
        %1301 = vmatpush1.msra.mxu0 0.0
        %1302 = vmatprep.subr.mxu0 0.0
        %1303 = vmatpush1.msra.mxu0 0.0
        %1304 = vmatprep.subr.mxu0 0.0
        %1305 = vmatpush1.msra.mxu0 0.0
        %1306 = vmatprep.subr.mxu0 0.0
        %1307 = vmatpush1.msra.mxu0 0.0
        %1308 = vmatprep.subr.mxu0 0.0
        %1309 = vmatpush1.msra.mxu0 0.0
        %1310 = vmatprep.subr.mxu0 0.0
        %1311 = vmatpush1.msra.mxu0 0.0
        %1312 = vmatprep.subr.mxu0 0.0
        %1313 = vmatpush1.msra.mxu0 0.0
        %1314 = vmatprep.subr.mxu0 0.0
        %1315 = vmatpush1.msra.mxu0 0.0
        %1316 = vmatprep.subr.mxu0 0.0
        %1317 = vmatpush1.msra.mxu0 0.0
        %1318 = vmatprep.subr.mxu0 0.0
        %1319 = vmatpush1.msra.mxu0 0.0
        %1320 = vmatprep.subr.mxu0 0.0
        %1321 = vmatpush1.msra.mxu0 0.0
        %1322 = vmatprep.subr.mxu0 0.0
        %1323 = vmatpush1.msra.mxu0 0.0
        %1324 = vmatprep.subr.mxu0 0.0
        %1325 = vmatpush1.msra.mxu0 0.0
        %1326 = vmatprep.subr.mxu0 0.0
        %1327 = vmatpush1.msra.mxu0 0.0
        %1328 = vmatprep.subr.mxu0 0.0
        %1329 = vmatpush1.msra.mxu0 0.0
        %1330 = vmatprep.mubr.f32.mxu0 0.0
        %1331 = vmatmul.mubr.f32.gmra.mrb[0].mxu0 %v1258
        %v1332 = vpop.f32.mrb[0].mxu0
        %v1333 = vadd.f32 0.0, %v1332
        %v1334 = vpop.f32.mrb[0].mxu0
        %1335 = vmatprep.mubr.f32.mxu0 0.0
        %1336 = vmatmul.mubr.f32.gmra.mrb[0].mxu0 %v1259
        %v1337 = vpop.f32.mrb[0].mxu0
        %v1338 = vadd.f32 0.0, %v1337
        %v1339 = vpop.f32.mrb[0].mxu0
        %1340 = vmatprep.mubr.f32.mxu0 0.0
        %1341 = vmatmul.mubr.f32.gmra.mrb[0].mxu0 %v1260
        %v1342 = vpop.f32.mrb[0].mxu0
        %v1343 = vadd.f32 0.0, %v1342
        %v1344 = vpop.f32.mrb[0].mxu0
        %1345 = vmatprep.mubr.f32.mxu0 0.0
        %1346 = vmatmul.mubr.f32.gmra.mrb[0].mxu0 %v1261
        %v1347 = vpop.f32.mrb[0].mxu0
        %v1348 = vadd.f32 0.0, %v1347
        %v1349 = vpop.f32.mrb[0].mxu0
        %1350 = vmatprep.mubr.f32.mxu0 0.0
        %1351 = vmatmul.mubr.f32.gmra.mrb[0].mxu0 %v1262
        %v1352 = vpop.f32.mrb[0].mxu0
        %v1353 = vadd.f32 0.0, %v1352
        %v1354 = vpop.f32.mrb[0].mxu0
        %1355 = vmatprep.mubr.f32.mxu0 0.0
        %1356 = vmatmul.mubr.f32.gmra.mrb[0].mxu0 %v1263
        %v1357 = vpop.f32.mrb[0].mxu0
        %v1358 = vadd.f32 0.0, %v1357
        %v1359 = vpop.f32.mrb[0].mxu0
        %1360 = vmatprep.mubr.f32.mxu0 0.0
        %1361 = vmatmul.mubr.f32.gmra.mrb[0].mxu0 %v1264
        %v1362 = vpop.f32.mrb[0].mxu0
        %v1363 = vadd.f32 0.0, %v1362
        %v1364 = vpop.f32.mrb[0].mxu0
        %1365 = vmatprep.mubr.f32.mxu0 0.0
        %1366 = vmatmul.mubr.f32.gmra.mrb[0].mxu0 %v1265
        %v1367 = vpop.f32.mrb[0].mxu0
        %v1368 = vadd.f32 0.0, %v1367
        %v1369 = vpop.f32.mrb[0].mxu0
        %1370 = vdwg.mxu0
        %vm1371 = vcmp.gt.f32.partialorder %v859, 0.0
        %vm1372 = vcmp.gt.f32.partialorder %v860, 0.0
        %vm1373 = vcmp.gt.f32.partialorder %v861, 0.0
        %vm1374 = vcmp.gt.f32.partialorder %v862, 0.0
        %vm1375 = vcmp.gt.f32.partialorder %v863, 0.0
        %vm1376 = vcmp.gt.f32.partialorder %v864, 0.0
        %vm1377 = vcmp.gt.f32.partialorder %v865, 0.0
        %vm1378 = vcmp.gt.f32.partialorder %v866, 0.0
        %v1379 = vsel %vm1371, 1, 0
        %v1380 = vsel %vm1372, 1, 0
        %v1381 = vsel %vm1373, 1, 0
        %v1382 = vsel %vm1374, 1, 0
        %v1383 = vsel %vm1375, 1, 0
        %v1384 = vsel %vm1376, 1, 0
        %v1385 = vsel %vm1377, 1, 0
        %v1386 = vsel %vm1378, 1, 0
        %1387 = vset.pattern.permute.xlu0 0
        %1388 = vperm.xlu0 %1387, %v1379
        %v1389 = vpop.permute.xlu0 %1388
        %1390 = vset.pattern.permute.xlu0 0
        %1391 = vperm.xlu0 %1390, %v1380
        %v1392 = vpop.permute.xlu0 %1391
        %1393 = vset.pattern.permute.xlu0 0
        %1394 = vperm.xlu0 %1393, %v1381
        %v1395 = vpop.permute.xlu0 %1394
        %1396 = vset.pattern.permute.xlu0 0
        %1397 = vperm.xlu0 %1396, %v1382
        %v1398 = vpop.permute.xlu0 %1397
        %1399 = vset.pattern.permute.xlu0 0
        %1400 = vperm.xlu0 %1399, %v1383
        %v1401 = vpop.permute.xlu0 %1400
        %1402 = vset.pattern.permute.xlu0 0
        %1403 = vperm.xlu0 %1402, %v1384
        %v1404 = vpop.permute.xlu0 %1403
        %1405 = vset.pattern.permute.xlu0 0
        %1406 = vperm.xlu0 %1405, %v1385
        %v1407 = vpop.permute.xlu0 %1406
        %1408 = vset.pattern.permute.xlu0 0
        %1409 = vperm.xlu0 %1408, %v1386
        %v1410 = vpop.permute.xlu0 %1409
        %vm1411 = vcmp.eq.s32.totalorder %v1389, 1
        %vm1412 = vcmp.eq.s32.totalorder %v1392, 1
        %vm1413 = vcmp.eq.s32.totalorder %v1395, 1
        %vm1414 = vcmp.eq.s32.totalorder %v1398, 1
        %vm1415 = vcmp.eq.s32.totalorder %v1401, 1
        %vm1416 = vcmp.eq.s32.totalorder %v1404, 1
        %vm1417 = vcmp.eq.s32.totalorder %v1407, 1
        %vm1418 = vcmp.eq.s32.totalorder %v1410, 1
        %v1419 = vsel %vm1411, -1e+20, %v1333
        %v1420 = vsel %vm1412, -1e+20, %v1338
        %v1421 = vsel %vm1413, -1e+20, %v1343
        %v1422 = vsel %vm1414, -1e+20, %v1348
        %v1423 = vsel %vm1415, -1e+20, %v1353
        %v1424 = vsel %vm1416, -1e+20, %v1358
        %v1425 = vsel %vm1417, -1e+20, %v1363
        %v1426 = vsel %vm1418, -1e+20, %v1368
        %vm1427 = vcmask 130048
        %v1428 = vsel %vm1427, %v1419, -inf
        %1429 = vmax.xlane.f32.xlu0 %v1428
        %v1430 = vpop.xlane.xlu0 %1429
        %v1431 = vsel %vm1427, %v1420, -inf
        %1432 = vmax.xlane.f32.xlu0 %v1431
        %v1433 = vpop.xlane.xlu0 %1432
        %v1434 = vsel %vm1427, %v1421, -inf
        %1435 = vmax.xlane.f32.xlu0 %v1434
        %v1436 = vpop.xlane.xlu0 %1435
        %v1437 = vsel %vm1427, %v1422, -inf
        %1438 = vmax.xlane.f32.xlu0 %v1437
        %v1439 = vpop.xlane.xlu0 %1438
        %v1440 = vsel %vm1427, %v1423, -inf
        %1441 = vmax.xlane.f32.xlu0 %v1440
        %v1442 = vpop.xlane.xlu0 %1441
        %v1443 = vsel %vm1427, %v1424, -inf
        %1444 = vmax.xlane.f32.xlu0 %v1443
        %v1445 = vpop.xlane.xlu0 %1444
        %v1446 = vsel %vm1427, %v1425, -inf
        %1447 = vmax.xlane.f32.xlu0 %v1446
        %v1448 = vpop.xlane.xlu0 %1447
        %v1449 = vsel %vm1427, %v1426, -inf
        %1450 = vmax.xlane.f32.xlu0 %v1449
        %v1451 = vpop.xlane.xlu0 %1450
        %v1452 = vsub.f32 %v1419, %v1430
        %v1453 = vsub.f32 %v1420, %v1433
        %v1454 = vsub.f32 %v1421, %v1436
        %v1455 = vsub.f32 %v1422, %v1439
        %v1456 = vsub.f32 %v1423, %v1442
        %v1457 = vsub.f32 %v1424, %v1445
        %v1458 = vsub.f32 %v1425, %v1448
        %v1459 = vsub.f32 %v1426, %v1451
        %v1460 = vmul.f32 %v1452, 1.442695
        %v1461 = vpow.pop %v1460
        %v1462 = vmul.f32 %v1453, 1.442695
        %v1463 = vpow.pop %v1462
        %v1464 = vmul.f32 %v1454, 1.442695
        %v1465 = vpow.pop %v1464
        %v1466 = vmul.f32 %v1455, 1.442695
        %v1467 = vpow.pop %v1466
        %v1468 = vmul.f32 %v1456, 1.442695
        %v1469 = vpow.pop %v1468
        %v1470 = vmul.f32 %v1457, 1.442695
        %v1471 = vpow.pop %v1470
        %v1472 = vmul.f32 %v1458, 1.442695
        %v1473 = vpow.pop %v1472
        %v1474 = vmul.f32 %v1459, 1.442695
        %v1475 = vpow.pop %v1474
        %v1476 = vsel %vm1427, %v1461, 0.0
        %1477 = vadd.xlane.f32.xlu0 %v1476
        %v1478 = vpop.xlane.xlu0 %1477
        %v1479 = vsel %vm1427, %v1463, 0.0
        %1480 = vadd.xlane.f32.xlu0 %v1479
        %v1481 = vpop.xlane.xlu0 %1480
        %v1482 = vsel %vm1427, %v1465, 0.0
        %1483 = vadd.xlane.f32.xlu0 %v1482
        %v1484 = vpop.xlane.xlu0 %1483
        %v1485 = vsel %vm1427, %v1467, 0.0
        %1486 = vadd.xlane.f32.xlu0 %v1485
        %v1487 = vpop.xlane.xlu0 %1486
        %v1488 = vsel %vm1427, %v1469, 0.0
        %1489 = vadd.xlane.f32.xlu0 %v1488
        %v1490 = vpop.xlane.xlu0 %1489
        %v1491 = vsel %vm1427, %v1471, 0.0
        %1492 = vadd.xlane.f32.xlu0 %v1491
        %v1493 = vpop.xlane.xlu0 %1492
        %v1494 = vsel %vm1427, %v1473, 0.0
        %1495 = vadd.xlane.f32.xlu0 %v1494
        %v1496 = vpop.xlane.xlu0 %1495
        %v1497 = vsel %vm1427, %v1475, 0.0
        %1498 = vadd.xlane.f32.xlu0 %v1497
        %v1499 = vpop.xlane.xlu0 %1498
        %v1500 = vrcp.pop %v1478
        %v1501 = vrcp.pop %v1481
        %v1502 = vrcp.pop %v1484
        %v1503 = vrcp.pop %v1487
        %v1504 = vrcp.pop %v1490
        %v1505 = vrcp.pop %v1493
        %v1506 = vrcp.pop %v1496
        %v1507 = vrcp.pop %v1499
        %v1508 = vmul.f32 %v1461, %v1500
        %v1509 = vmul.f32 %v1463, %v1501
        %v1510 = vmul.f32 %v1465, %v1502
        %v1511 = vmul.f32 %v1467, %v1503
        %v1512 = vmul.f32 %v1469, %v1504
        %v1513 = vmul.f32 %v1471, %v1505
        %v1514 = vmul.f32 %v1473, %v1506
        %v1515 = vmul.f32 %v1475, %v1507
        %v1517 = vsel %vm1427, %v1508, 0
        %v1520 = vsel %vm1427, %v1509, 0
        %v1523 = vsel %vm1427, %v1510, 0
        %v1526 = vsel %vm1427, %v1511, 0
        %v1529 = vsel %vm1427, %v1512, 0
        %v1532 = vsel %vm1427, %v1513, 0
        %v1535 = vsel %vm1427, %v1514, 0
        %v1538 = vsel %vm1427, %v1515, 0
        %1540 = vmatprep.subr.mxu0 0.0
        %1541 = vmatpush1.msra.mxu0 %v855
        %1542 = vmatprep.subr.mxu0 0.0
        %1543 = vmatpush1.msra.mxu0 %v856
        %1544 = vmatprep.subr.mxu0 0.0
        %1545 = vmatpush1.msra.mxu0 0.0
        %1546 = vmatprep.subr.mxu0 0.0
        %1547 = vmatpush1.msra.mxu0 0.0
        %1548 = vmatprep.subr.mxu0 0.0
        %1549 = vmatpush1.msra.mxu0 0.0
        %1550 = vmatprep.subr.mxu0 0.0
        %1551 = vmatpush1.msra.mxu0 0.0
        %1552 = vmatprep.subr.mxu0 0.0
        %1553 = vmatpush1.msra.mxu0 0.0
        %1554 = vmatprep.subr.mxu0 0.0
        %1555 = vmatpush1.msra.mxu0 0.0
        %1556 = vmatprep.subr.mxu0 0.0
        %1557 = vmatpush1.msra.mxu0 0.0
        %1558 = vmatprep.subr.mxu0 0.0
        %1559 = vmatpush1.msra.mxu0 0.0
        %1560 = vmatprep.subr.mxu0 0.0
        %1561 = vmatpush1.msra.mxu0 0.0
        %1562 = vmatprep.subr.mxu0 0.0
        %1563 = vmatpush1.msra.mxu0 0.0
        %1564 = vmatprep.subr.mxu0 0.0
        %1565 = vmatpush1.msra.mxu0 0.0
        %1566 = vmatprep.subr.mxu0 0.0
        %1567 = vmatpush1.msra.mxu0 0.0
        %1568 = vmatprep.subr.mxu0 0.0
        %1569 = vmatpush1.msra.mxu0 0.0
        %1570 = vmatprep.subr.mxu0 0.0
        %1571 = vmatpush1.msra.mxu0 0.0
        %1572 = vmatprep.subr.mxu0 0.0
        %1573 = vmatpush1.msra.mxu0 0.0
        %1574 = vmatprep.subr.mxu0 0.0
        %1575 = vmatpush1.msra.mxu0 0.0
        %1576 = vmatprep.subr.mxu0 0.0
        %1577 = vmatpush1.msra.mxu0 0.0
        %1578 = vmatprep.subr.mxu0 0.0
        %1579 = vmatpush1.msra.mxu0 0.0
        %1580 = vmatprep.subr.mxu0 0.0
        %1581 = vmatpush1.msra.mxu0 0.0
        %1582 = vmatprep.subr.mxu0 0.0
        %1583 = vmatpush1.msra.mxu0 0.0
        %1584 = vmatprep.subr.mxu0 0.0
        %1585 = vmatpush1.msra.mxu0 0.0
        %1586 = vmatprep.subr.mxu0 0.0
        %1587 = vmatpush1.msra.mxu0 0.0
        %1588 = vmatprep.subr.mxu0 0.0
        %1589 = vmatpush1.msra.mxu0 0.0
        %1590 = vmatprep.subr.mxu0 0.0
        %1591 = vmatpush1.msra.mxu0 0.0
        %1592 = vmatprep.subr.mxu0 0.0
        %1593 = vmatpush1.msra.mxu0 0.0
        %1594 = vmatprep.subr.mxu0 0.0
        %1595 = vmatpush1.msra.mxu0 0.0
        %1596 = vmatprep.subr.mxu0 0.0
        %1597 = vmatpush1.msra.mxu0 0.0
        %1598 = vmatprep.subr.mxu0 0.0
        %1599 = vmatpush1.msra.mxu0 0.0
        %1600 = vmatprep.subr.mxu0 0.0
        %1601 = vmatpush1.msra.mxu0 0.0
        %1602 = vmatprep.subr.mxu0 0.0
        %1603 = vmatpush1.msra.mxu0 0.0
        %1604 = vmatprep.mubr.f32.mxu0 0.0
        %1605 = vmatmul.mubr.f32.gmra.mrb[0].mxu0 %v1517
        %v1606 = vpop.f32.mrb[0].mxu0
        %v1607 = vadd.f32 0.0, %v1606
        %v1608 = vpop.f32.mrb[0].mxu0
        %1609 = vmatprep.mubr.f32.mxu0 0.0
        %1610 = vmatmul.mubr.f32.gmra.mrb[0].mxu0 %v1520
        %v1611 = vpop.f32.mrb[0].mxu0
        %v1612 = vadd.f32 0.0, %v1611
        %v1613 = vpop.f32.mrb[0].mxu0
        %1614 = vmatprep.mubr.f32.mxu0 0.0
        %1615 = vmatmul.mubr.f32.gmra.mrb[0].mxu0 %v1523
        %v1616 = vpop.f32.mrb[0].mxu0
        %v1617 = vadd.f32 0.0, %v1616
        %v1618 = vpop.f32.mrb[0].mxu0
        %1619 = vmatprep.mubr.f32.mxu0 0.0
        %1620 = vmatmul.mubr.f32.gmra.mrb[0].mxu0 %v1526
        %v1621 = vpop.f32.mrb[0].mxu0
        %v1622 = vadd.f32 0.0, %v1621
        %v1623 = vpop.f32.mrb[0].mxu0
        %1624 = vmatprep.mubr.f32.mxu0 0.0
        %1625 = vmatmul.mubr.f32.gmra.mrb[0].mxu0 %v1529
        %v1626 = vpop.f32.mrb[0].mxu0
        %v1627 = vadd.f32 0.0, %v1626
        %v1628 = vpop.f32.mrb[0].mxu0
        %1629 = vmatprep.mubr.f32.mxu0 0.0
        %1630 = vmatmul.mubr.f32.gmra.mrb[0].mxu0 %v1532
        %v1631 = vpop.f32.mrb[0].mxu0
        %v1632 = vadd.f32 0.0, %v1631
        %v1633 = vpop.f32.mrb[0].mxu0
        %1634 = vmatprep.mubr.f32.mxu0 0.0
        %1635 = vmatmul.mubr.f32.gmra.mrb[0].mxu0 %v1535
        %v1636 = vpop.f32.mrb[0].mxu0
        %v1637 = vadd.f32 0.0, %v1636
        %v1638 = vpop.f32.mrb[0].mxu0
        %1639 = vmatprep.mubr.f32.mxu0 0.0
        %1640 = vmatmul.mubr.f32.gmra.mrb[0].mxu0 %v1538
        %v1641 = vpop.f32.mrb[0].mxu0
        %v1642 = vadd.f32 0.0, %v1641
        %v1643 = vpop.f32.mrb[0].mxu0
        %1644 = vdwg.mxu0
        %v1645 = vmul.f32 %v1607, %v1164
        %v1646 = vmul.f32 %v1612, %v1164
        %v1647 = vmul.f32 %v1617, %v1164
        %v1648 = vmul.f32 %v1622, %v1164
        %v1649 = vmul.f32 %v1627, %v1164
        %v1650 = vmul.f32 %v1632, %v1164
        %v1651 = vmul.f32 %v1637, %v1164
        %v1652 = vmul.f32 %v1642, %v1164
        %v1653 = vrot.slane %v1645, 4
        %v1654 = vadd.f32 %v1645, %v1653
        %v1655 = vrot.slane %v1654, 2
        %v1656 = vadd.f32 %v1654, %v1655
        %v1657 = vrot.slane %v1656, 1
        %v1658 = vadd.f32 %v1656, %v1657
        %v1659 = vrot.slane %v1646, 4
        %v1660 = vadd.f32 %v1646, %v1659
        %v1661 = vrot.slane %v1660, 2
        %v1662 = vadd.f32 %v1660, %v1661
        %v1663 = vrot.slane %v1662, 1
        %v1664 = vadd.f32 %v1662, %v1663
        %v1665 = vrot.slane %v1647, 4
        %v1666 = vadd.f32 %v1647, %v1665
        %v1667 = vrot.slane %v1666, 2
        %v1668 = vadd.f32 %v1666, %v1667
        %v1669 = vrot.slane %v1668, 1
        %v1670 = vadd.f32 %v1668, %v1669
        %v1671 = vrot.slane %v1648, 4
        %v1672 = vadd.f32 %v1648, %v1671
        %v1673 = vrot.slane %v1672, 2
        %v1674 = vadd.f32 %v1672, %v1673
        %v1675 = vrot.slane %v1674, 1
        %v1676 = vadd.f32 %v1674, %v1675
        %v1677 = vrot.slane %v1649, 4
        %v1678 = vadd.f32 %v1649, %v1677
        %v1679 = vrot.slane %v1678, 2
        %v1680 = vadd.f32 %v1678, %v1679
        %v1681 = vrot.slane %v1680, 1
        %v1682 = vadd.f32 %v1680, %v1681
        %v1683 = vrot.slane %v1650, 4
        %v1684 = vadd.f32 %v1650, %v1683
        %v1685 = vrot.slane %v1684, 2
        %v1686 = vadd.f32 %v1684, %v1685
        %v1687 = vrot.slane %v1686, 1
        %v1688 = vadd.f32 %v1686, %v1687
        %v1689 = vrot.slane %v1651, 4
        %v1690 = vadd.f32 %v1651, %v1689
        %v1691 = vrot.slane %v1690, 2
        %v1692 = vadd.f32 %v1690, %v1691
        %v1693 = vrot.slane %v1692, 1
        %v1694 = vadd.f32 %v1692, %v1693
        %v1695 = vrot.slane %v1652, 4
        %v1696 = vadd.f32 %v1652, %v1695
        %v1697 = vrot.slane %v1696, 2
        %v1698 = vadd.f32 %v1696, %v1697
        %v1699 = vrot.slane %v1698, 1
        %v1700 = vadd.f32 %v1698, %v1699
        %v1702 = vlaneseq
        %v1703 = vshrl.u32 %v1702, 7
        %v1704 = vsub.s32 0, %v1703
        %v1705 = vrot.slane %v940, %v1704
        %vm1715 = vcmask 1041409
        %v1716 = vsel %vm1715, %v1664, %v1658
        %vm1717 = vcmask 1042434
        %v1718 = vsel %vm1717, %v1670, %v1716
        %vm1719 = vcmask 1043459
        %v1720 = vsel %vm1719, %v1676, %v1718
        %vm1721 = vcmask 1044484
        %v1722 = vsel %vm1721, %v1682, %v1720
        %vm1723 = vcmask 1045509
        %v1724 = vsel %vm1723, %v1688, %v1722
        %vm1725 = vcmask 1046534
        %v1726 = vsel %vm1725, %v1694, %v1724
        %vm1727 = vcmask 1047559
        %v1728 = vsel %vm1727, %v1700, %v1726
        %1730 = vmatprep.subr.mxu0 0.0
        %1731 = vmatpush1.msra.mxu0 %v924
        %1732 = vmatprep.subr.mxu0 0.0
        %1733 = vmatpush1.msra.mxu0 %v925
        %1734 = vmatprep.subr.mxu0 0.0
        %1735 = vmatpush1.msra.mxu0 %v926
        %1736 = vmatprep.subr.mxu0 0.0
        %1737 = vmatpush1.msra.mxu0 %v927
        %1738 = vmatprep.subr.mxu0 0.0
        %1739 = vmatpush1.msra.mxu0 %v928
        %1740 = vmatprep.subr.mxu0 0.0
        %1741 = vmatpush1.msra.mxu0 %v929
        %1742 = vmatprep.subr.mxu0 0.0
        %1743 = vmatpush1.msra.mxu0 %v930
        %1744 = vmatprep.subr.mxu0 0.0
        %1745 = vmatpush1.msra.mxu0 %v931
        %1746 = vmatprep.subr.mxu0 0.0
        %1747 = vmatpush1.msra.mxu0 %v932
        %1748 = vmatprep.subr.mxu0 0.0
        %1749 = vmatpush1.msra.mxu0 %v933
        %1750 = vmatprep.subr.mxu0 0.0
        %1751 = vmatpush1.msra.mxu0 %v934
        %1752 = vmatprep.subr.mxu0 0.0
        %1753 = vmatpush1.msra.mxu0 %v935
        %1754 = vmatprep.subr.mxu0 0.0
        %1755 = vmatpush1.msra.mxu0 %v936
        %1756 = vmatprep.subr.mxu0 0.0
        %1757 = vmatpush1.msra.mxu0 %v937
        %1758 = vmatprep.subr.mxu0 0.0
        %1759 = vmatpush1.msra.mxu0 %v938
        %1760 = vmatprep.subr.mxu0 0.0
        %1761 = vmatpush1.msra.mxu0 %v939
        %1762 = vmatprep.subr.mxu0 0.0
        %1763 = vmatpush1.msra.mxu0 0.0
        %1764 = vmatprep.subr.mxu0 0.0
        %1765 = vmatpush1.msra.mxu0 0.0
        %1766 = vmatprep.subr.mxu0 0.0
        %1767 = vmatpush1.msra.mxu0 0.0
        %1768 = vmatprep.subr.mxu0 0.0
        %1769 = vmatpush1.msra.mxu0 0.0
        %1770 = vmatprep.subr.mxu0 0.0
        %1771 = vmatpush1.msra.mxu0 0.0
        %1772 = vmatprep.subr.mxu0 0.0
        %1773 = vmatpush1.msra.mxu0 0.0
        %1774 = vmatprep.subr.mxu0 0.0
        %1775 = vmatpush1.msra.mxu0 0.0
        %1776 = vmatprep.subr.mxu0 0.0
        %1777 = vmatpush1.msra.mxu0 0.0
        %1778 = vmatprep.subr.mxu0 0.0
        %1779 = vmatpush1.msra.mxu0 0.0
        %1780 = vmatprep.subr.mxu0 0.0
        %1781 = vmatpush1.msra.mxu0 0.0
        %1782 = vmatprep.subr.mxu0 0.0
        %1783 = vmatpush1.msra.mxu0 0.0
        %1784 = vmatprep.subr.mxu0 0.0
        %1785 = vmatpush1.msra.mxu0 0.0
        %1786 = vmatprep.subr.mxu0 0.0
        %1787 = vmatpush1.msra.mxu0 0.0
        %1788 = vmatprep.subr.mxu0 0.0
        %1789 = vmatpush1.msra.mxu0 0.0
        %1790 = vmatprep.subr.mxu0 0.0
        %1791 = vmatpush1.msra.mxu0 0.0
        %1792 = vmatprep.subr.mxu0 0.0
        %1793 = vmatpush1.msra.mxu0 0.0
        %1794 = vmatprep.mubr.f32.mxu0 0.0
        %1795 = vmatmul.mubr.f32.gmra.mrb[0].mxu0 %v1728
        %v1796 = vpop.f32.mrb[0].mxu0
        %v1797 = vadd.f32 %v1705, %v1796
        %v1798 = vpop.f32.mrb[0].mxu0
        %1799 = vdwg.mxu0
        %v1800 = vld [vmem:[%s16] sm:$0x7]
        %v1801 = vld [vmem:[%s17] sm:$0x7]
        %v1802 = vld [vmem:[#allocation7] sm:$0xff]
        %v1803 = vld [vmem:[#allocation7 + $0x8] sm:$0xff]
        %v1804 = vld [vmem:[#allocation7 + $0x10] sm:$0xff]
        %v1805 = vld [vmem:[#allocation7 + $0x18] sm:$0xff]
        %v1806 = vld [vmem:[#allocation7 + $0x20] sm:$0xff]
        %v1807 = vld [vmem:[#allocation7 + $0x28] sm:$0xff]
        %v1808 = vld [vmem:[#allocation7 + $0x30] sm:$0xff]
        %v1809 = vld [vmem:[#allocation7 + $0x38] sm:$0xff]
        %v1810 = vld [vmem:[#allocation7 + $0x40] sm:$0xff]
        %v1811 = vld [vmem:[#allocation7 + $0x48] sm:$0xff]
        %v1812 = vld [vmem:[#allocation7 + $0x50] sm:$0xff]
        %v1813 = vld [vmem:[#allocation7 + $0x58] sm:$0xff]
        %v1814 = vld [vmem:[#allocation7 + $0x60] sm:$0xff]
        %v1815 = vld [vmem:[#allocation7 + $0x68] sm:$0xff]
        %v1816 = vld [vmem:[#allocation7 + $0x70] sm:$0xff]
        %v1817 = vld [vmem:[#allocation7 + $0x78] sm:$0xff]
        %v1818 = vld [vmem:[#allocation7 + $0x80] sm:$0xff]
        %v1819 = vld [vmem:[#allocation7 + $0x88] sm:$0xff]
        %v1820 = vld [vmem:[#allocation7 + $0x90] sm:$0xff]
        %v1821 = vld [vmem:[#allocation7 + $0x98] sm:$0xff]
        %v1822 = vld [vmem:[#allocation7 + $0xa0] sm:$0xff]
        %v1823 = vld [vmem:[#allocation7 + $0xa8] sm:$0xff]
        %v1824 = vld [vmem:[#allocation7 + $0xb0] sm:$0xff]
        %v1825 = vld [vmem:[#allocation7 + $0xb8] sm:$0xff]
        %v1826 = vld [vmem:[#allocation7 + $0xc0] sm:$0xff]
        %v1827 = vld [vmem:[#allocation7 + $0xc8] sm:$0xff]
        %v1828 = vld [vmem:[#allocation7 + $0xd0] sm:$0xff]
        %v1829 = vld [vmem:[#allocation7 + $0xd8] sm:$0xff]
        %v1830 = vld [vmem:[#allocation7 + $0xe0] sm:$0xff]
        %v1831 = vld [vmem:[#allocation7 + $0xe8] sm:$0xff]
        %v1832 = vld [vmem:[#allocation7 + $0xf0] sm:$0xff]
        %v1833 = vld [vmem:[#allocation7 + $0xf8] sm:$0xff]
        %v1834 = vld [vmem:[#allocation7 + $0x100] sm:$0xff]
        %v1835 = vld [vmem:[#allocation7 + $0x108] sm:$0xff]
        %v1836 = vld [vmem:[#allocation7 + $0x110] sm:$0xff]
        %v1837 = vld [vmem:[#allocation7 + $0x118] sm:$0xff]
        %v1838 = vld [vmem:[#allocation7 + $0x120] sm:$0xff]
        %v1839 = vld [vmem:[#allocation7 + $0x128] sm:$0xff]
        %v1840 = vld [vmem:[#allocation7 + $0x130] sm:$0xff]
        %v1841 = vld [vmem:[#allocation7 + $0x138] sm:$0xff]
        %v1842 = vld [vmem:[#allocation7 + $0x140] sm:$0xff]
        %v1843 = vld [vmem:[#allocation7 + $0x148] sm:$0xff]
        %v1844 = vld [vmem:[#allocation7 + $0x150] sm:$0xff]
        %v1845 = vld [vmem:[#allocation7 + $0x158] sm:$0xff]
        %v1846 = vld [vmem:[#allocation7 + $0x160] sm:$0xff]
        %v1847 = vld [vmem:[#allocation7 + $0x168] sm:$0xff]
        %v1848 = vld [vmem:[#allocation7 + $0x170] sm:$0xff]
        %v1849 = vld [vmem:[#allocation7 + $0x178] sm:$0xff]
        %v1850 = vld [vmem:[%s9] sm:$0x7]
        %v1851 = vld [vmem:[#allocation8] sm:$0xff]
        %v1852 = vld [vmem:[#allocation8 + $0x8] sm:$0xff]
        %v1853 = vld [vmem:[#allocation8 + $0x10] sm:$0xff]
        %v1854 = vld [vmem:[#allocation8 + $0x18] sm:$0xff]
        %v1855 = vld [vmem:[#allocation8 + $0x20] sm:$0xff]
        %v1856 = vld [vmem:[#allocation8 + $0x28] sm:$0xff]
        %v1857 = vld [vmem:[#allocation8 + $0x30] sm:$0xff]
        %v1858 = vld [vmem:[#allocation8 + $0x38] sm:$0xff]
        %v1859 = vld [vmem:[#allocation8 + $0x40] sm:$0xff]
        %v1860 = vld [vmem:[#allocation8 + $0x48] sm:$0xff]
        %v1861 = vld [vmem:[#allocation8 + $0x50] sm:$0xff]
        %v1862 = vld [vmem:[#allocation8 + $0x58] sm:$0xff]
        %v1863 = vld [vmem:[#allocation8 + $0x60] sm:$0xff]
        %v1864 = vld [vmem:[#allocation8 + $0x68] sm:$0xff]
        %v1865 = vld [vmem:[#allocation8 + $0x70] sm:$0xff]
        %v1866 = vld [vmem:[#allocation8 + $0x78] sm:$0xff]
        %v1867 = vld [vmem:[#allocation10] sm:$0x1]
        %v1869 = vlaneseq
        %v1870 = vshrl.u32 %v1869, 7
        %v1871 = vsub.s32 0, %v1870
        %v1872 = vrot.slane %v1850, %v1871
        %v1873 = vlaneseq
        %v1874 = vshrl.u32 %v1873, 7
        %v1875 = vsub.s32 1, %v1874
        %v1876 = vrot.slane %v1850, %v1875
        %v1877 = vlaneseq
        %v1878 = vshrl.u32 %v1877, 7
        %v1879 = vsub.s32 2, %v1878
        %v1880 = vrot.slane %v1850, %v1879
        %1884 = vmatprep.subr.mxu0 %v1803
        %1885 = vmatpush1.msra.mxu0 %v1802
        %1886 = vmatprep.subr.mxu0 %v1806
        %1887 = vmatpush1.msra.mxu0 %v1805
        %1888 = vmatprep.subr.mxu0 %v1809
        %1889 = vmatpush1.msra.mxu0 %v1808
        %1890 = vmatprep.subr.mxu0 %v1812
        %1891 = vmatpush1.msra.mxu0 %v1811
        %1892 = vmatprep.subr.mxu0 %v1815
        %1893 = vmatpush1.msra.mxu0 %v1814
        %1894 = vmatprep.subr.mxu0 %v1818
        %1895 = vmatpush1.msra.mxu0 %v1817
        %1896 = vmatprep.subr.mxu0 %v1821
        %1897 = vmatpush1.msra.mxu0 %v1820
        %1898 = vmatprep.subr.mxu0 %v1824
        %1899 = vmatpush1.msra.mxu0 %v1823
        %1900 = vmatprep.subr.mxu0 %v1827
        %1901 = vmatpush1.msra.mxu0 %v1826
        %1902 = vmatprep.subr.mxu0 %v1830
        %1903 = vmatpush1.msra.mxu0 %v1829
        %1904 = vmatprep.subr.mxu0 %v1833
        %1905 = vmatpush1.msra.mxu0 %v1832
        %1906 = vmatprep.subr.mxu0 %v1836
        %1907 = vmatpush1.msra.mxu0 %v1835
        %1908 = vmatprep.subr.mxu0 %v1839
        %1909 = vmatpush1.msra.mxu0 %v1838
        %1910 = vmatprep.subr.mxu0 %v1842
        %1911 = vmatpush1.msra.mxu0 %v1841
        %1912 = vmatprep.subr.mxu0 %v1845
        %1913 = vmatpush1.msra.mxu0 %v1844
        %1914 = vmatprep.subr.mxu0 %v1848
        %1915 = vmatpush1.msra.mxu0 %v1847
        %1916 = vmatprep.subr.mxu0 0.0
        %1917 = vmatpush1.msra.mxu0 0.0
        %1918 = vmatprep.subr.mxu0 0.0
        %1919 = vmatpush1.msra.mxu0 0.0
        %1920 = vmatprep.subr.mxu0 0.0
        %1921 = vmatpush1.msra.mxu0 0.0
        %1922 = vmatprep.subr.mxu0 0.0
        %1923 = vmatpush1.msra.mxu0 0.0
        %1924 = vmatprep.subr.mxu0 0.0
        %1925 = vmatpush1.msra.mxu0 0.0
        %1926 = vmatprep.subr.mxu0 0.0
        %1927 = vmatpush1.msra.mxu0 0.0
        %1928 = vmatprep.subr.mxu0 0.0
        %1929 = vmatpush1.msra.mxu0 0.0
        %1930 = vmatprep.subr.mxu0 0.0
        %1931 = vmatpush1.msra.mxu0 0.0
        %1932 = vmatprep.subr.mxu0 0.0
        %1933 = vmatpush1.msra.mxu0 0.0
        %1934 = vmatprep.subr.mxu0 0.0
        %1935 = vmatpush1.msra.mxu0 0.0
        %1936 = vmatprep.subr.mxu0 0.0
        %1937 = vmatpush1.msra.mxu0 0.0
        %1938 = vmatprep.subr.mxu0 0.0
        %1939 = vmatpush1.msra.mxu0 0.0
        %1940 = vmatprep.subr.mxu0 0.0
        %1941 = vmatpush1.msra.mxu0 0.0
        %1942 = vmatprep.subr.mxu0 0.0
        %1943 = vmatpush1.msra.mxu0 0.0
        %1944 = vmatprep.subr.mxu0 0.0
        %1945 = vmatpush1.msra.mxu0 0.0
        %1946 = vmatprep.subr.mxu0 0.0
        %1947 = vmatpush1.msra.mxu0 0.0
        %1948 = vmatprep.mubr.f32.mxu0 0.0
        %1949 = vmatmul.mubr.f32.gmra.mrb[0].mxu0 %v857
        %v1950 = vpop.f32.mrb[0].mxu0
        %v1951 = vadd.f32 %v1872, %v1950
        %v1952 = vpop.f32.mrb[0].mxu0
        %v1953 = vadd.f32 %v1876, %v1952
        %1954 = vdwg.mxu0
        %1955 = vmatprep.subr.mxu0 0.0
        %1956 = vmatpush1.msra.mxu0 %v1804
        %1957 = vmatprep.subr.mxu0 0.0
        %1958 = vmatpush1.msra.mxu0 %v1807
        %1959 = vmatprep.subr.mxu0 0.0
        %1960 = vmatpush1.msra.mxu0 %v1810
        %1961 = vmatprep.subr.mxu0 0.0
        %1962 = vmatpush1.msra.mxu0 %v1813
        %1963 = vmatprep.subr.mxu0 0.0
        %1964 = vmatpush1.msra.mxu0 %v1816
        %1965 = vmatprep.subr.mxu0 0.0
        %1966 = vmatpush1.msra.mxu0 %v1819
        %1967 = vmatprep.subr.mxu0 0.0
        %1968 = vmatpush1.msra.mxu0 %v1822
        %1969 = vmatprep.subr.mxu0 0.0
        %1970 = vmatpush1.msra.mxu0 %v1825
        %1971 = vmatprep.subr.mxu0 0.0
        %1972 = vmatpush1.msra.mxu0 %v1828
        %1973 = vmatprep.subr.mxu0 0.0
        %1974 = vmatpush1.msra.mxu0 %v1831
        %1975 = vmatprep.subr.mxu0 0.0
        %1976 = vmatpush1.msra.mxu0 %v1834
        %1977 = vmatprep.subr.mxu0 0.0
        %1978 = vmatpush1.msra.mxu0 %v1837
        %1979 = vmatprep.subr.mxu0 0.0
        %1980 = vmatpush1.msra.mxu0 %v1840
        %1981 = vmatprep.subr.mxu0 0.0
        %1982 = vmatpush1.msra.mxu0 %v1843
        %1983 = vmatprep.subr.mxu0 0.0
        %1984 = vmatpush1.msra.mxu0 %v1846
        %1985 = vmatprep.subr.mxu0 0.0
        %1986 = vmatpush1.msra.mxu0 %v1849
        %1987 = vmatprep.subr.mxu0 0.0
        %1988 = vmatpush1.msra.mxu0 0.0
        %1989 = vmatprep.subr.mxu0 0.0
        %1990 = vmatpush1.msra.mxu0 0.0
        %1991 = vmatprep.subr.mxu0 0.0
        %1992 = vmatpush1.msra.mxu0 0.0
        %1993 = vmatprep.subr.mxu0 0.0
        %1994 = vmatpush1.msra.mxu0 0.0
        %1995 = vmatprep.subr.mxu0 0.0
        %1996 = vmatpush1.msra.mxu0 0.0
        %1997 = vmatprep.subr.mxu0 0.0
        %1998 = vmatpush1.msra.mxu0 0.0
        %1999 = vmatprep.subr.mxu0 0.0
        %2000 = vmatpush1.msra.mxu0 0.0
        %2001 = vmatprep.subr.mxu0 0.0
        %2002 = vmatpush1.msra.mxu0 0.0
        %2003 = vmatprep.subr.mxu0 0.0
        %2004 = vmatpush1.msra.mxu0 0.0
        %2005 = vmatprep.subr.mxu0 0.0
        %2006 = vmatpush1.msra.mxu0 0.0
        %2007 = vmatprep.subr.mxu0 0.0
        %2008 = vmatpush1.msra.mxu0 0.0
        %2009 = vmatprep.subr.mxu0 0.0
        %2010 = vmatpush1.msra.mxu0 0.0
        %2011 = vmatprep.subr.mxu0 0.0
        %2012 = vmatpush1.msra.mxu0 0.0
        %2013 = vmatprep.subr.mxu0 0.0
        %2014 = vmatpush1.msra.mxu0 0.0
        %2015 = vmatprep.subr.mxu0 0.0
        %2016 = vmatpush1.msra.mxu0 0.0
        %2017 = vmatprep.subr.mxu0 0.0
        %2018 = vmatpush1.msra.mxu0 0.0
        %2019 = vmatprep.mubr.f32.mxu0 0.0
        %2020 = vmatmul.mubr.f32.gmra.mrb[0].mxu0 %v857
        %v2021 = vpop.f32.mrb[0].mxu0
        %v2022 = vadd.f32 %v1880, %v2021
        %v2023 = vpop.f32.mrb[0].mxu0
        %2024 = vdwg.mxu0
        %v2025 = vmul.f32 %v1951, 0.35355338
        %v2027 = vcombine.high %v2025, %v2025
        %v2029 = vunpack.c.l.s4 1966171168
        %v2030 = vunpack.c.0.s8 %v2029
        %v2031 = vlaneseq
        %v2032 = vshrl.u32 %v2031, 7
        %v2033 = vsub.s32 %v2030, %v2032
        %v2034 = vrot.slane %v2025, %v2033
        %v2036 = vunpack.c.l.s4 1966171168
        %v2037 = vunpack.c.0.s8 %v2036
        %v2038 = vlaneseq
        %v2039 = vshrl.u32 %v2038, 7
        %v2040 = vsub.s32 %v2037, %v2039
        %v2041 = vrot.slane %v2027, %v2040
        %v2042 = vcombine.high %v2034, %v2034
        %v2043 = vcombine.high %v2041, %v2041
        %v2045 = vunpack.c.l.s4 1966171168
        %v2046 = vunpack.c.0.s8 %v2045
        %v2047 = vlaneseq
        %v2048 = vshrl.u32 %v2047, 7
        %v2049 = vsub.s32 %v2046, %v2048
        %v2050 = vrot.slane %v2034, %v2049
        %v2052 = vunpack.c.l.s4 1966171168
        %v2053 = vunpack.c.0.s8 %v2052
        %v2054 = vlaneseq
        %v2055 = vshrl.u32 %v2054, 7
        %v2056 = vsub.s32 %v2053, %v2055
        %v2057 = vrot.slane %v2041, %v2056
        %v2059 = vunpack.c.l.s4 1966171168
        %v2060 = vunpack.c.0.s8 %v2059
        %v2061 = vlaneseq
        %v2062 = vshrl.u32 %v2061, 7
        %v2063 = vsub.s32 %v2060, %v2062
        %v2064 = vrot.slane %v2042, %v2063
        %v2066 = vunpack.c.l.s4 1966171168
        %v2067 = vunpack.c.0.s8 %v2066
        %v2068 = vlaneseq
        %v2069 = vshrl.u32 %v2068, 7
        %v2070 = vsub.s32 %v2067, %v2069
        %v2071 = vrot.slane %v2043, %v2070
        %v2072 = vcombine.high %v2050, %v2050
        %v2073 = vcombine.high %v2057, %v2057
        %v2074 = vcombine.high %v2064, %v2064
        %v2075 = vcombine.high %v2071, %v2071
        %v2076 = vlaneseq
        %v2077 = vshrl.u32 %v2076, 7
        %v2078 = vsub.s32 0, %v2077
        %v2079 = vrot.slane %v2050, %v2078
        %v2080 = vlaneseq
        %v2081 = vshrl.u32 %v2080, 7
        %v2082 = vsub.s32 0, %v2081
        %v2083 = vrot.slane %v2064, %v2082
        %v2084 = vlaneseq
        %v2085 = vshrl.u32 %v2084, 7
        %v2086 = vsub.s32 0, %v2085
        %v2087 = vrot.slane %v2072, %v2086
        %v2088 = vlaneseq
        %v2089 = vshrl.u32 %v2088, 7
        %v2090 = vsub.s32 0, %v2089
        %v2091 = vrot.slane %v2074, %v2090
        %v2092 = vlaneseq
        %v2093 = vshrl.u32 %v2092, 7
        %v2094 = vsub.s32 0, %v2093
        %v2095 = vrot.slane %v2057, %v2094
        %v2096 = vlaneseq
        %v2097 = vshrl.u32 %v2096, 7
        %v2098 = vsub.s32 0, %v2097
        %v2099 = vrot.slane %v2071, %v2098
        %v2100 = vlaneseq
        %v2101 = vshrl.u32 %v2100, 7
        %v2102 = vsub.s32 0, %v2101
        %v2103 = vrot.slane %v2073, %v2102
        %v2104 = vlaneseq
        %v2105 = vshrl.u32 %v2104, 7
        %v2106 = vsub.s32 0, %v2105
        %v2107 = vrot.slane %v2075, %v2106
        %v2116 = vmul.f32 %v2079, %v1953
        %v2117 = vmul.f32 %v2083, %v1953
        %v2118 = vmul.f32 %v2087, %v1953
        %v2119 = vmul.f32 %v2091, %v1953
        %v2120 = vmul.f32 %v2095, %v1953
        %v2121 = vmul.f32 %v2099, %v1953
        %v2122 = vmul.f32 %v2103, %v1953
        %v2123 = vmul.f32 %v2107, %v1953
        %2124 = vmatprep.subr.mxu0 0.0
        %2125 = vmatpush1.msra.mxu0 %v827
        %2126 = vmatprep.subr.mxu0 0.0
        %2127 = vmatpush1.msra.mxu0 %v828
        %2128 = vmatprep.subr.mxu0 0.0
        %2129 = vmatpush1.msra.mxu0 %v829
        %2130 = vmatprep.subr.mxu0 0.0
        %2131 = vmatpush1.msra.mxu0 %v830
        %2132 = vmatprep.subr.mxu0 0.0
        %2133 = vmatpush1.msra.mxu0 %v831
        %2134 = vmatprep.subr.mxu0 0.0
        %2135 = vmatpush1.msra.mxu0 %v832
        %2136 = vmatprep.subr.mxu0 0.0
        %2137 = vmatpush1.msra.mxu0 %v833
        %2138 = vmatprep.subr.mxu0 0.0
        %2139 = vmatpush1.msra.mxu0 %v834
        %2140 = vmatprep.subr.mxu0 0.0
        %2141 = vmatpush1.msra.mxu0 %v835
        %2142 = vmatprep.subr.mxu0 0.0
        %2143 = vmatpush1.msra.mxu0 %v836
        %2144 = vmatprep.subr.mxu0 0.0
        %2145 = vmatpush1.msra.mxu0 %v837
        %2146 = vmatprep.subr.mxu0 0.0
        %2147 = vmatpush1.msra.mxu0 %v838
        %2148 = vmatprep.subr.mxu0 0.0
        %2149 = vmatpush1.msra.mxu0 %v839
        %2150 = vmatprep.subr.mxu0 0.0
        %2151 = vmatpush1.msra.mxu0 %v840
        %2152 = vmatprep.subr.mxu0 0.0
        %2153 = vmatpush1.msra.mxu0 %v841
        %2154 = vmatprep.subr.mxu0 0.0
        %2155 = vmatpush1.msra.mxu0 %v842
        %2156 = vmatprep.subr.mxu0 0.0
        %2157 = vmatpush1.msra.mxu0 0.0
        %2158 = vmatprep.subr.mxu0 0.0
        %2159 = vmatpush1.msra.mxu0 0.0
        %2160 = vmatprep.subr.mxu0 0.0
        %2161 = vmatpush1.msra.mxu0 0.0
        %2162 = vmatprep.subr.mxu0 0.0
        %2163 = vmatpush1.msra.mxu0 0.0
        %2164 = vmatprep.subr.mxu0 0.0
        %2165 = vmatpush1.msra.mxu0 0.0
        %2166 = vmatprep.subr.mxu0 0.0
        %2167 = vmatpush1.msra.mxu0 0.0
        %2168 = vmatprep.subr.mxu0 0.0
        %2169 = vmatpush1.msra.mxu0 0.0
        %2170 = vmatprep.subr.mxu0 0.0
        %2171 = vmatpush1.msra.mxu0 0.0
        %2172 = vmatprep.subr.mxu0 0.0
        %2173 = vmatpush1.msra.mxu0 0.0
        %2174 = vmatprep.subr.mxu0 0.0
        %2175 = vmatpush1.msra.mxu0 0.0
        %2176 = vmatprep.subr.mxu0 0.0
        %2177 = vmatpush1.msra.mxu0 0.0
        %2178 = vmatprep.subr.mxu0 0.0
        %2179 = vmatpush1.msra.mxu0 0.0
        %2180 = vmatprep.subr.mxu0 0.0
        %2181 = vmatpush1.msra.mxu0 0.0
        %2182 = vmatprep.subr.mxu0 0.0
        %2183 = vmatpush1.msra.mxu0 0.0
        %2184 = vmatprep.subr.mxu0 0.0
        %2185 = vmatpush1.msra.mxu0 0.0
        %2186 = vmatprep.subr.mxu0 0.0
        %2187 = vmatpush1.msra.mxu0 0.0
        %2188 = vmatprep.mubr.f32.mxu0 0.0
        %2189 = vmatmul.mubr.f32.gmra.mrb[0].mxu0 %v2116
        %v2190 = vpop.f32.mrb[0].mxu0
        %v2191 = vadd.f32 0.0, %v2190
        %v2192 = vpop.f32.mrb[0].mxu0
        %2193 = vmatprep.mubr.f32.mxu0 0.0
        %2194 = vmatmul.mubr.f32.gmra.mrb[0].mxu0 %v2117
        %v2195 = vpop.f32.mrb[0].mxu0
        %v2196 = vadd.f32 0.0, %v2195
        %v2197 = vpop.f32.mrb[0].mxu0
        %2198 = vmatprep.mubr.f32.mxu0 0.0
        %2199 = vmatmul.mubr.f32.gmra.mrb[0].mxu0 %v2118
        %v2200 = vpop.f32.mrb[0].mxu0
        %v2201 = vadd.f32 0.0, %v2200
        %v2202 = vpop.f32.mrb[0].mxu0
        %2203 = vmatprep.mubr.f32.mxu0 0.0
        %2204 = vmatmul.mubr.f32.gmra.mrb[0].mxu0 %v2119
        %v2205 = vpop.f32.mrb[0].mxu0
        %v2206 = vadd.f32 0.0, %v2205
        %v2207 = vpop.f32.mrb[0].mxu0
        %2208 = vmatprep.mubr.f32.mxu0 0.0
        %2209 = vmatmul.mubr.f32.gmra.mrb[0].mxu0 %v2120
        %v2210 = vpop.f32.mrb[0].mxu0
        %v2211 = vadd.f32 0.0, %v2210
        %v2212 = vpop.f32.mrb[0].mxu0
        %2213 = vmatprep.mubr.f32.mxu0 0.0
        %2214 = vmatmul.mubr.f32.gmra.mrb[0].mxu0 %v2121
        %v2215 = vpop.f32.mrb[0].mxu0
        %v2216 = vadd.f32 0.0, %v2215
        %v2217 = vpop.f32.mrb[0].mxu0
        %2218 = vmatprep.mubr.f32.mxu0 0.0
        %2219 = vmatmul.mubr.f32.gmra.mrb[0].mxu0 %v2122
        %v2220 = vpop.f32.mrb[0].mxu0
        %v2221 = vadd.f32 0.0, %v2220
        %v2222 = vpop.f32.mrb[0].mxu0
        %2223 = vmatprep.mubr.f32.mxu0 0.0
        %2224 = vmatmul.mubr.f32.gmra.mrb[0].mxu0 %v2123
        %v2225 = vpop.f32.mrb[0].mxu0
        %v2226 = vadd.f32 0.0, %v2225
        %v2227 = vpop.f32.mrb[0].mxu0
        %2228 = vdwg.mxu0
        %vm2229 = vcmp.gt.f32.partialorder %v867, 0.0
        %vm2230 = vcmp.gt.f32.partialorder %v868, 0.0
        %vm2231 = vcmp.gt.f32.partialorder %v869, 0.0
        %vm2232 = vcmp.gt.f32.partialorder %v870, 0.0
        %vm2233 = vcmp.gt.f32.partialorder %v871, 0.0
        %vm2234 = vcmp.gt.f32.partialorder %v872, 0.0
        %vm2235 = vcmp.gt.f32.partialorder %v873, 0.0
        %vm2236 = vcmp.gt.f32.partialorder %v874, 0.0
        %v2237 = vsel %vm2229, 1, 0
        %v2238 = vsel %vm2230, 1, 0
        %v2239 = vsel %vm2231, 1, 0
        %v2240 = vsel %vm2232, 1, 0
        %v2241 = vsel %vm2233, 1, 0
        %v2242 = vsel %vm2234, 1, 0
        %v2243 = vsel %vm2235, 1, 0
        %v2244 = vsel %vm2236, 1, 0
        %2245 = vset.pattern.permute.xlu0 0
        %2246 = vperm.xlu0 %2245, %v2237
        %v2247 = vpop.permute.xlu0 %2246
        %2248 = vset.pattern.permute.xlu0 0
        %2249 = vperm.xlu0 %2248, %v2238
        %v2250 = vpop.permute.xlu0 %2249
        %2251 = vset.pattern.permute.xlu0 0
        %2252 = vperm.xlu0 %2251, %v2239
        %v2253 = vpop.permute.xlu0 %2252
        %2254 = vset.pattern.permute.xlu0 0
        %2255 = vperm.xlu0 %2254, %v2240
        %v2256 = vpop.permute.xlu0 %2255
        %2257 = vset.pattern.permute.xlu0 0
        %2258 = vperm.xlu0 %2257, %v2241
        %v2259 = vpop.permute.xlu0 %2258
        %2260 = vset.pattern.permute.xlu0 0
        %2261 = vperm.xlu0 %2260, %v2242
        %v2262 = vpop.permute.xlu0 %2261
        %2263 = vset.pattern.permute.xlu0 0
        %2264 = vperm.xlu0 %2263, %v2243
        %v2265 = vpop.permute.xlu0 %2264
        %2266 = vset.pattern.permute.xlu0 0
        %2267 = vperm.xlu0 %2266, %v2244
        %v2268 = vpop.permute.xlu0 %2267
        %vm2269 = vcmp.eq.s32.totalorder %v2247, 1
        %vm2270 = vcmp.eq.s32.totalorder %v2250, 1
        %vm2271 = vcmp.eq.s32.totalorder %v2253, 1
        %vm2272 = vcmp.eq.s32.totalorder %v2256, 1
        %vm2273 = vcmp.eq.s32.totalorder %v2259, 1
        %vm2274 = vcmp.eq.s32.totalorder %v2262, 1
        %vm2275 = vcmp.eq.s32.totalorder %v2265, 1
        %vm2276 = vcmp.eq.s32.totalorder %v2268, 1
        %v2277 = vsel %vm2269, -1e+20, %v2191
        %v2278 = vsel %vm2270, -1e+20, %v2196
        %v2279 = vsel %vm2271, -1e+20, %v2201
        %v2280 = vsel %vm2272, -1e+20, %v2206
        %v2281 = vsel %vm2273, -1e+20, %v2211
        %v2282 = vsel %vm2274, -1e+20, %v2216
        %v2283 = vsel %vm2275, -1e+20, %v2221
        %v2284 = vsel %vm2276, -1e+20, %v2226
        %v2285 = vsel %vm1427, %v2277, -inf
        %2286 = vmax.xlane.f32.xlu0 %v2285
        %v2287 = vpop.xlane.xlu0 %2286
        %v2288 = vsel %vm1427, %v2278, -inf
        %2289 = vmax.xlane.f32.xlu0 %v2288
        %v2290 = vpop.xlane.xlu0 %2289
        %v2291 = vsel %vm1427, %v2279, -inf
        %2292 = vmax.xlane.f32.xlu0 %v2291
        %v2293 = vpop.xlane.xlu0 %2292
        %v2294 = vsel %vm1427, %v2280, -inf
        %2295 = vmax.xlane.f32.xlu0 %v2294
        %v2296 = vpop.xlane.xlu0 %2295
        %v2297 = vsel %vm1427, %v2281, -inf
        %2298 = vmax.xlane.f32.xlu0 %v2297
        %v2299 = vpop.xlane.xlu0 %2298
        %v2300 = vsel %vm1427, %v2282, -inf
        %2301 = vmax.xlane.f32.xlu0 %v2300
        %v2302 = vpop.xlane.xlu0 %2301
        %v2303 = vsel %vm1427, %v2283, -inf
        %2304 = vmax.xlane.f32.xlu0 %v2303
        %v2305 = vpop.xlane.xlu0 %2304
        %v2306 = vsel %vm1427, %v2284, -inf
        %2307 = vmax.xlane.f32.xlu0 %v2306
        %v2308 = vpop.xlane.xlu0 %2307
        %v2309 = vsub.f32 %v2277, %v2287
        %v2310 = vsub.f32 %v2278, %v2290
        %v2311 = vsub.f32 %v2279, %v2293
        %v2312 = vsub.f32 %v2280, %v2296
        %v2313 = vsub.f32 %v2281, %v2299
        %v2314 = vsub.f32 %v2282, %v2302
        %v2315 = vsub.f32 %v2283, %v2305
        %v2316 = vsub.f32 %v2284, %v2308
        %v2317 = vmul.f32 %v2309, 1.442695
        %v2318 = vpow.pop %v2317
        %v2319 = vmul.f32 %v2310, 1.442695
        %v2320 = vpow.pop %v2319
        %v2321 = vmul.f32 %v2311, 1.442695
        %v2322 = vpow.pop %v2321
        %v2323 = vmul.f32 %v2312, 1.442695
        %v2324 = vpow.pop %v2323
        %v2325 = vmul.f32 %v2313, 1.442695
        %v2326 = vpow.pop %v2325
        %v2327 = vmul.f32 %v2314, 1.442695
        %v2328 = vpow.pop %v2327
        %v2329 = vmul.f32 %v2315, 1.442695
        %v2330 = vpow.pop %v2329
        %v2331 = vmul.f32 %v2316, 1.442695
        %v2332 = vpow.pop %v2331
        %v2333 = vsel %vm1427, %v2318, 0.0
        %2334 = vadd.xlane.f32.xlu0 %v2333
        %v2335 = vpop.xlane.xlu0 %2334
        %v2336 = vsel %vm1427, %v2320, 0.0
        %2337 = vadd.xlane.f32.xlu0 %v2336
        %v2338 = vpop.xlane.xlu0 %2337
        %v2339 = vsel %vm1427, %v2322, 0.0
        %2340 = vadd.xlane.f32.xlu0 %v2339
        %v2341 = vpop.xlane.xlu0 %2340
        %v2342 = vsel %vm1427, %v2324, 0.0
        %2343 = vadd.xlane.f32.xlu0 %v2342
        %v2344 = vpop.xlane.xlu0 %2343
        %v2345 = vsel %vm1427, %v2326, 0.0
        %2346 = vadd.xlane.f32.xlu0 %v2345
        %v2347 = vpop.xlane.xlu0 %2346
        %v2348 = vsel %vm1427, %v2328, 0.0
        %2349 = vadd.xlane.f32.xlu0 %v2348
        %v2350 = vpop.xlane.xlu0 %2349
        %v2351 = vsel %vm1427, %v2330, 0.0
        %2352 = vadd.xlane.f32.xlu0 %v2351
        %v2353 = vpop.xlane.xlu0 %2352
        %v2354 = vsel %vm1427, %v2332, 0.0
        %2355 = vadd.xlane.f32.xlu0 %v2354
        %v2356 = vpop.xlane.xlu0 %2355
        %v2357 = vrcp.pop %v2335
        %v2358 = vrcp.pop %v2338
        %v2359 = vrcp.pop %v2341
        %v2360 = vrcp.pop %v2344
        %v2361 = vrcp.pop %v2347
        %v2362 = vrcp.pop %v2350
        %v2363 = vrcp.pop %v2353
        %v2364 = vrcp.pop %v2356
        %v2365 = vmul.f32 %v2318, %v2357
        %v2366 = vmul.f32 %v2320, %v2358
        %v2367 = vmul.f32 %v2322, %v2359
        %v2368 = vmul.f32 %v2324, %v2360
        %v2369 = vmul.f32 %v2326, %v2361
        %v2370 = vmul.f32 %v2328, %v2362
        %v2371 = vmul.f32 %v2330, %v2363
        %v2372 = vmul.f32 %v2332, %v2364
        %v2374 = vsel %vm1427, %v2365, 0
        %v2377 = vsel %vm1427, %v2366, 0
        %v2380 = vsel %vm1427, %v2367, 0
        %v2383 = vsel %vm1427, %v2368, 0
        %v2386 = vsel %vm1427, %v2369, 0
        %v2389 = vsel %vm1427, %v2370, 0
        %v2392 = vsel %vm1427, %v2371, 0
        %v2395 = vsel %vm1427, %v2372, 0
        %2397 = vmatprep.subr.mxu0 0.0
        %2398 = vmatpush1.msra.mxu0 %v855
        %2399 = vmatprep.subr.mxu0 0.0
        %2400 = vmatpush1.msra.mxu0 %v856
        %2401 = vmatprep.subr.mxu0 0.0
        %2402 = vmatpush1.msra.mxu0 0.0
        %2403 = vmatprep.subr.mxu0 0.0
        %2404 = vmatpush1.msra.mxu0 0.0
        %2405 = vmatprep.subr.mxu0 0.0
        %2406 = vmatpush1.msra.mxu0 0.0
        %2407 = vmatprep.subr.mxu0 0.0
        %2408 = vmatpush1.msra.mxu0 0.0
        %2409 = vmatprep.subr.mxu0 0.0
        %2410 = vmatpush1.msra.mxu0 0.0
        %2411 = vmatprep.subr.mxu0 0.0
        %2412 = vmatpush1.msra.mxu0 0.0
        %2413 = vmatprep.subr.mxu0 0.0
        %2414 = vmatpush1.msra.mxu0 0.0
        %2415 = vmatprep.subr.mxu0 0.0
        %2416 = vmatpush1.msra.mxu0 0.0
        %2417 = vmatprep.subr.mxu0 0.0
        %2418 = vmatpush1.msra.mxu0 0.0
        %2419 = vmatprep.subr.mxu0 0.0
        %2420 = vmatpush1.msra.mxu0 0.0
        %2421 = vmatprep.subr.mxu0 0.0
        %2422 = vmatpush1.msra.mxu0 0.0
        %2423 = vmatprep.subr.mxu0 0.0
        %2424 = vmatpush1.msra.mxu0 0.0
        %2425 = vmatprep.subr.mxu0 0.0
        %2426 = vmatpush1.msra.mxu0 0.0
        %2427 = vmatprep.subr.mxu0 0.0
        %2428 = vmatpush1.msra.mxu0 0.0
        %2429 = vmatprep.subr.mxu0 0.0
        %2430 = vmatpush1.msra.mxu0 0.0
        %2431 = vmatprep.subr.mxu0 0.0
        %2432 = vmatpush1.msra.mxu0 0.0
        %2433 = vmatprep.subr.mxu0 0.0
        %2434 = vmatpush1.msra.mxu0 0.0
        %2435 = vmatprep.subr.mxu0 0.0
        %2436 = vmatpush1.msra.mxu0 0.0
        %2437 = vmatprep.subr.mxu0 0.0
        %2438 = vmatpush1.msra.mxu0 0.0
        %2439 = vmatprep.subr.mxu0 0.0
        %2440 = vmatpush1.msra.mxu0 0.0
        %2441 = vmatprep.subr.mxu0 0.0
        %2442 = vmatpush1.msra.mxu0 0.0
        %2443 = vmatprep.subr.mxu0 0.0
        %2444 = vmatpush1.msra.mxu0 0.0
        %2445 = vmatprep.subr.mxu0 0.0
        %2446 = vmatpush1.msra.mxu0 0.0
        %2447 = vmatprep.subr.mxu0 0.0
        %2448 = vmatpush1.msra.mxu0 0.0
        %2449 = vmatprep.subr.mxu0 0.0
        %2450 = vmatpush1.msra.mxu0 0.0
        %2451 = vmatprep.subr.mxu0 0.0
        %2452 = vmatpush1.msra.mxu0 0.0
        %2453 = vmatprep.subr.mxu0 0.0
        %2454 = vmatpush1.msra.mxu0 0.0
        %2455 = vmatprep.subr.mxu0 0.0
        %2456 = vmatpush1.msra.mxu0 0.0
        %2457 = vmatprep.subr.mxu0 0.0
        %2458 = vmatpush1.msra.mxu0 0.0
        %2459 = vmatprep.subr.mxu0 0.0
        %2460 = vmatpush1.msra.mxu0 0.0
        %2461 = vmatprep.mubr.f32.mxu0 0.0
        %2462 = vmatmul.mubr.f32.gmra.mrb[0].mxu0 %v2374
        %v2463 = vpop.f32.mrb[0].mxu0
        %v2464 = vadd.f32 0.0, %v2463
        %v2465 = vpop.f32.mrb[0].mxu0
        %2466 = vmatprep.mubr.f32.mxu0 0.0
        %2467 = vmatmul.mubr.f32.gmra.mrb[0].mxu0 %v2377
        %v2468 = vpop.f32.mrb[0].mxu0
        %v2469 = vadd.f32 0.0, %v2468
        %v2470 = vpop.f32.mrb[0].mxu0
        %2471 = vmatprep.mubr.f32.mxu0 0.0
        %2472 = vmatmul.mubr.f32.gmra.mrb[0].mxu0 %v2380
        %v2473 = vpop.f32.mrb[0].mxu0
        %v2474 = vadd.f32 0.0, %v2473
        %v2475 = vpop.f32.mrb[0].mxu0
        %2476 = vmatprep.mubr.f32.mxu0 0.0
        %2477 = vmatmul.mubr.f32.gmra.mrb[0].mxu0 %v2383
        %v2478 = vpop.f32.mrb[0].mxu0
        %v2479 = vadd.f32 0.0, %v2478
        %v2480 = vpop.f32.mrb[0].mxu0
        %2481 = vmatprep.mubr.f32.mxu0 0.0
        %2482 = vmatmul.mubr.f32.gmra.mrb[0].mxu0 %v2386
        %v2483 = vpop.f32.mrb[0].mxu0
        %v2484 = vadd.f32 0.0, %v2483
        %v2485 = vpop.f32.mrb[0].mxu0
        %2486 = vmatprep.mubr.f32.mxu0 0.0
        %2487 = vmatmul.mubr.f32.gmra.mrb[0].mxu0 %v2389
        %v2488 = vpop.f32.mrb[0].mxu0
        %v2489 = vadd.f32 0.0, %v2488
        %v2490 = vpop.f32.mrb[0].mxu0
        %2491 = vmatprep.mubr.f32.mxu0 0.0
        %2492 = vmatmul.mubr.f32.gmra.mrb[0].mxu0 %v2392
        %v2493 = vpop.f32.mrb[0].mxu0
        %v2494 = vadd.f32 0.0, %v2493
        %v2495 = vpop.f32.mrb[0].mxu0
        %2496 = vmatprep.mubr.f32.mxu0 0.0
        %2497 = vmatmul.mubr.f32.gmra.mrb[0].mxu0 %v2395
        %v2498 = vpop.f32.mrb[0].mxu0
        %v2499 = vadd.f32 0.0, %v2498
        %v2500 = vpop.f32.mrb[0].mxu0
        %2501 = vdwg.mxu0
        %v2502 = vmul.f32 %v2464, %v2022
        %v2503 = vmul.f32 %v2469, %v2022
        %v2504 = vmul.f32 %v2474, %v2022
        %v2505 = vmul.f32 %v2479, %v2022
        %v2506 = vmul.f32 %v2484, %v2022
        %v2507 = vmul.f32 %v2489, %v2022
        %v2508 = vmul.f32 %v2494, %v2022
        %v2509 = vmul.f32 %v2499, %v2022
        %v2510 = vrot.slane %v2502, 4
        %v2511 = vadd.f32 %v2502, %v2510
        %v2512 = vrot.slane %v2511, 2
        %v2513 = vadd.f32 %v2511, %v2512
        %v2514 = vrot.slane %v2513, 1
        %v2515 = vadd.f32 %v2513, %v2514
        %v2516 = vrot.slane %v2503, 4
        %v2517 = vadd.f32 %v2503, %v2516
        %v2518 = vrot.slane %v2517, 2
        %v2519 = vadd.f32 %v2517, %v2518
        %v2520 = vrot.slane %v2519, 1
        %v2521 = vadd.f32 %v2519, %v2520
        %v2522 = vrot.slane %v2504, 4
        %v2523 = vadd.f32 %v2504, %v2522
        %v2524 = vrot.slane %v2523, 2
        %v2525 = vadd.f32 %v2523, %v2524
        %v2526 = vrot.slane %v2525, 1
        %v2527 = vadd.f32 %v2525, %v2526
        %v2528 = vrot.slane %v2505, 4
        %v2529 = vadd.f32 %v2505, %v2528
        %v2530 = vrot.slane %v2529, 2
        %v2531 = vadd.f32 %v2529, %v2530
        %v2532 = vrot.slane %v2531, 1
        %v2533 = vadd.f32 %v2531, %v2532
        %v2534 = vrot.slane %v2506, 4
        %v2535 = vadd.f32 %v2506, %v2534
        %v2536 = vrot.slane %v2535, 2
        %v2537 = vadd.f32 %v2535, %v2536
        %v2538 = vrot.slane %v2537, 1
        %v2539 = vadd.f32 %v2537, %v2538
        %v2540 = vrot.slane %v2507, 4
        %v2541 = vadd.f32 %v2507, %v2540
        %v2542 = vrot.slane %v2541, 2
        %v2543 = vadd.f32 %v2541, %v2542
        %v2544 = vrot.slane %v2543, 1
        %v2545 = vadd.f32 %v2543, %v2544
        %v2546 = vrot.slane %v2508, 4
        %v2547 = vadd.f32 %v2508, %v2546
        %v2548 = vrot.slane %v2547, 2
        %v2549 = vadd.f32 %v2547, %v2548
        %v2550 = vrot.slane %v2549, 1
        %v2551 = vadd.f32 %v2549, %v2550
        %v2552 = vrot.slane %v2509, 4
        %v2553 = vadd.f32 %v2509, %v2552
        %v2554 = vrot.slane %v2553, 2
        %v2555 = vadd.f32 %v2553, %v2554
        %v2556 = vrot.slane %v2555, 1
        %v2557 = vadd.f32 %v2555, %v2556
        %v2559 = vlaneseq
        %v2560 = vshrl.u32 %v2559, 7
        %v2561 = vsub.s32 0, %v2560
        %v2562 = vrot.slane %v1867, %v2561
        %v2572 = vsel %vm1715, %v2521, %v2515
        %v2573 = vsel %vm1717, %v2527, %v2572
        %v2574 = vsel %vm1719, %v2533, %v2573
        %v2575 = vsel %vm1721, %v2539, %v2574
        %v2576 = vsel %vm1723, %v2545, %v2575
        %v2577 = vsel %vm1725, %v2551, %v2576
        %v2578 = vsel %vm1727, %v2557, %v2577
        %2580 = vmatprep.subr.mxu0 0.0
        %2581 = vmatpush1.msra.mxu0 %v1851
        %2582 = vmatprep.subr.mxu0 0.0
        %2583 = vmatpush1.msra.mxu0 %v1852
        %2584 = vmatprep.subr.mxu0 0.0
        %2585 = vmatpush1.msra.mxu0 %v1853
        %2586 = vmatprep.subr.mxu0 0.0
        %2587 = vmatpush1.msra.mxu0 %v1854
        %2588 = vmatprep.subr.mxu0 0.0
        %2589 = vmatpush1.msra.mxu0 %v1855
        %2590 = vmatprep.subr.mxu0 0.0
        %2591 = vmatpush1.msra.mxu0 %v1856
        %2592 = vmatprep.subr.mxu0 0.0
        %2593 = vmatpush1.msra.mxu0 %v1857
        %2594 = vmatprep.subr.mxu0 0.0
        %2595 = vmatpush1.msra.mxu0 %v1858
        %2596 = vmatprep.subr.mxu0 0.0
        %2597 = vmatpush1.msra.mxu0 %v1859
        %2598 = vmatprep.subr.mxu0 0.0
        %2599 = vmatpush1.msra.mxu0 %v1860
        %2600 = vmatprep.subr.mxu0 0.0
        %2601 = vmatpush1.msra.mxu0 %v1861
        %2602 = vmatprep.subr.mxu0 0.0
        %2603 = vmatpush1.msra.mxu0 %v1862
        %2604 = vmatprep.subr.mxu0 0.0
        %2605 = vmatpush1.msra.mxu0 %v1863
        %2606 = vmatprep.subr.mxu0 0.0
        %2607 = vmatpush1.msra.mxu0 %v1864
        %2608 = vmatprep.subr.mxu0 0.0
        %2609 = vmatpush1.msra.mxu0 %v1865
        %2610 = vmatprep.subr.mxu0 0.0
        %2611 = vmatpush1.msra.mxu0 %v1866
        %2612 = vmatprep.subr.mxu0 0.0
        %2613 = vmatpush1.msra.mxu0 0.0
        %2614 = vmatprep.subr.mxu0 0.0
        %2615 = vmatpush1.msra.mxu0 0.0
        %2616 = vmatprep.subr.mxu0 0.0
        %2617 = vmatpush1.msra.mxu0 0.0
        %2618 = vmatprep.subr.mxu0 0.0
        %2619 = vmatpush1.msra.mxu0 0.0
        %2620 = vmatprep.subr.mxu0 0.0
        %2621 = vmatpush1.msra.mxu0 0.0
        %2622 = vmatprep.subr.mxu0 0.0
        %2623 = vmatpush1.msra.mxu0 0.0
        %2624 = vmatprep.subr.mxu0 0.0
        %2625 = vmatpush1.msra.mxu0 0.0
        %2626 = vmatprep.subr.mxu0 0.0
        %2627 = vmatpush1.msra.mxu0 0.0
        %2628 = vmatprep.subr.mxu0 0.0
        %2629 = vmatpush1.msra.mxu0 0.0
        %2630 = vmatprep.subr.mxu0 0.0
        %2631 = vmatpush1.msra.mxu0 0.0
        %2632 = vmatprep.subr.mxu0 0.0
        %2633 = vmatpush1.msra.mxu0 0.0
        %2634 = vmatprep.subr.mxu0 0.0
        %2635 = vmatpush1.msra.mxu0 0.0
        %2636 = vmatprep.subr.mxu0 0.0
        %2637 = vmatpush1.msra.mxu0 0.0
        %2638 = vmatprep.subr.mxu0 0.0
        %2639 = vmatpush1.msra.mxu0 0.0
        %2640 = vmatprep.subr.mxu0 0.0
        %2641 = vmatpush1.msra.mxu0 0.0
        %2642 = vmatprep.subr.mxu0 0.0
        %2643 = vmatpush1.msra.mxu0 0.0
        %2644 = vmatprep.mubr.f32.mxu0 0.0
        %2645 = vmatmul.mubr.f32.gmra.mrb[0].mxu0 %v2578
        %v2646 = vpop.f32.mrb[0].mxu0
        %v2647 = vadd.f32 %v2562, %v2646
        %v2648 = vpop.f32.mrb[0].mxu0
        %2649 = vdwg.mxu0
        %v2650 = vadd.f32 %v857, %v2647
        %2651 = vadd.xlane.f32.xlu0 %v2650
        %v2652 = vpop.xlane.xlu0 %2651
        %v2653 = vrcp.pop 128.0
        %v2654 = vmul.f32 %v2652, %v2653
        %v2655 = vsub.f32 %v2650, %v2654
        %v2656 = vmul.f32 %v2655, %v2655
        %2657 = vadd.xlane.f32.xlu0 %v2656
        %v2658 = vpop.xlane.xlu0 %2657
        %v2659 = vmul.f32 %v2658, %v2653
        %v2660 = vadd.f32 %v2659, 1e-05
        %v2661 = vrsqrt.pop %v2660
        %v2662 = vmul.f32 %v2655, %v2661
        %v2663 = vlaneseq
        %v2664 = vshrl.u32 %v2663, 7
        %v2665 = vsub.s32 0, %v2664
        %v2666 = vrot.slane %v1800, %v2665
        %v2667 = vmul.f32 %v2662, %v2666
        %v2668 = vlaneseq
        %v2669 = vshrl.u32 %v2668, 7
        %v2670 = vsub.s32 0, %v2669
        %v2671 = vrot.slane %v1801, %v2670
        %v2672 = vadd.f32 %v2667, %v2671
        %v2673 = vadd.f32 %v2672, %v1797
        %2674 = vadd.xlane.f32.xlu0 %v2673
        %v2675 = vpop.xlane.xlu0 %2674
        %v2676 = vmul.f32 %v2675, %v2653
        %v2677 = vsub.f32 %v2673, %v2676
        %v2678 = vmul.f32 %v2677, %v2677
        %2679 = vadd.xlane.f32.xlu0 %v2678
        %v2680 = vpop.xlane.xlu0 %2679
        %v2681 = vmul.f32 %v2680, %v2653
        %v2682 = vadd.f32 %v2681, 1e-05
        %v2683 = vrsqrt.pop %v2682
        %v2684 = vmul.f32 %v2677, %v2683
        %v2685 = vlaneseq
        %v2686 = vshrl.u32 %v2685, 7
        %v2687 = vsub.s32 1, %v2686
        %v2688 = vrot.slane %v1800, %v2687
        %v2689 = vmul.f32 %v2684, %v2688
        %v2690 = vlaneseq
        %v2691 = vshrl.u32 %v2690, 7
        %v2692 = vsub.s32 1, %v2691
        %v2693 = vrot.slane %v1801, %v2692
        %v2694 = vadd.f32 %v2689, %v2693
        %v2695 = vld [vmem:[#allocation11] sm:$0xff]
        %v2696 = vld [vmem:[#allocation11 + $0x8] sm:$0xff]
        %v2697 = vld [vmem:[#allocation11 + $0x10] sm:$0xff]
        %v2698 = vld [vmem:[#allocation11 + $0x18] sm:$0xff]
        %v2699 = vld [vmem:[#allocation11 + $0x20] sm:$0xff]
        %v2700 = vld [vmem:[#allocation11 + $0x28] sm:$0xff]
        %v2701 = vld [vmem:[#allocation11 + $0x30] sm:$0xff]
        %v2702 = vld [vmem:[#allocation11 + $0x38] sm:$0xff]
        %v2703 = vld [vmem:[#allocation11 + $0x40] sm:$0xff]
        %v2704 = vld [vmem:[#allocation11 + $0x48] sm:$0xff]
        %v2705 = vld [vmem:[#allocation11 + $0x50] sm:$0xff]
        %v2706 = vld [vmem:[#allocation11 + $0x58] sm:$0xff]
        %v2707 = vld [vmem:[#allocation11 + $0x60] sm:$0xff]
        %v2708 = vld [vmem:[#allocation11 + $0x68] sm:$0xff]
        %v2709 = vld [vmem:[#allocation11 + $0x70] sm:$0xff]
        %v2710 = vld [vmem:[#allocation11 + $0x78] sm:$0xff]
        %v2711 = vld [vmem:[#allocation11 + $0x80] sm:$0xff]
        %v2712 = vld [vmem:[#allocation11 + $0x88] sm:$0xff]
        %v2713 = vld [vmem:[#allocation11 + $0x90] sm:$0xff]
        %v2714 = vld [vmem:[#allocation11 + $0x98] sm:$0xff]
        %v2715 = vld [vmem:[#allocation11 + $0xa0] sm:$0xff]
        %v2716 = vld [vmem:[#allocation11 + $0xa8] sm:$0xff]
        %v2717 = vld [vmem:[#allocation11 + $0xb0] sm:$0xff]
        %v2718 = vld [vmem:[#allocation11 + $0xb8] sm:$0xff]
        %v2719 = vld [vmem:[#allocation11 + $0xc0] sm:$0xff]
        %v2720 = vld [vmem:[#allocation11 + $0xc8] sm:$0xff]
        %v2721 = vld [vmem:[#allocation11 + $0xd0] sm:$0xff]
        %v2722 = vld [vmem:[#allocation11 + $0xd8] sm:$0xff]
        %v2723 = vld [vmem:[#allocation11 + $0xe0] sm:$0xff]
        %v2724 = vld [vmem:[#allocation11 + $0xe8] sm:$0xff]
        %v2725 = vld [vmem:[#allocation11 + $0xf0] sm:$0xff]
        %v2726 = vld [vmem:[#allocation11 + $0xf8] sm:$0xff]
        %v2727 = vld [vmem:[#allocation13] sm:$0x3]
        %v2729 = vlaneseq
        %v2730 = vshrl.u32 %v2729, 7
        %v2731 = vsub.s32 0, %v2730
        %v2732 = vrot.slane %v2727, %v2731
        %v2733 = vlaneseq
        %v2734 = vshrl.u32 %v2733, 7
        %v2735 = vsub.s32 1, %v2734
        %v2736 = vrot.slane %v2727, %v2735
        %2739 = vmatprep.subr.mxu0 %v2696
        %2740 = vmatpush1.msra.mxu0 %v2695
        %2741 = vmatprep.subr.mxu0 %v2698
        %2742 = vmatpush1.msra.mxu0 %v2697
        %2743 = vmatprep.subr.mxu0 %v2700
        %2744 = vmatpush1.msra.mxu0 %v2699
        %2745 = vmatprep.subr.mxu0 %v2702
        %2746 = vmatpush1.msra.mxu0 %v2701
        %2747 = vmatprep.subr.mxu0 %v2704
        %2748 = vmatpush1.msra.mxu0 %v2703
        %2749 = vmatprep.subr.mxu0 %v2706
        %2750 = vmatpush1.msra.mxu0 %v2705
        %2751 = vmatprep.subr.mxu0 %v2708
        %2752 = vmatpush1.msra.mxu0 %v2707
        %2753 = vmatprep.subr.mxu0 %v2710
        %2754 = vmatpush1.msra.mxu0 %v2709
        %2755 = vmatprep.subr.mxu0 %v2712
        %2756 = vmatpush1.msra.mxu0 %v2711
        %2757 = vmatprep.subr.mxu0 %v2714
        %2758 = vmatpush1.msra.mxu0 %v2713
        %2759 = vmatprep.subr.mxu0 %v2716
        %2760 = vmatpush1.msra.mxu0 %v2715
        %2761 = vmatprep.subr.mxu0 %v2718
        %2762 = vmatpush1.msra.mxu0 %v2717
        %2763 = vmatprep.subr.mxu0 %v2720
        %2764 = vmatpush1.msra.mxu0 %v2719
        %2765 = vmatprep.subr.mxu0 %v2722
        %2766 = vmatpush1.msra.mxu0 %v2721
        %2767 = vmatprep.subr.mxu0 %v2724
        %2768 = vmatpush1.msra.mxu0 %v2723
        %2769 = vmatprep.subr.mxu0 %v2726
        %2770 = vmatpush1.msra.mxu0 %v2725
        %2771 = vmatprep.subr.mxu0 0.0
        %2772 = vmatpush1.msra.mxu0 0.0
        %2773 = vmatprep.subr.mxu0 0.0
        %2774 = vmatpush1.msra.mxu0 0.0
        %2775 = vmatprep.subr.mxu0 0.0
        %2776 = vmatpush1.msra.mxu0 0.0
        %2777 = vmatprep.subr.mxu0 0.0
        %2778 = vmatpush1.msra.mxu0 0.0
        %2779 = vmatprep.subr.mxu0 0.0
        %2780 = vmatpush1.msra.mxu0 0.0
        %2781 = vmatprep.subr.mxu0 0.0
        %2782 = vmatpush1.msra.mxu0 0.0
        %2783 = vmatprep.subr.mxu0 0.0
        %2784 = vmatpush1.msra.mxu0 0.0
        %2785 = vmatprep.subr.mxu0 0.0
        %2786 = vmatpush1.msra.mxu0 0.0
        %2787 = vmatprep.subr.mxu0 0.0
        %2788 = vmatpush1.msra.mxu0 0.0
        %2789 = vmatprep.subr.mxu0 0.0
        %2790 = vmatpush1.msra.mxu0 0.0
        %2791 = vmatprep.subr.mxu0 0.0
        %2792 = vmatpush1.msra.mxu0 0.0
        %2793 = vmatprep.subr.mxu0 0.0
        %2794 = vmatpush1.msra.mxu0 0.0
        %2795 = vmatprep.subr.mxu0 0.0
        %2796 = vmatpush1.msra.mxu0 0.0
        %2797 = vmatprep.subr.mxu0 0.0
        %2798 = vmatpush1.msra.mxu0 0.0
        %2799 = vmatprep.subr.mxu0 0.0
        %2800 = vmatpush1.msra.mxu0 0.0
        %2801 = vmatprep.subr.mxu0 0.0
        %2802 = vmatpush1.msra.mxu0 0.0
        %2803 = vmatprep.mubr.f32.mxu0 0.0
        %2804 = vmatmul.mubr.f32.gmra.mrb[0].mxu0 %v2694
        %v2805 = vpop.f32.mrb[0].mxu0
        %v2806 = vadd.f32 %v2732, %v2805
        %v2807 = vpop.f32.mrb[0].mxu0
        %v2808 = vadd.f32 %v2736, %v2807
        %2809 = vdwg.mxu0
        %v2810 = vmax.f32 %v2806, 0.0
        %v2811 = vmax.f32 %v2808, 0.0
        %v2812 = vld [vmem:[#allocation14] sm:$0xff]
        %v2813 = vld [vmem:[#allocation14 + $0x8] sm:$0xff]
        %v2814 = vld [vmem:[#allocation14 + $0x10] sm:$0xff]
        %v2815 = vld [vmem:[#allocation14 + $0x18] sm:$0xff]
        %v2816 = vld [vmem:[#allocation14 + $0x20] sm:$0xff]
        %v2817 = vld [vmem:[#allocation14 + $0x28] sm:$0xff]
        %v2818 = vld [vmem:[#allocation14 + $0x30] sm:$0xff]
        %v2819 = vld [vmem:[#allocation14 + $0x38] sm:$0xff]
        %v2820 = vld [vmem:[#allocation14 + $0x40] sm:$0xff]
        %v2821 = vld [vmem:[#allocation14 + $0x48] sm:$0xff]
        %v2822 = vld [vmem:[#allocation14 + $0x50] sm:$0xff]
        %v2823 = vld [vmem:[#allocation14 + $0x58] sm:$0xff]
        %v2824 = vld [vmem:[#allocation14 + $0x60] sm:$0xff]
        %v2825 = vld [vmem:[#allocation14 + $0x68] sm:$0xff]
        %v2826 = vld [vmem:[#allocation14 + $0x70] sm:$0xff]
        %v2827 = vld [vmem:[#allocation14 + $0x78] sm:$0xff]
        %v2828 = vld [vmem:[#allocation14 + $0x80] sm:$0xff]
        %v2829 = vld [vmem:[#allocation14 + $0x88] sm:$0xff]
        %v2830 = vld [vmem:[#allocation14 + $0x90] sm:$0xff]
        %v2831 = vld [vmem:[#allocation14 + $0x98] sm:$0xff]
        %v2832 = vld [vmem:[#allocation14 + $0xa0] sm:$0xff]
        %v2833 = vld [vmem:[#allocation14 + $0xa8] sm:$0xff]
        %v2834 = vld [vmem:[#allocation14 + $0xb0] sm:$0xff]
        %v2835 = vld [vmem:[#allocation14 + $0xb8] sm:$0xff]
        %v2836 = vld [vmem:[#allocation14 + $0xc0] sm:$0xff]
        %v2837 = vld [vmem:[#allocation14 + $0xc8] sm:$0xff]
        %v2838 = vld [vmem:[#allocation14 + $0xd0] sm:$0xff]
        %v2839 = vld [vmem:[#allocation14 + $0xd8] sm:$0xff]
        %v2840 = vld [vmem:[#allocation14 + $0xe0] sm:$0xff]
        %v2841 = vld [vmem:[#allocation14 + $0xe8] sm:$0xff]
        %v2842 = vld [vmem:[#allocation14 + $0xf0] sm:$0xff]
        %v2843 = vld [vmem:[#allocation14 + $0xf8] sm:$0xff]
        %v2844 = vld [vmem:[#allocation16] sm:$0x1]
        %v2846 = vlaneseq
        %v2847 = vshrl.u32 %v2846, 7
        %v2848 = vsub.s32 0, %v2847
        %v2849 = vrot.slane %v2844, %v2848
        %2851 = vmatprep.subr.mxu0 0.0
        %2852 = vmatpush1.msra.mxu0 %v2812
        %2853 = vmatprep.subr.mxu0 0.0
        %2854 = vmatpush1.msra.mxu0 %v2813
        %2855 = vmatprep.subr.mxu0 0.0
        %2856 = vmatpush1.msra.mxu0 %v2814
        %2857 = vmatprep.subr.mxu0 0.0
        %2858 = vmatpush1.msra.mxu0 %v2815
        %2859 = vmatprep.subr.mxu0 0.0
        %2860 = vmatpush1.msra.mxu0 %v2816
        %2861 = vmatprep.subr.mxu0 0.0
        %2862 = vmatpush1.msra.mxu0 %v2817
        %2863 = vmatprep.subr.mxu0 0.0
        %2864 = vmatpush1.msra.mxu0 %v2818
        %2865 = vmatprep.subr.mxu0 0.0
        %2866 = vmatpush1.msra.mxu0 %v2819
        %2867 = vmatprep.subr.mxu0 0.0
        %2868 = vmatpush1.msra.mxu0 %v2820
        %2869 = vmatprep.subr.mxu0 0.0
        %2870 = vmatpush1.msra.mxu0 %v2821
        %2871 = vmatprep.subr.mxu0 0.0
        %2872 = vmatpush1.msra.mxu0 %v2822
        %2873 = vmatprep.subr.mxu0 0.0
        %2874 = vmatpush1.msra.mxu0 %v2823
        %2875 = vmatprep.subr.mxu0 0.0
        %2876 = vmatpush1.msra.mxu0 %v2824
        %2877 = vmatprep.subr.mxu0 0.0
        %2878 = vmatpush1.msra.mxu0 %v2825
        %2879 = vmatprep.subr.mxu0 0.0
        %2880 = vmatpush1.msra.mxu0 %v2826
        %2881 = vmatprep.subr.mxu0 0.0
        %2882 = vmatpush1.msra.mxu0 %v2827
        %2883 = vmatprep.subr.mxu0 0.0
        %2884 = vmatpush1.msra.mxu0 %v2828
        %2885 = vmatprep.subr.mxu0 0.0
        %2886 = vmatpush1.msra.mxu0 %v2829
        %2887 = vmatprep.subr.mxu0 0.0
        %2888 = vmatpush1.msra.mxu0 %v2830
        %2889 = vmatprep.subr.mxu0 0.0
        %2890 = vmatpush1.msra.mxu0 %v2831
        %2891 = vmatprep.subr.mxu0 0.0
        %2892 = vmatpush1.msra.mxu0 %v2832
        %2893 = vmatprep.subr.mxu0 0.0
        %2894 = vmatpush1.msra.mxu0 %v2833
        %2895 = vmatprep.subr.mxu0 0.0
        %2896 = vmatpush1.msra.mxu0 %v2834
        %2897 = vmatprep.subr.mxu0 0.0
        %2898 = vmatpush1.msra.mxu0 %v2835
        %2899 = vmatprep.subr.mxu0 0.0
        %2900 = vmatpush1.msra.mxu0 %v2836
        %2901 = vmatprep.subr.mxu0 0.0
        %2902 = vmatpush1.msra.mxu0 %v2837
        %2903 = vmatprep.subr.mxu0 0.0
        %2904 = vmatpush1.msra.mxu0 %v2838
        %2905 = vmatprep.subr.mxu0 0.0
        %2906 = vmatpush1.msra.mxu0 %v2839
        %2907 = vmatprep.subr.mxu0 0.0
        %2908 = vmatpush1.msra.mxu0 %v2840
        %2909 = vmatprep.subr.mxu0 0.0
        %2910 = vmatpush1.msra.mxu0 %v2841
        %2911 = vmatprep.subr.mxu0 0.0
        %2912 = vmatpush1.msra.mxu0 %v2842
        %2913 = vmatprep.subr.mxu0 0.0
        %2914 = vmatpush1.msra.mxu0 %v2843
        %2915 = vmatprep.mubr.f32.mxu0 %v2811
        %2916 = vmatmul.mubr.f32.gmra.mrb[0].mxu0 %v2810
        %v2917 = vpop.f32.mrb[0].mxu0
        %v2918 = vadd.f32 %v2849, %v2917
        %v2919 = vpop.f32.mrb[0].mxu0
        %2920 = vdwg.mxu0
        %v2921 = vadd.f32 %v2694, %v2918
        %2922 = vadd.xlane.f32.xlu0 %v2921
        %v2923 = vpop.xlane.xlu0 %2922
        %v2924 = vmul.f32 %v2923, %v2653
        %v2925 = vsub.f32 %v2921, %v2924
        %v2926 = vmul.f32 %v2925, %v2925
        %2927 = vadd.xlane.f32.xlu0 %v2926
        %v2928 = vpop.xlane.xlu0 %2927
        %v2929 = vmul.f32 %v2928, %v2653
        %v2930 = vadd.f32 %v2929, 1e-05
        %v2931 = vrsqrt.pop %v2930
        %v2932 = vmul.f32 %v2925, %v2931
        %v2933 = vlaneseq
        %v2934 = vshrl.u32 %v2933, 7
        %v2935 = vsub.s32 2, %v2934
        %v2936 = vrot.slane %v1800, %v2935
        %v2937 = vmul.f32 %v2932, %v2936
        %v2938 = vlaneseq
        %v2939 = vshrl.u32 %v2938, 7
        %v2940 = vsub.s32 2, %v2939
        %v2941 = vrot.slane %v1801, %v2940
        %v2942 = vadd.f32 %v2937, %v2941
        %s2943 = scalar_lea.vmem %s16, 4
        %v2944 = vld [vmem:[%s2943] sm:$0x7]
        %s2945 = scalar_lea.vmem %s17, 4
        %v2946 = vld [vmem:[%s2945] sm:$0x7]
        %s2947 = scalar_lea.vmem [#allocation7], 384
        %v2948 = vld [vmem:[%s2947] sm:$0xff]
        %v2949 = vld [vmem:[%s2947 + $0x8] sm:$0xff]
        %v2950 = vld [vmem:[%s2947 + $0x10] sm:$0xff]
        %v2951 = vld [vmem:[%s2947 + $0x18] sm:$0xff]
        %v2952 = vld [vmem:[%s2947 + $0x20] sm:$0xff]
        %v2953 = vld [vmem:[%s2947 + $0x28] sm:$0xff]
        %v2954 = vld [vmem:[%s2947 + $0x30] sm:$0xff]
        %v2955 = vld [vmem:[%s2947 + $0x38] sm:$0xff]
        %v2956 = vld [vmem:[%s2947 + $0x40] sm:$0xff]
        %v2957 = vld [vmem:[%s2947 + $0x48] sm:$0xff]
        %v2958 = vld [vmem:[%s2947 + $0x50] sm:$0xff]
        %v2959 = vld [vmem:[%s2947 + $0x58] sm:$0xff]
        %v2960 = vld [vmem:[%s2947 + $0x60] sm:$0xff]
        %v2961 = vld [vmem:[%s2947 + $0x68] sm:$0xff]
        %v2962 = vld [vmem:[%s2947 + $0x70] sm:$0xff]
        %v2963 = vld [vmem:[%s2947 + $0x78] sm:$0xff]
        %v2964 = vld [vmem:[%s2947 + $0x80] sm:$0xff]
        %v2965 = vld [vmem:[%s2947 + $0x88] sm:$0xff]
        %v2966 = vld [vmem:[%s2947 + $0x90] sm:$0xff]
        %v2967 = vld [vmem:[%s2947 + $0x98] sm:$0xff]
        %v2968 = vld [vmem:[%s2947 + $0xa0] sm:$0xff]
        %v2969 = vld [vmem:[%s2947 + $0xa8] sm:$0xff]
        %v2970 = vld [vmem:[%s2947 + $0xb0] sm:$0xff]
        %v2971 = vld [vmem:[%s2947 + $0xb8] sm:$0xff]
        %v2972 = vld [vmem:[%s2947 + $0xc0] sm:$0xff]
        %v2973 = vld [vmem:[%s2947 + $0xc8] sm:$0xff]
        %v2974 = vld [vmem:[%s2947 + $0xd0] sm:$0xff]
        %v2975 = vld [vmem:[%s2947 + $0xd8] sm:$0xff]
        %v2976 = vld [vmem:[%s2947 + $0xe0] sm:$0xff]
        %v2977 = vld [vmem:[%s2947 + $0xe8] sm:$0xff]
        %v2978 = vld [vmem:[%s2947 + $0xf0] sm:$0xff]
        %v2979 = vld [vmem:[%s2947 + $0xf8] sm:$0xff]
        %v2980 = vld [vmem:[%s2947 + $0x100] sm:$0xff]
        %v2981 = vld [vmem:[%s2947 + $0x108] sm:$0xff]
        %v2982 = vld [vmem:[%s2947 + $0x110] sm:$0xff]
        %v2983 = vld [vmem:[%s2947 + $0x118] sm:$0xff]
        %v2984 = vld [vmem:[%s2947 + $0x120] sm:$0xff]
        %v2985 = vld [vmem:[%s2947 + $0x128] sm:$0xff]
        %v2986 = vld [vmem:[%s2947 + $0x130] sm:$0xff]
        %v2987 = vld [vmem:[%s2947 + $0x138] sm:$0xff]
        %v2988 = vld [vmem:[%s2947 + $0x140] sm:$0xff]
        %v2989 = vld [vmem:[%s2947 + $0x148] sm:$0xff]
        %v2990 = vld [vmem:[%s2947 + $0x150] sm:$0xff]
        %v2991 = vld [vmem:[%s2947 + $0x158] sm:$0xff]
        %v2992 = vld [vmem:[%s2947 + $0x160] sm:$0xff]
        %v2993 = vld [vmem:[%s2947 + $0x168] sm:$0xff]
        %v2994 = vld [vmem:[%s2947 + $0x170] sm:$0xff]
        %v2995 = vld [vmem:[%s2947 + $0x178] sm:$0xff]
        %s2996 = scalar_lea.vmem %s9, 3
        %v2997 = vld [vmem:[%s2996] sm:$0x7]
        %s2998 = scalar_lea.vmem [#allocation8], 128
        %v2999 = vld [vmem:[%s2998] sm:$0xff]
        %v3000 = vld [vmem:[%s2998 + $0x8] sm:$0xff]
        %v3001 = vld [vmem:[%s2998 + $0x10] sm:$0xff]
        %v3002 = vld [vmem:[%s2998 + $0x18] sm:$0xff]
        %v3003 = vld [vmem:[%s2998 + $0x20] sm:$0xff]
        %v3004 = vld [vmem:[%s2998 + $0x28] sm:$0xff]
        %v3005 = vld [vmem:[%s2998 + $0x30] sm:$0xff]
        %v3006 = vld [vmem:[%s2998 + $0x38] sm:$0xff]
        %v3007 = vld [vmem:[%s2998 + $0x40] sm:$0xff]
        %v3008 = vld [vmem:[%s2998 + $0x48] sm:$0xff]
        %v3009 = vld [vmem:[%s2998 + $0x50] sm:$0xff]
        %v3010 = vld [vmem:[%s2998 + $0x58] sm:$0xff]
        %v3011 = vld [vmem:[%s2998 + $0x60] sm:$0xff]
        %v3012 = vld [vmem:[%s2998 + $0x68] sm:$0xff]
        %v3013 = vld [vmem:[%s2998 + $0x70] sm:$0xff]
        %v3014 = vld [vmem:[%s2998 + $0x78] sm:$0xff]
        %s3015 = scalar_lea.vmem [#allocation10], 1
        %v3016 = vld [vmem:[%s3015] sm:$0x1]
        %v3018 = vlaneseq
        %v3019 = vshrl.u32 %v3018, 7
        %v3020 = vsub.s32 0, %v3019
        %v3021 = vrot.slane %v2997, %v3020
        %v3022 = vlaneseq
        %v3023 = vshrl.u32 %v3022, 7
        %v3024 = vsub.s32 1, %v3023
        %v3025 = vrot.slane %v2997, %v3024
        %v3026 = vlaneseq
        %v3027 = vshrl.u32 %v3026, 7
        %v3028 = vsub.s32 2, %v3027
        %v3029 = vrot.slane %v2997, %v3028
        %3033 = vmatprep.subr.mxu0 %v2949
        %3034 = vmatpush1.msra.mxu0 %v2948
        %3035 = vmatprep.subr.mxu0 %v2952
        %3036 = vmatpush1.msra.mxu0 %v2951
        %3037 = vmatprep.subr.mxu0 %v2955
        %3038 = vmatpush1.msra.mxu0 %v2954
        %3039 = vmatprep.subr.mxu0 %v2958
        %3040 = vmatpush1.msra.mxu0 %v2957
        %3041 = vmatprep.subr.mxu0 %v2961
        %3042 = vmatpush1.msra.mxu0 %v2960
        %3043 = vmatprep.subr.mxu0 %v2964
        %3044 = vmatpush1.msra.mxu0 %v2963
        %3045 = vmatprep.subr.mxu0 %v2967
        %3046 = vmatpush1.msra.mxu0 %v2966
        %3047 = vmatprep.subr.mxu0 %v2970
        %3048 = vmatpush1.msra.mxu0 %v2969
        %3049 = vmatprep.subr.mxu0 %v2973
        %3050 = vmatpush1.msra.mxu0 %v2972
        %3051 = vmatprep.subr.mxu0 %v2976
        %3052 = vmatpush1.msra.mxu0 %v2975
        %3053 = vmatprep.subr.mxu0 %v2979
        %3054 = vmatpush1.msra.mxu0 %v2978
        %3055 = vmatprep.subr.mxu0 %v2982
        %3056 = vmatpush1.msra.mxu0 %v2981
        %3057 = vmatprep.subr.mxu0 %v2985
        %3058 = vmatpush1.msra.mxu0 %v2984
        %3059 = vmatprep.subr.mxu0 %v2988
        %3060 = vmatpush1.msra.mxu0 %v2987
        %3061 = vmatprep.subr.mxu0 %v2991
        %3062 = vmatpush1.msra.mxu0 %v2990
        %3063 = vmatprep.subr.mxu0 %v2994
        %3064 = vmatpush1.msra.mxu0 %v2993
        %3065 = vmatprep.subr.mxu0 0.0
        %3066 = vmatpush1.msra.mxu0 0.0
        %3067 = vmatprep.subr.mxu0 0.0
        %3068 = vmatpush1.msra.mxu0 0.0
        %3069 = vmatprep.subr.mxu0 0.0
        %3070 = vmatpush1.msra.mxu0 0.0
        %3071 = vmatprep.subr.mxu0 0.0
        %3072 = vmatpush1.msra.mxu0 0.0
        %3073 = vmatprep.subr.mxu0 0.0
        %3074 = vmatpush1.msra.mxu0 0.0
        %3075 = vmatprep.subr.mxu0 0.0
        %3076 = vmatpush1.msra.mxu0 0.0
        %3077 = vmatprep.subr.mxu0 0.0
        %3078 = vmatpush1.msra.mxu0 0.0
        %3079 = vmatprep.subr.mxu0 0.0
        %3080 = vmatpush1.msra.mxu0 0.0
        %3081 = vmatprep.subr.mxu0 0.0
        %3082 = vmatpush1.msra.mxu0 0.0
        %3083 = vmatprep.subr.mxu0 0.0
        %3084 = vmatpush1.msra.mxu0 0.0
        %3085 = vmatprep.subr.mxu0 0.0
        %3086 = vmatpush1.msra.mxu0 0.0
        %3087 = vmatprep.subr.mxu0 0.0
        %3088 = vmatpush1.msra.mxu0 0.0
        %3089 = vmatprep.subr.mxu0 0.0
        %3090 = vmatpush1.msra.mxu0 0.0
        %3091 = vmatprep.subr.mxu0 0.0
        %3092 = vmatpush1.msra.mxu0 0.0
        %3093 = vmatprep.subr.mxu0 0.0
        %3094 = vmatpush1.msra.mxu0 0.0
        %3095 = vmatprep.subr.mxu0 0.0
        %3096 = vmatpush1.msra.mxu0 0.0
        %3097 = vmatprep.mubr.f32.mxu0 0.0
        %3098 = vmatmul.mubr.f32.gmra.mrb[0].mxu0 %v2942
        %v3099 = vpop.f32.mrb[0].mxu0
        %v3100 = vadd.f32 %v3021, %v3099
        %v3101 = vpop.f32.mrb[0].mxu0
        %v3102 = vadd.f32 %v3025, %v3101
        %3103 = vdwg.mxu0
        %3104 = vmatprep.subr.mxu0 0.0
        %3105 = vmatpush1.msra.mxu0 %v2950
        %3106 = vmatprep.subr.mxu0 0.0
        %3107 = vmatpush1.msra.mxu0 %v2953
        %3108 = vmatprep.subr.mxu0 0.0
        %3109 = vmatpush1.msra.mxu0 %v2956
        %3110 = vmatprep.subr.mxu0 0.0
        %3111 = vmatpush1.msra.mxu0 %v2959
        %3112 = vmatprep.subr.mxu0 0.0
        %3113 = vmatpush1.msra.mxu0 %v2962
        %3114 = vmatprep.subr.mxu0 0.0
        %3115 = vmatpush1.msra.mxu0 %v2965
        %3116 = vmatprep.subr.mxu0 0.0
        %3117 = vmatpush1.msra.mxu0 %v2968
        %3118 = vmatprep.subr.mxu0 0.0
        %3119 = vmatpush1.msra.mxu0 %v2971
        %3120 = vmatprep.subr.mxu0 0.0
        %3121 = vmatpush1.msra.mxu0 %v2974
        %3122 = vmatprep.subr.mxu0 0.0
        %3123 = vmatpush1.msra.mxu0 %v2977
        %3124 = vmatprep.subr.mxu0 0.0
        %3125 = vmatpush1.msra.mxu0 %v2980
        %3126 = vmatprep.subr.mxu0 0.0
        %3127 = vmatpush1.msra.mxu0 %v2983
        %3128 = vmatprep.subr.mxu0 0.0
        %3129 = vmatpush1.msra.mxu0 %v2986
        %3130 = vmatprep.subr.mxu0 0.0
        %3131 = vmatpush1.msra.mxu0 %v2989
        %3132 = vmatprep.subr.mxu0 0.0
        %3133 = vmatpush1.msra.mxu0 %v2992
        %3134 = vmatprep.subr.mxu0 0.0
        %3135 = vmatpush1.msra.mxu0 %v2995
        %3136 = vmatprep.subr.mxu0 0.0
        %3137 = vmatpush1.msra.mxu0 0.0
        %3138 = vmatprep.subr.mxu0 0.0
        %3139 = vmatpush1.msra.mxu0 0.0
        %3140 = vmatprep.subr.mxu0 0.0
        %3141 = vmatpush1.msra.mxu0 0.0
        %3142 = vmatprep.subr.mxu0 0.0
        %3143 = vmatpush1.msra.mxu0 0.0
        %3144 = vmatprep.subr.mxu0 0.0
        %3145 = vmatpush1.msra.mxu0 0.0
        %3146 = vmatprep.subr.mxu0 0.0
        %3147 = vmatpush1.msra.mxu0 0.0
        %3148 = vmatprep.subr.mxu0 0.0
        %3149 = vmatpush1.msra.mxu0 0.0
        %3150 = vmatprep.subr.mxu0 0.0
        %3151 = vmatpush1.msra.mxu0 0.0
        %3152 = vmatprep.subr.mxu0 0.0
        %3153 = vmatpush1.msra.mxu0 0.0
        %3154 = vmatprep.subr.mxu0 0.0
        %3155 = vmatpush1.msra.mxu0 0.0
        %3156 = vmatprep.subr.mxu0 0.0
        %3157 = vmatpush1.msra.mxu0 0.0
        %3158 = vmatprep.subr.mxu0 0.0
        %3159 = vmatpush1.msra.mxu0 0.0
        %3160 = vmatprep.subr.mxu0 0.0
        %3161 = vmatpush1.msra.mxu0 0.0
        %3162 = vmatprep.subr.mxu0 0.0
        %3163 = vmatpush1.msra.mxu0 0.0
        %3164 = vmatprep.subr.mxu0 0.0
        %3165 = vmatpush1.msra.mxu0 0.0
        %3166 = vmatprep.subr.mxu0 0.0
        %3167 = vmatpush1.msra.mxu0 0.0
        %3168 = vmatprep.mubr.f32.mxu0 0.0
        %3169 = vmatmul.mubr.f32.gmra.mrb[0].mxu0 %v2942
        %v3170 = vpop.f32.mrb[0].mxu0
        %v3171 = vadd.f32 %v3029, %v3170
        %v3172 = vpop.f32.mrb[0].mxu0
        %3173 = vdwg.mxu0
        %v3174 = vmul.f32 %v3100, 0.35355338
        %v3176 = vcombine.high %v3174, %v3174
        %v3178 = vunpack.c.l.s4 1966171168
        %v3179 = vunpack.c.0.s8 %v3178
        %v3180 = vlaneseq
        %v3181 = vshrl.u32 %v3180, 7
        %v3182 = vsub.s32 %v3179, %v3181
        %v3183 = vrot.slane %v3174, %v3182
        %v3185 = vunpack.c.l.s4 1966171168
        %v3186 = vunpack.c.0.s8 %v3185
        %v3187 = vlaneseq
        %v3188 = vshrl.u32 %v3187, 7
        %v3189 = vsub.s32 %v3186, %v3188
        %v3190 = vrot.slane %v3176, %v3189
        %v3191 = vcombine.high %v3183, %v3183
        %v3192 = vcombine.high %v3190, %v3190
        %v3194 = vunpack.c.l.s4 1966171168
        %v3195 = vunpack.c.0.s8 %v3194
        %v3196 = vlaneseq
        %v3197 = vshrl.u32 %v3196, 7
        %v3198 = vsub.s32 %v3195, %v3197
        %v3199 = vrot.slane %v3183, %v3198
        %v3201 = vunpack.c.l.s4 1966171168
        %v3202 = vunpack.c.0.s8 %v3201
        %v3203 = vlaneseq
        %v3204 = vshrl.u32 %v3203, 7
        %v3205 = vsub.s32 %v3202, %v3204
        %v3206 = vrot.slane %v3190, %v3205
        %v3208 = vunpack.c.l.s4 1966171168
        %v3209 = vunpack.c.0.s8 %v3208
        %v3210 = vlaneseq
        %v3211 = vshrl.u32 %v3210, 7
        %v3212 = vsub.s32 %v3209, %v3211
        %v3213 = vrot.slane %v3191, %v3212
        %v3215 = vunpack.c.l.s4 1966171168
        %v3216 = vunpack.c.0.s8 %v3215
        %v3217 = vlaneseq
        %v3218 = vshrl.u32 %v3217, 7
        %v3219 = vsub.s32 %v3216, %v3218
        %v3220 = vrot.slane %v3192, %v3219
        %v3221 = vcombine.high %v3199, %v3199
        %v3222 = vcombine.high %v3206, %v3206
        %v3223 = vcombine.high %v3213, %v3213
        %v3224 = vcombine.high %v3220, %v3220
        %v3225 = vlaneseq
        %v3226 = vshrl.u32 %v3225, 7
        %v3227 = vsub.s32 0, %v3226
        %v3228 = vrot.slane %v3199, %v3227
        %v3229 = vlaneseq
        %v3230 = vshrl.u32 %v3229, 7
        %v3231 = vsub.s32 0, %v3230
        %v3232 = vrot.slane %v3213, %v3231
        %v3233 = vlaneseq
        %v3234 = vshrl.u32 %v3233, 7
        %v3235 = vsub.s32 0, %v3234
        %v3236 = vrot.slane %v3221, %v3235
        %v3237 = vlaneseq
        %v3238 = vshrl.u32 %v3237, 7
        %v3239 = vsub.s32 0, %v3238
        %v3240 = vrot.slane %v3223, %v3239
        %v3241 = vlaneseq
        %v3242 = vshrl.u32 %v3241, 7
        %v3243 = vsub.s32 0, %v3242
        %v3244 = vrot.slane %v3206, %v3243
        %v3245 = vlaneseq
        %v3246 = vshrl.u32 %v3245, 7
        %v3247 = vsub.s32 0, %v3246
        %v3248 = vrot.slane %v3220, %v3247
        %v3249 = vlaneseq
        %v3250 = vshrl.u32 %v3249, 7
        %v3251 = vsub.s32 0, %v3250
        %v3252 = vrot.slane %v3222, %v3251
        %v3253 = vlaneseq
        %v3254 = vshrl.u32 %v3253, 7
        %v3255 = vsub.s32 0, %v3254
        %v3256 = vrot.slane %v3224, %v3255
        %v3265 = vmul.f32 %v3228, %v3102
        %v3266 = vmul.f32 %v3232, %v3102
        %v3267 = vmul.f32 %v3236, %v3102
        %v3268 = vmul.f32 %v3240, %v3102
        %v3269 = vmul.f32 %v3244, %v3102
        %v3270 = vmul.f32 %v3248, %v3102
        %v3271 = vmul.f32 %v3252, %v3102
        %v3272 = vmul.f32 %v3256, %v3102
        %3273 = vmatprep.subr.mxu0 0.0
        %3274 = vmatpush1.msra.mxu0 %v827
        %3275 = vmatprep.subr.mxu0 0.0
        %3276 = vmatpush1.msra.mxu0 %v828
        %3277 = vmatprep.subr.mxu0 0.0
        %3278 = vmatpush1.msra.mxu0 %v829
        %3279 = vmatprep.subr.mxu0 0.0
        %3280 = vmatpush1.msra.mxu0 %v830
        %3281 = vmatprep.subr.mxu0 0.0
        %3282 = vmatpush1.msra.mxu0 %v831
        %3283 = vmatprep.subr.mxu0 0.0
        %3284 = vmatpush1.msra.mxu0 %v832
        %3285 = vmatprep.subr.mxu0 0.0
        %3286 = vmatpush1.msra.mxu0 %v833
        %3287 = vmatprep.subr.mxu0 0.0
        %3288 = vmatpush1.msra.mxu0 %v834
        %3289 = vmatprep.subr.mxu0 0.0
        %3290 = vmatpush1.msra.mxu0 %v835
        %3291 = vmatprep.subr.mxu0 0.0
        %3292 = vmatpush1.msra.mxu0 %v836
        %3293 = vmatprep.subr.mxu0 0.0
        %3294 = vmatpush1.msra.mxu0 %v837
        %3295 = vmatprep.subr.mxu0 0.0
        %3296 = vmatpush1.msra.mxu0 %v838
        %3297 = vmatprep.subr.mxu0 0.0
        %3298 = vmatpush1.msra.mxu0 %v839
        %3299 = vmatprep.subr.mxu0 0.0
        %3300 = vmatpush1.msra.mxu0 %v840
        %3301 = vmatprep.subr.mxu0 0.0
        %3302 = vmatpush1.msra.mxu0 %v841
        %3303 = vmatprep.subr.mxu0 0.0
        %3304 = vmatpush1.msra.mxu0 %v842
        %3305 = vmatprep.subr.mxu0 0.0
        %3306 = vmatpush1.msra.mxu0 0.0
        %3307 = vmatprep.subr.mxu0 0.0
        %3308 = vmatpush1.msra.mxu0 0.0
        %3309 = vmatprep.subr.mxu0 0.0
        %3310 = vmatpush1.msra.mxu0 0.0
        %3311 = vmatprep.subr.mxu0 0.0
        %3312 = vmatpush1.msra.mxu0 0.0
        %3313 = vmatprep.subr.mxu0 0.0
        %3314 = vmatpush1.msra.mxu0 0.0
        %3315 = vmatprep.subr.mxu0 0.0
        %3316 = vmatpush1.msra.mxu0 0.0
        %3317 = vmatprep.subr.mxu0 0.0
        %3318 = vmatpush1.msra.mxu0 0.0
        %3319 = vmatprep.subr.mxu0 0.0
        %3320 = vmatpush1.msra.mxu0 0.0
        %3321 = vmatprep.subr.mxu0 0.0
        %3322 = vmatpush1.msra.mxu0 0.0
        %3323 = vmatprep.subr.mxu0 0.0
        %3324 = vmatpush1.msra.mxu0 0.0
        %3325 = vmatprep.subr.mxu0 0.0
        %3326 = vmatpush1.msra.mxu0 0.0
        %3327 = vmatprep.subr.mxu0 0.0
        %3328 = vmatpush1.msra.mxu0 0.0
        %3329 = vmatprep.subr.mxu0 0.0
        %3330 = vmatpush1.msra.mxu0 0.0
        %3331 = vmatprep.subr.mxu0 0.0
        %3332 = vmatpush1.msra.mxu0 0.0
        %3333 = vmatprep.subr.mxu0 0.0
        %3334 = vmatpush1.msra.mxu0 0.0
        %3335 = vmatprep.subr.mxu0 0.0
        %3336 = vmatpush1.msra.mxu0 0.0
        %3337 = vmatprep.mubr.f32.mxu0 0.0
        %3338 = vmatmul.mubr.f32.gmra.mrb[0].mxu0 %v3265
        %v3339 = vpop.f32.mrb[0].mxu0
        %v3340 = vadd.f32 0.0, %v3339
        %v3341 = vpop.f32.mrb[0].mxu0
        %3342 = vmatprep.mubr.f32.mxu0 0.0
        %3343 = vmatmul.mubr.f32.gmra.mrb[0].mxu0 %v3266
        %v3344 = vpop.f32.mrb[0].mxu0
        %v3345 = vadd.f32 0.0, %v3344
        %v3346 = vpop.f32.mrb[0].mxu0
        %3347 = vmatprep.mubr.f32.mxu0 0.0
        %3348 = vmatmul.mubr.f32.gmra.mrb[0].mxu0 %v3267
        %v3349 = vpop.f32.mrb[0].mxu0
        %v3350 = vadd.f32 0.0, %v3349
        %v3351 = vpop.f32.mrb[0].mxu0
        %3352 = vmatprep.mubr.f32.mxu0 0.0
        %3353 = vmatmul.mubr.f32.gmra.mrb[0].mxu0 %v3268
        %v3354 = vpop.f32.mrb[0].mxu0
        %v3355 = vadd.f32 0.0, %v3354
        %v3356 = vpop.f32.mrb[0].mxu0
        %3357 = vmatprep.mubr.f32.mxu0 0.0
        %3358 = vmatmul.mubr.f32.gmra.mrb[0].mxu0 %v3269
        %v3359 = vpop.f32.mrb[0].mxu0
        %v3360 = vadd.f32 0.0, %v3359
        %v3361 = vpop.f32.mrb[0].mxu0
        %3362 = vmatprep.mubr.f32.mxu0 0.0
        %3363 = vmatmul.mubr.f32.gmra.mrb[0].mxu0 %v3270
        %v3364 = vpop.f32.mrb[0].mxu0
        %v3365 = vadd.f32 0.0, %v3364
        %v3366 = vpop.f32.mrb[0].mxu0
        %3367 = vmatprep.mubr.f32.mxu0 0.0
        %3368 = vmatmul.mubr.f32.gmra.mrb[0].mxu0 %v3271
        %v3369 = vpop.f32.mrb[0].mxu0
        %v3370 = vadd.f32 0.0, %v3369
        %v3371 = vpop.f32.mrb[0].mxu0
        %3372 = vmatprep.mubr.f32.mxu0 0.0
        %3373 = vmatmul.mubr.f32.gmra.mrb[0].mxu0 %v3272
        %v3374 = vpop.f32.mrb[0].mxu0
        %v3375 = vadd.f32 0.0, %v3374
        %v3376 = vpop.f32.mrb[0].mxu0
        %3377 = vdwg.mxu0
        %v3378 = vsel %vm2269, -1e+20, %v3340
        %v3379 = vsel %vm2270, -1e+20, %v3345
        %v3380 = vsel %vm2271, -1e+20, %v3350
        %v3381 = vsel %vm2272, -1e+20, %v3355
        %v3382 = vsel %vm2273, -1e+20, %v3360
        %v3383 = vsel %vm2274, -1e+20, %v3365
        %v3384 = vsel %vm2275, -1e+20, %v3370
        %v3385 = vsel %vm2276, -1e+20, %v3375
        %v3386 = vsel %vm1427, %v3378, -inf
        %3387 = vmax.xlane.f32.xlu0 %v3386
        %v3388 = vpop.xlane.xlu0 %3387
        %v3389 = vsel %vm1427, %v3379, -inf
        %3390 = vmax.xlane.f32.xlu0 %v3389
        %v3391 = vpop.xlane.xlu0 %3390
        %v3392 = vsel %vm1427, %v3380, -inf
        %3393 = vmax.xlane.f32.xlu0 %v3392
        %v3394 = vpop.xlane.xlu0 %3393
        %v3395 = vsel %vm1427, %v3381, -inf
        %3396 = vmax.xlane.f32.xlu0 %v3395
        %v3397 = vpop.xlane.xlu0 %3396
        %v3398 = vsel %vm1427, %v3382, -inf
        %3399 = vmax.xlane.f32.xlu0 %v3398
        %v3400 = vpop.xlane.xlu0 %3399
        %v3401 = vsel %vm1427, %v3383, -inf
        %3402 = vmax.xlane.f32.xlu0 %v3401
        %v3403 = vpop.xlane.xlu0 %3402
        %v3404 = vsel %vm1427, %v3384, -inf
        %3405 = vmax.xlane.f32.xlu0 %v3404
        %v3406 = vpop.xlane.xlu0 %3405
        %v3407 = vsel %vm1427, %v3385, -inf
        %3408 = vmax.xlane.f32.xlu0 %v3407
        %v3409 = vpop.xlane.xlu0 %3408
        %v3410 = vsub.f32 %v3378, %v3388
        %v3411 = vsub.f32 %v3379, %v3391
        %v3412 = vsub.f32 %v3380, %v3394
        %v3413 = vsub.f32 %v3381, %v3397
        %v3414 = vsub.f32 %v3382, %v3400
        %v3415 = vsub.f32 %v3383, %v3403
        %v3416 = vsub.f32 %v3384, %v3406
        %v3417 = vsub.f32 %v3385, %v3409
        %v3418 = vmul.f32 %v3410, 1.442695
        %v3419 = vpow.pop %v3418
        %v3420 = vmul.f32 %v3411, 1.442695
        %v3421 = vpow.pop %v3420
        %v3422 = vmul.f32 %v3412, 1.442695
        %v3423 = vpow.pop %v3422
        %v3424 = vmul.f32 %v3413, 1.442695
        %v3425 = vpow.pop %v3424
        %v3426 = vmul.f32 %v3414, 1.442695
        %v3427 = vpow.pop %v3426
        %v3428 = vmul.f32 %v3415, 1.442695
        %v3429 = vpow.pop %v3428
        %v3430 = vmul.f32 %v3416, 1.442695
        %v3431 = vpow.pop %v3430
        %v3432 = vmul.f32 %v3417, 1.442695
        %v3433 = vpow.pop %v3432
        %v3434 = vsel %vm1427, %v3419, 0.0
        %3435 = vadd.xlane.f32.xlu0 %v3434
        %v3436 = vpop.xlane.xlu0 %3435
        %v3437 = vsel %vm1427, %v3421, 0.0
        %3438 = vadd.xlane.f32.xlu0 %v3437
        %v3439 = vpop.xlane.xlu0 %3438
        %v3440 = vsel %vm1427, %v3423, 0.0
        %3441 = vadd.xlane.f32.xlu0 %v3440
        %v3442 = vpop.xlane.xlu0 %3441
        %v3443 = vsel %vm1427, %v3425, 0.0
        %3444 = vadd.xlane.f32.xlu0 %v3443
        %v3445 = vpop.xlane.xlu0 %3444
        %v3446 = vsel %vm1427, %v3427, 0.0
        %3447 = vadd.xlane.f32.xlu0 %v3446
        %v3448 = vpop.xlane.xlu0 %3447
        %v3449 = vsel %vm1427, %v3429, 0.0
        %3450 = vadd.xlane.f32.xlu0 %v3449
        %v3451 = vpop.xlane.xlu0 %3450
        %v3452 = vsel %vm1427, %v3431, 0.0
        %3453 = vadd.xlane.f32.xlu0 %v3452
        %v3454 = vpop.xlane.xlu0 %3453
        %v3455 = vsel %vm1427, %v3433, 0.0
        %3456 = vadd.xlane.f32.xlu0 %v3455
        %v3457 = vpop.xlane.xlu0 %3456
        %v3458 = vrcp.pop %v3436
        %v3459 = vrcp.pop %v3439
        %v3460 = vrcp.pop %v3442
        %v3461 = vrcp.pop %v3445
        %v3462 = vrcp.pop %v3448
        %v3463 = vrcp.pop %v3451
        %v3464 = vrcp.pop %v3454
        %v3465 = vrcp.pop %v3457
        %v3466 = vmul.f32 %v3419, %v3458
        %v3467 = vmul.f32 %v3421, %v3459
        %v3468 = vmul.f32 %v3423, %v3460
        %v3469 = vmul.f32 %v3425, %v3461
        %v3470 = vmul.f32 %v3427, %v3462
        %v3471 = vmul.f32 %v3429, %v3463
        %v3472 = vmul.f32 %v3431, %v3464
        %v3473 = vmul.f32 %v3433, %v3465
        %v3475 = vsel %vm1427, %v3466, 0
        %v3478 = vsel %vm1427, %v3467, 0
        %v3481 = vsel %vm1427, %v3468, 0
        %v3484 = vsel %vm1427, %v3469, 0
        %v3487 = vsel %vm1427, %v3470, 0
        %v3490 = vsel %vm1427, %v3471, 0
        %v3493 = vsel %vm1427, %v3472, 0
        %v3496 = vsel %vm1427, %v3473, 0
        %3498 = vmatprep.subr.mxu0 0.0
        %3499 = vmatpush1.msra.mxu0 %v855
        %3500 = vmatprep.subr.mxu0 0.0
        %3501 = vmatpush1.msra.mxu0 %v856
        %3502 = vmatprep.subr.mxu0 0.0
        %3503 = vmatpush1.msra.mxu0 0.0
        %3504 = vmatprep.subr.mxu0 0.0
        %3505 = vmatpush1.msra.mxu0 0.0
        %3506 = vmatprep.subr.mxu0 0.0
        %3507 = vmatpush1.msra.mxu0 0.0
        %3508 = vmatprep.subr.mxu0 0.0
        %3509 = vmatpush1.msra.mxu0 0.0
        %3510 = vmatprep.subr.mxu0 0.0
        %3511 = vmatpush1.msra.mxu0 0.0
        %3512 = vmatprep.subr.mxu0 0.0
        %3513 = vmatpush1.msra.mxu0 0.0
        %3514 = vmatprep.subr.mxu0 0.0
        %3515 = vmatpush1.msra.mxu0 0.0
        %3516 = vmatprep.subr.mxu0 0.0
        %3517 = vmatpush1.msra.mxu0 0.0
        %3518 = vmatprep.subr.mxu0 0.0
        %3519 = vmatpush1.msra.mxu0 0.0
        %3520 = vmatprep.subr.mxu0 0.0
        %3521 = vmatpush1.msra.mxu0 0.0
        %3522 = vmatprep.subr.mxu0 0.0
        %3523 = vmatpush1.msra.mxu0 0.0
        %3524 = vmatprep.subr.mxu0 0.0
        %3525 = vmatpush1.msra.mxu0 0.0
        %3526 = vmatprep.subr.mxu0 0.0
        %3527 = vmatpush1.msra.mxu0 0.0
        %3528 = vmatprep.subr.mxu0 0.0
        %3529 = vmatpush1.msra.mxu0 0.0
        %3530 = vmatprep.subr.mxu0 0.0
        %3531 = vmatpush1.msra.mxu0 0.0
        %3532 = vmatprep.subr.mxu0 0.0
        %3533 = vmatpush1.msra.mxu0 0.0
        %3534 = vmatprep.subr.mxu0 0.0
        %3535 = vmatpush1.msra.mxu0 0.0
        %3536 = vmatprep.subr.mxu0 0.0
        %3537 = vmatpush1.msra.mxu0 0.0
        %3538 = vmatprep.subr.mxu0 0.0
        %3539 = vmatpush1.msra.mxu0 0.0
        %3540 = vmatprep.subr.mxu0 0.0
        %3541 = vmatpush1.msra.mxu0 0.0
        %3542 = vmatprep.subr.mxu0 0.0
        %3543 = vmatpush1.msra.mxu0 0.0
        %3544 = vmatprep.subr.mxu0 0.0
        %3545 = vmatpush1.msra.mxu0 0.0
        %3546 = vmatprep.subr.mxu0 0.0
        %3547 = vmatpush1.msra.mxu0 0.0
        %3548 = vmatprep.subr.mxu0 0.0
        %3549 = vmatpush1.msra.mxu0 0.0
        %3550 = vmatprep.subr.mxu0 0.0
        %3551 = vmatpush1.msra.mxu0 0.0
        %3552 = vmatprep.subr.mxu0 0.0
        %3553 = vmatpush1.msra.mxu0 0.0
        %3554 = vmatprep.subr.mxu0 0.0
        %3555 = vmatpush1.msra.mxu0 0.0
        %3556 = vmatprep.subr.mxu0 0.0
        %3557 = vmatpush1.msra.mxu0 0.0
        %3558 = vmatprep.subr.mxu0 0.0
        %3559 = vmatpush1.msra.mxu0 0.0
        %3560 = vmatprep.subr.mxu0 0.0
        %3561 = vmatpush1.msra.mxu0 0.0
        %3562 = vmatprep.mubr.f32.mxu0 0.0
        %3563 = vmatmul.mubr.f32.gmra.mrb[0].mxu0 %v3475
        %v3564 = vpop.f32.mrb[0].mxu0
        %v3565 = vadd.f32 0.0, %v3564
        %v3566 = vpop.f32.mrb[0].mxu0
        %3567 = vmatprep.mubr.f32.mxu0 0.0
        %3568 = vmatmul.mubr.f32.gmra.mrb[0].mxu0 %v3478
        %v3569 = vpop.f32.mrb[0].mxu0
        %v3570 = vadd.f32 0.0, %v3569
        %v3571 = vpop.f32.mrb[0].mxu0
        %3572 = vmatprep.mubr.f32.mxu0 0.0
        %3573 = vmatmul.mubr.f32.gmra.mrb[0].mxu0 %v3481
        %v3574 = vpop.f32.mrb[0].mxu0
        %v3575 = vadd.f32 0.0, %v3574
        %v3576 = vpop.f32.mrb[0].mxu0
        %3577 = vmatprep.mubr.f32.mxu0 0.0
        %3578 = vmatmul.mubr.f32.gmra.mrb[0].mxu0 %v3484
        %v3579 = vpop.f32.mrb[0].mxu0
        %v3580 = vadd.f32 0.0, %v3579
        %v3581 = vpop.f32.mrb[0].mxu0
        %3582 = vmatprep.mubr.f32.mxu0 0.0
        %3583 = vmatmul.mubr.f32.gmra.mrb[0].mxu0 %v3487
        %v3584 = vpop.f32.mrb[0].mxu0
        %v3585 = vadd.f32 0.0, %v3584
        %v3586 = vpop.f32.mrb[0].mxu0
        %3587 = vmatprep.mubr.f32.mxu0 0.0
        %3588 = vmatmul.mubr.f32.gmra.mrb[0].mxu0 %v3490
        %v3589 = vpop.f32.mrb[0].mxu0
        %v3590 = vadd.f32 0.0, %v3589
        %v3591 = vpop.f32.mrb[0].mxu0
        %3592 = vmatprep.mubr.f32.mxu0 0.0
        %3593 = vmatmul.mubr.f32.gmra.mrb[0].mxu0 %v3493
        %v3594 = vpop.f32.mrb[0].mxu0
        %v3595 = vadd.f32 0.0, %v3594
        %v3596 = vpop.f32.mrb[0].mxu0
        %3597 = vmatprep.mubr.f32.mxu0 0.0
        %3598 = vmatmul.mubr.f32.gmra.mrb[0].mxu0 %v3496
        %v3599 = vpop.f32.mrb[0].mxu0
        %v3600 = vadd.f32 0.0, %v3599
        %v3601 = vpop.f32.mrb[0].mxu0
        %3602 = vdwg.mxu0
        %v3603 = vmul.f32 %v3565, %v3171
        %v3604 = vmul.f32 %v3570, %v3171
        %v3605 = vmul.f32 %v3575, %v3171
        %v3606 = vmul.f32 %v3580, %v3171
        %v3607 = vmul.f32 %v3585, %v3171
        %v3608 = vmul.f32 %v3590, %v3171
        %v3609 = vmul.f32 %v3595, %v3171
        %v3610 = vmul.f32 %v3600, %v3171
        %v3611 = vrot.slane %v3603, 4
        %v3612 = vadd.f32 %v3603, %v3611
        %v3613 = vrot.slane %v3612, 2
        %v3614 = vadd.f32 %v3612, %v3613
        %v3615 = vrot.slane %v3614, 1
        %v3616 = vadd.f32 %v3614, %v3615
        %v3617 = vrot.slane %v3604, 4
        %v3618 = vadd.f32 %v3604, %v3617
        %v3619 = vrot.slane %v3618, 2
        %v3620 = vadd.f32 %v3618, %v3619
        %v3621 = vrot.slane %v3620, 1
        %v3622 = vadd.f32 %v3620, %v3621
        %v3623 = vrot.slane %v3605, 4
        %v3624 = vadd.f32 %v3605, %v3623
        %v3625 = vrot.slane %v3624, 2
        %v3626 = vadd.f32 %v3624, %v3625
        %v3627 = vrot.slane %v3626, 1
        %v3628 = vadd.f32 %v3626, %v3627
        %v3629 = vrot.slane %v3606, 4
        %v3630 = vadd.f32 %v3606, %v3629
        %v3631 = vrot.slane %v3630, 2
        %v3632 = vadd.f32 %v3630, %v3631
        %v3633 = vrot.slane %v3632, 1
        %v3634 = vadd.f32 %v3632, %v3633
        %v3635 = vrot.slane %v3607, 4
        %v3636 = vadd.f32 %v3607, %v3635
        %v3637 = vrot.slane %v3636, 2
        %v3638 = vadd.f32 %v3636, %v3637
        %v3639 = vrot.slane %v3638, 1
        %v3640 = vadd.f32 %v3638, %v3639
        %v3641 = vrot.slane %v3608, 4
        %v3642 = vadd.f32 %v3608, %v3641
        %v3643 = vrot.slane %v3642, 2
        %v3644 = vadd.f32 %v3642, %v3643
        %v3645 = vrot.slane %v3644, 1
        %v3646 = vadd.f32 %v3644, %v3645
        %v3647 = vrot.slane %v3609, 4
        %v3648 = vadd.f32 %v3609, %v3647
        %v3649 = vrot.slane %v3648, 2
        %v3650 = vadd.f32 %v3648, %v3649
        %v3651 = vrot.slane %v3650, 1
        %v3652 = vadd.f32 %v3650, %v3651
        %v3653 = vrot.slane %v3610, 4
        %v3654 = vadd.f32 %v3610, %v3653
        %v3655 = vrot.slane %v3654, 2
        %v3656 = vadd.f32 %v3654, %v3655
        %v3657 = vrot.slane %v3656, 1
        %v3658 = vadd.f32 %v3656, %v3657
        %v3660 = vlaneseq
        %v3661 = vshrl.u32 %v3660, 7
        %v3662 = vsub.s32 0, %v3661
        %v3663 = vrot.slane %v3016, %v3662
        %v3673 = vsel %vm1715, %v3622, %v3616
        %v3674 = vsel %vm1717, %v3628, %v3673
        %v3675 = vsel %vm1719, %v3634, %v3674
        %v3676 = vsel %vm1721, %v3640, %v3675
        %v3677 = vsel %vm1723, %v3646, %v3676
        %v3678 = vsel %vm1725, %v3652, %v3677
        %v3679 = vsel %vm1727, %v3658, %v3678
        %3681 = vmatprep.subr.mxu0 0.0
        %3682 = vmatpush1.msra.mxu0 %v2999
        %3683 = vmatprep.subr.mxu0 0.0
        %3684 = vmatpush1.msra.mxu0 %v3000
        %3685 = vmatprep.subr.mxu0 0.0
        %3686 = vmatpush1.msra.mxu0 %v3001
        %3687 = vmatprep.subr.mxu0 0.0
        %3688 = vmatpush1.msra.mxu0 %v3002
        %3689 = vmatprep.subr.mxu0 0.0
        %3690 = vmatpush1.msra.mxu0 %v3003
        %3691 = vmatprep.subr.mxu0 0.0
        %3692 = vmatpush1.msra.mxu0 %v3004
        %3693 = vmatprep.subr.mxu0 0.0
        %3694 = vmatpush1.msra.mxu0 %v3005
        %3695 = vmatprep.subr.mxu0 0.0
        %3696 = vmatpush1.msra.mxu0 %v3006
        %3697 = vmatprep.subr.mxu0 0.0
        %3698 = vmatpush1.msra.mxu0 %v3007
        %3699 = vmatprep.subr.mxu0 0.0
        %3700 = vmatpush1.msra.mxu0 %v3008
        %3701 = vmatprep.subr.mxu0 0.0
        %3702 = vmatpush1.msra.mxu0 %v3009
        %3703 = vmatprep.subr.mxu0 0.0
        %3704 = vmatpush1.msra.mxu0 %v3010
        %3705 = vmatprep.subr.mxu0 0.0
        %3706 = vmatpush1.msra.mxu0 %v3011
        %3707 = vmatprep.subr.mxu0 0.0
        %3708 = vmatpush1.msra.mxu0 %v3012
        %3709 = vmatprep.subr.mxu0 0.0
        %3710 = vmatpush1.msra.mxu0 %v3013
        %3711 = vmatprep.subr.mxu0 0.0
        %3712 = vmatpush1.msra.mxu0 %v3014
        %3713 = vmatprep.subr.mxu0 0.0
        %3714 = vmatpush1.msra.mxu0 0.0
        %3715 = vmatprep.subr.mxu0 0.0
        %3716 = vmatpush1.msra.mxu0 0.0
        %3717 = vmatprep.subr.mxu0 0.0
        %3718 = vmatpush1.msra.mxu0 0.0
        %3719 = vmatprep.subr.mxu0 0.0
        %3720 = vmatpush1.msra.mxu0 0.0
        %3721 = vmatprep.subr.mxu0 0.0
        %3722 = vmatpush1.msra.mxu0 0.0
        %3723 = vmatprep.subr.mxu0 0.0
        %3724 = vmatpush1.msra.mxu0 0.0
        %3725 = vmatprep.subr.mxu0 0.0
        %3726 = vmatpush1.msra.mxu0 0.0
        %3727 = vmatprep.subr.mxu0 0.0
        %3728 = vmatpush1.msra.mxu0 0.0
        %3729 = vmatprep.subr.mxu0 0.0
        %3730 = vmatpush1.msra.mxu0 0.0
        %3731 = vmatprep.subr.mxu0 0.0
        %3732 = vmatpush1.msra.mxu0 0.0
        %3733 = vmatprep.subr.mxu0 0.0
        %3734 = vmatpush1.msra.mxu0 0.0
        %3735 = vmatprep.subr.mxu0 0.0
        %3736 = vmatpush1.msra.mxu0 0.0
        %3737 = vmatprep.subr.mxu0 0.0
        %3738 = vmatpush1.msra.mxu0 0.0
        %3739 = vmatprep.subr.mxu0 0.0
        %3740 = vmatpush1.msra.mxu0 0.0
        %3741 = vmatprep.subr.mxu0 0.0
        %3742 = vmatpush1.msra.mxu0 0.0
        %3743 = vmatprep.subr.mxu0 0.0
        %3744 = vmatpush1.msra.mxu0 0.0
        %3745 = vmatprep.mubr.f32.mxu0 0.0
        %3746 = vmatmul.mubr.f32.gmra.mrb[0].mxu0 %v3679
        %v3747 = vpop.f32.mrb[0].mxu0
        %v3748 = vadd.f32 %v3663, %v3747
        %v3749 = vpop.f32.mrb[0].mxu0
        %3750 = vdwg.mxu0
        %v3751 = vadd.f32 %v2942, %v3748
        %3752 = vadd.xlane.f32.xlu0 %v3751
        %v3753 = vpop.xlane.xlu0 %3752
        %v3754 = vmul.f32 %v3753, %v2653
        %v3755 = vsub.f32 %v3751, %v3754
        %v3756 = vmul.f32 %v3755, %v3755
        %3757 = vadd.xlane.f32.xlu0 %v3756
        %v3758 = vpop.xlane.xlu0 %3757
        %v3759 = vmul.f32 %v3758, %v2653
        %v3760 = vadd.f32 %v3759, 1e-05
        %v3761 = vrsqrt.pop %v3760
        %v3762 = vmul.f32 %v3755, %v3761
        %v3763 = vlaneseq
        %v3764 = vshrl.u32 %v3763, 7
        %v3765 = vsub.s32 0, %v3764
        %v3766 = vrot.slane %v2944, %v3765
        %v3767 = vmul.f32 %v3762, %v3766
        %v3768 = vlaneseq
        %v3769 = vshrl.u32 %v3768, 7
        %v3770 = vsub.s32 0, %v3769
        %v3771 = vrot.slane %v2946, %v3770
        %v3772 = vadd.f32 %v3767, %v3771
        %v3773 = vadd.f32 %v3772, %v1797
        %3774 = vadd.xlane.f32.xlu0 %v3773
        %v3775 = vpop.xlane.xlu0 %3774
        %v3776 = vmul.f32 %v3775, %v2653
        %v3777 = vsub.f32 %v3773, %v3776
        %v3778 = vmul.f32 %v3777, %v3777
        %3779 = vadd.xlane.f32.xlu0 %v3778
        %v3780 = vpop.xlane.xlu0 %3779
        %v3781 = vmul.f32 %v3780, %v2653
        %v3782 = vadd.f32 %v3781, 1e-05
        %v3783 = vrsqrt.pop %v3782
        %v3784 = vmul.f32 %v3777, %v3783
        %v3785 = vlaneseq
        %v3786 = vshrl.u32 %v3785, 7
        %v3787 = vsub.s32 1, %v3786
        %v3788 = vrot.slane %v2944, %v3787
        %v3789 = vmul.f32 %v3784, %v3788
        %v3790 = vlaneseq
        %v3791 = vshrl.u32 %v3790, 7
        %v3792 = vsub.s32 1, %v3791
        %v3793 = vrot.slane %v2946, %v3792
        %v3794 = vadd.f32 %v3789, %v3793
        %s3795 = scalar_lea.vmem [#allocation11], 256
        %v3796 = vld [vmem:[%s3795] sm:$0xff]
        %v3797 = vld [vmem:[%s3795 + $0x8] sm:$0xff]
        %v3798 = vld [vmem:[%s3795 + $0x10] sm:$0xff]
        %v3799 = vld [vmem:[%s3795 + $0x18] sm:$0xff]
        %v3800 = vld [vmem:[%s3795 + $0x20] sm:$0xff]
        %v3801 = vld [vmem:[%s3795 + $0x28] sm:$0xff]
        %v3802 = vld [vmem:[%s3795 + $0x30] sm:$0xff]
        %v3803 = vld [vmem:[%s3795 + $0x38] sm:$0xff]
        %v3804 = vld [vmem:[%s3795 + $0x40] sm:$0xff]
        %v3805 = vld [vmem:[%s3795 + $0x48] sm:$0xff]
        %v3806 = vld [vmem:[%s3795 + $0x50] sm:$0xff]
        %v3807 = vld [vmem:[%s3795 + $0x58] sm:$0xff]
        %v3808 = vld [vmem:[%s3795 + $0x60] sm:$0xff]
        %v3809 = vld [vmem:[%s3795 + $0x68] sm:$0xff]
        %v3810 = vld [vmem:[%s3795 + $0x70] sm:$0xff]
        %v3811 = vld [vmem:[%s3795 + $0x78] sm:$0xff]
        %v3812 = vld [vmem:[%s3795 + $0x80] sm:$0xff]
        %v3813 = vld [vmem:[%s3795 + $0x88] sm:$0xff]
        %v3814 = vld [vmem:[%s3795 + $0x90] sm:$0xff]
        %v3815 = vld [vmem:[%s3795 + $0x98] sm:$0xff]
        %v3816 = vld [vmem:[%s3795 + $0xa0] sm:$0xff]
        %v3817 = vld [vmem:[%s3795 + $0xa8] sm:$0xff]
        %v3818 = vld [vmem:[%s3795 + $0xb0] sm:$0xff]
        %v3819 = vld [vmem:[%s3795 + $0xb8] sm:$0xff]
        %v3820 = vld [vmem:[%s3795 + $0xc0] sm:$0xff]
        %v3821 = vld [vmem:[%s3795 + $0xc8] sm:$0xff]
        %v3822 = vld [vmem:[%s3795 + $0xd0] sm:$0xff]
        %v3823 = vld [vmem:[%s3795 + $0xd8] sm:$0xff]
        %v3824 = vld [vmem:[%s3795 + $0xe0] sm:$0xff]
        %v3825 = vld [vmem:[%s3795 + $0xe8] sm:$0xff]
        %v3826 = vld [vmem:[%s3795 + $0xf0] sm:$0xff]
        %v3827 = vld [vmem:[%s3795 + $0xf8] sm:$0xff]
        %s3828 = scalar_lea.vmem [#allocation13], 2
        %v3829 = vld [vmem:[%s3828] sm:$0x3]
        %v3831 = vlaneseq
        %v3832 = vshrl.u32 %v3831, 7
        %v3833 = vsub.s32 0, %v3832
        %v3834 = vrot.slane %v3829, %v3833
        %v3835 = vlaneseq
        %v3836 = vshrl.u32 %v3835, 7
        %v3837 = vsub.s32 1, %v3836
        %v3838 = vrot.slane %v3829, %v3837
        %3841 = vmatprep.subr.mxu0 %v3797
        %3842 = vmatpush1.msra.mxu0 %v3796
        %3843 = vmatprep.subr.mxu0 %v3799
        %3844 = vmatpush1.msra.mxu0 %v3798
        %3845 = vmatprep.subr.mxu0 %v3801
        %3846 = vmatpush1.msra.mxu0 %v3800
        %3847 = vmatprep.subr.mxu0 %v3803
        %3848 = vmatpush1.msra.mxu0 %v3802
        %3849 = vmatprep.subr.mxu0 %v3805
        %3850 = vmatpush1.msra.mxu0 %v3804
        %3851 = vmatprep.subr.mxu0 %v3807
        %3852 = vmatpush1.msra.mxu0 %v3806
        %3853 = vmatprep.subr.mxu0 %v3809
        %3854 = vmatpush1.msra.mxu0 %v3808
        %3855 = vmatprep.subr.mxu0 %v3811
        %3856 = vmatpush1.msra.mxu0 %v3810
        %3857 = vmatprep.subr.mxu0 %v3813
        %3858 = vmatpush1.msra.mxu0 %v3812
        %3859 = vmatprep.subr.mxu0 %v3815
        %3860 = vmatpush1.msra.mxu0 %v3814
        %3861 = vmatprep.subr.mxu0 %v3817
        %3862 = vmatpush1.msra.mxu0 %v3816
        %3863 = vmatprep.subr.mxu0 %v3819
        %3864 = vmatpush1.msra.mxu0 %v3818
        %3865 = vmatprep.subr.mxu0 %v3821
        %3866 = vmatpush1.msra.mxu0 %v3820
        %3867 = vmatprep.subr.mxu0 %v3823
        %3868 = vmatpush1.msra.mxu0 %v3822
        %3869 = vmatprep.subr.mxu0 %v3825
        %3870 = vmatpush1.msra.mxu0 %v3824
        %3871 = vmatprep.subr.mxu0 %v3827
        %3872 = vmatpush1.msra.mxu0 %v3826
        %3873 = vmatprep.subr.mxu0 0.0
        %3874 = vmatpush1.msra.mxu0 0.0
        %3875 = vmatprep.subr.mxu0 0.0
        %3876 = vmatpush1.msra.mxu0 0.0
        %3877 = vmatprep.subr.mxu0 0.0
        %3878 = vmatpush1.msra.mxu0 0.0
        %3879 = vmatprep.subr.mxu0 0.0
        %3880 = vmatpush1.msra.mxu0 0.0
        %3881 = vmatprep.subr.mxu0 0.0
        %3882 = vmatpush1.msra.mxu0 0.0
        %3883 = vmatprep.subr.mxu0 0.0
        %3884 = vmatpush1.msra.mxu0 0.0
        %3885 = vmatprep.subr.mxu0 0.0
        %3886 = vmatpush1.msra.mxu0 0.0
        %3887 = vmatprep.subr.mxu0 0.0
        %3888 = vmatpush1.msra.mxu0 0.0
        %3889 = vmatprep.subr.mxu0 0.0
        %3890 = vmatpush1.msra.mxu0 0.0
        %3891 = vmatprep.subr.mxu0 0.0
        %3892 = vmatpush1.msra.mxu0 0.0
        %3893 = vmatprep.subr.mxu0 0.0
        %3894 = vmatpush1.msra.mxu0 0.0
        %3895 = vmatprep.subr.mxu0 0.0
        %3896 = vmatpush1.msra.mxu0 0.0
        %3897 = vmatprep.subr.mxu0 0.0
        %3898 = vmatpush1.msra.mxu0 0.0
        %3899 = vmatprep.subr.mxu0 0.0
        %3900 = vmatpush1.msra.mxu0 0.0
        %3901 = vmatprep.subr.mxu0 0.0
        %3902 = vmatpush1.msra.mxu0 0.0
        %3903 = vmatprep.subr.mxu0 0.0
        %3904 = vmatpush1.msra.mxu0 0.0
        %3905 = vmatprep.mubr.f32.mxu0 0.0
        %3906 = vmatmul.mubr.f32.gmra.mrb[0].mxu0 %v3794
        %v3907 = vpop.f32.mrb[0].mxu0
        %v3908 = vadd.f32 %v3834, %v3907
        %v3909 = vpop.f32.mrb[0].mxu0
        %v3910 = vadd.f32 %v3838, %v3909
        %3911 = vdwg.mxu0
        %v3912 = vmax.f32 %v3908, 0.0
        %v3913 = vmax.f32 %v3910, 0.0
        %s3914 = scalar_lea.vmem [#allocation14], 256
        %v3915 = vld [vmem:[%s3914] sm:$0xff]
        %v3916 = vld [vmem:[%s3914 + $0x8] sm:$0xff]
        %v3917 = vld [vmem:[%s3914 + $0x10] sm:$0xff]
        %v3918 = vld [vmem:[%s3914 + $0x18] sm:$0xff]
        %v3919 = vld [vmem:[%s3914 + $0x20] sm:$0xff]
        %v3920 = vld [vmem:[%s3914 + $0x28] sm:$0xff]
        %v3921 = vld [vmem:[%s3914 + $0x30] sm:$0xff]
        %v3922 = vld [vmem:[%s3914 + $0x38] sm:$0xff]
        %v3923 = vld [vmem:[%s3914 + $0x40] sm:$0xff]
        %v3924 = vld [vmem:[%s3914 + $0x48] sm:$0xff]
        %v3925 = vld [vmem:[%s3914 + $0x50] sm:$0xff]
        %v3926 = vld [vmem:[%s3914 + $0x58] sm:$0xff]
        %v3927 = vld [vmem:[%s3914 + $0x60] sm:$0xff]
        %v3928 = vld [vmem:[%s3914 + $0x68] sm:$0xff]
        %v3929 = vld [vmem:[%s3914 + $0x70] sm:$0xff]
        %v3930 = vld [vmem:[%s3914 + $0x78] sm:$0xff]
        %v3931 = vld [vmem:[%s3914 + $0x80] sm:$0xff]
        %v3932 = vld [vmem:[%s3914 + $0x88] sm:$0xff]
        %v3933 = vld [vmem:[%s3914 + $0x90] sm:$0xff]
        %v3934 = vld [vmem:[%s3914 + $0x98] sm:$0xff]
        %v3935 = vld [vmem:[%s3914 + $0xa0] sm:$0xff]
        %v3936 = vld [vmem:[%s3914 + $0xa8] sm:$0xff]
        %v3937 = vld [vmem:[%s3914 + $0xb0] sm:$0xff]
        %v3938 = vld [vmem:[%s3914 + $0xb8] sm:$0xff]
        %v3939 = vld [vmem:[%s3914 + $0xc0] sm:$0xff]
        %v3940 = vld [vmem:[%s3914 + $0xc8] sm:$0xff]
        %v3941 = vld [vmem:[%s3914 + $0xd0] sm:$0xff]
        %v3942 = vld [vmem:[%s3914 + $0xd8] sm:$0xff]
        %v3943 = vld [vmem:[%s3914 + $0xe0] sm:$0xff]
        %v3944 = vld [vmem:[%s3914 + $0xe8] sm:$0xff]
        %v3945 = vld [vmem:[%s3914 + $0xf0] sm:$0xff]
        %v3946 = vld [vmem:[%s3914 + $0xf8] sm:$0xff]
        %s3947 = scalar_lea.vmem [#allocation16], 1
        %v3948 = vld [vmem:[%s3947] sm:$0x1]
        %v3950 = vlaneseq
        %v3951 = vshrl.u32 %v3950, 7
        %v3952 = vsub.s32 0, %v3951
        %v3953 = vrot.slane %v3948, %v3952
        %3955 = vmatprep.subr.mxu0 0.0
        %3956 = vmatpush1.msra.mxu0 %v3915
        %3957 = vmatprep.subr.mxu0 0.0
        %3958 = vmatpush1.msra.mxu0 %v3916
        %3959 = vmatprep.subr.mxu0 0.0
        %3960 = vmatpush1.msra.mxu0 %v3917
        %3961 = vmatprep.subr.mxu0 0.0
        %3962 = vmatpush1.msra.mxu0 %v3918
        %3963 = vmatprep.subr.mxu0 0.0
        %3964 = vmatpush1.msra.mxu0 %v3919
        %3965 = vmatprep.subr.mxu0 0.0
        %3966 = vmatpush1.msra.mxu0 %v3920
        %3967 = vmatprep.subr.mxu0 0.0
        %3968 = vmatpush1.msra.mxu0 %v3921
        %3969 = vmatprep.subr.mxu0 0.0
        %3970 = vmatpush1.msra.mxu0 %v3922
        %3971 = vmatprep.subr.mxu0 0.0
        %3972 = vmatpush1.msra.mxu0 %v3923
        %3973 = vmatprep.subr.mxu0 0.0
        %3974 = vmatpush1.msra.mxu0 %v3924
        %3975 = vmatprep.subr.mxu0 0.0
        %3976 = vmatpush1.msra.mxu0 %v3925
        %3977 = vmatprep.subr.mxu0 0.0
        %3978 = vmatpush1.msra.mxu0 %v3926
        %3979 = vmatprep.subr.mxu0 0.0
        %3980 = vmatpush1.msra.mxu0 %v3927
        %3981 = vmatprep.subr.mxu0 0.0
        %3982 = vmatpush1.msra.mxu0 %v3928
        %3983 = vmatprep.subr.mxu0 0.0
        %3984 = vmatpush1.msra.mxu0 %v3929
        %3985 = vmatprep.subr.mxu0 0.0
        %3986 = vmatpush1.msra.mxu0 %v3930
        %3987 = vmatprep.subr.mxu0 0.0
        %3988 = vmatpush1.msra.mxu0 %v3931
        %3989 = vmatprep.subr.mxu0 0.0
        %3990 = vmatpush1.msra.mxu0 %v3932
        %3991 = vmatprep.subr.mxu0 0.0
        %3992 = vmatpush1.msra.mxu0 %v3933
        %3993 = vmatprep.subr.mxu0 0.0
        %3994 = vmatpush1.msra.mxu0 %v3934
        %3995 = vmatprep.subr.mxu0 0.0
        %3996 = vmatpush1.msra.mxu0 %v3935
        %3997 = vmatprep.subr.mxu0 0.0
        %3998 = vmatpush1.msra.mxu0 %v3936
        %3999 = vmatprep.subr.mxu0 0.0
        %4000 = vmatpush1.msra.mxu0 %v3937
        %4001 = vmatprep.subr.mxu0 0.0
        %4002 = vmatpush1.msra.mxu0 %v3938
        %4003 = vmatprep.subr.mxu0 0.0
        %4004 = vmatpush1.msra.mxu0 %v3939
        %4005 = vmatprep.subr.mxu0 0.0
        %4006 = vmatpush1.msra.mxu0 %v3940
        %4007 = vmatprep.subr.mxu0 0.0
        %4008 = vmatpush1.msra.mxu0 %v3941
        %4009 = vmatprep.subr.mxu0 0.0
        %4010 = vmatpush1.msra.mxu0 %v3942
        %4011 = vmatprep.subr.mxu0 0.0
        %4012 = vmatpush1.msra.mxu0 %v3943
        %4013 = vmatprep.subr.mxu0 0.0
        %4014 = vmatpush1.msra.mxu0 %v3944
        %4015 = vmatprep.subr.mxu0 0.0
        %4016 = vmatpush1.msra.mxu0 %v3945
        %4017 = vmatprep.subr.mxu0 0.0
        %4018 = vmatpush1.msra.mxu0 %v3946
        %4019 = vmatprep.mubr.f32.mxu0 %v3913
        %4020 = vmatmul.mubr.f32.gmra.mrb[0].mxu0 %v3912
        %v4021 = vpop.f32.mrb[0].mxu0
        %v4022 = vadd.f32 %v3953, %v4021
        %v4023 = vpop.f32.mrb[0].mxu0
        %4024 = vdwg.mxu0
        %v4025 = vadd.f32 %v3794, %v4022
        %4026 = vadd.xlane.f32.xlu0 %v4025
        %v4027 = vpop.xlane.xlu0 %4026
        %v4028 = vmul.f32 %v4027, %v2653
        %v4029 = vsub.f32 %v4025, %v4028
        %v4030 = vmul.f32 %v4029, %v4029
        %4031 = vadd.xlane.f32.xlu0 %v4030
        %v4032 = vpop.xlane.xlu0 %4031
        %v4033 = vmul.f32 %v4032, %v2653
        %v4034 = vadd.f32 %v4033, 1e-05
        %v4035 = vrsqrt.pop %v4034
        %v4036 = vmul.f32 %v4029, %v4035
        %v4037 = vlaneseq
        %v4038 = vshrl.u32 %v4037, 7
        %v4039 = vsub.s32 2, %v4038
        %v4040 = vrot.slane %v2944, %v4039
        %v4041 = vmul.f32 %v4036, %v4040
        %v4042 = vlaneseq
        %v4043 = vshrl.u32 %v4042, 7
        %v4044 = vsub.s32 2, %v4043
        %v4045 = vrot.slane %v2946, %v4044
        %v4046 = vadd.f32 %v4041, %v4045
        %s4047 = scalar_lea.vmem %s16, 8
        %v4048 = vld [vmem:[%s4047] sm:$0x7]
        %s4049 = scalar_lea.vmem %s17, 8
        %v4050 = vld [vmem:[%s4049] sm:$0x7]
        %s4051 = scalar_lea.vmem [#allocation7], 768
        %v4052 = vld [vmem:[%s4051] sm:$0xff]
        %v4053 = vld [vmem:[%s4051 + $0x8] sm:$0xff]
        %v4054 = vld [vmem:[%s4051 + $0x10] sm:$0xff]
        %v4055 = vld [vmem:[%s4051 + $0x18] sm:$0xff]
        %v4056 = vld [vmem:[%s4051 + $0x20] sm:$0xff]
        %v4057 = vld [vmem:[%s4051 + $0x28] sm:$0xff]
        %v4058 = vld [vmem:[%s4051 + $0x30] sm:$0xff]
        %v4059 = vld [vmem:[%s4051 + $0x38] sm:$0xff]
        %v4060 = vld [vmem:[%s4051 + $0x40] sm:$0xff]
        %v4061 = vld [vmem:[%s4051 + $0x48] sm:$0xff]
        %v4062 = vld [vmem:[%s4051 + $0x50] sm:$0xff]
        %v4063 = vld [vmem:[%s4051 + $0x58] sm:$0xff]
        %v4064 = vld [vmem:[%s4051 + $0x60] sm:$0xff]
        %v4065 = vld [vmem:[%s4051 + $0x68] sm:$0xff]
        %v4066 = vld [vmem:[%s4051 + $0x70] sm:$0xff]
        %v4067 = vld [vmem:[%s4051 + $0x78] sm:$0xff]
        %v4068 = vld [vmem:[%s4051 + $0x80] sm:$0xff]
        %v4069 = vld [vmem:[%s4051 + $0x88] sm:$0xff]
        %v4070 = vld [vmem:[%s4051 + $0x90] sm:$0xff]
        %v4071 = vld [vmem:[%s4051 + $0x98] sm:$0xff]
        %v4072 = vld [vmem:[%s4051 + $0xa0] sm:$0xff]
        %v4073 = vld [vmem:[%s4051 + $0xa8] sm:$0xff]
        %v4074 = vld [vmem:[%s4051 + $0xb0] sm:$0xff]
        %v4075 = vld [vmem:[%s4051 + $0xb8] sm:$0xff]
        %v4076 = vld [vmem:[%s4051 + $0xc0] sm:$0xff]
        %v4077 = vld [vmem:[%s4051 + $0xc8] sm:$0xff]
        %v4078 = vld [vmem:[%s4051 + $0xd0] sm:$0xff]
        %v4079 = vld [vmem:[%s4051 + $0xd8] sm:$0xff]
        %v4080 = vld [vmem:[%s4051 + $0xe0] sm:$0xff]
        %v4081 = vld [vmem:[%s4051 + $0xe8] sm:$0xff]
        %v4082 = vld [vmem:[%s4051 + $0xf0] sm:$0xff]
        %v4083 = vld [vmem:[%s4051 + $0xf8] sm:$0xff]
        %v4084 = vld [vmem:[%s4051 + $0x100] sm:$0xff]
        %v4085 = vld [vmem:[%s4051 + $0x108] sm:$0xff]
        %v4086 = vld [vmem:[%s4051 + $0x110] sm:$0xff]
        %v4087 = vld [vmem:[%s4051 + $0x118] sm:$0xff]
        %v4088 = vld [vmem:[%s4051 + $0x120] sm:$0xff]
        %v4089 = vld [vmem:[%s4051 + $0x128] sm:$0xff]
        %v4090 = vld [vmem:[%s4051 + $0x130] sm:$0xff]
        %v4091 = vld [vmem:[%s4051 + $0x138] sm:$0xff]
        %v4092 = vld [vmem:[%s4051 + $0x140] sm:$0xff]
        %v4093 = vld [vmem:[%s4051 + $0x148] sm:$0xff]
        %v4094 = vld [vmem:[%s4051 + $0x150] sm:$0xff]
        %v4095 = vld [vmem:[%s4051 + $0x158] sm:$0xff]
        %v4096 = vld [vmem:[%s4051 + $0x160] sm:$0xff]
        %v4097 = vld [vmem:[%s4051 + $0x168] sm:$0xff]
        %v4098 = vld [vmem:[%s4051 + $0x170] sm:$0xff]
        %v4099 = vld [vmem:[%s4051 + $0x178] sm:$0xff]
        %s4100 = scalar_lea.vmem %s9, 6
        %v4101 = vld [vmem:[%s4100] sm:$0x7]
        %s4102 = scalar_lea.vmem [#allocation8], 256
        %v4103 = vld [vmem:[%s4102] sm:$0xff]
        %v4104 = vld [vmem:[%s4102 + $0x8] sm:$0xff]
        %v4105 = vld [vmem:[%s4102 + $0x10] sm:$0xff]
        %v4106 = vld [vmem:[%s4102 + $0x18] sm:$0xff]
        %v4107 = vld [vmem:[%s4102 + $0x20] sm:$0xff]
        %v4108 = vld [vmem:[%s4102 + $0x28] sm:$0xff]
        %v4109 = vld [vmem:[%s4102 + $0x30] sm:$0xff]
        %v4110 = vld [vmem:[%s4102 + $0x38] sm:$0xff]
        %v4111 = vld [vmem:[%s4102 + $0x40] sm:$0xff]
        %v4112 = vld [vmem:[%s4102 + $0x48] sm:$0xff]
        %v4113 = vld [vmem:[%s4102 + $0x50] sm:$0xff]
        %v4114 = vld [vmem:[%s4102 + $0x58] sm:$0xff]
        %v4115 = vld [vmem:[%s4102 + $0x60] sm:$0xff]
        %v4116 = vld [vmem:[%s4102 + $0x68] sm:$0xff]
        %v4117 = vld [vmem:[%s4102 + $0x70] sm:$0xff]
        %v4118 = vld [vmem:[%s4102 + $0x78] sm:$0xff]
        %s4119 = scalar_lea.vmem [#allocation10], 2
        %v4120 = vld [vmem:[%s4119] sm:$0x1]
        %v4122 = vlaneseq
        %v4123 = vshrl.u32 %v4122, 7
        %v4124 = vsub.s32 0, %v4123
        %v4125 = vrot.slane %v4101, %v4124
        %v4126 = vlaneseq
        %v4127 = vshrl.u32 %v4126, 7
        %v4128 = vsub.s32 1, %v4127
        %v4129 = vrot.slane %v4101, %v4128
        %v4130 = vlaneseq
        %v4131 = vshrl.u32 %v4130, 7
        %v4132 = vsub.s32 2, %v4131
        %v4133 = vrot.slane %v4101, %v4132
        %4137 = vmatprep.subr.mxu0 %v4053
        %4138 = vmatpush1.msra.mxu0 %v4052
        %4139 = vmatprep.subr.mxu0 %v4056
        %4140 = vmatpush1.msra.mxu0 %v4055
        %4141 = vmatprep.subr.mxu0 %v4059
        %4142 = vmatpush1.msra.mxu0 %v4058
        %4143 = vmatprep.subr.mxu0 %v4062
        %4144 = vmatpush1.msra.mxu0 %v4061
        %4145 = vmatprep.subr.mxu0 %v4065
        %4146 = vmatpush1.msra.mxu0 %v4064
        %4147 = vmatprep.subr.mxu0 %v4068
        %4148 = vmatpush1.msra.mxu0 %v4067
        %4149 = vmatprep.subr.mxu0 %v4071
        %4150 = vmatpush1.msra.mxu0 %v4070
        %4151 = vmatprep.subr.mxu0 %v4074
        %4152 = vmatpush1.msra.mxu0 %v4073
        %4153 = vmatprep.subr.mxu0 %v4077
        %4154 = vmatpush1.msra.mxu0 %v4076
        %4155 = vmatprep.subr.mxu0 %v4080
        %4156 = vmatpush1.msra.mxu0 %v4079
        %4157 = vmatprep.subr.mxu0 %v4083
        %4158 = vmatpush1.msra.mxu0 %v4082
        %4159 = vmatprep.subr.mxu0 %v4086
        %4160 = vmatpush1.msra.mxu0 %v4085
        %4161 = vmatprep.subr.mxu0 %v4089
        %4162 = vmatpush1.msra.mxu0 %v4088
        %4163 = vmatprep.subr.mxu0 %v4092
        %4164 = vmatpush1.msra.mxu0 %v4091
        %4165 = vmatprep.subr.mxu0 %v4095
        %4166 = vmatpush1.msra.mxu0 %v4094
        %4167 = vmatprep.subr.mxu0 %v4098
        %4168 = vmatpush1.msra.mxu0 %v4097
        %4169 = vmatprep.subr.mxu0 0.0
        %4170 = vmatpush1.msra.mxu0 0.0
        %4171 = vmatprep.subr.mxu0 0.0
        %4172 = vmatpush1.msra.mxu0 0.0
        %4173 = vmatprep.subr.mxu0 0.0
        %4174 = vmatpush1.msra.mxu0 0.0
        %4175 = vmatprep.subr.mxu0 0.0
        %4176 = vmatpush1.msra.mxu0 0.0
        %4177 = vmatprep.subr.mxu0 0.0
        %4178 = vmatpush1.msra.mxu0 0.0
        %4179 = vmatprep.subr.mxu0 0.0
        %4180 = vmatpush1.msra.mxu0 0.0
        %4181 = vmatprep.subr.mxu0 0.0
        %4182 = vmatpush1.msra.mxu0 0.0
        %4183 = vmatprep.subr.mxu0 0.0
        %4184 = vmatpush1.msra.mxu0 0.0
        %4185 = vmatprep.subr.mxu0 0.0
        %4186 = vmatpush1.msra.mxu0 0.0
        %4187 = vmatprep.subr.mxu0 0.0
        %4188 = vmatpush1.msra.mxu0 0.0
        %4189 = vmatprep.subr.mxu0 0.0
        %4190 = vmatpush1.msra.mxu0 0.0
        %4191 = vmatprep.subr.mxu0 0.0
        %4192 = vmatpush1.msra.mxu0 0.0
        %4193 = vmatprep.subr.mxu0 0.0
        %4194 = vmatpush1.msra.mxu0 0.0
        %4195 = vmatprep.subr.mxu0 0.0
        %4196 = vmatpush1.msra.mxu0 0.0
        %4197 = vmatprep.subr.mxu0 0.0
        %4198 = vmatpush1.msra.mxu0 0.0
        %4199 = vmatprep.subr.mxu0 0.0
        %4200 = vmatpush1.msra.mxu0 0.0
        %4201 = vmatprep.mubr.f32.mxu0 0.0
        %4202 = vmatmul.mubr.f32.gmra.mrb[0].mxu0 %v4046
        %v4203 = vpop.f32.mrb[0].mxu0
        %v4204 = vadd.f32 %v4125, %v4203
        %v4205 = vpop.f32.mrb[0].mxu0
        %v4206 = vadd.f32 %v4129, %v4205
        %4207 = vdwg.mxu0
        %4208 = vmatprep.subr.mxu0 0.0
        %4209 = vmatpush1.msra.mxu0 %v4054
        %4210 = vmatprep.subr.mxu0 0.0
        %4211 = vmatpush1.msra.mxu0 %v4057
        %4212 = vmatprep.subr.mxu0 0.0
        %4213 = vmatpush1.msra.mxu0 %v4060
        %4214 = vmatprep.subr.mxu0 0.0
        %4215 = vmatpush1.msra.mxu0 %v4063
        %4216 = vmatprep.subr.mxu0 0.0
        %4217 = vmatpush1.msra.mxu0 %v4066
        %4218 = vmatprep.subr.mxu0 0.0
        %4219 = vmatpush1.msra.mxu0 %v4069
        %4220 = vmatprep.subr.mxu0 0.0
        %4221 = vmatpush1.msra.mxu0 %v4072
        %4222 = vmatprep.subr.mxu0 0.0
        %4223 = vmatpush1.msra.mxu0 %v4075
        %4224 = vmatprep.subr.mxu0 0.0
        %4225 = vmatpush1.msra.mxu0 %v4078
        %4226 = vmatprep.subr.mxu0 0.0
        %4227 = vmatpush1.msra.mxu0 %v4081
        %4228 = vmatprep.subr.mxu0 0.0
        %4229 = vmatpush1.msra.mxu0 %v4084
        %4230 = vmatprep.subr.mxu0 0.0
        %4231 = vmatpush1.msra.mxu0 %v4087
        %4232 = vmatprep.subr.mxu0 0.0
        %4233 = vmatpush1.msra.mxu0 %v4090
        %4234 = vmatprep.subr.mxu0 0.0
        %4235 = vmatpush1.msra.mxu0 %v4093
        %4236 = vmatprep.subr.mxu0 0.0
        %4237 = vmatpush1.msra.mxu0 %v4096
        %4238 = vmatprep.subr.mxu0 0.0
        %4239 = vmatpush1.msra.mxu0 %v4099
        %4240 = vmatprep.subr.mxu0 0.0
        %4241 = vmatpush1.msra.mxu0 0.0
        %4242 = vmatprep.subr.mxu0 0.0
        %4243 = vmatpush1.msra.mxu0 0.0
        %4244 = vmatprep.subr.mxu0 0.0
        %4245 = vmatpush1.msra.mxu0 0.0
        %4246 = vmatprep.subr.mxu0 0.0
        %4247 = vmatpush1.msra.mxu0 0.0
        %4248 = vmatprep.subr.mxu0 0.0
        %4249 = vmatpush1.msra.mxu0 0.0
        %4250 = vmatprep.subr.mxu0 0.0
        %4251 = vmatpush1.msra.mxu0 0.0
        %4252 = vmatprep.subr.mxu0 0.0
        %4253 = vmatpush1.msra.mxu0 0.0
        %4254 = vmatprep.subr.mxu0 0.0
        %4255 = vmatpush1.msra.mxu0 0.0
        %4256 = vmatprep.subr.mxu0 0.0
        %4257 = vmatpush1.msra.mxu0 0.0
        %4258 = vmatprep.subr.mxu0 0.0
        %4259 = vmatpush1.msra.mxu0 0.0
        %4260 = vmatprep.subr.mxu0 0.0
        %4261 = vmatpush1.msra.mxu0 0.0
        %4262 = vmatprep.subr.mxu0 0.0
        %4263 = vmatpush1.msra.mxu0 0.0
        %4264 = vmatprep.subr.mxu0 0.0
        %4265 = vmatpush1.msra.mxu0 0.0
        %4266 = vmatprep.subr.mxu0 0.0
        %4267 = vmatpush1.msra.mxu0 0.0
        %4268 = vmatprep.subr.mxu0 0.0
        %4269 = vmatpush1.msra.mxu0 0.0
        %4270 = vmatprep.subr.mxu0 0.0
        %4271 = vmatpush1.msra.mxu0 0.0
        %4272 = vmatprep.mubr.f32.mxu0 0.0
        %4273 = vmatmul.mubr.f32.gmra.mrb[0].mxu0 %v4046
        %v4274 = vpop.f32.mrb[0].mxu0
        %v4275 = vadd.f32 %v4133, %v4274
        %v4276 = vpop.f32.mrb[0].mxu0
        %4277 = vdwg.mxu0
        %v4278 = vmul.f32 %v4204, 0.35355338
        %v4280 = vcombine.high %v4278, %v4278
        %v4282 = vunpack.c.l.s4 1966171168
        %v4283 = vunpack.c.0.s8 %v4282
        %v4284 = vlaneseq
        %v4285 = vshrl.u32 %v4284, 7
        %v4286 = vsub.s32 %v4283, %v4285
        %v4287 = vrot.slane %v4278, %v4286
        %v4289 = vunpack.c.l.s4 1966171168
        %v4290 = vunpack.c.0.s8 %v4289
        %v4291 = vlaneseq
        %v4292 = vshrl.u32 %v4291, 7
        %v4293 = vsub.s32 %v4290, %v4292
        %v4294 = vrot.slane %v4280, %v4293
        %v4295 = vcombine.high %v4287, %v4287
        %v4296 = vcombine.high %v4294, %v4294
        %v4298 = vunpack.c.l.s4 1966171168
        %v4299 = vunpack.c.0.s8 %v4298
        %v4300 = vlaneseq
        %v4301 = vshrl.u32 %v4300, 7
        %v4302 = vsub.s32 %v4299, %v4301
        %v4303 = vrot.slane %v4287, %v4302
        %v4305 = vunpack.c.l.s4 1966171168
        %v4306 = vunpack.c.0.s8 %v4305
        %v4307 = vlaneseq
        %v4308 = vshrl.u32 %v4307, 7
        %v4309 = vsub.s32 %v4306, %v4308
        %v4310 = vrot.slane %v4294, %v4309
        %v4312 = vunpack.c.l.s4 1966171168
        %v4313 = vunpack.c.0.s8 %v4312
        %v4314 = vlaneseq
        %v4315 = vshrl.u32 %v4314, 7
        %v4316 = vsub.s32 %v4313, %v4315
        %v4317 = vrot.slane %v4295, %v4316
        %v4319 = vunpack.c.l.s4 1966171168
        %v4320 = vunpack.c.0.s8 %v4319
        %v4321 = vlaneseq
        %v4322 = vshrl.u32 %v4321, 7
        %v4323 = vsub.s32 %v4320, %v4322
        %v4324 = vrot.slane %v4296, %v4323
        %v4325 = vcombine.high %v4303, %v4303
        %v4326 = vcombine.high %v4310, %v4310
        %v4327 = vcombine.high %v4317, %v4317
        %v4328 = vcombine.high %v4324, %v4324
        %v4329 = vlaneseq
        %v4330 = vshrl.u32 %v4329, 7
        %v4331 = vsub.s32 0, %v4330
        %v4332 = vrot.slane %v4303, %v4331
        %v4333 = vlaneseq
        %v4334 = vshrl.u32 %v4333, 7
        %v4335 = vsub.s32 0, %v4334
        %v4336 = vrot.slane %v4317, %v4335
        %v4337 = vlaneseq
        %v4338 = vshrl.u32 %v4337, 7
        %v4339 = vsub.s32 0, %v4338
        %v4340 = vrot.slane %v4325, %v4339
        %v4341 = vlaneseq
        %v4342 = vshrl.u32 %v4341, 7
        %v4343 = vsub.s32 0, %v4342
        %v4344 = vrot.slane %v4327, %v4343
        %v4345 = vlaneseq
        %v4346 = vshrl.u32 %v4345, 7
        %v4347 = vsub.s32 0, %v4346
        %v4348 = vrot.slane %v4310, %v4347
        %v4349 = vlaneseq
        %v4350 = vshrl.u32 %v4349, 7
        %v4351 = vsub.s32 0, %v4350
        %v4352 = vrot.slane %v4324, %v4351
        %v4353 = vlaneseq
        %v4354 = vshrl.u32 %v4353, 7
        %v4355 = vsub.s32 0, %v4354
        %v4356 = vrot.slane %v4326, %v4355
        %v4357 = vlaneseq
        %v4358 = vshrl.u32 %v4357, 7
        %v4359 = vsub.s32 0, %v4358
        %v4360 = vrot.slane %v4328, %v4359
        %v4369 = vmul.f32 %v4332, %v4206
        %v4370 = vmul.f32 %v4336, %v4206
        %v4371 = vmul.f32 %v4340, %v4206
        %v4372 = vmul.f32 %v4344, %v4206
        %v4373 = vmul.f32 %v4348, %v4206
        %v4374 = vmul.f32 %v4352, %v4206
        %v4375 = vmul.f32 %v4356, %v4206
        %v4376 = vmul.f32 %v4360, %v4206
        %4377 = vmatprep.subr.mxu0 0.0
        %4378 = vmatpush1.msra.mxu0 %v827
        %4379 = vmatprep.subr.mxu0 0.0
        %4380 = vmatpush1.msra.mxu0 %v828
        %4381 = vmatprep.subr.mxu0 0.0
        %4382 = vmatpush1.msra.mxu0 %v829
        %4383 = vmatprep.subr.mxu0 0.0
        %4384 = vmatpush1.msra.mxu0 %v830
        %4385 = vmatprep.subr.mxu0 0.0
        %4386 = vmatpush1.msra.mxu0 %v831
        %4387 = vmatprep.subr.mxu0 0.0
        %4388 = vmatpush1.msra.mxu0 %v832
        %4389 = vmatprep.subr.mxu0 0.0
        %4390 = vmatpush1.msra.mxu0 %v833
        %4391 = vmatprep.subr.mxu0 0.0
        %4392 = vmatpush1.msra.mxu0 %v834
        %4393 = vmatprep.subr.mxu0 0.0
        %4394 = vmatpush1.msra.mxu0 %v835
        %4395 = vmatprep.subr.mxu0 0.0
        %4396 = vmatpush1.msra.mxu0 %v836
        %4397 = vmatprep.subr.mxu0 0.0
        %4398 = vmatpush1.msra.mxu0 %v837
        %4399 = vmatprep.subr.mxu0 0.0
        %4400 = vmatpush1.msra.mxu0 %v838
        %4401 = vmatprep.subr.mxu0 0.0
        %4402 = vmatpush1.msra.mxu0 %v839
        %4403 = vmatprep.subr.mxu0 0.0
        %4404 = vmatpush1.msra.mxu0 %v840
        %4405 = vmatprep.subr.mxu0 0.0
        %4406 = vmatpush1.msra.mxu0 %v841
        %4407 = vmatprep.subr.mxu0 0.0
        %4408 = vmatpush1.msra.mxu0 %v842
        %4409 = vmatprep.subr.mxu0 0.0
        %4410 = vmatpush1.msra.mxu0 0.0
        %4411 = vmatprep.subr.mxu0 0.0
        %4412 = vmatpush1.msra.mxu0 0.0
        %4413 = vmatprep.subr.mxu0 0.0
        %4414 = vmatpush1.msra.mxu0 0.0
        %4415 = vmatprep.subr.mxu0 0.0
        %4416 = vmatpush1.msra.mxu0 0.0
        %4417 = vmatprep.subr.mxu0 0.0
        %4418 = vmatpush1.msra.mxu0 0.0
        %4419 = vmatprep.subr.mxu0 0.0
        %4420 = vmatpush1.msra.mxu0 0.0
        %4421 = vmatprep.subr.mxu0 0.0
        %4422 = vmatpush1.msra.mxu0 0.0
        %4423 = vmatprep.subr.mxu0 0.0
        %4424 = vmatpush1.msra.mxu0 0.0
        %4425 = vmatprep.subr.mxu0 0.0
        %4426 = vmatpush1.msra.mxu0 0.0
        %4427 = vmatprep.subr.mxu0 0.0
        %4428 = vmatpush1.msra.mxu0 0.0
        %4429 = vmatprep.subr.mxu0 0.0
        %4430 = vmatpush1.msra.mxu0 0.0
        %4431 = vmatprep.subr.mxu0 0.0
        %4432 = vmatpush1.msra.mxu0 0.0
        %4433 = vmatprep.subr.mxu0 0.0
        %4434 = vmatpush1.msra.mxu0 0.0
        %4435 = vmatprep.subr.mxu0 0.0
        %4436 = vmatpush1.msra.mxu0 0.0
        %4437 = vmatprep.subr.mxu0 0.0
        %4438 = vmatpush1.msra.mxu0 0.0
        %4439 = vmatprep.subr.mxu0 0.0
        %4440 = vmatpush1.msra.mxu0 0.0
        %4441 = vmatprep.mubr.f32.mxu0 0.0
        %4442 = vmatmul.mubr.f32.gmra.mrb[0].mxu0 %v4369
        %v4443 = vpop.f32.mrb[0].mxu0
        %v4444 = vadd.f32 0.0, %v4443
        %v4445 = vpop.f32.mrb[0].mxu0
        %4446 = vmatprep.mubr.f32.mxu0 0.0
        %4447 = vmatmul.mubr.f32.gmra.mrb[0].mxu0 %v4370
        %v4448 = vpop.f32.mrb[0].mxu0
        %v4449 = vadd.f32 0.0, %v4448
        %v4450 = vpop.f32.mrb[0].mxu0
        %4451 = vmatprep.mubr.f32.mxu0 0.0
        %4452 = vmatmul.mubr.f32.gmra.mrb[0].mxu0 %v4371
        %v4453 = vpop.f32.mrb[0].mxu0
        %v4454 = vadd.f32 0.0, %v4453
        %v4455 = vpop.f32.mrb[0].mxu0
        %4456 = vmatprep.mubr.f32.mxu0 0.0
        %4457 = vmatmul.mubr.f32.gmra.mrb[0].mxu0 %v4372
        %v4458 = vpop.f32.mrb[0].mxu0
        %v4459 = vadd.f32 0.0, %v4458
        %v4460 = vpop.f32.mrb[0].mxu0
        %4461 = vmatprep.mubr.f32.mxu0 0.0
        %4462 = vmatmul.mubr.f32.gmra.mrb[0].mxu0 %v4373
        %v4463 = vpop.f32.mrb[0].mxu0
        %v4464 = vadd.f32 0.0, %v4463
        %v4465 = vpop.f32.mrb[0].mxu0
        %4466 = vmatprep.mubr.f32.mxu0 0.0
        %4467 = vmatmul.mubr.f32.gmra.mrb[0].mxu0 %v4374
        %v4468 = vpop.f32.mrb[0].mxu0
        %v4469 = vadd.f32 0.0, %v4468
        %v4470 = vpop.f32.mrb[0].mxu0
        %4471 = vmatprep.mubr.f32.mxu0 0.0
        %4472 = vmatmul.mubr.f32.gmra.mrb[0].mxu0 %v4375
        %v4473 = vpop.f32.mrb[0].mxu0
        %v4474 = vadd.f32 0.0, %v4473
        %v4475 = vpop.f32.mrb[0].mxu0
        %4476 = vmatprep.mubr.f32.mxu0 0.0
        %4477 = vmatmul.mubr.f32.gmra.mrb[0].mxu0 %v4376
        %v4478 = vpop.f32.mrb[0].mxu0
        %v4479 = vadd.f32 0.0, %v4478
        %v4480 = vpop.f32.mrb[0].mxu0
        %4481 = vdwg.mxu0
        %v4482 = vsel %vm2269, -1e+20, %v4444
        %v4483 = vsel %vm2270, -1e+20, %v4449
        %v4484 = vsel %vm2271, -1e+20, %v4454
        %v4485 = vsel %vm2272, -1e+20, %v4459
        %v4486 = vsel %vm2273, -1e+20, %v4464
        %v4487 = vsel %vm2274, -1e+20, %v4469
        %v4488 = vsel %vm2275, -1e+20, %v4474
        %v4489 = vsel %vm2276, -1e+20, %v4479
        %v4490 = vsel %vm1427, %v4482, -inf
        %4491 = vmax.xlane.f32.xlu0 %v4490
        %v4492 = vpop.xlane.xlu0 %4491
        %v4493 = vsel %vm1427, %v4483, -inf
        %4494 = vmax.xlane.f32.xlu0 %v4493
        %v4495 = vpop.xlane.xlu0 %4494
        %v4496 = vsel %vm1427, %v4484, -inf
        %4497 = vmax.xlane.f32.xlu0 %v4496
        %v4498 = vpop.xlane.xlu0 %4497
        %v4499 = vsel %vm1427, %v4485, -inf
        %4500 = vmax.xlane.f32.xlu0 %v4499
        %v4501 = vpop.xlane.xlu0 %4500
        %v4502 = vsel %vm1427, %v4486, -inf
        %4503 = vmax.xlane.f32.xlu0 %v4502
        %v4504 = vpop.xlane.xlu0 %4503
        %v4505 = vsel %vm1427, %v4487, -inf
        %4506 = vmax.xlane.f32.xlu0 %v4505
        %v4507 = vpop.xlane.xlu0 %4506
        %v4508 = vsel %vm1427, %v4488, -inf
        %4509 = vmax.xlane.f32.xlu0 %v4508
        %v4510 = vpop.xlane.xlu0 %4509
        %v4511 = vsel %vm1427, %v4489, -inf
        %4512 = vmax.xlane.f32.xlu0 %v4511
        %v4513 = vpop.xlane.xlu0 %4512
        %v4514 = vsub.f32 %v4482, %v4492
        %v4515 = vsub.f32 %v4483, %v4495
        %v4516 = vsub.f32 %v4484, %v4498
        %v4517 = vsub.f32 %v4485, %v4501
        %v4518 = vsub.f32 %v4486, %v4504
        %v4519 = vsub.f32 %v4487, %v4507
        %v4520 = vsub.f32 %v4488, %v4510
        %v4521 = vsub.f32 %v4489, %v4513
        %v4522 = vmul.f32 %v4514, 1.442695
        %v4523 = vpow.pop %v4522
        %v4524 = vmul.f32 %v4515, 1.442695
        %v4525 = vpow.pop %v4524
        %v4526 = vmul.f32 %v4516, 1.442695
        %v4527 = vpow.pop %v4526
        %v4528 = vmul.f32 %v4517, 1.442695
        %v4529 = vpow.pop %v4528
        %v4530 = vmul.f32 %v4518, 1.442695
        %v4531 = vpow.pop %v4530
        %v4532 = vmul.f32 %v4519, 1.442695
        %v4533 = vpow.pop %v4532
        %v4534 = vmul.f32 %v4520, 1.442695
        %v4535 = vpow.pop %v4534
        %v4536 = vmul.f32 %v4521, 1.442695
        %v4537 = vpow.pop %v4536
        %v4538 = vsel %vm1427, %v4523, 0.0
        %4539 = vadd.xlane.f32.xlu0 %v4538
        %v4540 = vpop.xlane.xlu0 %4539
        %v4541 = vsel %vm1427, %v4525, 0.0
        %4542 = vadd.xlane.f32.xlu0 %v4541
        %v4543 = vpop.xlane.xlu0 %4542
        %v4544 = vsel %vm1427, %v4527, 0.0
        %4545 = vadd.xlane.f32.xlu0 %v4544
        %v4546 = vpop.xlane.xlu0 %4545
        %v4547 = vsel %vm1427, %v4529, 0.0
        %4548 = vadd.xlane.f32.xlu0 %v4547
        %v4549 = vpop.xlane.xlu0 %4548
        %v4550 = vsel %vm1427, %v4531, 0.0
        %4551 = vadd.xlane.f32.xlu0 %v4550
        %v4552 = vpop.xlane.xlu0 %4551
        %v4553 = vsel %vm1427, %v4533, 0.0
        %4554 = vadd.xlane.f32.xlu0 %v4553
        %v4555 = vpop.xlane.xlu0 %4554
        %v4556 = vsel %vm1427, %v4535, 0.0
        %4557 = vadd.xlane.f32.xlu0 %v4556
        %v4558 = vpop.xlane.xlu0 %4557
        %v4559 = vsel %vm1427, %v4537, 0.0
        %4560 = vadd.xlane.f32.xlu0 %v4559
        %v4561 = vpop.xlane.xlu0 %4560
        %v4562 = vrcp.pop %v4540
        %v4563 = vrcp.pop %v4543
        %v4564 = vrcp.pop %v4546
        %v4565 = vrcp.pop %v4549
        %v4566 = vrcp.pop %v4552
        %v4567 = vrcp.pop %v4555
        %v4568 = vrcp.pop %v4558
        %v4569 = vrcp.pop %v4561
        %v4570 = vmul.f32 %v4523, %v4562
        %v4571 = vmul.f32 %v4525, %v4563
        %v4572 = vmul.f32 %v4527, %v4564
        %v4573 = vmul.f32 %v4529, %v4565
        %v4574 = vmul.f32 %v4531, %v4566
        %v4575 = vmul.f32 %v4533, %v4567
        %v4576 = vmul.f32 %v4535, %v4568
        %v4577 = vmul.f32 %v4537, %v4569
        %v4579 = vsel %vm1427, %v4570, 0
        %v4582 = vsel %vm1427, %v4571, 0
        %v4585 = vsel %vm1427, %v4572, 0
        %v4588 = vsel %vm1427, %v4573, 0
        %v4591 = vsel %vm1427, %v4574, 0
        %v4594 = vsel %vm1427, %v4575, 0
        %v4597 = vsel %vm1427, %v4576, 0
        %v4600 = vsel %vm1427, %v4577, 0
        %4602 = vmatprep.subr.mxu0 0.0
        %4603 = vmatpush1.msra.mxu0 %v855
        %4604 = vmatprep.subr.mxu0 0.0
        %4605 = vmatpush1.msra.mxu0 %v856
        %4606 = vmatprep.subr.mxu0 0.0
        %4607 = vmatpush1.msra.mxu0 0.0
        %4608 = vmatprep.subr.mxu0 0.0
        %4609 = vmatpush1.msra.mxu0 0.0
        %4610 = vmatprep.subr.mxu0 0.0
        %4611 = vmatpush1.msra.mxu0 0.0
        %4612 = vmatprep.subr.mxu0 0.0
        %4613 = vmatpush1.msra.mxu0 0.0
        %4614 = vmatprep.subr.mxu0 0.0
        %4615 = vmatpush1.msra.mxu0 0.0
        %4616 = vmatprep.subr.mxu0 0.0
        %4617 = vmatpush1.msra.mxu0 0.0
        %4618 = vmatprep.subr.mxu0 0.0
        %4619 = vmatpush1.msra.mxu0 0.0
        %4620 = vmatprep.subr.mxu0 0.0
        %4621 = vmatpush1.msra.mxu0 0.0
        %4622 = vmatprep.subr.mxu0 0.0
        %4623 = vmatpush1.msra.mxu0 0.0
        %4624 = vmatprep.subr.mxu0 0.0
        %4625 = vmatpush1.msra.mxu0 0.0
        %4626 = vmatprep.subr.mxu0 0.0
        %4627 = vmatpush1.msra.mxu0 0.0
        %4628 = vmatprep.subr.mxu0 0.0
        %4629 = vmatpush1.msra.mxu0 0.0
        %4630 = vmatprep.subr.mxu0 0.0
        %4631 = vmatpush1.msra.mxu0 0.0
        %4632 = vmatprep.subr.mxu0 0.0
        %4633 = vmatpush1.msra.mxu0 0.0
        %4634 = vmatprep.subr.mxu0 0.0
        %4635 = vmatpush1.msra.mxu0 0.0
        %4636 = vmatprep.subr.mxu0 0.0
        %4637 = vmatpush1.msra.mxu0 0.0
        %4638 = vmatprep.subr.mxu0 0.0
        %4639 = vmatpush1.msra.mxu0 0.0
        %4640 = vmatprep.subr.mxu0 0.0
        %4641 = vmatpush1.msra.mxu0 0.0
        %4642 = vmatprep.subr.mxu0 0.0
        %4643 = vmatpush1.msra.mxu0 0.0
        %4644 = vmatprep.subr.mxu0 0.0
        %4645 = vmatpush1.msra.mxu0 0.0
        %4646 = vmatprep.subr.mxu0 0.0
        %4647 = vmatpush1.msra.mxu0 0.0
        %4648 = vmatprep.subr.mxu0 0.0
        %4649 = vmatpush1.msra.mxu0 0.0
        %4650 = vmatprep.subr.mxu0 0.0
        %4651 = vmatpush1.msra.mxu0 0.0
        %4652 = vmatprep.subr.mxu0 0.0
        %4653 = vmatpush1.msra.mxu0 0.0
        %4654 = vmatprep.subr.mxu0 0.0
        %4655 = vmatpush1.msra.mxu0 0.0
        %4656 = vmatprep.subr.mxu0 0.0
        %4657 = vmatpush1.msra.mxu0 0.0
        %4658 = vmatprep.subr.mxu0 0.0
        %4659 = vmatpush1.msra.mxu0 0.0
        %4660 = vmatprep.subr.mxu0 0.0
        %4661 = vmatpush1.msra.mxu0 0.0
        %4662 = vmatprep.subr.mxu0 0.0
        %4663 = vmatpush1.msra.mxu0 0.0
        %4664 = vmatprep.subr.mxu0 0.0
        %4665 = vmatpush1.msra.mxu0 0.0
        %4666 = vmatprep.mubr.f32.mxu0 0.0
        %4667 = vmatmul.mubr.f32.gmra.mrb[0].mxu0 %v4579
        %v4668 = vpop.f32.mrb[0].mxu0
        %v4669 = vadd.f32 0.0, %v4668
        %v4670 = vpop.f32.mrb[0].mxu0
        %4671 = vmatprep.mubr.f32.mxu0 0.0
        %4672 = vmatmul.mubr.f32.gmra.mrb[0].mxu0 %v4582
        %v4673 = vpop.f32.mrb[0].mxu0
        %v4674 = vadd.f32 0.0, %v4673
        %v4675 = vpop.f32.mrb[0].mxu0
        %4676 = vmatprep.mubr.f32.mxu0 0.0
        %4677 = vmatmul.mubr.f32.gmra.mrb[0].mxu0 %v4585
        %v4678 = vpop.f32.mrb[0].mxu0
        %v4679 = vadd.f32 0.0, %v4678
        %v4680 = vpop.f32.mrb[0].mxu0
        %4681 = vmatprep.mubr.f32.mxu0 0.0
        %4682 = vmatmul.mubr.f32.gmra.mrb[0].mxu0 %v4588
        %v4683 = vpop.f32.mrb[0].mxu0
        %v4684 = vadd.f32 0.0, %v4683
        %v4685 = vpop.f32.mrb[0].mxu0
        %4686 = vmatprep.mubr.f32.mxu0 0.0
        %4687 = vmatmul.mubr.f32.gmra.mrb[0].mxu0 %v4591
        %v4688 = vpop.f32.mrb[0].mxu0
        %v4689 = vadd.f32 0.0, %v4688
        %v4690 = vpop.f32.mrb[0].mxu0
        %4691 = vmatprep.mubr.f32.mxu0 0.0
        %4692 = vmatmul.mubr.f32.gmra.mrb[0].mxu0 %v4594
        %v4693 = vpop.f32.mrb[0].mxu0
        %v4694 = vadd.f32 0.0, %v4693
        %v4695 = vpop.f32.mrb[0].mxu0
        %4696 = vmatprep.mubr.f32.mxu0 0.0
        %4697 = vmatmul.mubr.f32.gmra.mrb[0].mxu0 %v4597
        %v4698 = vpop.f32.mrb[0].mxu0
        %v4699 = vadd.f32 0.0, %v4698
        %v4700 = vpop.f32.mrb[0].mxu0
        %4701 = vmatprep.mubr.f32.mxu0 0.0
        %4702 = vmatmul.mubr.f32.gmra.mrb[0].mxu0 %v4600
        %v4703 = vpop.f32.mrb[0].mxu0
        %v4704 = vadd.f32 0.0, %v4703
        %v4705 = vpop.f32.mrb[0].mxu0
        %4706 = vdwg.mxu0
        %v4707 = vmul.f32 %v4669, %v4275
        %v4708 = vmul.f32 %v4674, %v4275
        %v4709 = vmul.f32 %v4679, %v4275
        %v4710 = vmul.f32 %v4684, %v4275
        %v4711 = vmul.f32 %v4689, %v4275
        %v4712 = vmul.f32 %v4694, %v4275
        %v4713 = vmul.f32 %v4699, %v4275
        %v4714 = vmul.f32 %v4704, %v4275
        %v4715 = vrot.slane %v4707, 4
        %v4716 = vadd.f32 %v4707, %v4715
        %v4717 = vrot.slane %v4716, 2
        %v4718 = vadd.f32 %v4716, %v4717
        %v4719 = vrot.slane %v4718, 1
        %v4720 = vadd.f32 %v4718, %v4719
        %v4721 = vrot.slane %v4708, 4
        %v4722 = vadd.f32 %v4708, %v4721
        %v4723 = vrot.slane %v4722, 2
        %v4724 = vadd.f32 %v4722, %v4723
        %v4725 = vrot.slane %v4724, 1
        %v4726 = vadd.f32 %v4724, %v4725
        %v4727 = vrot.slane %v4709, 4
        %v4728 = vadd.f32 %v4709, %v4727
        %v4729 = vrot.slane %v4728, 2
        %v4730 = vadd.f32 %v4728, %v4729
        %v4731 = vrot.slane %v4730, 1
        %v4732 = vadd.f32 %v4730, %v4731
        %v4733 = vrot.slane %v4710, 4
        %v4734 = vadd.f32 %v4710, %v4733
        %v4735 = vrot.slane %v4734, 2
        %v4736 = vadd.f32 %v4734, %v4735
        %v4737 = vrot.slane %v4736, 1
        %v4738 = vadd.f32 %v4736, %v4737
        %v4739 = vrot.slane %v4711, 4
        %v4740 = vadd.f32 %v4711, %v4739
        %v4741 = vrot.slane %v4740, 2
        %v4742 = vadd.f32 %v4740, %v4741
        %v4743 = vrot.slane %v4742, 1
        %v4744 = vadd.f32 %v4742, %v4743
        %v4745 = vrot.slane %v4712, 4
        %v4746 = vadd.f32 %v4712, %v4745
        %v4747 = vrot.slane %v4746, 2
        %v4748 = vadd.f32 %v4746, %v4747
        %v4749 = vrot.slane %v4748, 1
        %v4750 = vadd.f32 %v4748, %v4749
        %v4751 = vrot.slane %v4713, 4
        %v4752 = vadd.f32 %v4713, %v4751
        %v4753 = vrot.slane %v4752, 2
        %v4754 = vadd.f32 %v4752, %v4753
        %v4755 = vrot.slane %v4754, 1
        %v4756 = vadd.f32 %v4754, %v4755
        %v4757 = vrot.slane %v4714, 4
        %v4758 = vadd.f32 %v4714, %v4757
        %v4759 = vrot.slane %v4758, 2
        %v4760 = vadd.f32 %v4758, %v4759
        %v4761 = vrot.slane %v4760, 1
        %v4762 = vadd.f32 %v4760, %v4761
        %v4764 = vlaneseq
        %v4765 = vshrl.u32 %v4764, 7
        %v4766 = vsub.s32 0, %v4765
        %v4767 = vrot.slane %v4120, %v4766
        %v4777 = vsel %vm1715, %v4726, %v4720
        %v4778 = vsel %vm1717, %v4732, %v4777
        %v4779 = vsel %vm1719, %v4738, %v4778
        %v4780 = vsel %vm1721, %v4744, %v4779
        %v4781 = vsel %vm1723, %v4750, %v4780
        %v4782 = vsel %vm1725, %v4756, %v4781
        %v4783 = vsel %vm1727, %v4762, %v4782
        %4785 = vmatprep.subr.mxu0 0.0
        %4786 = vmatpush1.msra.mxu0 %v4103
        %4787 = vmatprep.subr.mxu0 0.0
        %4788 = vmatpush1.msra.mxu0 %v4104
        %4789 = vmatprep.subr.mxu0 0.0
        %4790 = vmatpush1.msra.mxu0 %v4105
        %4791 = vmatprep.subr.mxu0 0.0
        %4792 = vmatpush1.msra.mxu0 %v4106
        %4793 = vmatprep.subr.mxu0 0.0
        %4794 = vmatpush1.msra.mxu0 %v4107
        %4795 = vmatprep.subr.mxu0 0.0
        %4796 = vmatpush1.msra.mxu0 %v4108
        %4797 = vmatprep.subr.mxu0 0.0
        %4798 = vmatpush1.msra.mxu0 %v4109
        %4799 = vmatprep.subr.mxu0 0.0
        %4800 = vmatpush1.msra.mxu0 %v4110
        %4801 = vmatprep.subr.mxu0 0.0
        %4802 = vmatpush1.msra.mxu0 %v4111
        %4803 = vmatprep.subr.mxu0 0.0
        %4804 = vmatpush1.msra.mxu0 %v4112
        %4805 = vmatprep.subr.mxu0 0.0
        %4806 = vmatpush1.msra.mxu0 %v4113
        %4807 = vmatprep.subr.mxu0 0.0
        %4808 = vmatpush1.msra.mxu0 %v4114
        %4809 = vmatprep.subr.mxu0 0.0
        %4810 = vmatpush1.msra.mxu0 %v4115
        %4811 = vmatprep.subr.mxu0 0.0
        %4812 = vmatpush1.msra.mxu0 %v4116
        %4813 = vmatprep.subr.mxu0 0.0
        %4814 = vmatpush1.msra.mxu0 %v4117
        %4815 = vmatprep.subr.mxu0 0.0
        %4816 = vmatpush1.msra.mxu0 %v4118
        %4817 = vmatprep.subr.mxu0 0.0
        %4818 = vmatpush1.msra.mxu0 0.0
        %4819 = vmatprep.subr.mxu0 0.0
        %4820 = vmatpush1.msra.mxu0 0.0
        %4821 = vmatprep.subr.mxu0 0.0
        %4822 = vmatpush1.msra.mxu0 0.0
        %4823 = vmatprep.subr.mxu0 0.0
        %4824 = vmatpush1.msra.mxu0 0.0
        %4825 = vmatprep.subr.mxu0 0.0
        %4826 = vmatpush1.msra.mxu0 0.0
        %4827 = vmatprep.subr.mxu0 0.0
        %4828 = vmatpush1.msra.mxu0 0.0
        %4829 = vmatprep.subr.mxu0 0.0
        %4830 = vmatpush1.msra.mxu0 0.0
        %4831 = vmatprep.subr.mxu0 0.0
        %4832 = vmatpush1.msra.mxu0 0.0
        %4833 = vmatprep.subr.mxu0 0.0
        %4834 = vmatpush1.msra.mxu0 0.0
        %4835 = vmatprep.subr.mxu0 0.0
        %4836 = vmatpush1.msra.mxu0 0.0
        %4837 = vmatprep.subr.mxu0 0.0
        %4838 = vmatpush1.msra.mxu0 0.0
        %4839 = vmatprep.subr.mxu0 0.0
        %4840 = vmatpush1.msra.mxu0 0.0
        %4841 = vmatprep.subr.mxu0 0.0
        %4842 = vmatpush1.msra.mxu0 0.0
        %4843 = vmatprep.subr.mxu0 0.0
        %4844 = vmatpush1.msra.mxu0 0.0
        %4845 = vmatprep.subr.mxu0 0.0
        %4846 = vmatpush1.msra.mxu0 0.0
        %4847 = vmatprep.subr.mxu0 0.0
        %4848 = vmatpush1.msra.mxu0 0.0
        %4849 = vmatprep.mubr.f32.mxu0 0.0
        %4850 = vmatmul.mubr.f32.gmra.mrb[0].mxu0 %v4783
        %v4851 = vpop.f32.mrb[0].mxu0
        %v4852 = vadd.f32 %v4767, %v4851
        %v4853 = vpop.f32.mrb[0].mxu0
        %4854 = vdwg.mxu0
        %v4855 = vadd.f32 %v4046, %v4852
        %4856 = vadd.xlane.f32.xlu0 %v4855
        %v4857 = vpop.xlane.xlu0 %4856
        %v4858 = vmul.f32 %v4857, %v2653
        %v4859 = vsub.f32 %v4855, %v4858
        %v4860 = vmul.f32 %v4859, %v4859
        %4861 = vadd.xlane.f32.xlu0 %v4860
        %v4862 = vpop.xlane.xlu0 %4861
        %v4863 = vmul.f32 %v4862, %v2653
        %v4864 = vadd.f32 %v4863, 1e-05
        %v4865 = vrsqrt.pop %v4864
        %v4866 = vmul.f32 %v4859, %v4865
        %v4867 = vlaneseq
        %v4868 = vshrl.u32 %v4867, 7
        %v4869 = vsub.s32 0, %v4868
        %v4870 = vrot.slane %v4048, %v4869
        %v4871 = vmul.f32 %v4866, %v4870
        %v4872 = vlaneseq
        %v4873 = vshrl.u32 %v4872, 7
        %v4874 = vsub.s32 0, %v4873
        %v4875 = vrot.slane %v4050, %v4874
        %v4876 = vadd.f32 %v4871, %v4875
        %v4877 = vadd.f32 %v4876, %v1797
        %4878 = vadd.xlane.f32.xlu0 %v4877
        %v4879 = vpop.xlane.xlu0 %4878
        %v4880 = vmul.f32 %v4879, %v2653
        %v4881 = vsub.f32 %v4877, %v4880
        %v4882 = vmul.f32 %v4881, %v4881
        %4883 = vadd.xlane.f32.xlu0 %v4882
        %v4884 = vpop.xlane.xlu0 %4883
        %v4885 = vmul.f32 %v4884, %v2653
        %v4886 = vadd.f32 %v4885, 1e-05
        %v4887 = vrsqrt.pop %v4886
        %v4888 = vmul.f32 %v4881, %v4887
        %v4889 = vlaneseq
        %v4890 = vshrl.u32 %v4889, 7
        %v4891 = vsub.s32 1, %v4890
        %v4892 = vrot.slane %v4048, %v4891
        %v4893 = vmul.f32 %v4888, %v4892
        %v4894 = vlaneseq
        %v4895 = vshrl.u32 %v4894, 7
        %v4896 = vsub.s32 1, %v4895
        %v4897 = vrot.slane %v4050, %v4896
        %v4898 = vadd.f32 %v4893, %v4897
        %s4899 = scalar_lea.vmem [#allocation11], 512
        %v4900 = vld [vmem:[%s4899] sm:$0xff]
        %v4901 = vld [vmem:[%s4899 + $0x8] sm:$0xff]
        %v4902 = vld [vmem:[%s4899 + $0x10] sm:$0xff]
        %v4903 = vld [vmem:[%s4899 + $0x18] sm:$0xff]
        %v4904 = vld [vmem:[%s4899 + $0x20] sm:$0xff]
        %v4905 = vld [vmem:[%s4899 + $0x28] sm:$0xff]
        %v4906 = vld [vmem:[%s4899 + $0x30] sm:$0xff]
        %v4907 = vld [vmem:[%s4899 + $0x38] sm:$0xff]
        %v4908 = vld [vmem:[%s4899 + $0x40] sm:$0xff]
        %v4909 = vld [vmem:[%s4899 + $0x48] sm:$0xff]
        %v4910 = vld [vmem:[%s4899 + $0x50] sm:$0xff]
        %v4911 = vld [vmem:[%s4899 + $0x58] sm:$0xff]
        %v4912 = vld [vmem:[%s4899 + $0x60] sm:$0xff]
        %v4913 = vld [vmem:[%s4899 + $0x68] sm:$0xff]
        %v4914 = vld [vmem:[%s4899 + $0x70] sm:$0xff]
        %v4915 = vld [vmem:[%s4899 + $0x78] sm:$0xff]
        %v4916 = vld [vmem:[%s4899 + $0x80] sm:$0xff]
        %v4917 = vld [vmem:[%s4899 + $0x88] sm:$0xff]
        %v4918 = vld [vmem:[%s4899 + $0x90] sm:$0xff]
        %v4919 = vld [vmem:[%s4899 + $0x98] sm:$0xff]
        %v4920 = vld [vmem:[%s4899 + $0xa0] sm:$0xff]
        %v4921 = vld [vmem:[%s4899 + $0xa8] sm:$0xff]
        %v4922 = vld [vmem:[%s4899 + $0xb0] sm:$0xff]
        %v4923 = vld [vmem:[%s4899 + $0xb8] sm:$0xff]
        %v4924 = vld [vmem:[%s4899 + $0xc0] sm:$0xff]
        %v4925 = vld [vmem:[%s4899 + $0xc8] sm:$0xff]
        %v4926 = vld [vmem:[%s4899 + $0xd0] sm:$0xff]
        %v4927 = vld [vmem:[%s4899 + $0xd8] sm:$0xff]
        %v4928 = vld [vmem:[%s4899 + $0xe0] sm:$0xff]
        %v4929 = vld [vmem:[%s4899 + $0xe8] sm:$0xff]
        %v4930 = vld [vmem:[%s4899 + $0xf0] sm:$0xff]
        %v4931 = vld [vmem:[%s4899 + $0xf8] sm:$0xff]
        %s4932 = scalar_lea.vmem [#allocation13], 4
        %v4933 = vld [vmem:[%s4932] sm:$0x3]
        %v4935 = vlaneseq
        %v4936 = vshrl.u32 %v4935, 7
        %v4937 = vsub.s32 0, %v4936
        %v4938 = vrot.slane %v4933, %v4937
        %v4939 = vlaneseq
        %v4940 = vshrl.u32 %v4939, 7
        %v4941 = vsub.s32 1, %v4940
        %v4942 = vrot.slane %v4933, %v4941
        %4945 = vmatprep.subr.mxu0 %v4901
        %4946 = vmatpush1.msra.mxu0 %v4900
        %4947 = vmatprep.subr.mxu0 %v4903
        %4948 = vmatpush1.msra.mxu0 %v4902
        %4949 = vmatprep.subr.mxu0 %v4905
        %4950 = vmatpush1.msra.mxu0 %v4904
        %4951 = vmatprep.subr.mxu0 %v4907
        %4952 = vmatpush1.msra.mxu0 %v4906
        %4953 = vmatprep.subr.mxu0 %v4909
        %4954 = vmatpush1.msra.mxu0 %v4908
        %4955 = vmatprep.subr.mxu0 %v4911
        %4956 = vmatpush1.msra.mxu0 %v4910
        %4957 = vmatprep.subr.mxu0 %v4913
        %4958 = vmatpush1.msra.mxu0 %v4912
        %4959 = vmatprep.subr.mxu0 %v4915
        %4960 = vmatpush1.msra.mxu0 %v4914
        %4961 = vmatprep.subr.mxu0 %v4917
        %4962 = vmatpush1.msra.mxu0 %v4916
        %4963 = vmatprep.subr.mxu0 %v4919
        %4964 = vmatpush1.msra.mxu0 %v4918
        %4965 = vmatprep.subr.mxu0 %v4921
        %4966 = vmatpush1.msra.mxu0 %v4920
        %4967 = vmatprep.subr.mxu0 %v4923
        %4968 = vmatpush1.msra.mxu0 %v4922
        %4969 = vmatprep.subr.mxu0 %v4925
        %4970 = vmatpush1.msra.mxu0 %v4924
        %4971 = vmatprep.subr.mxu0 %v4927
        %4972 = vmatpush1.msra.mxu0 %v4926
        %4973 = vmatprep.subr.mxu0 %v4929
        %4974 = vmatpush1.msra.mxu0 %v4928
        %4975 = vmatprep.subr.mxu0 %v4931
        %4976 = vmatpush1.msra.mxu0 %v4930
        %4977 = vmatprep.subr.mxu0 0.0
        %4978 = vmatpush1.msra.mxu0 0.0
        %4979 = vmatprep.subr.mxu0 0.0
        %4980 = vmatpush1.msra.mxu0 0.0
        %4981 = vmatprep.subr.mxu0 0.0
        %4982 = vmatpush1.msra.mxu0 0.0
        %4983 = vmatprep.subr.mxu0 0.0
        %4984 = vmatpush1.msra.mxu0 0.0
        %4985 = vmatprep.subr.mxu0 0.0
        %4986 = vmatpush1.msra.mxu0 0.0
        %4987 = vmatprep.subr.mxu0 0.0
        %4988 = vmatpush1.msra.mxu0 0.0
        %4989 = vmatprep.subr.mxu0 0.0
        %4990 = vmatpush1.msra.mxu0 0.0
        %4991 = vmatprep.subr.mxu0 0.0
        %4992 = vmatpush1.msra.mxu0 0.0
        %4993 = vmatprep.subr.mxu0 0.0
        %4994 = vmatpush1.msra.mxu0 0.0
        %4995 = vmatprep.subr.mxu0 0.0
        %4996 = vmatpush1.msra.mxu0 0.0
        %4997 = vmatprep.subr.mxu0 0.0
        %4998 = vmatpush1.msra.mxu0 0.0
        %4999 = vmatprep.subr.mxu0 0.0
        %5000 = vmatpush1.msra.mxu0 0.0
        %5001 = vmatprep.subr.mxu0 0.0
        %5002 = vmatpush1.msra.mxu0 0.0
        %5003 = vmatprep.subr.mxu0 0.0
        %5004 = vmatpush1.msra.mxu0 0.0
        %5005 = vmatprep.subr.mxu0 0.0
        %5006 = vmatpush1.msra.mxu0 0.0
        %5007 = vmatprep.subr.mxu0 0.0
        %5008 = vmatpush1.msra.mxu0 0.0
        %5009 = vmatprep.mubr.f32.mxu0 0.0
        %5010 = vmatmul.mubr.f32.gmra.mrb[0].mxu0 %v4898
        %v5011 = vpop.f32.mrb[0].mxu0
        %v5012 = vadd.f32 %v4938, %v5011
        %v5013 = vpop.f32.mrb[0].mxu0
        %v5014 = vadd.f32 %v4942, %v5013
        %5015 = vdwg.mxu0
        %v5016 = vmax.f32 %v5012, 0.0
        %v5017 = vmax.f32 %v5014, 0.0
        %s5018 = scalar_lea.vmem [#allocation14], 512
        %v5019 = vld [vmem:[%s5018] sm:$0xff]
        %v5020 = vld [vmem:[%s5018 + $0x8] sm:$0xff]
        %v5021 = vld [vmem:[%s5018 + $0x10] sm:$0xff]
        %v5022 = vld [vmem:[%s5018 + $0x18] sm:$0xff]
        %v5023 = vld [vmem:[%s5018 + $0x20] sm:$0xff]
        %v5024 = vld [vmem:[%s5018 + $0x28] sm:$0xff]
        %v5025 = vld [vmem:[%s5018 + $0x30] sm:$0xff]
        %v5026 = vld [vmem:[%s5018 + $0x38] sm:$0xff]
        %v5027 = vld [vmem:[%s5018 + $0x40] sm:$0xff]
        %v5028 = vld [vmem:[%s5018 + $0x48] sm:$0xff]
        %v5029 = vld [vmem:[%s5018 + $0x50] sm:$0xff]
        %v5030 = vld [vmem:[%s5018 + $0x58] sm:$0xff]
        %v5031 = vld [vmem:[%s5018 + $0x60] sm:$0xff]
        %v5032 = vld [vmem:[%s5018 + $0x68] sm:$0xff]
        %v5033 = vld [vmem:[%s5018 + $0x70] sm:$0xff]
        %v5034 = vld [vmem:[%s5018 + $0x78] sm:$0xff]
        %v5035 = vld [vmem:[%s5018 + $0x80] sm:$0xff]
        %v5036 = vld [vmem:[%s5018 + $0x88] sm:$0xff]
        %v5037 = vld [vmem:[%s5018 + $0x90] sm:$0xff]
        %v5038 = vld [vmem:[%s5018 + $0x98] sm:$0xff]
        %v5039 = vld [vmem:[%s5018 + $0xa0] sm:$0xff]
        %v5040 = vld [vmem:[%s5018 + $0xa8] sm:$0xff]
        %v5041 = vld [vmem:[%s5018 + $0xb0] sm:$0xff]
        %v5042 = vld [vmem:[%s5018 + $0xb8] sm:$0xff]
        %v5043 = vld [vmem:[%s5018 + $0xc0] sm:$0xff]
        %v5044 = vld [vmem:[%s5018 + $0xc8] sm:$0xff]
        %v5045 = vld [vmem:[%s5018 + $0xd0] sm:$0xff]
        %v5046 = vld [vmem:[%s5018 + $0xd8] sm:$0xff]
        %v5047 = vld [vmem:[%s5018 + $0xe0] sm:$0xff]
        %v5048 = vld [vmem:[%s5018 + $0xe8] sm:$0xff]
        %v5049 = vld [vmem:[%s5018 + $0xf0] sm:$0xff]
        %v5050 = vld [vmem:[%s5018 + $0xf8] sm:$0xff]
        %s5051 = scalar_lea.vmem [#allocation16], 2
        %v5052 = vld [vmem:[%s5051] sm:$0x1]
        %v5054 = vlaneseq
        %v5055 = vshrl.u32 %v5054, 7
        %v5056 = vsub.s32 0, %v5055
        %v5057 = vrot.slane %v5052, %v5056
        %5059 = vmatprep.subr.mxu0 0.0
        %5060 = vmatpush1.msra.mxu0 %v5019
        %5061 = vmatprep.subr.mxu0 0.0
        %5062 = vmatpush1.msra.mxu0 %v5020
        %5063 = vmatprep.subr.mxu0 0.0
        %5064 = vmatpush1.msra.mxu0 %v5021
        %5065 = vmatprep.subr.mxu0 0.0
        %5066 = vmatpush1.msra.mxu0 %v5022
        %5067 = vmatprep.subr.mxu0 0.0
        %5068 = vmatpush1.msra.mxu0 %v5023
        %5069 = vmatprep.subr.mxu0 0.0
        %5070 = vmatpush1.msra.mxu0 %v5024
        %5071 = vmatprep.subr.mxu0 0.0
        %5072 = vmatpush1.msra.mxu0 %v5025
        %5073 = vmatprep.subr.mxu0 0.0
        %5074 = vmatpush1.msra.mxu0 %v5026
        %5075 = vmatprep.subr.mxu0 0.0
        %5076 = vmatpush1.msra.mxu0 %v5027
        %5077 = vmatprep.subr.mxu0 0.0
        %5078 = vmatpush1.msra.mxu0 %v5028
        %5079 = vmatprep.subr.mxu0 0.0
        %5080 = vmatpush1.msra.mxu0 %v5029
        %5081 = vmatprep.subr.mxu0 0.0
        %5082 = vmatpush1.msra.mxu0 %v5030
        %5083 = vmatprep.subr.mxu0 0.0
        %5084 = vmatpush1.msra.mxu0 %v5031
        %5085 = vmatprep.subr.mxu0 0.0
        %5086 = vmatpush1.msra.mxu0 %v5032
        %5087 = vmatprep.subr.mxu0 0.0
        %5088 = vmatpush1.msra.mxu0 %v5033
        %5089 = vmatprep.subr.mxu0 0.0
        %5090 = vmatpush1.msra.mxu0 %v5034
        %5091 = vmatprep.subr.mxu0 0.0
        %5092 = vmatpush1.msra.mxu0 %v5035
        %5093 = vmatprep.subr.mxu0 0.0
        %5094 = vmatpush1.msra.mxu0 %v5036
        %5095 = vmatprep.subr.mxu0 0.0
        %5096 = vmatpush1.msra.mxu0 %v5037
        %5097 = vmatprep.subr.mxu0 0.0
        %5098 = vmatpush1.msra.mxu0 %v5038
        %5099 = vmatprep.subr.mxu0 0.0
        %5100 = vmatpush1.msra.mxu0 %v5039
        %5101 = vmatprep.subr.mxu0 0.0
        %5102 = vmatpush1.msra.mxu0 %v5040
        %5103 = vmatprep.subr.mxu0 0.0
        %5104 = vmatpush1.msra.mxu0 %v5041
        %5105 = vmatprep.subr.mxu0 0.0
        %5106 = vmatpush1.msra.mxu0 %v5042
        %5107 = vmatprep.subr.mxu0 0.0
        %5108 = vmatpush1.msra.mxu0 %v5043
        %5109 = vmatprep.subr.mxu0 0.0
        %5110 = vmatpush1.msra.mxu0 %v5044
        %5111 = vmatprep.subr.mxu0 0.0
        %5112 = vmatpush1.msra.mxu0 %v5045
        %5113 = vmatprep.subr.mxu0 0.0
        %5114 = vmatpush1.msra.mxu0 %v5046
        %5115 = vmatprep.subr.mxu0 0.0
        %5116 = vmatpush1.msra.mxu0 %v5047
        %5117 = vmatprep.subr.mxu0 0.0
        %5118 = vmatpush1.msra.mxu0 %v5048
        %5119 = vmatprep.subr.mxu0 0.0
        %5120 = vmatpush1.msra.mxu0 %v5049
        %5121 = vmatprep.subr.mxu0 0.0
        %5122 = vmatpush1.msra.mxu0 %v5050
        %5123 = vmatprep.mubr.f32.mxu0 %v5017
        %5124 = vmatmul.mubr.f32.gmra.mrb[0].mxu0 %v5016
        %v5125 = vpop.f32.mrb[0].mxu0
        %v5126 = vadd.f32 %v5057, %v5125
        %v5127 = vpop.f32.mrb[0].mxu0
        %5128 = vdwg.mxu0
        %v5129 = vadd.f32 %v4898, %v5126
        %5130 = vadd.xlane.f32.xlu0 %v5129
        %v5131 = vpop.xlane.xlu0 %5130
        %v5132 = vmul.f32 %v5131, %v2653
        %v5133 = vsub.f32 %v5129, %v5132
        %v5134 = vmul.f32 %v5133, %v5133
        %5135 = vadd.xlane.f32.xlu0 %v5134
        %v5136 = vpop.xlane.xlu0 %5135
        %v5137 = vmul.f32 %v5136, %v2653
        %v5138 = vadd.f32 %v5137, 1e-05
        %v5139 = vrsqrt.pop %v5138
        %v5140 = vmul.f32 %v5133, %v5139
        %v5141 = vlaneseq
        %v5142 = vshrl.u32 %v5141, 7
        %v5143 = vsub.s32 2, %v5142
        %v5144 = vrot.slane %v4048, %v5143
        %v5145 = vmul.f32 %v5140, %v5144
        %v5146 = vlaneseq
        %v5147 = vshrl.u32 %v5146, 7
        %v5148 = vsub.s32 2, %v5147
        %v5149 = vrot.slane %v4050, %v5148
        %v5150 = vadd.f32 %v5145, %v5149
        %s5151 = scalar_lea.vmem %s16, 12
        %v5152 = vld [vmem:[%s5151] sm:$0x7]
        %s5153 = scalar_lea.vmem %s17, 12
        %v5154 = vld [vmem:[%s5153] sm:$0x7]
        %s5155 = scalar_lea.vmem [#allocation7], 1152
        %v5156 = vld [vmem:[%s5155] sm:$0xff]
        %v5157 = vld [vmem:[%s5155 + $0x8] sm:$0xff]
        %v5158 = vld [vmem:[%s5155 + $0x10] sm:$0xff]
        %v5159 = vld [vmem:[%s5155 + $0x18] sm:$0xff]
        %v5160 = vld [vmem:[%s5155 + $0x20] sm:$0xff]
        %v5161 = vld [vmem:[%s5155 + $0x28] sm:$0xff]
        %v5162 = vld [vmem:[%s5155 + $0x30] sm:$0xff]
        %v5163 = vld [vmem:[%s5155 + $0x38] sm:$0xff]
        %v5164 = vld [vmem:[%s5155 + $0x40] sm:$0xff]
        %v5165 = vld [vmem:[%s5155 + $0x48] sm:$0xff]
        %v5166 = vld [vmem:[%s5155 + $0x50] sm:$0xff]
        %v5167 = vld [vmem:[%s5155 + $0x58] sm:$0xff]
        %v5168 = vld [vmem:[%s5155 + $0x60] sm:$0xff]
        %v5169 = vld [vmem:[%s5155 + $0x68] sm:$0xff]
        %v5170 = vld [vmem:[%s5155 + $0x70] sm:$0xff]
        %v5171 = vld [vmem:[%s5155 + $0x78] sm:$0xff]
        %v5172 = vld [vmem:[%s5155 + $0x80] sm:$0xff]
        %v5173 = vld [vmem:[%s5155 + $0x88] sm:$0xff]
        %v5174 = vld [vmem:[%s5155 + $0x90] sm:$0xff]
        %v5175 = vld [vmem:[%s5155 + $0x98] sm:$0xff]
        %v5176 = vld [vmem:[%s5155 + $0xa0] sm:$0xff]
        %v5177 = vld [vmem:[%s5155 + $0xa8] sm:$0xff]
        %v5178 = vld [vmem:[%s5155 + $0xb0] sm:$0xff]
        %v5179 = vld [vmem:[%s5155 + $0xb8] sm:$0xff]
        %v5180 = vld [vmem:[%s5155 + $0xc0] sm:$0xff]
        %v5181 = vld [vmem:[%s5155 + $0xc8] sm:$0xff]
        %v5182 = vld [vmem:[%s5155 + $0xd0] sm:$0xff]
        %v5183 = vld [vmem:[%s5155 + $0xd8] sm:$0xff]
        %v5184 = vld [vmem:[%s5155 + $0xe0] sm:$0xff]
        %v5185 = vld [vmem:[%s5155 + $0xe8] sm:$0xff]
        %v5186 = vld [vmem:[%s5155 + $0xf0] sm:$0xff]
        %v5187 = vld [vmem:[%s5155 + $0xf8] sm:$0xff]
        %v5188 = vld [vmem:[%s5155 + $0x100] sm:$0xff]
        %v5189 = vld [vmem:[%s5155 + $0x108] sm:$0xff]
        %v5190 = vld [vmem:[%s5155 + $0x110] sm:$0xff]
        %v5191 = vld [vmem:[%s5155 + $0x118] sm:$0xff]
        %v5192 = vld [vmem:[%s5155 + $0x120] sm:$0xff]
        %v5193 = vld [vmem:[%s5155 + $0x128] sm:$0xff]
        %v5194 = vld [vmem:[%s5155 + $0x130] sm:$0xff]
        %v5195 = vld [vmem:[%s5155 + $0x138] sm:$0xff]
        %v5196 = vld [vmem:[%s5155 + $0x140] sm:$0xff]
        %v5197 = vld [vmem:[%s5155 + $0x148] sm:$0xff]
        %v5198 = vld [vmem:[%s5155 + $0x150] sm:$0xff]
        %v5199 = vld [vmem:[%s5155 + $0x158] sm:$0xff]
        %v5200 = vld [vmem:[%s5155 + $0x160] sm:$0xff]
        %v5201 = vld [vmem:[%s5155 + $0x168] sm:$0xff]
        %v5202 = vld [vmem:[%s5155 + $0x170] sm:$0xff]
        %v5203 = vld [vmem:[%s5155 + $0x178] sm:$0xff]
        %s5204 = scalar_lea.vmem %s9, 9
        %v5205 = vld [vmem:[%s5204] sm:$0x7]
        %s5206 = scalar_lea.vmem [#allocation8], 384
        %v5207 = vld [vmem:[%s5206] sm:$0xff]
        %v5208 = vld [vmem:[%s5206 + $0x8] sm:$0xff]
        %v5209 = vld [vmem:[%s5206 + $0x10] sm:$0xff]
        %v5210 = vld [vmem:[%s5206 + $0x18] sm:$0xff]
        %v5211 = vld [vmem:[%s5206 + $0x20] sm:$0xff]
        %v5212 = vld [vmem:[%s5206 + $0x28] sm:$0xff]
        %v5213 = vld [vmem:[%s5206 + $0x30] sm:$0xff]
        %v5214 = vld [vmem:[%s5206 + $0x38] sm:$0xff]
        %v5215 = vld [vmem:[%s5206 + $0x40] sm:$0xff]
        %v5216 = vld [vmem:[%s5206 + $0x48] sm:$0xff]
        %v5217 = vld [vmem:[%s5206 + $0x50] sm:$0xff]
        %v5218 = vld [vmem:[%s5206 + $0x58] sm:$0xff]
        %v5219 = vld [vmem:[%s5206 + $0x60] sm:$0xff]
        %v5220 = vld [vmem:[%s5206 + $0x68] sm:$0xff]
        %v5221 = vld [vmem:[%s5206 + $0x70] sm:$0xff]
        %v5222 = vld [vmem:[%s5206 + $0x78] sm:$0xff]
        %s5223 = scalar_lea.vmem [#allocation10], 3
        %v5224 = vld [vmem:[%s5223] sm:$0x1]
        %v5226 = vlaneseq
        %v5227 = vshrl.u32 %v5226, 7
        %v5228 = vsub.s32 0, %v5227
        %v5229 = vrot.slane %v5205, %v5228
        %v5230 = vlaneseq
        %v5231 = vshrl.u32 %v5230, 7
        %v5232 = vsub.s32 1, %v5231
        %v5233 = vrot.slane %v5205, %v5232
        %v5234 = vlaneseq
        %v5235 = vshrl.u32 %v5234, 7
        %v5236 = vsub.s32 2, %v5235
        %v5237 = vrot.slane %v5205, %v5236
        %5241 = vmatprep.subr.mxu0 %v5157
        %5242 = vmatpush1.msra.mxu0 %v5156
        %5243 = vmatprep.subr.mxu0 %v5160
        %5244 = vmatpush1.msra.mxu0 %v5159
        %5245 = vmatprep.subr.mxu0 %v5163
        %5246 = vmatpush1.msra.mxu0 %v5162
        %5247 = vmatprep.subr.mxu0 %v5166
        %5248 = vmatpush1.msra.mxu0 %v5165
        %5249 = vmatprep.subr.mxu0 %v5169
        %5250 = vmatpush1.msra.mxu0 %v5168
        %5251 = vmatprep.subr.mxu0 %v5172
        %5252 = vmatpush1.msra.mxu0 %v5171
        %5253 = vmatprep.subr.mxu0 %v5175
        %5254 = vmatpush1.msra.mxu0 %v5174
        %5255 = vmatprep.subr.mxu0 %v5178
        %5256 = vmatpush1.msra.mxu0 %v5177
        %5257 = vmatprep.subr.mxu0 %v5181
        %5258 = vmatpush1.msra.mxu0 %v5180
        %5259 = vmatprep.subr.mxu0 %v5184
        %5260 = vmatpush1.msra.mxu0 %v5183
        %5261 = vmatprep.subr.mxu0 %v5187
        %5262 = vmatpush1.msra.mxu0 %v5186
        %5263 = vmatprep.subr.mxu0 %v5190
        %5264 = vmatpush1.msra.mxu0 %v5189
        %5265 = vmatprep.subr.mxu0 %v5193
        %5266 = vmatpush1.msra.mxu0 %v5192
        %5267 = vmatprep.subr.mxu0 %v5196
        %5268 = vmatpush1.msra.mxu0 %v5195
        %5269 = vmatprep.subr.mxu0 %v5199
        %5270 = vmatpush1.msra.mxu0 %v5198
        %5271 = vmatprep.subr.mxu0 %v5202
        %5272 = vmatpush1.msra.mxu0 %v5201
        %5273 = vmatprep.subr.mxu0 0.0
        %5274 = vmatpush1.msra.mxu0 0.0
        %5275 = vmatprep.subr.mxu0 0.0
        %5276 = vmatpush1.msra.mxu0 0.0
        %5277 = vmatprep.subr.mxu0 0.0
        %5278 = vmatpush1.msra.mxu0 0.0
        %5279 = vmatprep.subr.mxu0 0.0
        %5280 = vmatpush1.msra.mxu0 0.0
        %5281 = vmatprep.subr.mxu0 0.0
        %5282 = vmatpush1.msra.mxu0 0.0
        %5283 = vmatprep.subr.mxu0 0.0
        %5284 = vmatpush1.msra.mxu0 0.0
        %5285 = vmatprep.subr.mxu0 0.0
        %5286 = vmatpush1.msra.mxu0 0.0
        %5287 = vmatprep.subr.mxu0 0.0
        %5288 = vmatpush1.msra.mxu0 0.0
        %5289 = vmatprep.subr.mxu0 0.0
        %5290 = vmatpush1.msra.mxu0 0.0
        %5291 = vmatprep.subr.mxu0 0.0
        %5292 = vmatpush1.msra.mxu0 0.0
        %5293 = vmatprep.subr.mxu0 0.0
        %5294 = vmatpush1.msra.mxu0 0.0
        %5295 = vmatprep.subr.mxu0 0.0
        %5296 = vmatpush1.msra.mxu0 0.0
        %5297 = vmatprep.subr.mxu0 0.0
        %5298 = vmatpush1.msra.mxu0 0.0
        %5299 = vmatprep.subr.mxu0 0.0
        %5300 = vmatpush1.msra.mxu0 0.0
        %5301 = vmatprep.subr.mxu0 0.0
        %5302 = vmatpush1.msra.mxu0 0.0
        %5303 = vmatprep.subr.mxu0 0.0
        %5304 = vmatpush1.msra.mxu0 0.0
        %5305 = vmatprep.mubr.f32.mxu0 0.0
        %5306 = vmatmul.mubr.f32.gmra.mrb[0].mxu0 %v5150
        %v5307 = vpop.f32.mrb[0].mxu0
        %v5308 = vadd.f32 %v5229, %v5307
        %v5309 = vpop.f32.mrb[0].mxu0
        %v5310 = vadd.f32 %v5233, %v5309
        %5311 = vdwg.mxu0
        %5312 = vmatprep.subr.mxu0 0.0
        %5313 = vmatpush1.msra.mxu0 %v5158
        %5314 = vmatprep.subr.mxu0 0.0
        %5315 = vmatpush1.msra.mxu0 %v5161
        %5316 = vmatprep.subr.mxu0 0.0
        %5317 = vmatpush1.msra.mxu0 %v5164
        %5318 = vmatprep.subr.mxu0 0.0
        %5319 = vmatpush1.msra.mxu0 %v5167
        %5320 = vmatprep.subr.mxu0 0.0
        %5321 = vmatpush1.msra.mxu0 %v5170
        %5322 = vmatprep.subr.mxu0 0.0
        %5323 = vmatpush1.msra.mxu0 %v5173
        %5324 = vmatprep.subr.mxu0 0.0
        %5325 = vmatpush1.msra.mxu0 %v5176
        %5326 = vmatprep.subr.mxu0 0.0
        %5327 = vmatpush1.msra.mxu0 %v5179
        %5328 = vmatprep.subr.mxu0 0.0
        %5329 = vmatpush1.msra.mxu0 %v5182
        %5330 = vmatprep.subr.mxu0 0.0
        %5331 = vmatpush1.msra.mxu0 %v5185
        %5332 = vmatprep.subr.mxu0 0.0
        %5333 = vmatpush1.msra.mxu0 %v5188
        %5334 = vmatprep.subr.mxu0 0.0
        %5335 = vmatpush1.msra.mxu0 %v5191
        %5336 = vmatprep.subr.mxu0 0.0
        %5337 = vmatpush1.msra.mxu0 %v5194
        %5338 = vmatprep.subr.mxu0 0.0
        %5339 = vmatpush1.msra.mxu0 %v5197
        %5340 = vmatprep.subr.mxu0 0.0
        %5341 = vmatpush1.msra.mxu0 %v5200
        %5342 = vmatprep.subr.mxu0 0.0
        %5343 = vmatpush1.msra.mxu0 %v5203
        %5344 = vmatprep.subr.mxu0 0.0
        %5345 = vmatpush1.msra.mxu0 0.0
        %5346 = vmatprep.subr.mxu0 0.0
        %5347 = vmatpush1.msra.mxu0 0.0
        %5348 = vmatprep.subr.mxu0 0.0
        %5349 = vmatpush1.msra.mxu0 0.0
        %5350 = vmatprep.subr.mxu0 0.0
        %5351 = vmatpush1.msra.mxu0 0.0
        %5352 = vmatprep.subr.mxu0 0.0
        %5353 = vmatpush1.msra.mxu0 0.0
        %5354 = vmatprep.subr.mxu0 0.0
        %5355 = vmatpush1.msra.mxu0 0.0
        %5356 = vmatprep.subr.mxu0 0.0
        %5357 = vmatpush1.msra.mxu0 0.0
        %5358 = vmatprep.subr.mxu0 0.0
        %5359 = vmatpush1.msra.mxu0 0.0
        %5360 = vmatprep.subr.mxu0 0.0
        %5361 = vmatpush1.msra.mxu0 0.0
        %5362 = vmatprep.subr.mxu0 0.0
        %5363 = vmatpush1.msra.mxu0 0.0
        %5364 = vmatprep.subr.mxu0 0.0
        %5365 = vmatpush1.msra.mxu0 0.0
        %5366 = vmatprep.subr.mxu0 0.0
        %5367 = vmatpush1.msra.mxu0 0.0
        %5368 = vmatprep.subr.mxu0 0.0
        %5369 = vmatpush1.msra.mxu0 0.0
        %5370 = vmatprep.subr.mxu0 0.0
        %5371 = vmatpush1.msra.mxu0 0.0
        %5372 = vmatprep.subr.mxu0 0.0
        %5373 = vmatpush1.msra.mxu0 0.0
        %5374 = vmatprep.subr.mxu0 0.0
        %5375 = vmatpush1.msra.mxu0 0.0
        %5376 = vmatprep.mubr.f32.mxu0 0.0
        %5377 = vmatmul.mubr.f32.gmra.mrb[0].mxu0 %v5150
        %v5378 = vpop.f32.mrb[0].mxu0
        %v5379 = vadd.f32 %v5237, %v5378
        %v5380 = vpop.f32.mrb[0].mxu0
        %5381 = vdwg.mxu0
        %v5382 = vmul.f32 %v5308, 0.35355338
        %v5384 = vcombine.high %v5382, %v5382
        %v5386 = vunpack.c.l.s4 1966171168
        %v5387 = vunpack.c.0.s8 %v5386
        %v5388 = vlaneseq
        %v5389 = vshrl.u32 %v5388, 7
        %v5390 = vsub.s32 %v5387, %v5389
        %v5391 = vrot.slane %v5382, %v5390
        %v5393 = vunpack.c.l.s4 1966171168
        %v5394 = vunpack.c.0.s8 %v5393
        %v5395 = vlaneseq
        %v5396 = vshrl.u32 %v5395, 7
        %v5397 = vsub.s32 %v5394, %v5396
        %v5398 = vrot.slane %v5384, %v5397
        %v5399 = vcombine.high %v5391, %v5391
        %v5400 = vcombine.high %v5398, %v5398
        %v5402 = vunpack.c.l.s4 1966171168
        %v5403 = vunpack.c.0.s8 %v5402
        %v5404 = vlaneseq
        %v5405 = vshrl.u32 %v5404, 7
        %v5406 = vsub.s32 %v5403, %v5405
        %v5407 = vrot.slane %v5391, %v5406
        %v5409 = vunpack.c.l.s4 1966171168
        %v5410 = vunpack.c.0.s8 %v5409
        %v5411 = vlaneseq
        %v5412 = vshrl.u32 %v5411, 7
        %v5413 = vsub.s32 %v5410, %v5412
        %v5414 = vrot.slane %v5398, %v5413
        %v5416 = vunpack.c.l.s4 1966171168
        %v5417 = vunpack.c.0.s8 %v5416
        %v5418 = vlaneseq
        %v5419 = vshrl.u32 %v5418, 7
        %v5420 = vsub.s32 %v5417, %v5419
        %v5421 = vrot.slane %v5399, %v5420
        %v5423 = vunpack.c.l.s4 1966171168
        %v5424 = vunpack.c.0.s8 %v5423
        %v5425 = vlaneseq
        %v5426 = vshrl.u32 %v5425, 7
        %v5427 = vsub.s32 %v5424, %v5426
        %v5428 = vrot.slane %v5400, %v5427
        %v5429 = vcombine.high %v5407, %v5407
        %v5430 = vcombine.high %v5414, %v5414
        %v5431 = vcombine.high %v5421, %v5421
        %v5432 = vcombine.high %v5428, %v5428
        %v5433 = vlaneseq
        %v5434 = vshrl.u32 %v5433, 7
        %v5435 = vsub.s32 0, %v5434
        %v5436 = vrot.slane %v5407, %v5435
        %v5437 = vlaneseq
        %v5438 = vshrl.u32 %v5437, 7
        %v5439 = vsub.s32 0, %v5438
        %v5440 = vrot.slane %v5421, %v5439
        %v5441 = vlaneseq
        %v5442 = vshrl.u32 %v5441, 7
        %v5443 = vsub.s32 0, %v5442
        %v5444 = vrot.slane %v5429, %v5443
        %v5445 = vlaneseq
        %v5446 = vshrl.u32 %v5445, 7
        %v5447 = vsub.s32 0, %v5446
        %v5448 = vrot.slane %v5431, %v5447
        %v5449 = vlaneseq
        %v5450 = vshrl.u32 %v5449, 7
        %v5451 = vsub.s32 0, %v5450
        %v5452 = vrot.slane %v5414, %v5451
        %v5453 = vlaneseq
        %v5454 = vshrl.u32 %v5453, 7
        %v5455 = vsub.s32 0, %v5454
        %v5456 = vrot.slane %v5428, %v5455
        %v5457 = vlaneseq
        %v5458 = vshrl.u32 %v5457, 7
        %v5459 = vsub.s32 0, %v5458
        %v5460 = vrot.slane %v5430, %v5459
        %v5461 = vlaneseq
        %v5462 = vshrl.u32 %v5461, 7
        %v5463 = vsub.s32 0, %v5462
        %v5464 = vrot.slane %v5432, %v5463
        %v5473 = vmul.f32 %v5436, %v5310
        %v5474 = vmul.f32 %v5440, %v5310
        %v5475 = vmul.f32 %v5444, %v5310
        %v5476 = vmul.f32 %v5448, %v5310
        %v5477 = vmul.f32 %v5452, %v5310
        %v5478 = vmul.f32 %v5456, %v5310
        %v5479 = vmul.f32 %v5460, %v5310
        %v5480 = vmul.f32 %v5464, %v5310
        %5481 = vmatprep.subr.mxu0 0.0
        %5482 = vmatpush1.msra.mxu0 %v827
        %5483 = vmatprep.subr.mxu0 0.0
        %5484 = vmatpush1.msra.mxu0 %v828
        %5485 = vmatprep.subr.mxu0 0.0
        %5486 = vmatpush1.msra.mxu0 %v829
        %5487 = vmatprep.subr.mxu0 0.0
        %5488 = vmatpush1.msra.mxu0 %v830
        %5489 = vmatprep.subr.mxu0 0.0
        %5490 = vmatpush1.msra.mxu0 %v831
        %5491 = vmatprep.subr.mxu0 0.0
        %5492 = vmatpush1.msra.mxu0 %v832
        %5493 = vmatprep.subr.mxu0 0.0
        %5494 = vmatpush1.msra.mxu0 %v833
        %5495 = vmatprep.subr.mxu0 0.0
        %5496 = vmatpush1.msra.mxu0 %v834
        %5497 = vmatprep.subr.mxu0 0.0
        %5498 = vmatpush1.msra.mxu0 %v835
        %5499 = vmatprep.subr.mxu0 0.0
        %5500 = vmatpush1.msra.mxu0 %v836
        %5501 = vmatprep.subr.mxu0 0.0
        %5502 = vmatpush1.msra.mxu0 %v837
        %5503 = vmatprep.subr.mxu0 0.0
        %5504 = vmatpush1.msra.mxu0 %v838
        %5505 = vmatprep.subr.mxu0 0.0
        %5506 = vmatpush1.msra.mxu0 %v839
        %5507 = vmatprep.subr.mxu0 0.0
        %5508 = vmatpush1.msra.mxu0 %v840
        %5509 = vmatprep.subr.mxu0 0.0
        %5510 = vmatpush1.msra.mxu0 %v841
        %5511 = vmatprep.subr.mxu0 0.0
        %5512 = vmatpush1.msra.mxu0 %v842
        %5513 = vmatprep.subr.mxu0 0.0
        %5514 = vmatpush1.msra.mxu0 0.0
        %5515 = vmatprep.subr.mxu0 0.0
        %5516 = vmatpush1.msra.mxu0 0.0
        %5517 = vmatprep.subr.mxu0 0.0
        %5518 = vmatpush1.msra.mxu0 0.0
        %5519 = vmatprep.subr.mxu0 0.0
        %5520 = vmatpush1.msra.mxu0 0.0
        %5521 = vmatprep.subr.mxu0 0.0
        %5522 = vmatpush1.msra.mxu0 0.0
        %5523 = vmatprep.subr.mxu0 0.0
        %5524 = vmatpush1.msra.mxu0 0.0
        %5525 = vmatprep.subr.mxu0 0.0
        %5526 = vmatpush1.msra.mxu0 0.0
        %5527 = vmatprep.subr.mxu0 0.0
        %5528 = vmatpush1.msra.mxu0 0.0
        %5529 = vmatprep.subr.mxu0 0.0
        %5530 = vmatpush1.msra.mxu0 0.0
        %5531 = vmatprep.subr.mxu0 0.0
        %5532 = vmatpush1.msra.mxu0 0.0
        %5533 = vmatprep.subr.mxu0 0.0
        %5534 = vmatpush1.msra.mxu0 0.0
        %5535 = vmatprep.subr.mxu0 0.0
        %5536 = vmatpush1.msra.mxu0 0.0
        %5537 = vmatprep.subr.mxu0 0.0
        %5538 = vmatpush1.msra.mxu0 0.0
        %5539 = vmatprep.subr.mxu0 0.0
        %5540 = vmatpush1.msra.mxu0 0.0
        %5541 = vmatprep.subr.mxu0 0.0
        %5542 = vmatpush1.msra.mxu0 0.0
        %5543 = vmatprep.subr.mxu0 0.0
        %5544 = vmatpush1.msra.mxu0 0.0
        %5545 = vmatprep.mubr.f32.mxu0 0.0
        %5546 = vmatmul.mubr.f32.gmra.mrb[0].mxu0 %v5473
        %v5547 = vpop.f32.mrb[0].mxu0
        %v5548 = vadd.f32 0.0, %v5547
        %v5549 = vpop.f32.mrb[0].mxu0
        %5550 = vmatprep.mubr.f32.mxu0 0.0
        %5551 = vmatmul.mubr.f32.gmra.mrb[0].mxu0 %v5474
        %v5552 = vpop.f32.mrb[0].mxu0
        %v5553 = vadd.f32 0.0, %v5552
        %v5554 = vpop.f32.mrb[0].mxu0
        %5555 = vmatprep.mubr.f32.mxu0 0.0
        %5556 = vmatmul.mubr.f32.gmra.mrb[0].mxu0 %v5475
        %v5557 = vpop.f32.mrb[0].mxu0
        %v5558 = vadd.f32 0.0, %v5557
        %v5559 = vpop.f32.mrb[0].mxu0
        %5560 = vmatprep.mubr.f32.mxu0 0.0
        %5561 = vmatmul.mubr.f32.gmra.mrb[0].mxu0 %v5476
        %v5562 = vpop.f32.mrb[0].mxu0
        %v5563 = vadd.f32 0.0, %v5562
        %v5564 = vpop.f32.mrb[0].mxu0
        %5565 = vmatprep.mubr.f32.mxu0 0.0
        %5566 = vmatmul.mubr.f32.gmra.mrb[0].mxu0 %v5477
        %v5567 = vpop.f32.mrb[0].mxu0
        %v5568 = vadd.f32 0.0, %v5567
        %v5569 = vpop.f32.mrb[0].mxu0
        %5570 = vmatprep.mubr.f32.mxu0 0.0
        %5571 = vmatmul.mubr.f32.gmra.mrb[0].mxu0 %v5478
        %v5572 = vpop.f32.mrb[0].mxu0
        %v5573 = vadd.f32 0.0, %v5572
        %v5574 = vpop.f32.mrb[0].mxu0
        %5575 = vmatprep.mubr.f32.mxu0 0.0
        %5576 = vmatmul.mubr.f32.gmra.mrb[0].mxu0 %v5479
        %v5577 = vpop.f32.mrb[0].mxu0
        %v5578 = vadd.f32 0.0, %v5577
        %v5579 = vpop.f32.mrb[0].mxu0
        %5580 = vmatprep.mubr.f32.mxu0 0.0
        %5581 = vmatmul.mubr.f32.gmra.mrb[0].mxu0 %v5480
        %v5582 = vpop.f32.mrb[0].mxu0
        %v5583 = vadd.f32 0.0, %v5582
        %v5584 = vpop.f32.mrb[0].mxu0
        %5585 = vdwg.mxu0
        %v5586 = vsel %vm2269, -1e+20, %v5548
        %v5587 = vsel %vm2270, -1e+20, %v5553
        %v5588 = vsel %vm2271, -1e+20, %v5558
        %v5589 = vsel %vm2272, -1e+20, %v5563
        %v5590 = vsel %vm2273, -1e+20, %v5568
        %v5591 = vsel %vm2274, -1e+20, %v5573
        %v5592 = vsel %vm2275, -1e+20, %v5578
        %v5593 = vsel %vm2276, -1e+20, %v5583
        %v5594 = vsel %vm1427, %v5586, -inf
        %5595 = vmax.xlane.f32.xlu0 %v5594
        %v5596 = vpop.xlane.xlu0 %5595
        %v5597 = vsel %vm1427, %v5587, -inf
        %5598 = vmax.xlane.f32.xlu0 %v5597
        %v5599 = vpop.xlane.xlu0 %5598
        %v5600 = vsel %vm1427, %v5588, -inf
        %5601 = vmax.xlane.f32.xlu0 %v5600
        %v5602 = vpop.xlane.xlu0 %5601
        %v5603 = vsel %vm1427, %v5589, -inf
        %5604 = vmax.xlane.f32.xlu0 %v5603
        %v5605 = vpop.xlane.xlu0 %5604
        %v5606 = vsel %vm1427, %v5590, -inf
        %5607 = vmax.xlane.f32.xlu0 %v5606
        %v5608 = vpop.xlane.xlu0 %5607
        %v5609 = vsel %vm1427, %v5591, -inf
        %5610 = vmax.xlane.f32.xlu0 %v5609
        %v5611 = vpop.xlane.xlu0 %5610
        %v5612 = vsel %vm1427, %v5592, -inf
        %5613 = vmax.xlane.f32.xlu0 %v5612
        %v5614 = vpop.xlane.xlu0 %5613
        %v5615 = vsel %vm1427, %v5593, -inf
        %5616 = vmax.xlane.f32.xlu0 %v5615
        %v5617 = vpop.xlane.xlu0 %5616
        %v5618 = vsub.f32 %v5586, %v5596
        %v5619 = vsub.f32 %v5587, %v5599
        %v5620 = vsub.f32 %v5588, %v5602
        %v5621 = vsub.f32 %v5589, %v5605
        %v5622 = vsub.f32 %v5590, %v5608
        %v5623 = vsub.f32 %v5591, %v5611
        %v5624 = vsub.f32 %v5592, %v5614
        %v5625 = vsub.f32 %v5593, %v5617
        %v5626 = vmul.f32 %v5618, 1.442695
        %v5627 = vpow.pop %v5626
        %v5628 = vmul.f32 %v5619, 1.442695
        %v5629 = vpow.pop %v5628
        %v5630 = vmul.f32 %v5620, 1.442695
        %v5631 = vpow.pop %v5630
        %v5632 = vmul.f32 %v5621, 1.442695
        %v5633 = vpow.pop %v5632
        %v5634 = vmul.f32 %v5622, 1.442695
        %v5635 = vpow.pop %v5634
        %v5636 = vmul.f32 %v5623, 1.442695
        %v5637 = vpow.pop %v5636
        %v5638 = vmul.f32 %v5624, 1.442695
        %v5639 = vpow.pop %v5638
        %v5640 = vmul.f32 %v5625, 1.442695
        %v5641 = vpow.pop %v5640
        %v5642 = vsel %vm1427, %v5627, 0.0
        %5643 = vadd.xlane.f32.xlu0 %v5642
        %v5644 = vpop.xlane.xlu0 %5643
        %v5645 = vsel %vm1427, %v5629, 0.0
        %5646 = vadd.xlane.f32.xlu0 %v5645
        %v5647 = vpop.xlane.xlu0 %5646
        %v5648 = vsel %vm1427, %v5631, 0.0
        %5649 = vadd.xlane.f32.xlu0 %v5648
        %v5650 = vpop.xlane.xlu0 %5649
        %v5651 = vsel %vm1427, %v5633, 0.0
        %5652 = vadd.xlane.f32.xlu0 %v5651
        %v5653 = vpop.xlane.xlu0 %5652
        %v5654 = vsel %vm1427, %v5635, 0.0
        %5655 = vadd.xlane.f32.xlu0 %v5654
        %v5656 = vpop.xlane.xlu0 %5655
        %v5657 = vsel %vm1427, %v5637, 0.0
        %5658 = vadd.xlane.f32.xlu0 %v5657
        %v5659 = vpop.xlane.xlu0 %5658
        %v5660 = vsel %vm1427, %v5639, 0.0
        %5661 = vadd.xlane.f32.xlu0 %v5660
        %v5662 = vpop.xlane.xlu0 %5661
        %v5663 = vsel %vm1427, %v5641, 0.0
        %5664 = vadd.xlane.f32.xlu0 %v5663
        %v5665 = vpop.xlane.xlu0 %5664
        %v5666 = vrcp.pop %v5644
        %v5667 = vrcp.pop %v5647
        %v5668 = vrcp.pop %v5650
        %v5669 = vrcp.pop %v5653
        %v5670 = vrcp.pop %v5656
        %v5671 = vrcp.pop %v5659
        %v5672 = vrcp.pop %v5662
        %v5673 = vrcp.pop %v5665
        %v5674 = vmul.f32 %v5627, %v5666
        %v5675 = vmul.f32 %v5629, %v5667
        %v5676 = vmul.f32 %v5631, %v5668
        %v5677 = vmul.f32 %v5633, %v5669
        %v5678 = vmul.f32 %v5635, %v5670
        %v5679 = vmul.f32 %v5637, %v5671
        %v5680 = vmul.f32 %v5639, %v5672
        %v5681 = vmul.f32 %v5641, %v5673
        %v5683 = vsel %vm1427, %v5674, 0
        %v5686 = vsel %vm1427, %v5675, 0
        %v5689 = vsel %vm1427, %v5676, 0
        %v5692 = vsel %vm1427, %v5677, 0
        %v5695 = vsel %vm1427, %v5678, 0
        %v5698 = vsel %vm1427, %v5679, 0
        %v5701 = vsel %vm1427, %v5680, 0
        %v5704 = vsel %vm1427, %v5681, 0
        %5706 = vmatprep.subr.mxu0 0.0
        %5707 = vmatpush1.msra.mxu0 %v855
        %5708 = vmatprep.subr.mxu0 0.0
        %5709 = vmatpush1.msra.mxu0 %v856
        %5710 = vmatprep.subr.mxu0 0.0
        %5711 = vmatpush1.msra.mxu0 0.0
        %5712 = vmatprep.subr.mxu0 0.0
        %5713 = vmatpush1.msra.mxu0 0.0
        %5714 = vmatprep.subr.mxu0 0.0
        %5715 = vmatpush1.msra.mxu0 0.0
        %5716 = vmatprep.subr.mxu0 0.0
        %5717 = vmatpush1.msra.mxu0 0.0
        %5718 = vmatprep.subr.mxu0 0.0
        %5719 = vmatpush1.msra.mxu0 0.0
        %5720 = vmatprep.subr.mxu0 0.0
        %5721 = vmatpush1.msra.mxu0 0.0
        %5722 = vmatprep.subr.mxu0 0.0
        %5723 = vmatpush1.msra.mxu0 0.0
        %5724 = vmatprep.subr.mxu0 0.0
        %5725 = vmatpush1.msra.mxu0 0.0
        %5726 = vmatprep.subr.mxu0 0.0
        %5727 = vmatpush1.msra.mxu0 0.0
        %5728 = vmatprep.subr.mxu0 0.0
        %5729 = vmatpush1.msra.mxu0 0.0
        %5730 = vmatprep.subr.mxu0 0.0
        %5731 = vmatpush1.msra.mxu0 0.0
        %5732 = vmatprep.subr.mxu0 0.0
        %5733 = vmatpush1.msra.mxu0 0.0
        %5734 = vmatprep.subr.mxu0 0.0
        %5735 = vmatpush1.msra.mxu0 0.0
        %5736 = vmatprep.subr.mxu0 0.0
        %5737 = vmatpush1.msra.mxu0 0.0
        %5738 = vmatprep.subr.mxu0 0.0
        %5739 = vmatpush1.msra.mxu0 0.0
        %5740 = vmatprep.subr.mxu0 0.0
        %5741 = vmatpush1.msra.mxu0 0.0
        %5742 = vmatprep.subr.mxu0 0.0
        %5743 = vmatpush1.msra.mxu0 0.0
        %5744 = vmatprep.subr.mxu0 0.0
        %5745 = vmatpush1.msra.mxu0 0.0
        %5746 = vmatprep.subr.mxu0 0.0
        %5747 = vmatpush1.msra.mxu0 0.0
        %5748 = vmatprep.subr.mxu0 0.0
        %5749 = vmatpush1.msra.mxu0 0.0
        %5750 = vmatprep.subr.mxu0 0.0
        %5751 = vmatpush1.msra.mxu0 0.0
        %5752 = vmatprep.subr.mxu0 0.0
        %5753 = vmatpush1.msra.mxu0 0.0
        %5754 = vmatprep.subr.mxu0 0.0
        %5755 = vmatpush1.msra.mxu0 0.0
        %5756 = vmatprep.subr.mxu0 0.0
        %5757 = vmatpush1.msra.mxu0 0.0
        %5758 = vmatprep.subr.mxu0 0.0
        %5759 = vmatpush1.msra.mxu0 0.0
        %5760 = vmatprep.subr.mxu0 0.0
        %5761 = vmatpush1.msra.mxu0 0.0
        %5762 = vmatprep.subr.mxu0 0.0
        %5763 = vmatpush1.msra.mxu0 0.0
        %5764 = vmatprep.subr.mxu0 0.0
        %5765 = vmatpush1.msra.mxu0 0.0
        %5766 = vmatprep.subr.mxu0 0.0
        %5767 = vmatpush1.msra.mxu0 0.0
        %5768 = vmatprep.subr.mxu0 0.0
        %5769 = vmatpush1.msra.mxu0 0.0
        %5770 = vmatprep.mubr.f32.mxu0 0.0
        %5771 = vmatmul.mubr.f32.gmra.mrb[0].mxu0 %v5683
        %v5772 = vpop.f32.mrb[0].mxu0
        %v5773 = vadd.f32 0.0, %v5772
        %v5774 = vpop.f32.mrb[0].mxu0
        %5775 = vmatprep.mubr.f32.mxu0 0.0
        %5776 = vmatmul.mubr.f32.gmra.mrb[0].mxu0 %v5686
        %v5777 = vpop.f32.mrb[0].mxu0
        %v5778 = vadd.f32 0.0, %v5777
        %v5779 = vpop.f32.mrb[0].mxu0
        %5780 = vmatprep.mubr.f32.mxu0 0.0
        %5781 = vmatmul.mubr.f32.gmra.mrb[0].mxu0 %v5689
        %v5782 = vpop.f32.mrb[0].mxu0
        %v5783 = vadd.f32 0.0, %v5782
        %v5784 = vpop.f32.mrb[0].mxu0
        %5785 = vmatprep.mubr.f32.mxu0 0.0
        %5786 = vmatmul.mubr.f32.gmra.mrb[0].mxu0 %v5692
        %v5787 = vpop.f32.mrb[0].mxu0
        %v5788 = vadd.f32 0.0, %v5787
        %v5789 = vpop.f32.mrb[0].mxu0
        %5790 = vmatprep.mubr.f32.mxu0 0.0
        %5791 = vmatmul.mubr.f32.gmra.mrb[0].mxu0 %v5695
        %v5792 = vpop.f32.mrb[0].mxu0
        %v5793 = vadd.f32 0.0, %v5792
        %v5794 = vpop.f32.mrb[0].mxu0
        %5795 = vmatprep.mubr.f32.mxu0 0.0
        %5796 = vmatmul.mubr.f32.gmra.mrb[0].mxu0 %v5698
        %v5797 = vpop.f32.mrb[0].mxu0
        %v5798 = vadd.f32 0.0, %v5797
        %v5799 = vpop.f32.mrb[0].mxu0
        %5800 = vmatprep.mubr.f32.mxu0 0.0
        %5801 = vmatmul.mubr.f32.gmra.mrb[0].mxu0 %v5701
        %v5802 = vpop.f32.mrb[0].mxu0
        %v5803 = vadd.f32 0.0, %v5802
        %v5804 = vpop.f32.mrb[0].mxu0
        %5805 = vmatprep.mubr.f32.mxu0 0.0
        %5806 = vmatmul.mubr.f32.gmra.mrb[0].mxu0 %v5704
        %v5807 = vpop.f32.mrb[0].mxu0
        %v5808 = vadd.f32 0.0, %v5807
        %v5809 = vpop.f32.mrb[0].mxu0
        %5810 = vdwg.mxu0
        %v5811 = vmul.f32 %v5773, %v5379
        %v5812 = vmul.f32 %v5778, %v5379
        %v5813 = vmul.f32 %v5783, %v5379
        %v5814 = vmul.f32 %v5788, %v5379
        %v5815 = vmul.f32 %v5793, %v5379
        %v5816 = vmul.f32 %v5798, %v5379
        %v5817 = vmul.f32 %v5803, %v5379
        %v5818 = vmul.f32 %v5808, %v5379
        %v5819 = vrot.slane %v5811, 4
        %v5820 = vadd.f32 %v5811, %v5819
        %v5821 = vrot.slane %v5820, 2
        %v5822 = vadd.f32 %v5820, %v5821
        %v5823 = vrot.slane %v5822, 1
        %v5824 = vadd.f32 %v5822, %v5823
        %v5825 = vrot.slane %v5812, 4
        %v5826 = vadd.f32 %v5812, %v5825
        %v5827 = vrot.slane %v5826, 2
        %v5828 = vadd.f32 %v5826, %v5827
        %v5829 = vrot.slane %v5828, 1
        %v5830 = vadd.f32 %v5828, %v5829
        %v5831 = vrot.slane %v5813, 4
        %v5832 = vadd.f32 %v5813, %v5831
        %v5833 = vrot.slane %v5832, 2
        %v5834 = vadd.f32 %v5832, %v5833
        %v5835 = vrot.slane %v5834, 1
        %v5836 = vadd.f32 %v5834, %v5835
        %v5837 = vrot.slane %v5814, 4
        %v5838 = vadd.f32 %v5814, %v5837
        %v5839 = vrot.slane %v5838, 2
        %v5840 = vadd.f32 %v5838, %v5839
        %v5841 = vrot.slane %v5840, 1
        %v5842 = vadd.f32 %v5840, %v5841
        %v5843 = vrot.slane %v5815, 4
        %v5844 = vadd.f32 %v5815, %v5843
        %v5845 = vrot.slane %v5844, 2
        %v5846 = vadd.f32 %v5844, %v5845
        %v5847 = vrot.slane %v5846, 1
        %v5848 = vadd.f32 %v5846, %v5847
        %v5849 = vrot.slane %v5816, 4
        %v5850 = vadd.f32 %v5816, %v5849
        %v5851 = vrot.slane %v5850, 2
        %v5852 = vadd.f32 %v5850, %v5851
        %v5853 = vrot.slane %v5852, 1
        %v5854 = vadd.f32 %v5852, %v5853
        %v5855 = vrot.slane %v5817, 4
        %v5856 = vadd.f32 %v5817, %v5855
        %v5857 = vrot.slane %v5856, 2
        %v5858 = vadd.f32 %v5856, %v5857
        %v5859 = vrot.slane %v5858, 1
        %v5860 = vadd.f32 %v5858, %v5859
        %v5861 = vrot.slane %v5818, 4
        %v5862 = vadd.f32 %v5818, %v5861
        %v5863 = vrot.slane %v5862, 2
        %v5864 = vadd.f32 %v5862, %v5863
        %v5865 = vrot.slane %v5864, 1
        %v5866 = vadd.f32 %v5864, %v5865
        %v5868 = vlaneseq
        %v5869 = vshrl.u32 %v5868, 7
        %v5870 = vsub.s32 0, %v5869
        %v5871 = vrot.slane %v5224, %v5870
        %v5881 = vsel %vm1715, %v5830, %v5824
        %v5882 = vsel %vm1717, %v5836, %v5881
        %v5883 = vsel %vm1719, %v5842, %v5882
        %v5884 = vsel %vm1721, %v5848, %v5883
        %v5885 = vsel %vm1723, %v5854, %v5884
        %v5886 = vsel %vm1725, %v5860, %v5885
        %v5887 = vsel %vm1727, %v5866, %v5886
        %5889 = vmatprep.subr.mxu0 0.0
        %5890 = vmatpush1.msra.mxu0 %v5207
        %5891 = vmatprep.subr.mxu0 0.0
        %5892 = vmatpush1.msra.mxu0 %v5208
        %5893 = vmatprep.subr.mxu0 0.0
        %5894 = vmatpush1.msra.mxu0 %v5209
        %5895 = vmatprep.subr.mxu0 0.0
        %5896 = vmatpush1.msra.mxu0 %v5210
        %5897 = vmatprep.subr.mxu0 0.0
        %5898 = vmatpush1.msra.mxu0 %v5211
        %5899 = vmatprep.subr.mxu0 0.0
        %5900 = vmatpush1.msra.mxu0 %v5212
        %5901 = vmatprep.subr.mxu0 0.0
        %5902 = vmatpush1.msra.mxu0 %v5213
        %5903 = vmatprep.subr.mxu0 0.0
        %5904 = vmatpush1.msra.mxu0 %v5214
        %5905 = vmatprep.subr.mxu0 0.0
        %5906 = vmatpush1.msra.mxu0 %v5215
        %5907 = vmatprep.subr.mxu0 0.0
        %5908 = vmatpush1.msra.mxu0 %v5216
        %5909 = vmatprep.subr.mxu0 0.0
        %5910 = vmatpush1.msra.mxu0 %v5217
        %5911 = vmatprep.subr.mxu0 0.0
        %5912 = vmatpush1.msra.mxu0 %v5218
        %5913 = vmatprep.subr.mxu0 0.0
        %5914 = vmatpush1.msra.mxu0 %v5219
        %5915 = vmatprep.subr.mxu0 0.0
        %5916 = vmatpush1.msra.mxu0 %v5220
        %5917 = vmatprep.subr.mxu0 0.0
        %5918 = vmatpush1.msra.mxu0 %v5221
        %5919 = vmatprep.subr.mxu0 0.0
        %5920 = vmatpush1.msra.mxu0 %v5222
        %5921 = vmatprep.subr.mxu0 0.0
        %5922 = vmatpush1.msra.mxu0 0.0
        %5923 = vmatprep.subr.mxu0 0.0
        %5924 = vmatpush1.msra.mxu0 0.0
        %5925 = vmatprep.subr.mxu0 0.0
        %5926 = vmatpush1.msra.mxu0 0.0
        %5927 = vmatprep.subr.mxu0 0.0
        %5928 = vmatpush1.msra.mxu0 0.0
        %5929 = vmatprep.subr.mxu0 0.0
        %5930 = vmatpush1.msra.mxu0 0.0
        %5931 = vmatprep.subr.mxu0 0.0
        %5932 = vmatpush1.msra.mxu0 0.0
        %5933 = vmatprep.subr.mxu0 0.0
        %5934 = vmatpush1.msra.mxu0 0.0
        %5935 = vmatprep.subr.mxu0 0.0
        %5936 = vmatpush1.msra.mxu0 0.0
        %5937 = vmatprep.subr.mxu0 0.0
        %5938 = vmatpush1.msra.mxu0 0.0
        %5939 = vmatprep.subr.mxu0 0.0
        %5940 = vmatpush1.msra.mxu0 0.0
        %5941 = vmatprep.subr.mxu0 0.0
        %5942 = vmatpush1.msra.mxu0 0.0
        %5943 = vmatprep.subr.mxu0 0.0
        %5944 = vmatpush1.msra.mxu0 0.0
        %5945 = vmatprep.subr.mxu0 0.0
        %5946 = vmatpush1.msra.mxu0 0.0
        %5947 = vmatprep.subr.mxu0 0.0
        %5948 = vmatpush1.msra.mxu0 0.0
        %5949 = vmatprep.subr.mxu0 0.0
        %5950 = vmatpush1.msra.mxu0 0.0
        %5951 = vmatprep.subr.mxu0 0.0
        %5952 = vmatpush1.msra.mxu0 0.0
        %5953 = vmatprep.mubr.f32.mxu0 0.0
        %5954 = vmatmul.mubr.f32.gmra.mrb[0].mxu0 %v5887
        %v5955 = vpop.f32.mrb[0].mxu0
        %v5956 = vadd.f32 %v5871, %v5955
        %v5957 = vpop.f32.mrb[0].mxu0
        %5958 = vdwg.mxu0
        %v5959 = vadd.f32 %v5150, %v5956
        %5960 = vadd.xlane.f32.xlu0 %v5959
        %v5961 = vpop.xlane.xlu0 %5960
        %v5962 = vmul.f32 %v5961, %v2653
        %v5963 = vsub.f32 %v5959, %v5962
        %v5964 = vmul.f32 %v5963, %v5963
        %5965 = vadd.xlane.f32.xlu0 %v5964
        %v5966 = vpop.xlane.xlu0 %5965
        %v5967 = vmul.f32 %v5966, %v2653
        %v5968 = vadd.f32 %v5967, 1e-05
        %v5969 = vrsqrt.pop %v5968
        %v5970 = vmul.f32 %v5963, %v5969
        %v5971 = vlaneseq
        %v5972 = vshrl.u32 %v5971, 7
        %v5973 = vsub.s32 0, %v5972
        %v5974 = vrot.slane %v5152, %v5973
        %v5975 = vmul.f32 %v5970, %v5974
        %v5976 = vlaneseq
        %v5977 = vshrl.u32 %v5976, 7
        %v5978 = vsub.s32 0, %v5977
        %v5979 = vrot.slane %v5154, %v5978
        %v5980 = vadd.f32 %v5975, %v5979
        %v5981 = vadd.f32 %v5980, %v1797
        %5982 = vadd.xlane.f32.xlu0 %v5981
        %v5983 = vpop.xlane.xlu0 %5982
        %v5984 = vmul.f32 %v5983, %v2653
        %v5985 = vsub.f32 %v5981, %v5984
        %v5986 = vmul.f32 %v5985, %v5985
        %5987 = vadd.xlane.f32.xlu0 %v5986
        %v5988 = vpop.xlane.xlu0 %5987
        %v5989 = vmul.f32 %v5988, %v2653
        %v5990 = vadd.f32 %v5989, 1e-05
        %v5991 = vrsqrt.pop %v5990
        %v5992 = vmul.f32 %v5985, %v5991
        %v5993 = vlaneseq
        %v5994 = vshrl.u32 %v5993, 7
        %v5995 = vsub.s32 1, %v5994
        %v5996 = vrot.slane %v5152, %v5995
        %v5997 = vmul.f32 %v5992, %v5996
        %v5998 = vlaneseq
        %v5999 = vshrl.u32 %v5998, 7
        %v6000 = vsub.s32 1, %v5999
        %v6001 = vrot.slane %v5154, %v6000
        %v6002 = vadd.f32 %v5997, %v6001
        %s6003 = scalar_lea.vmem [#allocation11], 768
        %v6004 = vld [vmem:[%s6003] sm:$0xff]
        %v6005 = vld [vmem:[%s6003 + $0x8] sm:$0xff]
        %v6006 = vld [vmem:[%s6003 + $0x10] sm:$0xff]
        %v6007 = vld [vmem:[%s6003 + $0x18] sm:$0xff]
        %v6008 = vld [vmem:[%s6003 + $0x20] sm:$0xff]
        %v6009 = vld [vmem:[%s6003 + $0x28] sm:$0xff]
        %v6010 = vld [vmem:[%s6003 + $0x30] sm:$0xff]
        %v6011 = vld [vmem:[%s6003 + $0x38] sm:$0xff]
        %v6012 = vld [vmem:[%s6003 + $0x40] sm:$0xff]
        %v6013 = vld [vmem:[%s6003 + $0x48] sm:$0xff]
        %v6014 = vld [vmem:[%s6003 + $0x50] sm:$0xff]
        %v6015 = vld [vmem:[%s6003 + $0x58] sm:$0xff]
        %v6016 = vld [vmem:[%s6003 + $0x60] sm:$0xff]
        %v6017 = vld [vmem:[%s6003 + $0x68] sm:$0xff]
        %v6018 = vld [vmem:[%s6003 + $0x70] sm:$0xff]
        %v6019 = vld [vmem:[%s6003 + $0x78] sm:$0xff]
        %v6020 = vld [vmem:[%s6003 + $0x80] sm:$0xff]
        %v6021 = vld [vmem:[%s6003 + $0x88] sm:$0xff]
        %v6022 = vld [vmem:[%s6003 + $0x90] sm:$0xff]
        %v6023 = vld [vmem:[%s6003 + $0x98] sm:$0xff]
        %v6024 = vld [vmem:[%s6003 + $0xa0] sm:$0xff]
        %v6025 = vld [vmem:[%s6003 + $0xa8] sm:$0xff]
        %v6026 = vld [vmem:[%s6003 + $0xb0] sm:$0xff]
        %v6027 = vld [vmem:[%s6003 + $0xb8] sm:$0xff]
        %v6028 = vld [vmem:[%s6003 + $0xc0] sm:$0xff]
        %v6029 = vld [vmem:[%s6003 + $0xc8] sm:$0xff]
        %v6030 = vld [vmem:[%s6003 + $0xd0] sm:$0xff]
        %v6031 = vld [vmem:[%s6003 + $0xd8] sm:$0xff]
        %v6032 = vld [vmem:[%s6003 + $0xe0] sm:$0xff]
        %v6033 = vld [vmem:[%s6003 + $0xe8] sm:$0xff]
        %v6034 = vld [vmem:[%s6003 + $0xf0] sm:$0xff]
        %v6035 = vld [vmem:[%s6003 + $0xf8] sm:$0xff]
        %s6036 = scalar_lea.vmem [#allocation13], 6
        %v6037 = vld [vmem:[%s6036] sm:$0x3]
        %v6039 = vlaneseq
        %v6040 = vshrl.u32 %v6039, 7
        %v6041 = vsub.s32 0, %v6040
        %v6042 = vrot.slane %v6037, %v6041
        %v6043 = vlaneseq
        %v6044 = vshrl.u32 %v6043, 7
        %v6045 = vsub.s32 1, %v6044
        %v6046 = vrot.slane %v6037, %v6045
        %6049 = vmatprep.subr.mxu0 %v6005
        %6050 = vmatpush1.msra.mxu0 %v6004
        %6051 = vmatprep.subr.mxu0 %v6007
        %6052 = vmatpush1.msra.mxu0 %v6006
        %6053 = vmatprep.subr.mxu0 %v6009
        %6054 = vmatpush1.msra.mxu0 %v6008
        %6055 = vmatprep.subr.mxu0 %v6011
        %6056 = vmatpush1.msra.mxu0 %v6010
        %6057 = vmatprep.subr.mxu0 %v6013
        %6058 = vmatpush1.msra.mxu0 %v6012
        %6059 = vmatprep.subr.mxu0 %v6015
        %6060 = vmatpush1.msra.mxu0 %v6014
        %6061 = vmatprep.subr.mxu0 %v6017
        %6062 = vmatpush1.msra.mxu0 %v6016
        %6063 = vmatprep.subr.mxu0 %v6019
        %6064 = vmatpush1.msra.mxu0 %v6018
        %6065 = vmatprep.subr.mxu0 %v6021
        %6066 = vmatpush1.msra.mxu0 %v6020
        %6067 = vmatprep.subr.mxu0 %v6023
        %6068 = vmatpush1.msra.mxu0 %v6022
        %6069 = vmatprep.subr.mxu0 %v6025
        %6070 = vmatpush1.msra.mxu0 %v6024
        %6071 = vmatprep.subr.mxu0 %v6027
        %6072 = vmatpush1.msra.mxu0 %v6026
        %6073 = vmatprep.subr.mxu0 %v6029
        %6074 = vmatpush1.msra.mxu0 %v6028
        %6075 = vmatprep.subr.mxu0 %v6031
        %6076 = vmatpush1.msra.mxu0 %v6030
        %6077 = vmatprep.subr.mxu0 %v6033
        %6078 = vmatpush1.msra.mxu0 %v6032
        %6079 = vmatprep.subr.mxu0 %v6035
        %6080 = vmatpush1.msra.mxu0 %v6034
        %6081 = vmatprep.subr.mxu0 0.0
        %6082 = vmatpush1.msra.mxu0 0.0
        %6083 = vmatprep.subr.mxu0 0.0
        %6084 = vmatpush1.msra.mxu0 0.0
        %6085 = vmatprep.subr.mxu0 0.0
        %6086 = vmatpush1.msra.mxu0 0.0
        %6087 = vmatprep.subr.mxu0 0.0
        %6088 = vmatpush1.msra.mxu0 0.0
        %6089 = vmatprep.subr.mxu0 0.0
        %6090 = vmatpush1.msra.mxu0 0.0
        %6091 = vmatprep.subr.mxu0 0.0
        %6092 = vmatpush1.msra.mxu0 0.0
        %6093 = vmatprep.subr.mxu0 0.0
        %6094 = vmatpush1.msra.mxu0 0.0
        %6095 = vmatprep.subr.mxu0 0.0
        %6096 = vmatpush1.msra.mxu0 0.0
        %6097 = vmatprep.subr.mxu0 0.0
        %6098 = vmatpush1.msra.mxu0 0.0
        %6099 = vmatprep.subr.mxu0 0.0
        %6100 = vmatpush1.msra.mxu0 0.0
        %6101 = vmatprep.subr.mxu0 0.0
        %6102 = vmatpush1.msra.mxu0 0.0
        %6103 = vmatprep.subr.mxu0 0.0
        %6104 = vmatpush1.msra.mxu0 0.0
        %6105 = vmatprep.subr.mxu0 0.0
        %6106 = vmatpush1.msra.mxu0 0.0
        %6107 = vmatprep.subr.mxu0 0.0
        %6108 = vmatpush1.msra.mxu0 0.0
        %6109 = vmatprep.subr.mxu0 0.0
        %6110 = vmatpush1.msra.mxu0 0.0
        %6111 = vmatprep.subr.mxu0 0.0
        %6112 = vmatpush1.msra.mxu0 0.0
        %6113 = vmatprep.mubr.f32.mxu0 0.0
        %6114 = vmatmul.mubr.f32.gmra.mrb[0].mxu0 %v6002
        %v6115 = vpop.f32.mrb[0].mxu0
        %v6116 = vadd.f32 %v6042, %v6115
        %v6117 = vpop.f32.mrb[0].mxu0
        %v6118 = vadd.f32 %v6046, %v6117
        %6119 = vdwg.mxu0
        %v6120 = vmax.f32 %v6116, 0.0
        %v6121 = vmax.f32 %v6118, 0.0
        %s6122 = scalar_lea.vmem [#allocation14], 768
        %v6123 = vld [vmem:[%s6122] sm:$0xff]
        %v6124 = vld [vmem:[%s6122 + $0x8] sm:$0xff]
        %v6125 = vld [vmem:[%s6122 + $0x10] sm:$0xff]
        %v6126 = vld [vmem:[%s6122 + $0x18] sm:$0xff]
        %v6127 = vld [vmem:[%s6122 + $0x20] sm:$0xff]
        %v6128 = vld [vmem:[%s6122 + $0x28] sm:$0xff]
        %v6129 = vld [vmem:[%s6122 + $0x30] sm:$0xff]
        %v6130 = vld [vmem:[%s6122 + $0x38] sm:$0xff]
        %v6131 = vld [vmem:[%s6122 + $0x40] sm:$0xff]
        %v6132 = vld [vmem:[%s6122 + $0x48] sm:$0xff]
        %v6133 = vld [vmem:[%s6122 + $0x50] sm:$0xff]
        %v6134 = vld [vmem:[%s6122 + $0x58] sm:$0xff]
        %v6135 = vld [vmem:[%s6122 + $0x60] sm:$0xff]
        %v6136 = vld [vmem:[%s6122 + $0x68] sm:$0xff]
        %v6137 = vld [vmem:[%s6122 + $0x70] sm:$0xff]
        %v6138 = vld [vmem:[%s6122 + $0x78] sm:$0xff]
        %v6139 = vld [vmem:[%s6122 + $0x80] sm:$0xff]
        %v6140 = vld [vmem:[%s6122 + $0x88] sm:$0xff]
        %v6141 = vld [vmem:[%s6122 + $0x90] sm:$0xff]
        %v6142 = vld [vmem:[%s6122 + $0x98] sm:$0xff]
        %v6143 = vld [vmem:[%s6122 + $0xa0] sm:$0xff]
        %v6144 = vld [vmem:[%s6122 + $0xa8] sm:$0xff]
        %v6145 = vld [vmem:[%s6122 + $0xb0] sm:$0xff]
        %v6146 = vld [vmem:[%s6122 + $0xb8] sm:$0xff]
        %v6147 = vld [vmem:[%s6122 + $0xc0] sm:$0xff]
        %v6148 = vld [vmem:[%s6122 + $0xc8] sm:$0xff]
        %v6149 = vld [vmem:[%s6122 + $0xd0] sm:$0xff]
        %v6150 = vld [vmem:[%s6122 + $0xd8] sm:$0xff]
        %v6151 = vld [vmem:[%s6122 + $0xe0] sm:$0xff]
        %v6152 = vld [vmem:[%s6122 + $0xe8] sm:$0xff]
        %v6153 = vld [vmem:[%s6122 + $0xf0] sm:$0xff]
        %v6154 = vld [vmem:[%s6122 + $0xf8] sm:$0xff]
        %s6155 = scalar_lea.vmem [#allocation16], 3
        %v6156 = vld [vmem:[%s6155] sm:$0x1]
        %v6158 = vlaneseq
        %v6159 = vshrl.u32 %v6158, 7
        %v6160 = vsub.s32 0, %v6159
        %v6161 = vrot.slane %v6156, %v6160
        %6163 = vmatprep.subr.mxu0 0.0
        %6164 = vmatpush1.msra.mxu0 %v6123
        %6165 = vmatprep.subr.mxu0 0.0
        %6166 = vmatpush1.msra.mxu0 %v6124
        %6167 = vmatprep.subr.mxu0 0.0
        %6168 = vmatpush1.msra.mxu0 %v6125
        %6169 = vmatprep.subr.mxu0 0.0
        %6170 = vmatpush1.msra.mxu0 %v6126
        %6171 = vmatprep.subr.mxu0 0.0
        %6172 = vmatpush1.msra.mxu0 %v6127
        %6173 = vmatprep.subr.mxu0 0.0
        %6174 = vmatpush1.msra.mxu0 %v6128
        %6175 = vmatprep.subr.mxu0 0.0
        %6176 = vmatpush1.msra.mxu0 %v6129
        %6177 = vmatprep.subr.mxu0 0.0
        %6178 = vmatpush1.msra.mxu0 %v6130
        %6179 = vmatprep.subr.mxu0 0.0
        %6180 = vmatpush1.msra.mxu0 %v6131
        %6181 = vmatprep.subr.mxu0 0.0
        %6182 = vmatpush1.msra.mxu0 %v6132
        %6183 = vmatprep.subr.mxu0 0.0
        %6184 = vmatpush1.msra.mxu0 %v6133
        %6185 = vmatprep.subr.mxu0 0.0
        %6186 = vmatpush1.msra.mxu0 %v6134
        %6187 = vmatprep.subr.mxu0 0.0
        %6188 = vmatpush1.msra.mxu0 %v6135
        %6189 = vmatprep.subr.mxu0 0.0
        %6190 = vmatpush1.msra.mxu0 %v6136
        %6191 = vmatprep.subr.mxu0 0.0
        %6192 = vmatpush1.msra.mxu0 %v6137
        %6193 = vmatprep.subr.mxu0 0.0
        %6194 = vmatpush1.msra.mxu0 %v6138
        %6195 = vmatprep.subr.mxu0 0.0
        %6196 = vmatpush1.msra.mxu0 %v6139
        %6197 = vmatprep.subr.mxu0 0.0
        %6198 = vmatpush1.msra.mxu0 %v6140
        %6199 = vmatprep.subr.mxu0 0.0
        %6200 = vmatpush1.msra.mxu0 %v6141
        %6201 = vmatprep.subr.mxu0 0.0
        %6202 = vmatpush1.msra.mxu0 %v6142
        %6203 = vmatprep.subr.mxu0 0.0
        %6204 = vmatpush1.msra.mxu0 %v6143
        %6205 = vmatprep.subr.mxu0 0.0
        %6206 = vmatpush1.msra.mxu0 %v6144
        %6207 = vmatprep.subr.mxu0 0.0
        %6208 = vmatpush1.msra.mxu0 %v6145
        %6209 = vmatprep.subr.mxu0 0.0
        %6210 = vmatpush1.msra.mxu0 %v6146
        %6211 = vmatprep.subr.mxu0 0.0
        %6212 = vmatpush1.msra.mxu0 %v6147
        %6213 = vmatprep.subr.mxu0 0.0
        %6214 = vmatpush1.msra.mxu0 %v6148
        %6215 = vmatprep.subr.mxu0 0.0
        %6216 = vmatpush1.msra.mxu0 %v6149
        %6217 = vmatprep.subr.mxu0 0.0
        %6218 = vmatpush1.msra.mxu0 %v6150
        %6219 = vmatprep.subr.mxu0 0.0
        %6220 = vmatpush1.msra.mxu0 %v6151
        %6221 = vmatprep.subr.mxu0 0.0
        %6222 = vmatpush1.msra.mxu0 %v6152
        %6223 = vmatprep.subr.mxu0 0.0
        %6224 = vmatpush1.msra.mxu0 %v6153
        %6225 = vmatprep.subr.mxu0 0.0
        %6226 = vmatpush1.msra.mxu0 %v6154
        %6227 = vmatprep.mubr.f32.mxu0 %v6121
        %6228 = vmatmul.mubr.f32.gmra.mrb[0].mxu0 %v6120
        %v6229 = vpop.f32.mrb[0].mxu0
        %v6230 = vadd.f32 %v6161, %v6229
        %v6231 = vpop.f32.mrb[0].mxu0
        %6232 = vdwg.mxu0
        %v6233 = vadd.f32 %v6002, %v6230
        %6234 = vadd.xlane.f32.xlu0 %v6233
        %v6235 = vpop.xlane.xlu0 %6234
        %v6236 = vmul.f32 %v6235, %v2653
        %v6237 = vsub.f32 %v6233, %v6236
        %v6238 = vmul.f32 %v6237, %v6237
        %6239 = vadd.xlane.f32.xlu0 %v6238
        %v6240 = vpop.xlane.xlu0 %6239
        %v6241 = vmul.f32 %v6240, %v2653
        %v6242 = vadd.f32 %v6241, 1e-05
        %v6243 = vrsqrt.pop %v6242
        %v6244 = vmul.f32 %v6237, %v6243
        %v6245 = vlaneseq
        %v6246 = vshrl.u32 %v6245, 7
        %v6247 = vsub.s32 2, %v6246
        %v6248 = vrot.slane %v5152, %v6247
        %v6249 = vmul.f32 %v6244, %v6248
        %v6250 = vlaneseq
        %v6251 = vshrl.u32 %v6250, 7
        %v6252 = vsub.s32 2, %v6251
        %v6253 = vrot.slane %v5154, %v6252
        %v6254 = vadd.f32 %v6249, %v6253
        %6255 = vst [vmem:[%s738] sm:$0xff] %v6254
        %s6256 = sand.u32 %s443, 1
        %s6257 = scalar_lea.sflag [#allocation4], %s6256
        %s6258 = sand.u32 %s443, 1
        %s6259 = smul.addr %s6258, 8
        %s6260 = scalar_lea.vmem [#allocation17], %s6259
        // Predicated region
        $region129: #{transformer_encoder.1} parent=91 // pred_check
          %p6261 = pneg %p453
        $region130: #{transformer_encoder.1} parent=91 // pred_check_branch
          %6263 = sbr.rel (%p6261) target = $region132
        $region131: #{transformer_encoder.1} parent=91 // pred_region
          %s6265 = ssub.s32 128, 128
          %6266 = vsyncadd %s6257, %s6265
          %s6267 = smul.addr %s37, 128
          %s6268 = scalar_lea.hbm %s18, %s6267
          %s6270 = sshll.u32 %s6260, 4
          %s6271 = int_to_ptr.vmem [resolvable:$true] %s6270
          %6273 = dma.vmem_to_hbm [thread:$0]  %s6271, 128, %s6268, %s6257
        $region132: #{transformer_encoder.1} parent=91 // pred_fallthru
          _
      $region92: #{transformer_encoder.1} parent=5 // pred_fallthru
        _
      %p6274 = scmp.le.s32.totalorder 2, %s32
      // Predicated region
      $region133: #{transformer_encoder.1} parent=5 // pred_check
        %p6275 = pneg %p6274
      $region134: #{transformer_encoder.1} parent=5 // pred_check_branch
        %6277 = sbr.rel (%p6275) target = $region136
      $region135: #{transformer_encoder.1} parent=5 // pred_region
        %s6278 = ssub.s32 %s32, 2
        // Predicated region
        $region137: #{transformer_encoder.1} parent=135 // pred_check
          %p6279 = pneg %p459
        $region138: #{transformer_encoder.1} parent=135 // pred_check_branch
          %6281 = sbr.rel (%p6279) target = $region140
        $region139: #{transformer_encoder.1} parent=135 // pred_region
          %s6282 = sand.u32 %s444, 1
          %s6283 = scalar_lea.sflag [#allocation4], %s6282
          %s6284 = sand.u32 %s444, 1
          %s6285 = smul.addr %s6284, 8
          %s6286 = scalar_lea.vmem [#allocation17], %s6285
          %6287 = dma.done %s6283, 128
        $region140: #{transformer_encoder.1} parent=135 // pred_fallthru
          _
      $region136: #{transformer_encoder.1} parent=5 // pred_fallthru
        _
    $region6: #{transformer_encoder.1} parent=1 // loop_footer
      %s36 = sadd.s32 1, %s32
    $region7: #{transformer_encoder.1} parent=1 // loop_footer_branch
      %31 = sbr.rel target = $region3
    $region8: #{transformer_encoder.1} parent=1 // loop_exit
      _
    %6288 = vsyncpa [#allocation3], 1
    %s6289 = scalar_lea.sflag [#allocation3], 1
    %6290 = vsyncpa %s6289, 1
    %6291 = vsyncpa [#allocation6], 1
    %6292 = vsyncpa [#allocation9], 1
    %6293 = vsyncpa [#allocation12], 1
    %6294 = vsyncpa [#allocation15], 1
    %6295 = vsyncpa [#allocation4], 1
    %s6296 = scalar_lea.sflag [#allocation4], 1
    %6297 = vsyncpa %s6296, 1

</llo_original>
